<compile_context>
chip_gen: v6e
topology: v6e:2x2x1
jax: 0.10.0
libtpu: 0.0.40
codegen_flags: <defaults>
</compile_context>

<pallas_src>
import math
from functools import partial

import jax
import jax.numpy as jnp
from jax.experimental import pallas as pl
from jax.experimental.pallas import tpu as pltpu


# ----------------------------------------------------------------------------
# Fused Pallas kernel (factory closes over the static config)
# ----------------------------------------------------------------------------
def make_fused_kernel(*, num_layers, n_dirs, seq_len, batch, hidden):
    T, B, H = seq_len, batch, hidden
    G = 3 * n_dirs  # gate-direction columns: [r_f z_f n_f (r_b z_b n_b)]

    def kernel(*refs):
        # inputs: x2d, then per layer (wih, gxb, whh, bhn), then gamma, beta, fcw, fcb
        n_in = 1 + 4 * num_layers + 4
        x_ref = refs[0]
        layer_refs = [refs[1 + 4 * l: 1 + 4 * (l + 1)] for l in range(num_layers)]
        gamma_ref, beta_ref, fcw_ref, fcb_ref = refs[1 + 4 * num_layers: n_in]
        o_ref = refs[n_in]
        of_s, ob_s = refs[n_in + 1], refs[n_in + 2]   # (T*B, H) per-direction layer outputs

        def cell(gx_r, gx_z, gx_n, h, w_r, w_z, w_n, b_n):
            # gx_* already contain b_ih (and b_hh for r,z); b_n is b_hh_n (scaled by r).
            r = jax.nn.sigmoid(gx_r + jnp.dot(h, w_r, preferred_element_type=jnp.float32))
            z = jax.nn.sigmoid(gx_z + jnp.dot(h, w_z, preferred_element_type=jnp.float32))
            n = jnp.tanh(gx_n + r * (jnp.dot(h, w_n, preferred_element_type=jnp.float32) + b_n))
            return (1.0 - z) * n + z * h

        feat_f = None
        feat_b = None
        for l in range(num_layers):
            wih_ref, gxb_ref, whh_ref, bhn_ref = layer_refs[l]
            last = (l == num_layers - 1)

            # ---- hoisted input projection: all timesteps, both directions, in 1-2 matmuls ----
            if l == 0:
                gx_all = jnp.dot(x_ref[...], wih_ref[...],
                                 preferred_element_type=jnp.float32)          # (T*B, G*H)
            else:
                w = wih_ref[...]                                              # (n_dirs*H, G*H)
                gx_all = jnp.dot(of_s[...], w[:H, :],
                                 preferred_element_type=jnp.float32)
                if n_dirs == 2:
                    gx_all = gx_all + jnp.dot(ob_s[...], w[H:, :],
                                              preferred_element_type=jnp.float32)
            gx_all = gx_all + gxb_ref[...]        # fold b_ih (all gates) + b_hh (r, z)

            # Gate split once, outside the serial recurrence (static lane slices).
            gx = [gx_all[:, g * H:(g + 1) * H] for g in range(G)]             # each (T*B, H)
            whh = [whh_ref[g] for g in range(G)]                              # each (H, H)
            bhn_f = bhn_ref[0]                                                # (1, H)
            bhn_b = bhn_ref[1] if n_dirs == 2 else None

            h_f = jnp.zeros((B, H), jnp.float32)
            h_b = jnp.zeros((B, H), jnp.float32)

            # ---- recurrence: fully unrolled; fwd handles time t, bwd handles time T-1-t ----
            for t in range(T):
                h_f = cell(gx[0][t * B:(t + 1) * B], gx[1][t * B:(t + 1) * B],
                           gx[2][t * B:(t + 1) * B], h_f,
                           whh[0], whh[1], whh[2], bhn_f)
                if not last:
                    of_s[t * B:(t + 1) * B, :] = h_f
                if n_dirs == 2:
                    tb = T - 1 - t
                    h_b = cell(gx[3][tb * B:(tb + 1) * B], gx[4][tb * B:(tb + 1) * B],
                               gx[5][tb * B:(tb + 1) * B], h_b,
                               whh[3], whh[4], whh[5], bhn_b)
                    if not last:
                        ob_s[tb * B:(tb + 1) * B, :] = h_b
                    if last and t == 0:
                        feat_b = h_b          # bwd output at time T-1 (its first step)
            feat_f = h_f                      # fwd output at time T-1

        # ---- head: BatchNorm1d (training-mode batch stats) -> ReLU -> Linear, per half ----
        gamma, beta = gamma_ref[...], beta_ref[...]          # (1, F)
        fcw, fcb = fcw_ref[...], fcb_ref[...]                # (F, C), (1, C)

        def bn_relu(v, g, b):
            mean = jnp.mean(v, axis=0, keepdims=True)
            var = jnp.mean((v - mean) ** 2, axis=0, keepdims=True)   # biased, PyTorch train mode
            y = (v - mean) * jax.lax.rsqrt(var + 1e-5) * g + b
            return jnp.maximum(y, 0.0)

        if n_dirs == 2:
            yf = bn_relu(feat_f, gamma[:, :H], beta[:, :H])
            yb = bn_relu(feat_b, gamma[:, H:], beta[:, H:])
            logits = (jnp.dot(yf, fcw[:H, :], preferred_element_type=jnp.float32)
                      + jnp.dot(yb, fcw[H:, :], preferred_element_type=jnp.float32) + fcb)
        else:
            y = bn_relu(feat_f, gamma, beta)
            logits = jnp.dot(y, fcw, preferred_element_type=jnp.float32) + fcb
        o_ref[...] = logits

    return kernel


# ----------------------------------------------------------------------------
# Wrapper
# ----------------------------------------------------------------------------
def seq_classifier_forward(token_ids, packed, *, hidden, num_layers, bidirectional, num_class):
    """token_ids: (B, T) int32 -> logits (B, num_class) float32, one fused pallas_call."""
    B, T = token_ids.shape
    n_dirs = 2 if bidirectional else 1

    # Embedding gather directly into flattened time-major layout (row = t*B + b):
    # no (B,T,E)->(T,B,E) transpose, no extra HBM roundtrip of the embedded sequence.
    x2d = jnp.take(packed["embedding"], token_ids.T.reshape(-1), axis=0)   # (T*B, E)

    args = [x2d]
    for lp in packed["layers"]:
        args += [lp["wih"], lp["gxb"], lp["whh"], lp["bhn"]]
    args += [packed["gamma"], packed["beta"], packed["fcw"], packed["fcb"]]

    kernel = make_fused_kernel(num_layers=num_layers, n_dirs=n_dirs,
                               seq_len=T, batch=B, hidden=hidden)
    vmem = pl.BlockSpec(memory_space=pltpu.MemorySpace.VMEM)
    return pl.pallas_call(
        kernel,
        out_shape=jax.ShapeDtypeStruct((B, num_class), jnp.float32),
        in_specs=[vmem] * len(args),
        out_specs=vmem,
        scratch_shapes=[pltpu.VMEM((T * B, hidden), jnp.float32),   # fwd outputs of a layer
                        pltpu.VMEM((T * B, hidden), jnp.float32)],  # bwd outputs of a layer
    )(*args)


# ----------------------------------------------------------------------------
# Parameter init (raw PyTorch layout) and packing for the kernel
# ----------------------------------------------------------------------------
def init_params(key, vocab, emb_dim, hidden, num_layers, bidirectional, num_class):
    n_dirs = 2 if bidirectional else 1
    keys = iter(jax.random.split(key, 3 + 4 * num_layers * n_dirs))
    params = {"embedding": 0.1 * jax.random.normal(next(keys), (vocab, emb_dim), jnp.float32)}

    k = 1.0 / math.sqrt(hidden)
    gru = []
    for layer in range(num_layers):
        in_dim = emb_dim if layer == 0 else hidden * n_dirs
        dirs = []
        for _ in range(n_dirs):
            dirs.append(dict(
                wih=jax.random.uniform(next(keys), (3 * hidden, in_dim), jnp.float32, -k, k),
                whh=jax.random.uniform(next(keys), (3 * hidden, hidden), jnp.float32, -k, k),
                bih=jax.random.uniform(next(keys), (3 * hidden,), jnp.float32, -k, k),
                bhh=jax.random.uniform(next(keys), (3 * hidden,), jnp.float32, -k, k)))
        gru.append(dirs)
    params["gru"] = gru

    F = hidden * n_dirs
    kf = 1.0 / math.sqrt(F)
    params["gamma"] = jnp.ones((F,), jnp.float32)
    params["beta"] = jnp.zeros((F,), jnp.float32)
    params["fc_w"] = jax.random.uniform(next(keys), (num_class, F), jnp.float32, -kf, kf)
    params["fc_b"] = jax.random.uniform(next(keys), (num_class,), jnp.float32, -kf, kf)
    return params


def pack_params(raw, hidden, bidirectional):
    """Repack PyTorch-layout weights into the fused-kernel layout."""
    H = hidden
    n_dirs = 2 if bidirectional else 1
    layers = []
    for layer in raw["gru"]:
        wih_cols, gxb_cols, whh_mats, bhn_rows = [], [], [], []
        for d in range(n_dirs):
            p = layer[d]
            wih, whh, bih, bhh = p["wih"], p["whh"], p["bih"], p["bhh"]
            wih_cols.append(wih.T)                                   # (E_in, 3H) cols [r|z|n]
            gxb_cols.append(jnp.concatenate(
                [bih[:H] + bhh[:H], bih[H:2 * H] + bhh[H:2 * H], bih[2 * H:]]))
            for g in range(3):
                whh_mats.append(whh[g * H:(g + 1) * H, :].T)         # (H, H), h @ W_hh_g^T
            bhn_rows.append(bhh[2 * H:][None, :])                    # (1, H)
        layers.append(dict(
            wih=jnp.concatenate(wih_cols, axis=1),                   # (E_in, 3*n_dirs*H)
            gxb=jnp.concatenate(gxb_cols)[None, :],                  # (1,   3*n_dirs*H)
            whh=jnp.stack(whh_mats, axis=0),                         # (3*n_dirs, H, H)
            bhn=jnp.stack(bhn_rows, axis=0)))                        # (n_dirs, 1, H)
    return dict(embedding=raw["embedding"], layers=layers,
                gamma=raw["gamma"][None, :], beta=raw["beta"][None, :],
                fcw=raw["fc_w"].T, fcb=raw["fc_b"][None, :])


# ----------------------------------------------------------------------------
# Pure-JAX reference (PyTorch-layout weights) for correctness checking
# ----------------------------------------------------------------------------
def _ref_gru_dir(x_tm, p, reverse):
    H = p["whh"].shape[1]
    seq = x_tm[::-1] if reverse else x_tm

    def step(h, x_t):
        gx = x_t @ p["wih"].T + p["bih"]
        gh = h @ p["whh"].T + p["bhh"]
        r = jax.nn.sigmoid(gx[:, :H] + gh[:, :H])
        z = jax.nn.sigmoid(gx[:, H:2 * H] + gh[:, H:2 * H])
        n = jnp.tanh(gx[:, 2 * H:] + r * gh[:, 2 * H:])
        h_new = (1.0 - z) * n + z * h
        return h_new, h_new

    h0 = jnp.zeros((x_tm.shape[1], H), jnp.float32)
    _, outs = jax.lax.scan(step, h0, seq)
    return outs[::-1] if reverse else outs


def _ref_forward(token_ids, params, bidirectional):
    emb = params["embedding"][token_ids]
    x = jnp.transpose(emb, (1, 0, 2))
    for layer_p in params["gru"]:
        out_f = _ref_gru_dir(x, layer_p[0], reverse=False)
        if bidirectional:
            out_b = _ref_gru_dir(x, layer_p[1], reverse=True)
            x = jnp.concatenate([out_f, out_b], axis=-1)
        else:
            x = out_f
    feat = x[-1]
    mean = jnp.mean(feat, axis=0, keepdims=True)
    var = jnp.mean((feat - mean) ** 2, axis=0, keepdims=True)
    y = (feat - mean) / jnp.sqrt(var + 1e-5) * params["gamma"][None, :] + params["beta"][None, :]
    y = jnp.maximum(y, 0.0)
    return y @ params["fc_w"].T + params["fc_b"][None, :]


# ----------------------------------------------------------------------------
def _run_case(seed, vocab, emb_dim, hidden, num_layers, bidirectional, num_class, B, T):
    key = jax.random.PRNGKey(seed)
    k_tok, k_par = jax.random.split(key)
    raw = init_params(k_par, vocab, emb_dim, hidden, num_layers, bidirectional, num_class)
    packed = pack_params(raw, hidden, bidirectional)
    token_ids = jax.random.randint(k_tok, (B, T), 0, vocab, dtype=jnp.int32)

    fwd = jax.jit(partial(seq_classifier_forward, hidden=hidden, num_layers=num_layers,
                          bidirectional=bidirectional, num_class=num_class))
    logits = jax.block_until_ready(fwd(token_ids, packed))
    ref = jax.block_until_ready(_ref_forward(token_ids, raw, bidirectional))

    assert logits.shape == (B, num_class)
    assert bool(jnp.all(jnp.isfinite(logits)))
    # f32 throughout; small slack for differing matmul/bias-fold arithmetic order + BN rescale.
    assert jnp.allclose(logits, ref, atol=2e-3, rtol=2e-3), (logits, ref)


if __name__ == "__main__":
    # Main config, consistent with the module: 2-layer bidirectional GRU, hidden=32.
    _run_case(seed=0, vocab=50, emb_dim=32, hidden=32,
              num_layers=2, bidirectional=True, num_class=6, B=2, T=8)
    # Also exercise the unidirectional / single-layer path.
    _run_case(seed=1, vocab=50, emb_dim=32, hidden=32,
              num_layers=1, bidirectional=False, num_class=6, B=2, T=8)
    print("KERNEL_OK")
</pallas_src>

<mosaic_0001>
module attributes {stable_mosaic.version = 11 : i64} {
  func.func @kernel(%arg0: memref<16x32xf32, #tpu.memory_space<vmem>>, %arg1: memref<32x192xf32, #tpu.memory_space<vmem>>, %arg2: memref<1x192xf32, #tpu.memory_space<vmem>>, %arg3: memref<6x32x32xf32, #tpu.memory_space<vmem>>, %arg4: memref<2x1x32xf32, #tpu.memory_space<vmem>>, %arg5: memref<64x192xf32, #tpu.memory_space<vmem>>, %arg6: memref<1x192xf32, #tpu.memory_space<vmem>>, %arg7: memref<6x32x32xf32, #tpu.memory_space<vmem>>, %arg8: memref<2x1x32xf32, #tpu.memory_space<vmem>>, %arg9: memref<1x64xf32, #tpu.memory_space<vmem>>, %arg10: memref<1x64xf32, #tpu.memory_space<vmem>>, %arg11: memref<64x6xf32, #tpu.memory_space<vmem>>, %arg12: memref<1x6xf32, #tpu.memory_space<vmem>>, %arg13: memref<2x6xf32, #tpu.memory_space<vmem>>, %arg14: memref<16x32xf32, #tpu.memory_space<vmem>>, %arg15: memref<16x32xf32, #tpu.memory_space<vmem>>) attributes {dimension_semantics = [], scalar_prefetch = 0 : i64, scratch_operands = 2 : i64, tpu.core_type = #tpu.core_type<tc>} {
    %c0 = arith.constant 0 : index
    %c0_0 = arith.constant 0 : index
    %0 = vector.load %arg0[%c0, %c0_0] : memref<16x32xf32, #tpu.memory_space<vmem>>, vector<16x32xf32>
    %c0_1 = arith.constant 0 : index
    %c0_2 = arith.constant 0 : index
    %1 = vector.load %arg1[%c0_1, %c0_2] : memref<32x192xf32, #tpu.memory_space<vmem>>, vector<32x192xf32>
    %cst = arith.constant dense<0.000000e+00> : vector<16x192xf32>
    %2 = tpu.matmul %0, %1, %cst {dimension_numbers = #tpu.dot_dimension_numbers<[1], [0], [0], [1], [0, 0, 1, 1], [], []>} : vector<16x32xf32>, vector<32x192xf32>, vector<16x192xf32> -> vector<16x192xf32>
    %c0_3 = arith.constant 0 : index
    %c0_4 = arith.constant 0 : index
    %3 = vector.load %arg2[%c0_3, %c0_4] : memref<1x192xf32, #tpu.memory_space<vmem>>, vector<1x192xf32>
    %4 = vector.broadcast %3 : vector<1x192xf32> to vector<16x192xf32>
    %5 = arith.addf %2, %4 : vector<16x192xf32>
    %6 = vector.extract_strided_slice %5 {offsets = [0, 0], sizes = [16, 32], strides = [1, 1]} : vector<16x192xf32> to vector<16x32xf32>
    %7 = vector.extract_strided_slice %5 {offsets = [0, 32], sizes = [16, 32], strides = [1, 1]} : vector<16x192xf32> to vector<16x32xf32>
    %8 = vector.extract_strided_slice %5 {offsets = [0, 64], sizes = [16, 32], strides = [1, 1]} : vector<16x192xf32> to vector<16x32xf32>
    %9 = vector.extract_strided_slice %5 {offsets = [0, 96], sizes = [16, 32], strides = [1, 1]} : vector<16x192xf32> to vector<16x32xf32>
    %10 = vector.extract_strided_slice %5 {offsets = [0, 128], sizes = [16, 32], strides = [1, 1]} : vector<16x192xf32> to vector<16x32xf32>
    %11 = vector.extract_strided_slice %5 {offsets = [0, 160], sizes = [16, 32], strides = [1, 1]} : vector<16x192xf32> to vector<16x32xf32>
    %c0_5 = arith.constant 0 : index
    %c0_6 = arith.constant 0 : index
    %c0_7 = arith.constant 0 : index
    %12 = vector.load %arg3[%c0_5, %c0_6, %c0_7] : memref<6x32x32xf32, #tpu.memory_space<vmem>>, vector<1x32x32xf32>
    %13 = vector.shape_cast %12 : vector<1x32x32xf32> to vector<32x32xf32>
    %c1 = arith.constant 1 : index
    %c0_8 = arith.constant 0 : index
    %c0_9 = arith.constant 0 : index
    %14 = vector.load %arg3[%c1, %c0_8, %c0_9] : memref<6x32x32xf32, #tpu.memory_space<vmem>>, vector<1x32x32xf32>
    %15 = vector.shape_cast %14 : vector<1x32x32xf32> to vector<32x32xf32>
    %c2 = arith.constant 2 : index
    %c0_10 = arith.constant 0 : index
    %c0_11 = arith.constant 0 : index
    %16 = vector.load %arg3[%c2, %c0_10, %c0_11] : memref<6x32x32xf32, #tpu.memory_space<vmem>>, vector<1x32x32xf32>
    %17 = vector.shape_cast %16 : vector<1x32x32xf32> to vector<32x32xf32>
    %c3 = arith.constant 3 : index
    %c0_12 = arith.constant 0 : index
    %c0_13 = arith.constant 0 : index
    %18 = vector.load %arg3[%c3, %c0_12, %c0_13] : memref<6x32x32xf32, #tpu.memory_space<vmem>>, vector<1x32x32xf32>
    %19 = vector.shape_cast %18 : vector<1x32x32xf32> to vector<32x32xf32>
    %c4 = arith.constant 4 : index
    %c0_14 = arith.constant 0 : index
    %c0_15 = arith.constant 0 : index
    %20 = vector.load %arg3[%c4, %c0_14, %c0_15] : memref<6x32x32xf32, #tpu.memory_space<vmem>>, vector<1x32x32xf32>
    %21 = vector.shape_cast %20 : vector<1x32x32xf32> to vector<32x32xf32>
    %c5 = arith.constant 5 : index
    %c0_16 = arith.constant 0 : index
    %c0_17 = arith.constant 0 : index
    %22 = vector.load %arg3[%c5, %c0_16, %c0_17] : memref<6x32x32xf32, #tpu.memory_space<vmem>>, vector<1x32x32xf32>
    %23 = vector.shape_cast %22 : vector<1x32x32xf32> to vector<32x32xf32>
    %c0_18 = arith.constant 0 : index
    %c0_19 = arith.constant 0 : index
    %c0_20 = arith.constant 0 : index
    %24 = vector.load %arg4[%c0_18, %c0_19, %c0_20] : memref<2x1x32xf32, #tpu.memory_space<vmem>>, vector<1x1x32xf32>
    %25 = vector.shape_cast %24 : vector<1x1x32xf32> to vector<1x32xf32>
    %c1_21 = arith.constant 1 : index
    %c0_22 = arith.constant 0 : index
    %c0_23 = arith.constant 0 : index
    %26 = vector.load %arg4[%c1_21, %c0_22, %c0_23] : memref<2x1x32xf32, #tpu.memory_space<vmem>>, vector<1x1x32xf32>
    %27 = vector.shape_cast %26 : vector<1x1x32xf32> to vector<1x32xf32>
    %cst_24 = arith.constant 0.000000e+00 : f32
    %28 = vector.broadcast %cst_24 : f32 to vector<2x32xf32>
    %cst_25 = arith.constant 0.000000e+00 : f32
    %29 = vector.broadcast %cst_25 : f32 to vector<2x32xf32>
    %30 = vector.extract_strided_slice %6 {offsets = [0, 0], sizes = [2, 32], strides = [1, 1]} : vector<16x32xf32> to vector<2x32xf32>
    %31 = vector.extract_strided_slice %7 {offsets = [0, 0], sizes = [2, 32], strides = [1, 1]} : vector<16x32xf32> to vector<2x32xf32>
    %32 = vector.extract_strided_slice %8 {offsets = [0, 0], sizes = [2, 32], strides = [1, 1]} : vector<16x32xf32> to vector<2x32xf32>
    %cst_26 = arith.constant dense<0.000000e+00> : vector<2x32xf32>
    %33 = tpu.matmul %28, %13, %cst_26 {dimension_numbers = #tpu.dot_dimension_numbers<[1], [0], [0], [1], [0, 0, 1, 1], [], []>} : vector<2x32xf32>, vector<32x32xf32>, vector<2x32xf32> -> vector<2x32xf32>
    %34 = arith.addf %30, %33 : vector<2x32xf32>
    %35 = arith.negf %34 : vector<2x32xf32>
    %36 = math.exp %35 : vector<2x32xf32>
    %cst_27 = arith.constant 1.000000e+00 : f32
    %37 = vector.broadcast %cst_27 : f32 to vector<2x32xf32>
    %38 = arith.addf %37, %36 : vector<2x32xf32>
    %39 = arith.divf %37, %38 : vector<2x32xf32>
    %cst_28 = arith.constant dense<0.000000e+00> : vector<2x32xf32>
    %40 = tpu.matmul %28, %15, %cst_28 {dimension_numbers = #tpu.dot_dimension_numbers<[1], [0], [0], [1], [0, 0, 1, 1], [], []>} : vector<2x32xf32>, vector<32x32xf32>, vector<2x32xf32> -> vector<2x32xf32>
    %41 = arith.addf %31, %40 : vector<2x32xf32>
    %42 = arith.negf %41 : vector<2x32xf32>
    %43 = math.exp %42 : vector<2x32xf32>
    %cst_29 = arith.constant 1.000000e+00 : f32
    %44 = vector.broadcast %cst_29 : f32 to vector<2x32xf32>
    %45 = arith.addf %44, %43 : vector<2x32xf32>
    %46 = arith.divf %44, %45 : vector<2x32xf32>
    %cst_30 = arith.constant dense<0.000000e+00> : vector<2x32xf32>
    %47 = tpu.matmul %28, %17, %cst_30 {dimension_numbers = #tpu.dot_dimension_numbers<[1], [0], [0], [1], [0, 0, 1, 1], [], []>} : vector<2x32xf32>, vector<32x32xf32>, vector<2x32xf32> -> vector<2x32xf32>
    %48 = vector.broadcast %25 : vector<1x32xf32> to vector<2x32xf32>
    %49 = arith.addf %47, %48 : vector<2x32xf32>
    %50 = arith.mulf %39, %49 : vector<2x32xf32>
    %51 = arith.addf %32, %50 : vector<2x32xf32>
    %52 = math.tanh %51 : vector<2x32xf32>
    %cst_31 = arith.constant 1.000000e+00 : f32
    %53 = vector.broadcast %cst_31 : f32 to vector<2x32xf32>
    %54 = arith.subf %53, %46 : vector<2x32xf32>
    %55 = arith.mulf %54, %52 : vector<2x32xf32>
    %56 = arith.mulf %46, %28 : vector<2x32xf32>
    %57 = arith.addf %55, %56 : vector<2x32xf32>
    %c0_32 = arith.constant 0 : index
    %c0_33 = arith.constant 0 : index
    %58 = vector.load %arg14[%c0_32, %c0_33] : memref<16x32xf32, #tpu.memory_space<vmem>>, vector<2x32xf32>
    tpu.vector_store %arg14[%c0_32, %c0_33], %57 {strides = array<i32>} : memref<16x32xf32, #tpu.memory_space<vmem>>, vector<2x32xf32>,
    %59 = vector.extract_strided_slice %9 {offsets = [14, 0], sizes = [2, 32], strides = [1, 1]} : vector<16x32xf32> to vector<2x32xf32>
    %60 = vector.extract_strided_slice %10 {offsets = [14, 0], sizes = [2, 32], strides = [1, 1]} : vector<16x32xf32> to vector<2x32xf32>
    %61 = vector.extract_strided_slice %11 {offsets = [14, 0], sizes = [2, 32], strides = [1, 1]} : vector<16x32xf32> to vector<2x32xf32>
    %cst_34 = arith.constant dense<0.000000e+00> : vector<2x32xf32>
    %62 = tpu.matmul %29, %19, %cst_34 {dimension_numbers = #tpu.dot_dimension_numbers<[1], [0], [0], [1], [0, 0, 1, 1], [], []>} : vector<2x32xf32>, vector<32x32xf32>, vector<2x32xf32> -> vector<2x32xf32>
    %63 = arith.addf %59, %62 : vector<2x32xf32>
    %64 = arith.negf %63 : vector<2x32xf32>
    %65 = math.exp %64 : vector<2x32xf32>
    %cst_35 = arith.constant 1.000000e+00 : f32
    %66 = vector.broadcast %cst_35 : f32 to vector<2x32xf32>
    %67 = arith.addf %66, %65 : vector<2x32xf32>
    %68 = arith.divf %66, %67 : vector<2x32xf32>
    %cst_36 = arith.constant dense<0.000000e+00> : vector<2x32xf32>
    %69 = tpu.matmul %29, %21, %cst_36 {dimension_numbers = #tpu.dot_dimension_numbers<[1], [0], [0], [1], [0, 0, 1, 1], [], []>} : vector<2x32xf32>, vector<32x32xf32>, vector<2x32xf32> -> vector<2x32xf32>
    %70 = arith.addf %60, %69 : vector<2x32xf32>
    %71 = arith.negf %70 : vector<2x32xf32>
    %72 = math.exp %71 : vector<2x32xf32>
    %cst_37 = arith.constant 1.000000e+00 : f32
    %73 = vector.broadcast %cst_37 : f32 to vector<2x32xf32>
    %74 = arith.addf %73, %72 : vector<2x32xf32>
    %75 = arith.divf %73, %74 : vector<2x32xf32>
    %cst_38 = arith.constant dense<0.000000e+00> : vector<2x32xf32>
    %76 = tpu.matmul %29, %23, %cst_38 {dimension_numbers = #tpu.dot_dimension_numbers<[1], [0], [0], [1], [0, 0, 1, 1], [], []>} : vector<2x32xf32>, vector<32x32xf32>, vector<2x32xf32> -> vector<2x32xf32>
    %77 = vector.broadcast %27 : vector<1x32xf32> to vector<2x32xf32>
    %78 = arith.addf %76, %77 : vector<2x32xf32>
    %79 = arith.mulf %68, %78 : vector<2x32xf32>
    %80 = arith.addf %61, %79 : vector<2x32xf32>
    %81 = math.tanh %80 : vector<2x32xf32>
    %cst_39 = arith.constant 1.000000e+00 : f32
    %82 = vector.broadcast %cst_39 : f32 to vector<2x32xf32>
    %83 = arith.subf %82, %75 : vector<2x32xf32>
    %84 = arith.mulf %83, %81 : vector<2x32xf32>
    %85 = arith.mulf %75, %29 : vector<2x32xf32>
    %86 = arith.addf %84, %85 : vector<2x32xf32>
    %c14 = arith.constant 14 : index
    %c0_40 = arith.constant 0 : index
    %87 = vector.load %arg15[%c14, %c0_40] : memref<16x32xf32, #tpu.memory_space<vmem>>, vector<2x32xf32>
    tpu.vector_store %arg15[%c14, %c0_40], %86 {strides = array<i32>} : memref<16x32xf32, #tpu.memory_space<vmem>>, vector<2x32xf32>,
    %88 = vector.extract_strided_slice %6 {offsets = [2, 0], sizes = [2, 32], strides = [1, 1]} : vector<16x32xf32> to vector<2x32xf32>
    %89 = vector.extract_strided_slice %7 {offsets = [2, 0], sizes = [2, 32], strides = [1, 1]} : vector<16x32xf32> to vector<2x32xf32>
    %90 = vector.extract_strided_slice %8 {offsets = [2, 0], sizes = [2, 32], strides = [1, 1]} : vector<16x32xf32> to vector<2x32xf32>
    %cst_41 = arith.constant dense<0.000000e+00> : vector<2x32xf32>
    %91 = tpu.matmul %57, %13, %cst_41 {dimension_numbers = #tpu.dot_dimension_numbers<[1], [0], [0], [1], [0, 0, 1, 1], [], []>} : vector<2x32xf32>, vector<32x32xf32>, vector<2x32xf32> -> vector<2x32xf32>
    %92 = arith.addf %88, %91 : vector<2x32xf32>
    %93 = arith.negf %92 : vector<2x32xf32>
    %94 = math.exp %93 : vector<2x32xf32>
    %cst_42 = arith.constant 1.000000e+00 : f32
    %95 = vector.broadcast %cst_42 : f32 to vector<2x32xf32>
    %96 = arith.addf %95, %94 : vector<2x32xf32>
    %97 = arith.divf %95, %96 : vector<2x32xf32>
    %cst_43 = arith.constant dense<0.000000e+00> : vector<2x32xf32>
    %98 = tpu.matmul %57, %15, %cst_43 {dimension_numbers = #tpu.dot_dimension_numbers<[1], [0], [0], [1], [0, 0, 1, 1], [], []>} : vector<2x32xf32>, vector<32x32xf32>, vector<2x32xf32> -> vector<2x32xf32>
    %99 = arith.addf %89, %98 : vector<2x32xf32>
    %100 = arith.negf %99 : vector<2x32xf32>
    %101 = math.exp %100 : vector<2x32xf32>
    %cst_44 = arith.constant 1.000000e+00 : f32
    %102 = vector.broadcast %cst_44 : f32 to vector<2x32xf32>
    %103 = arith.addf %102, %101 : vector<2x32xf32>
    %104 = arith.divf %102, %103 : vector<2x32xf32>
    %cst_45 = arith.constant dense<0.000000e+00> : vector<2x32xf32>
    %105 = tpu.matmul %57, %17, %cst_45 {dimension_numbers = #tpu.dot_dimension_numbers<[1], [0], [0], [1], [0, 0, 1, 1], [], []>} : vector<2x32xf32>, vector<32x32xf32>, vector<2x32xf32> -> vector<2x32xf32>
    %106 = vector.broadcast %25 : vector<1x32xf32> to vector<2x32xf32>
    %107 = arith.addf %105, %106 : vector<2x32xf32>
    %108 = arith.mulf %97, %107 : vector<2x32xf32>
    %109 = arith.addf %90, %108 : vector<2x32xf32>
    %110 = math.tanh %109 : vector<2x32xf32>
    %cst_46 = arith.constant 1.000000e+00 : f32
    %111 = vector.broadcast %cst_46 : f32 to vector<2x32xf32>
    %112 = arith.subf %111, %104 : vector<2x32xf32>
    %113 = arith.mulf %112, %110 : vector<2x32xf32>
    %114 = arith.mulf %104, %57 : vector<2x32xf32>
    %115 = arith.addf %113, %114 : vector<2x32xf32>
    %c2_47 = arith.constant 2 : index
    %c0_48 = arith.constant 0 : index
    %116 = vector.load %arg14[%c2_47, %c0_48] : memref<16x32xf32, #tpu.memory_space<vmem>>, vector<2x32xf32>
    tpu.vector_store %arg14[%c2_47, %c0_48], %115 {strides = array<i32>} : memref<16x32xf32, #tpu.memory_space<vmem>>, vector<2x32xf32>,
    %117 = vector.extract_strided_slice %9 {offsets = [12, 0], sizes = [2, 32], strides = [1, 1]} : vector<16x32xf32> to vector<2x32xf32>
    %118 = vector.extract_strided_slice %10 {offsets = [12, 0], sizes = [2, 32], strides = [1, 1]} : vector<16x32xf32> to vector<2x32xf32>
    %119 = vector.extract_strided_slice %11 {offsets = [12, 0], sizes = [2, 32], strides = [1, 1]} : vector<16x32xf32> to vector<2x32xf32>
    %cst_49 = arith.constant dense<0.000000e+00> : vector<2x32xf32>
    %120 = tpu.matmul %86, %19, %cst_49 {dimension_numbers = #tpu.dot_dimension_numbers<[1], [0], [0], [1], [0, 0, 1, 1], [], []>} : vector<2x32xf32>, vector<32x32xf32>, vector<2x32xf32> -> vector<2x32xf32>
    %121 = arith.addf %117, %120 : vector<2x32xf32>
    %122 = arith.negf %121 : vector<2x32xf32>
    %123 = math.exp %122 : vector<2x32xf32>
    %cst_50 = arith.constant 1.000000e+00 : f32
    %124 = vector.broadcast %cst_50 : f32 to vector<2x32xf32>
    %125 = arith.addf %124, %123 : vector<2x32xf32>
    %126 = arith.divf %124, %125 : vector<2x32xf32>
    %cst_51 = arith.constant dense<0.000000e+00> : vector<2x32xf32>
    %127 = tpu.matmul %86, %21, %cst_51 {dimension_numbers = #tpu.dot_dimension_numbers<[1], [0], [0], [1], [0, 0, 1, 1], [], []>} : vector<2x32xf32>, vector<32x32xf32>, vector<2x32xf32> -> vector<2x32xf32>
    %128 = arith.addf %118, %127 : vector<2x32xf32>
    %129 = arith.negf %128 : vector<2x32xf32>
    %130 = math.exp %129 : vector<2x32xf32>
    %cst_52 = arith.constant 1.000000e+00 : f32
    %131 = vector.broadcast %cst_52 : f32 to vector<2x32xf32>
    %132 = arith.addf %131, %130 : vector<2x32xf32>
    %133 = arith.divf %131, %132 : vector<2x32xf32>
    %cst_53 = arith.constant dense<0.000000e+00> : vector<2x32xf32>
    %134 = tpu.matmul %86, %23, %cst_53 {dimension_numbers = #tpu.dot_dimension_numbers<[1], [0], [0], [1], [0, 0, 1, 1], [], []>} : vector<2x32xf32>, vector<32x32xf32>, vector<2x32xf32> -> vector<2x32xf32>
    %135 = vector.broadcast %27 : vector<1x32xf32> to vector<2x32xf32>
    %136 = arith.addf %134, %135 : vector<2x32xf32>
    %137 = arith.mulf %126, %136 : vector<2x32xf32>
    %138 = arith.addf %119, %137 : vector<2x32xf32>
    %139 = math.tanh %138 : vector<2x32xf32>
    %cst_54 = arith.constant 1.000000e+00 : f32
    %140 = vector.broadcast %cst_54 : f32 to vector<2x32xf32>
    %141 = arith.subf %140, %133 : vector<2x32xf32>
    %142 = arith.mulf %141, %139 : vector<2x32xf32>
    %143 = arith.mulf %133, %86 : vector<2x32xf32>
    %144 = arith.addf %142, %143 : vector<2x32xf32>
    %c12 = arith.constant 12 : index
    %c0_55 = arith.constant 0 : index
    %145 = vector.load %arg15[%c12, %c0_55] : memref<16x32xf32, #tpu.memory_space<vmem>>, vector<2x32xf32>
    tpu.vector_store %arg15[%c12, %c0_55], %144 {strides = array<i32>} : memref<16x32xf32, #tpu.memory_space<vmem>>, vector<2x32xf32>,
    %146 = vector.extract_strided_slice %6 {offsets = [4, 0], sizes = [2, 32], strides = [1, 1]} : vector<16x32xf32> to vector<2x32xf32>
    %147 = vector.extract_strided_slice %7 {offsets = [4, 0], sizes = [2, 32], strides = [1, 1]} : vector<16x32xf32> to vector<2x32xf32>
    %148 = vector.extract_strided_slice %8 {offsets = [4, 0], sizes = [2, 32], strides = [1, 1]} : vector<16x32xf32> to vector<2x32xf32>
    %cst_56 = arith.constant dense<0.000000e+00> : vector<2x32xf32>
    %149 = tpu.matmul %115, %13, %cst_56 {dimension_numbers = #tpu.dot_dimension_numbers<[1], [0], [0], [1], [0, 0, 1, 1], [], []>} : vector<2x32xf32>, vector<32x32xf32>, vector<2x32xf32> -> vector<2x32xf32>
    %150 = arith.addf %146, %149 : vector<2x32xf32>
    %151 = arith.negf %150 : vector<2x32xf32>
    %152 = math.exp %151 : vector<2x32xf32>
    %cst_57 = arith.constant 1.000000e+00 : f32
    %153 = vector.broadcast %cst_57 : f32 to vector<2x32xf32>
    %154 = arith.addf %153, %152 : vector<2x32xf32>
    %155 = arith.divf %153, %154 : vector<2x32xf32>
    %cst_58 = arith.constant dense<0.000000e+00> : vector<2x32xf32>
    %156 = tpu.matmul %115, %15, %cst_58 {dimension_numbers = #tpu.dot_dimension_numbers<[1], [0], [0], [1], [0, 0, 1, 1], [], []>} : vector<2x32xf32>, vector<32x32xf32>, vector<2x32xf32> -> vector<2x32xf32>
    %157 = arith.addf %147, %156 : vector<2x32xf32>
    %158 = arith.negf %157 : vector<2x32xf32>
    %159 = math.exp %158 : vector<2x32xf32>
    %cst_59 = arith.constant 1.000000e+00 : f32
    %160 = vector.broadcast %cst_59 : f32 to vector<2x32xf32>
    %161 = arith.addf %160, %159 : vector<2x32xf32>
    %162 = arith.divf %160, %161 : vector<2x32xf32>
    %cst_60 = arith.constant dense<0.000000e+00> : vector<2x32xf32>
    %163 = tpu.matmul %115, %17, %cst_60 {dimension_numbers = #tpu.dot_dimension_numbers<[1], [0], [0], [1], [0, 0, 1, 1], [], []>} : vector<2x32xf32>, vector<32x32xf32>, vector<2x32xf32> -> vector<2x32xf32>
    %164 = vector.broadcast %25 : vector<1x32xf32> to vector<2x32xf32>
    %165 = arith.addf %163, %164 : vector<2x32xf32>
    %166 = arith.mulf %155, %165 : vector<2x32xf32>
    %167 = arith.addf %148, %166 : vector<2x32xf32>
    %168 = math.tanh %167 : vector<2x32xf32>
    %cst_61 = arith.constant 1.000000e+00 : f32
    %169 = vector.broadcast %cst_61 : f32 to vector<2x32xf32>
    %170 = arith.subf %169, %162 : vector<2x32xf32>
    %171 = arith.mulf %170, %168 : vector<2x32xf32>
    %172 = arith.mulf %162, %115 : vector<2x32xf32>
    %173 = arith.addf %171, %172 : vector<2x32xf32>
    %c4_62 = arith.constant 4 : index
    %c0_63 = arith.constant 0 : index
    %174 = vector.load %arg14[%c4_62, %c0_63] : memref<16x32xf32, #tpu.memory_space<vmem>>, vector<2x32xf32>
    tpu.vector_store %arg14[%c4_62, %c0_63], %173 {strides = array<i32>} : memref<16x32xf32, #tpu.memory_space<vmem>>, vector<2x32xf32>,
    %175 = vector.extract_strided_slice %9 {offsets = [10, 0], sizes = [2, 32], strides = [1, 1]} : vector<16x32xf32> to vector<2x32xf32>
    %176 = vector.extract_strided_slice %10 {offsets = [10, 0], sizes = [2, 32], strides = [1, 1]} : vector<16x32xf32> to vector<2x32xf32>
    %177 = vector.extract_strided_slice %11 {offsets = [10, 0], sizes = [2, 32], strides = [1, 1]} : vector<16x32xf32> to vector<2x32xf32>
    %cst_64 = arith.constant dense<0.000000e+00> : vector<2x32xf32>
    %178 = tpu.matmul %144, %19, %cst_64 {dimension_numbers = #tpu.dot_dimension_numbers<[1], [0], [0], [1], [0, 0, 1, 1], [], []>} : vector<2x32xf32>, vector<32x32xf32>, vector<2x32xf32> -> vector<2x32xf32>
    %179 = arith.addf %175, %178 : vector<2x32xf32>
    %180 = arith.negf %179 : vector<2x32xf32>
    %181 = math.exp %180 : vector<2x32xf32>
    %cst_65 = arith.constant 1.000000e+00 : f32
    %182 = vector.broadcast %cst_65 : f32 to vector<2x32xf32>
    %183 = arith.addf %182, %181 : vector<2x32xf32>
    %184 = arith.divf %182, %183 : vector<2x32xf32>
    %cst_66 = arith.constant dense<0.000000e+00> : vector<2x32xf32>
    %185 = tpu.matmul %144, %21, %cst_66 {dimension_numbers = #tpu.dot_dimension_numbers<[1], [0], [0], [1], [0, 0, 1, 1], [], []>} : vector<2x32xf32>, vector<32x32xf32>, vector<2x32xf32> -> vector<2x32xf32>
    %186 = arith.addf %176, %185 : vector<2x32xf32>
    %187 = arith.negf %186 : vector<2x32xf32>
    %188 = math.exp %187 : vector<2x32xf32>
    %cst_67 = arith.constant 1.000000e+00 : f32
    %189 = vector.broadcast %cst_67 : f32 to vector<2x32xf32>
    %190 = arith.addf %189, %188 : vector<2x32xf32>
    %191 = arith.divf %189, %190 : vector<2x32xf32>
    %cst_68 = arith.constant dense<0.000000e+00> : vector<2x32xf32>
    %192 = tpu.matmul %144, %23, %cst_68 {dimension_numbers = #tpu.dot_dimension_numbers<[1], [0], [0], [1], [0, 0, 1, 1], [], []>} : vector<2x32xf32>, vector<32x32xf32>, vector<2x32xf32> -> vector<2x32xf32>
    %193 = vector.broadcast %27 : vector<1x32xf32> to vector<2x32xf32>
    %194 = arith.addf %192, %193 : vector<2x32xf32>
    %195 = arith.mulf %184, %194 : vector<2x32xf32>
    %196 = arith.addf %177, %195 : vector<2x32xf32>
    %197 = math.tanh %196 : vector<2x32xf32>
    %cst_69 = arith.constant 1.000000e+00 : f32
    %198 = vector.broadcast %cst_69 : f32 to vector<2x32xf32>
    %199 = arith.subf %198, %191 : vector<2x32xf32>
    %200 = arith.mulf %199, %197 : vector<2x32xf32>
    %201 = arith.mulf %191, %144 : vector<2x32xf32>
    %202 = arith.addf %200, %201 : vector<2x32xf32>
    %c10 = arith.constant 10 : index
    %c0_70 = arith.constant 0 : index
    %203 = vector.load %arg15[%c10, %c0_70] : memref<16x32xf32, #tpu.memory_space<vmem>>, vector<2x32xf32>
    tpu.vector_store %arg15[%c10, %c0_70], %202 {strides = array<i32>} : memref<16x32xf32, #tpu.memory_space<vmem>>, vector<2x32xf32>,
    %204 = vector.extract_strided_slice %6 {offsets = [6, 0], sizes = [2, 32], strides = [1, 1]} : vector<16x32xf32> to vector<2x32xf32>
    %205 = vector.extract_strided_slice %7 {offsets = [6, 0], sizes = [2, 32], strides = [1, 1]} : vector<16x32xf32> to vector<2x32xf32>
    %206 = vector.extract_strided_slice %8 {offsets = [6, 0], sizes = [2, 32], strides = [1, 1]} : vector<16x32xf32> to vector<2x32xf32>
    %cst_71 = arith.constant dense<0.000000e+00> : vector<2x32xf32>
    %207 = tpu.matmul %173, %13, %cst_71 {dimension_numbers = #tpu.dot_dimension_numbers<[1], [0], [0], [1], [0, 0, 1, 1], [], []>} : vector<2x32xf32>, vector<32x32xf32>, vector<2x32xf32> -> vector<2x32xf32>
    %208 = arith.addf %204, %207 : vector<2x32xf32>
    %209 = arith.negf %208 : vector<2x32xf32>
    %210 = math.exp %209 : vector<2x32xf32>
    %cst_72 = arith.constant 1.000000e+00 : f32
    %211 = vector.broadcast %cst_72 : f32 to vector<2x32xf32>
    %212 = arith.addf %211, %210 : vector<2x32xf32>
    %213 = arith.divf %211, %212 : vector<2x32xf32>
    %cst_73 = arith.constant dense<0.000000e+00> : vector<2x32xf32>
    %214 = tpu.matmul %173, %15, %cst_73 {dimension_numbers = #tpu.dot_dimension_numbers<[1], [0], [0], [1], [0, 0, 1, 1], [], []>} : vector<2x32xf32>, vector<32x32xf32>, vector<2x32xf32> -> vector<2x32xf32>
    %215 = arith.addf %205, %214 : vector<2x32xf32>
    %216 = arith.negf %215 : vector<2x32xf32>
    %217 = math.exp %216 : vector<2x32xf32>
    %cst_74 = arith.constant 1.000000e+00 : f32
    %218 = vector.broadcast %cst_74 : f32 to vector<2x32xf32>
    %219 = arith.addf %218, %217 : vector<2x32xf32>
    %220 = arith.divf %218, %219 : vector<2x32xf32>
    %cst_75 = arith.constant dense<0.000000e+00> : vector<2x32xf32>
    %221 = tpu.matmul %173, %17, %cst_75 {dimension_numbers = #tpu.dot_dimension_numbers<[1], [0], [0], [1], [0, 0, 1, 1], [], []>} : vector<2x32xf32>, vector<32x32xf32>, vector<2x32xf32> -> vector<2x32xf32>
    %222 = vector.broadcast %25 : vector<1x32xf32> to vector<2x32xf32>
    %223 = arith.addf %221, %222 : vector<2x32xf32>
    %224 = arith.mulf %213, %223 : vector<2x32xf32>
    %225 = arith.addf %206, %224 : vector<2x32xf32>
    %226 = math.tanh %225 : vector<2x32xf32>
    %cst_76 = arith.constant 1.000000e+00 : f32
    %227 = vector.broadcast %cst_76 : f32 to vector<2x32xf32>
    %228 = arith.subf %227, %220 : vector<2x32xf32>
    %229 = arith.mulf %228, %226 : vector<2x32xf32>
    %230 = arith.mulf %220, %173 : vector<2x32xf32>
    %231 = arith.addf %229, %230 : vector<2x32xf32>
    %c6 = arith.constant 6 : index
    %c0_77 = arith.constant 0 : index
    %232 = vector.load %arg14[%c6, %c0_77] : memref<16x32xf32, #tpu.memory_space<vmem>>, vector<2x32xf32>
    tpu.vector_store %arg14[%c6, %c0_77], %231 {strides = array<i32>} : memref<16x32xf32, #tpu.memory_space<vmem>>, vector<2x32xf32>,
    %233 = vector.extract_strided_slice %9 {offsets = [8, 0], sizes = [2, 32], strides = [1, 1]} : vector<16x32xf32> to vector<2x32xf32>
    %234 = vector.extract_strided_slice %10 {offsets = [8, 0], sizes = [2, 32], strides = [1, 1]} : vector<16x32xf32> to vector<2x32xf32>
    %235 = vector.extract_strided_slice %11 {offsets = [8, 0], sizes = [2, 32], strides = [1, 1]} : vector<16x32xf32> to vector<2x32xf32>
    %cst_78 = arith.constant dense<0.000000e+00> : vector<2x32xf32>
    %236 = tpu.matmul %202, %19, %cst_78 {dimension_numbers = #tpu.dot_dimension_numbers<[1], [0], [0], [1], [0, 0, 1, 1], [], []>} : vector<2x32xf32>, vector<32x32xf32>, vector<2x32xf32> -> vector<2x32xf32>
    %237 = arith.addf %233, %236 : vector<2x32xf32>
    %238 = arith.negf %237 : vector<2x32xf32>
    %239 = math.exp %238 : vector<2x32xf32>
    %cst_79 = arith.constant 1.000000e+00 : f32
    %240 = vector.broadcast %cst_79 : f32 to vector<2x32xf32>
    %241 = arith.addf %240, %239 : vector<2x32xf32>
    %242 = arith.divf %240, %241 : vector<2x32xf32>
    %cst_80 = arith.constant dense<0.000000e+00> : vector<2x32xf32>
    %243 = tpu.matmul %202, %21, %cst_80 {dimension_numbers = #tpu.dot_dimension_numbers<[1], [0], [0], [1], [0, 0, 1, 1], [], []>} : vector<2x32xf32>, vector<32x32xf32>, vector<2x32xf32> -> vector<2x32xf32>
    %244 = arith.addf %234, %243 : vector<2x32xf32>
    %245 = arith.negf %244 : vector<2x32xf32>
    %246 = math.exp %245 : vector<2x32xf32>
    %cst_81 = arith.constant 1.000000e+00 : f32
    %247 = vector.broadcast %cst_81 : f32 to vector<2x32xf32>
    %248 = arith.addf %247, %246 : vector<2x32xf32>
    %249 = arith.divf %247, %248 : vector<2x32xf32>
    %cst_82 = arith.constant dense<0.000000e+00> : vector<2x32xf32>
    %250 = tpu.matmul %202, %23, %cst_82 {dimension_numbers = #tpu.dot_dimension_numbers<[1], [0], [0], [1], [0, 0, 1, 1], [], []>} : vector<2x32xf32>, vector<32x32xf32>, vector<2x32xf32> -> vector<2x32xf32>
    %251 = vector.broadcast %27 : vector<1x32xf32> to vector<2x32xf32>
    %252 = arith.addf %250, %251 : vector<2x32xf32>
    %253 = arith.mulf %242, %252 : vector<2x32xf32>
    %254 = arith.addf %235, %253 : vector<2x32xf32>
    %255 = math.tanh %254 : vector<2x32xf32>
    %cst_83 = arith.constant 1.000000e+00 : f32
    %256 = vector.broadcast %cst_83 : f32 to vector<2x32xf32>
    %257 = arith.subf %256, %249 : vector<2x32xf32>
    %258 = arith.mulf %257, %255 : vector<2x32xf32>
    %259 = arith.mulf %249, %202 : vector<2x32xf32>
    %260 = arith.addf %258, %259 : vector<2x32xf32>
    %c8 = arith.constant 8 : index
    %c0_84 = arith.constant 0 : index
    %261 = vector.load %arg15[%c8, %c0_84] : memref<16x32xf32, #tpu.memory_space<vmem>>, vector<2x32xf32>
    tpu.vector_store %arg15[%c8, %c0_84], %260 {strides = array<i32>} : memref<16x32xf32, #tpu.memory_space<vmem>>, vector<2x32xf32>,
    %262 = vector.extract_strided_slice %6 {offsets = [8, 0], sizes = [2, 32], strides = [1, 1]} : vector<16x32xf32> to vector<2x32xf32>
    %263 = vector.extract_strided_slice %7 {offsets = [8, 0], sizes = [2, 32], strides = [1, 1]} : vector<16x32xf32> to vector<2x32xf32>
    %264 = vector.extract_strided_slice %8 {offsets = [8, 0], sizes = [2, 32], strides = [1, 1]} : vector<16x32xf32> to vector<2x32xf32>
    %cst_85 = arith.constant dense<0.000000e+00> : vector<2x32xf32>
    %265 = tpu.matmul %231, %13, %cst_85 {dimension_numbers = #tpu.dot_dimension_numbers<[1], [0], [0], [1], [0, 0, 1, 1], [], []>} : vector<2x32xf32>, vector<32x32xf32>, vector<2x32xf32> -> vector<2x32xf32>
    %266 = arith.addf %262, %265 : vector<2x32xf32>
    %267 = arith.negf %266 : vector<2x32xf32>
    %268 = math.exp %267 : vector<2x32xf32>
    %cst_86 = arith.constant 1.000000e+00 : f32
    %269 = vector.broadcast %cst_86 : f32 to vector<2x32xf32>
    %270 = arith.addf %269, %268 : vector<2x32xf32>
    %271 = arith.divf %269, %270 : vector<2x32xf32>
    %cst_87 = arith.constant dense<0.000000e+00> : vector<2x32xf32>
    %272 = tpu.matmul %231, %15, %cst_87 {dimension_numbers = #tpu.dot_dimension_numbers<[1], [0], [0], [1], [0, 0, 1, 1], [], []>} : vector<2x32xf32>, vector<32x32xf32>, vector<2x32xf32> -> vector<2x32xf32>
    %273 = arith.addf %263, %272 : vector<2x32xf32>
    %274 = arith.negf %273 : vector<2x32xf32>
    %275 = math.exp %274 : vector<2x32xf32>
    %cst_88 = arith.constant 1.000000e+00 : f32
    %276 = vector.broadcast %cst_88 : f32 to vector<2x32xf32>
    %277 = arith.addf %276, %275 : vector<2x32xf32>
    %278 = arith.divf %276, %277 : vector<2x32xf32>
    %cst_89 = arith.constant dense<0.000000e+00> : vector<2x32xf32>
    %279 = tpu.matmul %231, %17, %cst_89 {dimension_numbers = #tpu.dot_dimension_numbers<[1], [0], [0], [1], [0, 0, 1, 1], [], []>} : vector<2x32xf32>, vector<32x32xf32>, vector<2x32xf32> -> vector<2x32xf32>
    %280 = vector.broadcast %25 : vector<1x32xf32> to vector<2x32xf32>
    %281 = arith.addf %279, %280 : vector<2x32xf32>
    %282 = arith.mulf %271, %281 : vector<2x32xf32>
    %283 = arith.addf %264, %282 : vector<2x32xf32>
    %284 = math.tanh %283 : vector<2x32xf32>
    %cst_90 = arith.constant 1.000000e+00 : f32
    %285 = vector.broadcast %cst_90 : f32 to vector<2x32xf32>
    %286 = arith.subf %285, %278 : vector<2x32xf32>
    %287 = arith.mulf %286, %284 : vector<2x32xf32>
    %288 = arith.mulf %278, %231 : vector<2x32xf32>
    %289 = arith.addf %287, %288 : vector<2x32xf32>
    %c8_91 = arith.constant 8 : index
    %c0_92 = arith.constant 0 : index
    %290 = vector.load %arg14[%c8_91, %c0_92] : memref<16x32xf32, #tpu.memory_space<vmem>>, vector<2x32xf32>
    tpu.vector_store %arg14[%c8_91, %c0_92], %289 {strides = array<i32>} : memref<16x32xf32, #tpu.memory_space<vmem>>, vector<2x32xf32>,
    %291 = vector.extract_strided_slice %9 {offsets = [6, 0], sizes = [2, 32], strides = [1, 1]} : vector<16x32xf32> to vector<2x32xf32>
    %292 = vector.extract_strided_slice %10 {offsets = [6, 0], sizes = [2, 32], strides = [1, 1]} : vector<16x32xf32> to vector<2x32xf32>
    %293 = vector.extract_strided_slice %11 {offsets = [6, 0], sizes = [2, 32], strides = [1, 1]} : vector<16x32xf32> to vector<2x32xf32>
    %cst_93 = arith.constant dense<0.000000e+00> : vector<2x32xf32>
    %294 = tpu.matmul %260, %19, %cst_93 {dimension_numbers = #tpu.dot_dimension_numbers<[1], [0], [0], [1], [0, 0, 1, 1], [], []>} : vector<2x32xf32>, vector<32x32xf32>, vector<2x32xf32> -> vector<2x32xf32>
    %295 = arith.addf %291, %294 : vector<2x32xf32>
    %296 = arith.negf %295 : vector<2x32xf32>
    %297 = math.exp %296 : vector<2x32xf32>
    %cst_94 = arith.constant 1.000000e+00 : f32
    %298 = vector.broadcast %cst_94 : f32 to vector<2x32xf32>
    %299 = arith.addf %298, %297 : vector<2x32xf32>
    %300 = arith.divf %298, %299 : vector<2x32xf32>
    %cst_95 = arith.constant dense<0.000000e+00> : vector<2x32xf32>
    %301 = tpu.matmul %260, %21, %cst_95 {dimension_numbers = #tpu.dot_dimension_numbers<[1], [0], [0], [1], [0, 0, 1, 1], [], []>} : vector<2x32xf32>, vector<32x32xf32>, vector<2x32xf32> -> vector<2x32xf32>
    %302 = arith.addf %292, %301 : vector<2x32xf32>
    %303 = arith.negf %302 : vector<2x32xf32>
    %304 = math.exp %303 : vector<2x32xf32>
    %cst_96 = arith.constant 1.000000e+00 : f32
    %305 = vector.broadcast %cst_96 : f32 to vector<2x32xf32>
    %306 = arith.addf %305, %304 : vector<2x32xf32>
    %307 = arith.divf %305, %306 : vector<2x32xf32>
    %cst_97 = arith.constant dense<0.000000e+00> : vector<2x32xf32>
    %308 = tpu.matmul %260, %23, %cst_97 {dimension_numbers = #tpu.dot_dimension_numbers<[1], [0], [0], [1], [0, 0, 1, 1], [], []>} : vector<2x32xf32>, vector<32x32xf32>, vector<2x32xf32> -> vector<2x32xf32>
    %309 = vector.broadcast %27 : vector<1x32xf32> to vector<2x32xf32>
    %310 = arith.addf %308, %309 : vector<2x32xf32>
    %311 = arith.mulf %300, %310 : vector<2x32xf32>
    %312 = arith.addf %293, %311 : vector<2x32xf32>
    %313 = math.tanh %312 : vector<2x32xf32>
    %cst_98 = arith.constant 1.000000e+00 : f32
    %314 = vector.broadcast %cst_98 : f32 to vector<2x32xf32>
    %315 = arith.subf %314, %307 : vector<2x32xf32>
    %316 = arith.mulf %315, %313 : vector<2x32xf32>
    %317 = arith.mulf %307, %260 : vector<2x32xf32>
    %318 = arith.addf %316, %317 : vector<2x32xf32>
    %c6_99 = arith.constant 6 : index
    %c0_100 = arith.constant 0 : index
    %319 = vector.load %arg15[%c6_99, %c0_100] : memref<16x32xf32, #tpu.memory_space<vmem>>, vector<2x32xf32>
    tpu.vector_store %arg15[%c6_99, %c0_100], %318 {strides = array<i32>} : memref<16x32xf32, #tpu.memory_space<vmem>>, vector<2x32xf32>,
    %320 = vector.extract_strided_slice %6 {offsets = [10, 0], sizes = [2, 32], strides = [1, 1]} : vector<16x32xf32> to vector<2x32xf32>
    %321 = vector.extract_strided_slice %7 {offsets = [10, 0], sizes = [2, 32], strides = [1, 1]} : vector<16x32xf32> to vector<2x32xf32>
    %322 = vector.extract_strided_slice %8 {offsets = [10, 0], sizes = [2, 32], strides = [1, 1]} : vector<16x32xf32> to vector<2x32xf32>
    %cst_101 = arith.constant dense<0.000000e+00> : vector<2x32xf32>
    %323 = tpu.matmul %289, %13, %cst_101 {dimension_numbers = #tpu.dot_dimension_numbers<[1], [0], [0], [1], [0, 0, 1, 1], [], []>} : vector<2x32xf32>, vector<32x32xf32>, vector<2x32xf32> -> vector<2x32xf32>
    %324 = arith.addf %320, %323 : vector<2x32xf32>
    %325 = arith.negf %324 : vector<2x32xf32>
    %326 = math.exp %325 : vector<2x32xf32>
    %cst_102 = arith.constant 1.000000e+00 : f32
    %327 = vector.broadcast %cst_102 : f32 to vector<2x32xf32>
    %328 = arith.addf %327, %326 : vector<2x32xf32>
    %329 = arith.divf %327, %328 : vector<2x32xf32>
    %cst_103 = arith.constant dense<0.000000e+00> : vector<2x32xf32>
    %330 = tpu.matmul %289, %15, %cst_103 {dimension_numbers = #tpu.dot_dimension_numbers<[1], [0], [0], [1], [0, 0, 1, 1], [], []>} : vector<2x32xf32>, vector<32x32xf32>, vector<2x32xf32> -> vector<2x32xf32>
    %331 = arith.addf %321, %330 : vector<2x32xf32>
    %332 = arith.negf %331 : vector<2x32xf32>
    %333 = math.exp %332 : vector<2x32xf32>
    %cst_104 = arith.constant 1.000000e+00 : f32
    %334 = vector.broadcast %cst_104 : f32 to vector<2x32xf32>
    %335 = arith.addf %334, %333 : vector<2x32xf32>
    %336 = arith.divf %334, %335 : vector<2x32xf32>
    %cst_105 = arith.constant dense<0.000000e+00> : vector<2x32xf32>
    %337 = tpu.matmul %289, %17, %cst_105 {dimension_numbers = #tpu.dot_dimension_numbers<[1], [0], [0], [1], [0, 0, 1, 1], [], []>} : vector<2x32xf32>, vector<32x32xf32>, vector<2x32xf32> -> vector<2x32xf32>
    %338 = vector.broadcast %25 : vector<1x32xf32> to vector<2x32xf32>
    %339 = arith.addf %337, %338 : vector<2x32xf32>
    %340 = arith.mulf %329, %339 : vector<2x32xf32>
    %341 = arith.addf %322, %340 : vector<2x32xf32>
    %342 = math.tanh %341 : vector<2x32xf32>
    %cst_106 = arith.constant 1.000000e+00 : f32
    %343 = vector.broadcast %cst_106 : f32 to vector<2x32xf32>
    %344 = arith.subf %343, %336 : vector<2x32xf32>
    %345 = arith.mulf %344, %342 : vector<2x32xf32>
    %346 = arith.mulf %336, %289 : vector<2x32xf32>
    %347 = arith.addf %345, %346 : vector<2x32xf32>
    %c10_107 = arith.constant 10 : index
    %c0_108 = arith.constant 0 : index
    %348 = vector.load %arg14[%c10_107, %c0_108] : memref<16x32xf32, #tpu.memory_space<vmem>>, vector<2x32xf32>
    tpu.vector_store %arg14[%c10_107, %c0_108], %347 {strides = array<i32>} : memref<16x32xf32, #tpu.memory_space<vmem>>, vector<2x32xf32>,
    %349 = vector.extract_strided_slice %9 {offsets = [4, 0], sizes = [2, 32], strides = [1, 1]} : vector<16x32xf32> to vector<2x32xf32>
    %350 = vector.extract_strided_slice %10 {offsets = [4, 0], sizes = [2, 32], strides = [1, 1]} : vector<16x32xf32> to vector<2x32xf32>
    %351 = vector.extract_strided_slice %11 {offsets = [4, 0], sizes = [2, 32], strides = [1, 1]} : vector<16x32xf32> to vector<2x32xf32>
    %cst_109 = arith.constant dense<0.000000e+00> : vector<2x32xf32>
    %352 = tpu.matmul %318, %19, %cst_109 {dimension_numbers = #tpu.dot_dimension_numbers<[1], [0], [0], [1], [0, 0, 1, 1], [], []>} : vector<2x32xf32>, vector<32x32xf32>, vector<2x32xf32> -> vector<2x32xf32>
    %353 = arith.addf %349, %352 : vector<2x32xf32>
    %354 = arith.negf %353 : vector<2x32xf32>
    %355 = math.exp %354 : vector<2x32xf32>
    %cst_110 = arith.constant 1.000000e+00 : f32
    %356 = vector.broadcast %cst_110 : f32 to vector<2x32xf32>
    %357 = arith.addf %356, %355 : vector<2x32xf32>
    %358 = arith.divf %356, %357 : vector<2x32xf32>
    %cst_111 = arith.constant dense<0.000000e+00> : vector<2x32xf32>
    %359 = tpu.matmul %318, %21, %cst_111 {dimension_numbers = #tpu.dot_dimension_numbers<[1], [0], [0], [1], [0, 0, 1, 1], [], []>} : vector<2x32xf32>, vector<32x32xf32>, vector<2x32xf32> -> vector<2x32xf32>
    %360 = arith.addf %350, %359 : vector<2x32xf32>
    %361 = arith.negf %360 : vector<2x32xf32>
    %362 = math.exp %361 : vector<2x32xf32>
    %cst_112 = arith.constant 1.000000e+00 : f32
    %363 = vector.broadcast %cst_112 : f32 to vector<2x32xf32>
    %364 = arith.addf %363, %362 : vector<2x32xf32>
    %365 = arith.divf %363, %364 : vector<2x32xf32>
    %cst_113 = arith.constant dense<0.000000e+00> : vector<2x32xf32>
    %366 = tpu.matmul %318, %23, %cst_113 {dimension_numbers = #tpu.dot_dimension_numbers<[1], [0], [0], [1], [0, 0, 1, 1], [], []>} : vector<2x32xf32>, vector<32x32xf32>, vector<2x32xf32> -> vector<2x32xf32>
    %367 = vector.broadcast %27 : vector<1x32xf32> to vector<2x32xf32>
    %368 = arith.addf %366, %367 : vector<2x32xf32>
    %369 = arith.mulf %358, %368 : vector<2x32xf32>
    %370 = arith.addf %351, %369 : vector<2x32xf32>
    %371 = math.tanh %370 : vector<2x32xf32>
    %cst_114 = arith.constant 1.000000e+00 : f32
    %372 = vector.broadcast %cst_114 : f32 to vector<2x32xf32>
    %373 = arith.subf %372, %365 : vector<2x32xf32>
    %374 = arith.mulf %373, %371 : vector<2x32xf32>
    %375 = arith.mulf %365, %318 : vector<2x32xf32>
    %376 = arith.addf %374, %375 : vector<2x32xf32>
    %c4_115 = arith.constant 4 : index
    %c0_116 = arith.constant 0 : index
    %377 = vector.load %arg15[%c4_115, %c0_116] : memref<16x32xf32, #tpu.memory_space<vmem>>, vector<2x32xf32>
    tpu.vector_store %arg15[%c4_115, %c0_116], %376 {strides = array<i32>} : memref<16x32xf32, #tpu.memory_space<vmem>>, vector<2x32xf32>,
    %378 = vector.extract_strided_slice %6 {offsets = [12, 0], sizes = [2, 32], strides = [1, 1]} : vector<16x32xf32> to vector<2x32xf32>
    %379 = vector.extract_strided_slice %7 {offsets = [12, 0], sizes = [2, 32], strides = [1, 1]} : vector<16x32xf32> to vector<2x32xf32>
    %380 = vector.extract_strided_slice %8 {offsets = [12, 0], sizes = [2, 32], strides = [1, 1]} : vector<16x32xf32> to vector<2x32xf32>
    %cst_117 = arith.constant dense<0.000000e+00> : vector<2x32xf32>
    %381 = tpu.matmul %347, %13, %cst_117 {dimension_numbers = #tpu.dot_dimension_numbers<[1], [0], [0], [1], [0, 0, 1, 1], [], []>} : vector<2x32xf32>, vector<32x32xf32>, vector<2x32xf32> -> vector<2x32xf32>
    %382 = arith.addf %378, %381 : vector<2x32xf32>
    %383 = arith.negf %382 : vector<2x32xf32>
    %384 = math.exp %383 : vector<2x32xf32>
    %cst_118 = arith.constant 1.000000e+00 : f32
    %385 = vector.broadcast %cst_118 : f32 to vector<2x32xf32>
    %386 = arith.addf %385, %384 : vector<2x32xf32>
    %387 = arith.divf %385, %386 : vector<2x32xf32>
    %cst_119 = arith.constant dense<0.000000e+00> : vector<2x32xf32>
    %388 = tpu.matmul %347, %15, %cst_119 {dimension_numbers = #tpu.dot_dimension_numbers<[1], [0], [0], [1], [0, 0, 1, 1], [], []>} : vector<2x32xf32>, vector<32x32xf32>, vector<2x32xf32> -> vector<2x32xf32>
    %389 = arith.addf %379, %388 : vector<2x32xf32>
    %390 = arith.negf %389 : vector<2x32xf32>
    %391 = math.exp %390 : vector<2x32xf32>
    %cst_120 = arith.constant 1.000000e+00 : f32
    %392 = vector.broadcast %cst_120 : f32 to vector<2x32xf32>
    %393 = arith.addf %392, %391 : vector<2x32xf32>
    %394 = arith.divf %392, %393 : vector<2x32xf32>
    %cst_121 = arith.constant dense<0.000000e+00> : vector<2x32xf32>
    %395 = tpu.matmul %347, %17, %cst_121 {dimension_numbers = #tpu.dot_dimension_numbers<[1], [0], [0], [1], [0, 0, 1, 1], [], []>} : vector<2x32xf32>, vector<32x32xf32>, vector<2x32xf32> -> vector<2x32xf32>
    %396 = vector.broadcast %25 : vector<1x32xf32> to vector<2x32xf32>
    %397 = arith.addf %395, %396 : vector<2x32xf32>
    %398 = arith.mulf %387, %397 : vector<2x32xf32>
    %399 = arith.addf %380, %398 : vector<2x32xf32>
    %400 = math.tanh %399 : vector<2x32xf32>
    %cst_122 = arith.constant 1.000000e+00 : f32
    %401 = vector.broadcast %cst_122 : f32 to vector<2x32xf32>
    %402 = arith.subf %401, %394 : vector<2x32xf32>
    %403 = arith.mulf %402, %400 : vector<2x32xf32>
    %404 = arith.mulf %394, %347 : vector<2x32xf32>
    %405 = arith.addf %403, %404 : vector<2x32xf32>
    %c12_123 = arith.constant 12 : index
    %c0_124 = arith.constant 0 : index
    %406 = vector.load %arg14[%c12_123, %c0_124] : memref<16x32xf32, #tpu.memory_space<vmem>>, vector<2x32xf32>
    tpu.vector_store %arg14[%c12_123, %c0_124], %405 {strides = array<i32>} : memref<16x32xf32, #tpu.memory_space<vmem>>, vector<2x32xf32>,
    %407 = vector.extract_strided_slice %9 {offsets = [2, 0], sizes = [2, 32], strides = [1, 1]} : vector<16x32xf32> to vector<2x32xf32>
    %408 = vector.extract_strided_slice %10 {offsets = [2, 0], sizes = [2, 32], strides = [1, 1]} : vector<16x32xf32> to vector<2x32xf32>
    %409 = vector.extract_strided_slice %11 {offsets = [2, 0], sizes = [2, 32], strides = [1, 1]} : vector<16x32xf32> to vector<2x32xf32>
    %cst_125 = arith.constant dense<0.000000e+00> : vector<2x32xf32>
    %410 = tpu.matmul %376, %19, %cst_125 {dimension_numbers = #tpu.dot_dimension_numbers<[1], [0], [0], [1], [0, 0, 1, 1], [], []>} : vector<2x32xf32>, vector<32x32xf32>, vector<2x32xf32> -> vector<2x32xf32>
    %411 = arith.addf %407, %410 : vector<2x32xf32>
    %412 = arith.negf %411 : vector<2x32xf32>
    %413 = math.exp %412 : vector<2x32xf32>
    %cst_126 = arith.constant 1.000000e+00 : f32
    %414 = vector.broadcast %cst_126 : f32 to vector<2x32xf32>
    %415 = arith.addf %414, %413 : vector<2x32xf32>
    %416 = arith.divf %414, %415 : vector<2x32xf32>
    %cst_127 = arith.constant dense<0.000000e+00> : vector<2x32xf32>
    %417 = tpu.matmul %376, %21, %cst_127 {dimension_numbers = #tpu.dot_dimension_numbers<[1], [0], [0], [1], [0, 0, 1, 1], [], []>} : vector<2x32xf32>, vector<32x32xf32>, vector<2x32xf32> -> vector<2x32xf32>
    %418 = arith.addf %408, %417 : vector<2x32xf32>
    %419 = arith.negf %418 : vector<2x32xf32>
    %420 = math.exp %419 : vector<2x32xf32>
    %cst_128 = arith.constant 1.000000e+00 : f32
    %421 = vector.broadcast %cst_128 : f32 to vector<2x32xf32>
    %422 = arith.addf %421, %420 : vector<2x32xf32>
    %423 = arith.divf %421, %422 : vector<2x32xf32>
    %cst_129 = arith.constant dense<0.000000e+00> : vector<2x32xf32>
    %424 = tpu.matmul %376, %23, %cst_129 {dimension_numbers = #tpu.dot_dimension_numbers<[1], [0], [0], [1], [0, 0, 1, 1], [], []>} : vector<2x32xf32>, vector<32x32xf32>, vector<2x32xf32> -> vector<2x32xf32>
    %425 = vector.broadcast %27 : vector<1x32xf32> to vector<2x32xf32>
    %426 = arith.addf %424, %425 : vector<2x32xf32>
    %427 = arith.mulf %416, %426 : vector<2x32xf32>
    %428 = arith.addf %409, %427 : vector<2x32xf32>
    %429 = math.tanh %428 : vector<2x32xf32>
    %cst_130 = arith.constant 1.000000e+00 : f32
    %430 = vector.broadcast %cst_130 : f32 to vector<2x32xf32>
    %431 = arith.subf %430, %423 : vector<2x32xf32>
    %432 = arith.mulf %431, %429 : vector<2x32xf32>
    %433 = arith.mulf %423, %376 : vector<2x32xf32>
    %434 = arith.addf %432, %433 : vector<2x32xf32>
    %c2_131 = arith.constant 2 : index
    %c0_132 = arith.constant 0 : index
    %435 = vector.load %arg15[%c2_131, %c0_132] : memref<16x32xf32, #tpu.memory_space<vmem>>, vector<2x32xf32>
    tpu.vector_store %arg15[%c2_131, %c0_132], %434 {strides = array<i32>} : memref<16x32xf32, #tpu.memory_space<vmem>>, vector<2x32xf32>,
    %436 = vector.extract_strided_slice %6 {offsets = [14, 0], sizes = [2, 32], strides = [1, 1]} : vector<16x32xf32> to vector<2x32xf32>
    %437 = vector.extract_strided_slice %7 {offsets = [14, 0], sizes = [2, 32], strides = [1, 1]} : vector<16x32xf32> to vector<2x32xf32>
    %438 = vector.extract_strided_slice %8 {offsets = [14, 0], sizes = [2, 32], strides = [1, 1]} : vector<16x32xf32> to vector<2x32xf32>
    %cst_133 = arith.constant dense<0.000000e+00> : vector<2x32xf32>
    %439 = tpu.matmul %405, %13, %cst_133 {dimension_numbers = #tpu.dot_dimension_numbers<[1], [0], [0], [1], [0, 0, 1, 1], [], []>} : vector<2x32xf32>, vector<32x32xf32>, vector<2x32xf32> -> vector<2x32xf32>
    %440 = arith.addf %436, %439 : vector<2x32xf32>
    %441 = arith.negf %440 : vector<2x32xf32>
    %442 = math.exp %441 : vector<2x32xf32>
    %cst_134 = arith.constant 1.000000e+00 : f32
    %443 = vector.broadcast %cst_134 : f32 to vector<2x32xf32>
    %444 = arith.addf %443, %442 : vector<2x32xf32>
    %445 = arith.divf %443, %444 : vector<2x32xf32>
    %cst_135 = arith.constant dense<0.000000e+00> : vector<2x32xf32>
    %446 = tpu.matmul %405, %15, %cst_135 {dimension_numbers = #tpu.dot_dimension_numbers<[1], [0], [0], [1], [0, 0, 1, 1], [], []>} : vector<2x32xf32>, vector<32x32xf32>, vector<2x32xf32> -> vector<2x32xf32>
    %447 = arith.addf %437, %446 : vector<2x32xf32>
    %448 = arith.negf %447 : vector<2x32xf32>
    %449 = math.exp %448 : vector<2x32xf32>
    %cst_136 = arith.constant 1.000000e+00 : f32
    %450 = vector.broadcast %cst_136 : f32 to vector<2x32xf32>
    %451 = arith.addf %450, %449 : vector<2x32xf32>
    %452 = arith.divf %450, %451 : vector<2x32xf32>
    %cst_137 = arith.constant dense<0.000000e+00> : vector<2x32xf32>
    %453 = tpu.matmul %405, %17, %cst_137 {dimension_numbers = #tpu.dot_dimension_numbers<[1], [0], [0], [1], [0, 0, 1, 1], [], []>} : vector<2x32xf32>, vector<32x32xf32>, vector<2x32xf32> -> vector<2x32xf32>
    %454 = vector.broadcast %25 : vector<1x32xf32> to vector<2x32xf32>
    %455 = arith.addf %453, %454 : vector<2x32xf32>
    %456 = arith.mulf %445, %455 : vector<2x32xf32>
    %457 = arith.addf %438, %456 : vector<2x32xf32>
    %458 = math.tanh %457 : vector<2x32xf32>
    %cst_138 = arith.constant 1.000000e+00 : f32
    %459 = vector.broadcast %cst_138 : f32 to vector<2x32xf32>
    %460 = arith.subf %459, %452 : vector<2x32xf32>
    %461 = arith.mulf %460, %458 : vector<2x32xf32>
    %462 = arith.mulf %452, %405 : vector<2x32xf32>
    %463 = arith.addf %461, %462 : vector<2x32xf32>
    %c14_139 = arith.constant 14 : index
    %c0_140 = arith.constant 0 : index
    %464 = vector.load %arg14[%c14_139, %c0_140] : memref<16x32xf32, #tpu.memory_space<vmem>>, vector<2x32xf32>
    tpu.vector_store %arg14[%c14_139, %c0_140], %463 {strides = array<i32>} : memref<16x32xf32, #tpu.memory_space<vmem>>, vector<2x32xf32>,
    %465 = vector.extract_strided_slice %9 {offsets = [0, 0], sizes = [2, 32], strides = [1, 1]} : vector<16x32xf32> to vector<2x32xf32>
    %466 = vector.extract_strided_slice %10 {offsets = [0, 0], sizes = [2, 32], strides = [1, 1]} : vector<16x32xf32> to vector<2x32xf32>
    %467 = vector.extract_strided_slice %11 {offsets = [0, 0], sizes = [2, 32], strides = [1, 1]} : vector<16x32xf32> to vector<2x32xf32>
    %cst_141 = arith.constant dense<0.000000e+00> : vector<2x32xf32>
    %468 = tpu.matmul %434, %19, %cst_141 {dimension_numbers = #tpu.dot_dimension_numbers<[1], [0], [0], [1], [0, 0, 1, 1], [], []>} : vector<2x32xf32>, vector<32x32xf32>, vector<2x32xf32> -> vector<2x32xf32>
    %469 = arith.addf %465, %468 : vector<2x32xf32>
    %470 = arith.negf %469 : vector<2x32xf32>
    %471 = math.exp %470 : vector<2x32xf32>
    %cst_142 = arith.constant 1.000000e+00 : f32
    %472 = vector.broadcast %cst_142 : f32 to vector<2x32xf32>
    %473 = arith.addf %472, %471 : vector<2x32xf32>
    %474 = arith.divf %472, %473 : vector<2x32xf32>
    %cst_143 = arith.constant dense<0.000000e+00> : vector<2x32xf32>
    %475 = tpu.matmul %434, %21, %cst_143 {dimension_numbers = #tpu.dot_dimension_numbers<[1], [0], [0], [1], [0, 0, 1, 1], [], []>} : vector<2x32xf32>, vector<32x32xf32>, vector<2x32xf32> -> vector<2x32xf32>
    %476 = arith.addf %466, %475 : vector<2x32xf32>
    %477 = arith.negf %476 : vector<2x32xf32>
    %478 = math.exp %477 : vector<2x32xf32>
    %cst_144 = arith.constant 1.000000e+00 : f32
    %479 = vector.broadcast %cst_144 : f32 to vector<2x32xf32>
    %480 = arith.addf %479, %478 : vector<2x32xf32>
    %481 = arith.divf %479, %480 : vector<2x32xf32>
    %cst_145 = arith.constant dense<0.000000e+00> : vector<2x32xf32>
    %482 = tpu.matmul %434, %23, %cst_145 {dimension_numbers = #tpu.dot_dimension_numbers<[1], [0], [0], [1], [0, 0, 1, 1], [], []>} : vector<2x32xf32>, vector<32x32xf32>, vector<2x32xf32> -> vector<2x32xf32>
    %483 = vector.broadcast %27 : vector<1x32xf32> to vector<2x32xf32>
    %484 = arith.addf %482, %483 : vector<2x32xf32>
    %485 = arith.mulf %474, %484 : vector<2x32xf32>
    %486 = arith.addf %467, %485 : vector<2x32xf32>
    %487 = math.tanh %486 : vector<2x32xf32>
    %cst_146 = arith.constant 1.000000e+00 : f32
    %488 = vector.broadcast %cst_146 : f32 to vector<2x32xf32>
    %489 = arith.subf %488, %481 : vector<2x32xf32>
    %490 = arith.mulf %489, %487 : vector<2x32xf32>
    %491 = arith.mulf %481, %434 : vector<2x32xf32>
    %492 = arith.addf %490, %491 : vector<2x32xf32>
    %c0_147 = arith.constant 0 : index
    %c0_148 = arith.constant 0 : index
    %493 = vector.load %arg15[%c0_147, %c0_148] : memref<16x32xf32, #tpu.memory_space<vmem>>, vector<2x32xf32>
    tpu.vector_store %arg15[%c0_147, %c0_148], %492 {strides = array<i32>} : memref<16x32xf32, #tpu.memory_space<vmem>>, vector<2x32xf32>,
    %c0_149 = arith.constant 0 : index
    %c0_150 = arith.constant 0 : index
    %494 = vector.load %arg5[%c0_149, %c0_150] : memref<64x192xf32, #tpu.memory_space<vmem>>, vector<64x192xf32>
    %c0_151 = arith.constant 0 : index
    %c0_152 = arith.constant 0 : index
    %495 = vector.load %arg14[%c0_151, %c0_152] : memref<16x32xf32, #tpu.memory_space<vmem>>, vector<16x32xf32>
    %496 = vector.extract_strided_slice %494 {offsets = [0, 0], sizes = [32, 192], strides = [1, 1]} : vector<64x192xf32> to vector<32x192xf32>
    %cst_153 = arith.constant dense<0.000000e+00> : vector<16x192xf32>
    %497 = tpu.matmul %495, %496, %cst_153 {dimension_numbers = #tpu.dot_dimension_numbers<[1], [0], [0], [1], [0, 0, 1, 1], [], []>} : vector<16x32xf32>, vector<32x192xf32>, vector<16x192xf32> -> vector<16x192xf32>
    %c0_154 = arith.constant 0 : index
    %c0_155 = arith.constant 0 : index
    %498 = vector.load %arg15[%c0_154, %c0_155] : memref<16x32xf32, #tpu.memory_space<vmem>>, vector<16x32xf32>
    %499 = vector.extract_strided_slice %494 {offsets = [32, 0], sizes = [32, 192], strides = [1, 1]} : vector<64x192xf32> to vector<32x192xf32>
    %cst_156 = arith.constant dense<0.000000e+00> : vector<16x192xf32>
    %500 = tpu.matmul %498, %499, %cst_156 {dimension_numbers = #tpu.dot_dimension_numbers<[1], [0], [0], [1], [0, 0, 1, 1], [], []>} : vector<16x32xf32>, vector<32x192xf32>, vector<16x192xf32> -> vector<16x192xf32>
    %501 = arith.addf %497, %500 : vector<16x192xf32>
    %c0_157 = arith.constant 0 : index
    %c0_158 = arith.constant 0 : index
    %502 = vector.load %arg6[%c0_157, %c0_158] : memref<1x192xf32, #tpu.memory_space<vmem>>, vector<1x192xf32>
    %503 = vector.broadcast %502 : vector<1x192xf32> to vector<16x192xf32>
    %504 = arith.addf %501, %503 : vector<16x192xf32>
    %505 = vector.extract_strided_slice %504 {offsets = [0, 0], sizes = [16, 32], strides = [1, 1]} : vector<16x192xf32> to vector<16x32xf32>
    %506 = vector.extract_strided_slice %504 {offsets = [0, 32], sizes = [16, 32], strides = [1, 1]} : vector<16x192xf32> to vector<16x32xf32>
    %507 = vector.extract_strided_slice %504 {offsets = [0, 64], sizes = [16, 32], strides = [1, 1]} : vector<16x192xf32> to vector<16x32xf32>
    %508 = vector.extract_strided_slice %504 {offsets = [0, 96], sizes = [16, 32], strides = [1, 1]} : vector<16x192xf32> to vector<16x32xf32>
    %509 = vector.extract_strided_slice %504 {offsets = [0, 128], sizes = [16, 32], strides = [1, 1]} : vector<16x192xf32> to vector<16x32xf32>
    %510 = vector.extract_strided_slice %504 {offsets = [0, 160], sizes = [16, 32], strides = [1, 1]} : vector<16x192xf32> to vector<16x32xf32>
    %c0_159 = arith.constant 0 : index
    %c0_160 = arith.constant 0 : index
    %c0_161 = arith.constant 0 : index
    %511 = vector.load %arg7[%c0_159, %c0_160, %c0_161] : memref<6x32x32xf32, #tpu.memory_space<vmem>>, vector<1x32x32xf32>
    %512 = vector.shape_cast %511 : vector<1x32x32xf32> to vector<32x32xf32>
    %c1_162 = arith.constant 1 : index
    %c0_163 = arith.constant 0 : index
    %c0_164 = arith.constant 0 : index
    %513 = vector.load %arg7[%c1_162, %c0_163, %c0_164] : memref<6x32x32xf32, #tpu.memory_space<vmem>>, vector<1x32x32xf32>
    %514 = vector.shape_cast %513 : vector<1x32x32xf32> to vector<32x32xf32>
    %c2_165 = arith.constant 2 : index
    %c0_166 = arith.constant 0 : index
    %c0_167 = arith.constant 0 : index
    %515 = vector.load %arg7[%c2_165, %c0_166, %c0_167] : memref<6x32x32xf32, #tpu.memory_space<vmem>>, vector<1x32x32xf32>
    %516 = vector.shape_cast %515 : vector<1x32x32xf32> to vector<32x32xf32>
    %c3_168 = arith.constant 3 : index
    %c0_169 = arith.constant 0 : index
    %c0_170 = arith.constant 0 : index
    %517 = vector.load %arg7[%c3_168, %c0_169, %c0_170] : memref<6x32x32xf32, #tpu.memory_space<vmem>>, vector<1x32x32xf32>
    %518 = vector.shape_cast %517 : vector<1x32x32xf32> to vector<32x32xf32>
    %c4_171 = arith.constant 4 : index
    %c0_172 = arith.constant 0 : index
    %c0_173 = arith.constant 0 : index
    %519 = vector.load %arg7[%c4_171, %c0_172, %c0_173] : memref<6x32x32xf32, #tpu.memory_space<vmem>>, vector<1x32x32xf32>
    %520 = vector.shape_cast %519 : vector<1x32x32xf32> to vector<32x32xf32>
    %c5_174 = arith.constant 5 : index
    %c0_175 = arith.constant 0 : index
    %c0_176 = arith.constant 0 : index
    %521 = vector.load %arg7[%c5_174, %c0_175, %c0_176] : memref<6x32x32xf32, #tpu.memory_space<vmem>>, vector<1x32x32xf32>
    %522 = vector.shape_cast %521 : vector<1x32x32xf32> to vector<32x32xf32>
    %c0_177 = arith.constant 0 : index
    %c0_178 = arith.constant 0 : index
    %c0_179 = arith.constant 0 : index
    %523 = vector.load %arg8[%c0_177, %c0_178, %c0_179] : memref<2x1x32xf32, #tpu.memory_space<vmem>>, vector<1x1x32xf32>
    %524 = vector.shape_cast %523 : vector<1x1x32xf32> to vector<1x32xf32>
    %c1_180 = arith.constant 1 : index
    %c0_181 = arith.constant 0 : index
    %c0_182 = arith.constant 0 : index
    %525 = vector.load %arg8[%c1_180, %c0_181, %c0_182] : memref<2x1x32xf32, #tpu.memory_space<vmem>>, vector<1x1x32xf32>
    %526 = vector.shape_cast %525 : vector<1x1x32xf32> to vector<1x32xf32>
    %cst_183 = arith.constant 0.000000e+00 : f32
    %527 = vector.broadcast %cst_183 : f32 to vector<2x32xf32>
    %cst_184 = arith.constant 0.000000e+00 : f32
    %528 = vector.broadcast %cst_184 : f32 to vector<2x32xf32>
    %529 = vector.extract_strided_slice %505 {offsets = [0, 0], sizes = [2, 32], strides = [1, 1]} : vector<16x32xf32> to vector<2x32xf32>
    %530 = vector.extract_strided_slice %506 {offsets = [0, 0], sizes = [2, 32], strides = [1, 1]} : vector<16x32xf32> to vector<2x32xf32>
    %531 = vector.extract_strided_slice %507 {offsets = [0, 0], sizes = [2, 32], strides = [1, 1]} : vector<16x32xf32> to vector<2x32xf32>
    %cst_185 = arith.constant dense<0.000000e+00> : vector<2x32xf32>
    %532 = tpu.matmul %527, %512, %cst_185 {dimension_numbers = #tpu.dot_dimension_numbers<[1], [0], [0], [1], [0, 0, 1, 1], [], []>} : vector<2x32xf32>, vector<32x32xf32>, vector<2x32xf32> -> vector<2x32xf32>
    %533 = arith.addf %529, %532 : vector<2x32xf32>
    %534 = arith.negf %533 : vector<2x32xf32>
    %535 = math.exp %534 : vector<2x32xf32>
    %cst_186 = arith.constant 1.000000e+00 : f32
    %536 = vector.broadcast %cst_186 : f32 to vector<2x32xf32>
    %537 = arith.addf %536, %535 : vector<2x32xf32>
    %538 = arith.divf %536, %537 : vector<2x32xf32>
    %cst_187 = arith.constant dense<0.000000e+00> : vector<2x32xf32>
    %539 = tpu.matmul %527, %514, %cst_187 {dimension_numbers = #tpu.dot_dimension_numbers<[1], [0], [0], [1], [0, 0, 1, 1], [], []>} : vector<2x32xf32>, vector<32x32xf32>, vector<2x32xf32> -> vector<2x32xf32>
    %540 = arith.addf %530, %539 : vector<2x32xf32>
    %541 = arith.negf %540 : vector<2x32xf32>
    %542 = math.exp %541 : vector<2x32xf32>
    %cst_188 = arith.constant 1.000000e+00 : f32
    %543 = vector.broadcast %cst_188 : f32 to vector<2x32xf32>
    %544 = arith.addf %543, %542 : vector<2x32xf32>
    %545 = arith.divf %543, %544 : vector<2x32xf32>
    %cst_189 = arith.constant dense<0.000000e+00> : vector<2x32xf32>
    %546 = tpu.matmul %527, %516, %cst_189 {dimension_numbers = #tpu.dot_dimension_numbers<[1], [0], [0], [1], [0, 0, 1, 1], [], []>} : vector<2x32xf32>, vector<32x32xf32>, vector<2x32xf32> -> vector<2x32xf32>
    %547 = vector.broadcast %524 : vector<1x32xf32> to vector<2x32xf32>
    %548 = arith.addf %546, %547 : vector<2x32xf32>
    %549 = arith.mulf %538, %548 : vector<2x32xf32>
    %550 = arith.addf %531, %549 : vector<2x32xf32>
    %551 = math.tanh %550 : vector<2x32xf32>
    %cst_190 = arith.constant 1.000000e+00 : f32
    %552 = vector.broadcast %cst_190 : f32 to vector<2x32xf32>
    %553 = arith.subf %552, %545 : vector<2x32xf32>
    %554 = arith.mulf %553, %551 : vector<2x32xf32>
    %555 = arith.mulf %545, %527 : vector<2x32xf32>
    %556 = arith.addf %554, %555 : vector<2x32xf32>
    %557 = vector.extract_strided_slice %508 {offsets = [14, 0], sizes = [2, 32], strides = [1, 1]} : vector<16x32xf32> to vector<2x32xf32>
    %558 = vector.extract_strided_slice %509 {offsets = [14, 0], sizes = [2, 32], strides = [1, 1]} : vector<16x32xf32> to vector<2x32xf32>
    %559 = vector.extract_strided_slice %510 {offsets = [14, 0], sizes = [2, 32], strides = [1, 1]} : vector<16x32xf32> to vector<2x32xf32>
    %cst_191 = arith.constant dense<0.000000e+00> : vector<2x32xf32>
    %560 = tpu.matmul %528, %518, %cst_191 {dimension_numbers = #tpu.dot_dimension_numbers<[1], [0], [0], [1], [0, 0, 1, 1], [], []>} : vector<2x32xf32>, vector<32x32xf32>, vector<2x32xf32> -> vector<2x32xf32>
    %561 = arith.addf %557, %560 : vector<2x32xf32>
    %562 = arith.negf %561 : vector<2x32xf32>
    %563 = math.exp %562 : vector<2x32xf32>
    %cst_192 = arith.constant 1.000000e+00 : f32
    %564 = vector.broadcast %cst_192 : f32 to vector<2x32xf32>
    %565 = arith.addf %564, %563 : vector<2x32xf32>
    %566 = arith.divf %564, %565 : vector<2x32xf32>
    %cst_193 = arith.constant dense<0.000000e+00> : vector<2x32xf32>
    %567 = tpu.matmul %528, %520, %cst_193 {dimension_numbers = #tpu.dot_dimension_numbers<[1], [0], [0], [1], [0, 0, 1, 1], [], []>} : vector<2x32xf32>, vector<32x32xf32>, vector<2x32xf32> -> vector<2x32xf32>
    %568 = arith.addf %558, %567 : vector<2x32xf32>
    %569 = arith.negf %568 : vector<2x32xf32>
    %570 = math.exp %569 : vector<2x32xf32>
    %cst_194 = arith.constant 1.000000e+00 : f32
    %571 = vector.broadcast %cst_194 : f32 to vector<2x32xf32>
    %572 = arith.addf %571, %570 : vector<2x32xf32>
    %573 = arith.divf %571, %572 : vector<2x32xf32>
    %cst_195 = arith.constant dense<0.000000e+00> : vector<2x32xf32>
    %574 = tpu.matmul %528, %522, %cst_195 {dimension_numbers = #tpu.dot_dimension_numbers<[1], [0], [0], [1], [0, 0, 1, 1], [], []>} : vector<2x32xf32>, vector<32x32xf32>, vector<2x32xf32> -> vector<2x32xf32>
    %575 = vector.broadcast %526 : vector<1x32xf32> to vector<2x32xf32>
    %576 = arith.addf %574, %575 : vector<2x32xf32>
    %577 = arith.mulf %566, %576 : vector<2x32xf32>
    %578 = arith.addf %559, %577 : vector<2x32xf32>
    %579 = math.tanh %578 : vector<2x32xf32>
    %cst_196 = arith.constant 1.000000e+00 : f32
    %580 = vector.broadcast %cst_196 : f32 to vector<2x32xf32>
    %581 = arith.subf %580, %573 : vector<2x32xf32>
    %582 = arith.mulf %581, %579 : vector<2x32xf32>
    %583 = arith.mulf %573, %528 : vector<2x32xf32>
    %584 = arith.addf %582, %583 : vector<2x32xf32>
    %585 = vector.extract_strided_slice %505 {offsets = [2, 0], sizes = [2, 32], strides = [1, 1]} : vector<16x32xf32> to vector<2x32xf32>
    %586 = vector.extract_strided_slice %506 {offsets = [2, 0], sizes = [2, 32], strides = [1, 1]} : vector<16x32xf32> to vector<2x32xf32>
    %587 = vector.extract_strided_slice %507 {offsets = [2, 0], sizes = [2, 32], strides = [1, 1]} : vector<16x32xf32> to vector<2x32xf32>
    %cst_197 = arith.constant dense<0.000000e+00> : vector<2x32xf32>
    %588 = tpu.matmul %556, %512, %cst_197 {dimension_numbers = #tpu.dot_dimension_numbers<[1], [0], [0], [1], [0, 0, 1, 1], [], []>} : vector<2x32xf32>, vector<32x32xf32>, vector<2x32xf32> -> vector<2x32xf32>
    %589 = arith.addf %585, %588 : vector<2x32xf32>
    %590 = arith.negf %589 : vector<2x32xf32>
    %591 = math.exp %590 : vector<2x32xf32>
    %cst_198 = arith.constant 1.000000e+00 : f32
    %592 = vector.broadcast %cst_198 : f32 to vector<2x32xf32>
    %593 = arith.addf %592, %591 : vector<2x32xf32>
    %594 = arith.divf %592, %593 : vector<2x32xf32>
    %cst_199 = arith.constant dense<0.000000e+00> : vector<2x32xf32>
    %595 = tpu.matmul %556, %514, %cst_199 {dimension_numbers = #tpu.dot_dimension_numbers<[1], [0], [0], [1], [0, 0, 1, 1], [], []>} : vector<2x32xf32>, vector<32x32xf32>, vector<2x32xf32> -> vector<2x32xf32>
    %596 = arith.addf %586, %595 : vector<2x32xf32>
    %597 = arith.negf %596 : vector<2x32xf32>
    %598 = math.exp %597 : vector<2x32xf32>
    %cst_200 = arith.constant 1.000000e+00 : f32
    %599 = vector.broadcast %cst_200 : f32 to vector<2x32xf32>
    %600 = arith.addf %599, %598 : vector<2x32xf32>
    %601 = arith.divf %599, %600 : vector<2x32xf32>
    %cst_201 = arith.constant dense<0.000000e+00> : vector<2x32xf32>
    %602 = tpu.matmul %556, %516, %cst_201 {dimension_numbers = #tpu.dot_dimension_numbers<[1], [0], [0], [1], [0, 0, 1, 1], [], []>} : vector<2x32xf32>, vector<32x32xf32>, vector<2x32xf32> -> vector<2x32xf32>
    %603 = vector.broadcast %524 : vector<1x32xf32> to vector<2x32xf32>
    %604 = arith.addf %602, %603 : vector<2x32xf32>
    %605 = arith.mulf %594, %604 : vector<2x32xf32>
    %606 = arith.addf %587, %605 : vector<2x32xf32>
    %607 = math.tanh %606 : vector<2x32xf32>
    %cst_202 = arith.constant 1.000000e+00 : f32
    %608 = vector.broadcast %cst_202 : f32 to vector<2x32xf32>
    %609 = arith.subf %608, %601 : vector<2x32xf32>
    %610 = arith.mulf %609, %607 : vector<2x32xf32>
    %611 = arith.mulf %601, %556 : vector<2x32xf32>
    %612 = arith.addf %610, %611 : vector<2x32xf32>
    %613 = vector.extract_strided_slice %505 {offsets = [4, 0], sizes = [2, 32], strides = [1, 1]} : vector<16x32xf32> to vector<2x32xf32>
    %614 = vector.extract_strided_slice %506 {offsets = [4, 0], sizes = [2, 32], strides = [1, 1]} : vector<16x32xf32> to vector<2x32xf32>
    %615 = vector.extract_strided_slice %507 {offsets = [4, 0], sizes = [2, 32], strides = [1, 1]} : vector<16x32xf32> to vector<2x32xf32>
    %cst_203 = arith.constant dense<0.000000e+00> : vector<2x32xf32>
    %616 = tpu.matmul %612, %512, %cst_203 {dimension_numbers = #tpu.dot_dimension_numbers<[1], [0], [0], [1], [0, 0, 1, 1], [], []>} : vector<2x32xf32>, vector<32x32xf32>, vector<2x32xf32> -> vector<2x32xf32>
    %617 = arith.addf %613, %616 : vector<2x32xf32>
    %618 = arith.negf %617 : vector<2x32xf32>
    %619 = math.exp %618 : vector<2x32xf32>
    %cst_204 = arith.constant 1.000000e+00 : f32
    %620 = vector.broadcast %cst_204 : f32 to vector<2x32xf32>
    %621 = arith.addf %620, %619 : vector<2x32xf32>
    %622 = arith.divf %620, %621 : vector<2x32xf32>
    %cst_205 = arith.constant dense<0.000000e+00> : vector<2x32xf32>
    %623 = tpu.matmul %612, %514, %cst_205 {dimension_numbers = #tpu.dot_dimension_numbers<[1], [0], [0], [1], [0, 0, 1, 1], [], []>} : vector<2x32xf32>, vector<32x32xf32>, vector<2x32xf32> -> vector<2x32xf32>
    %624 = arith.addf %614, %623 : vector<2x32xf32>
    %625 = arith.negf %624 : vector<2x32xf32>
    %626 = math.exp %625 : vector<2x32xf32>
    %cst_206 = arith.constant 1.000000e+00 : f32
    %627 = vector.broadcast %cst_206 : f32 to vector<2x32xf32>
    %628 = arith.addf %627, %626 : vector<2x32xf32>
    %629 = arith.divf %627, %628 : vector<2x32xf32>
    %cst_207 = arith.constant dense<0.000000e+00> : vector<2x32xf32>
    %630 = tpu.matmul %612, %516, %cst_207 {dimension_numbers = #tpu.dot_dimension_numbers<[1], [0], [0], [1], [0, 0, 1, 1], [], []>} : vector<2x32xf32>, vector<32x32xf32>, vector<2x32xf32> -> vector<2x32xf32>
    %631 = vector.broadcast %524 : vector<1x32xf32> to vector<2x32xf32>
    %632 = arith.addf %630, %631 : vector<2x32xf32>
    %633 = arith.mulf %622, %632 : vector<2x32xf32>
    %634 = arith.addf %615, %633 : vector<2x32xf32>
    %635 = math.tanh %634 : vector<2x32xf32>
    %cst_208 = arith.constant 1.000000e+00 : f32
    %636 = vector.broadcast %cst_208 : f32 to vector<2x32xf32>
    %637 = arith.subf %636, %629 : vector<2x32xf32>
    %638 = arith.mulf %637, %635 : vector<2x32xf32>
    %639 = arith.mulf %629, %612 : vector<2x32xf32>
    %640 = arith.addf %638, %639 : vector<2x32xf32>
    %641 = vector.extract_strided_slice %505 {offsets = [6, 0], sizes = [2, 32], strides = [1, 1]} : vector<16x32xf32> to vector<2x32xf32>
    %642 = vector.extract_strided_slice %506 {offsets = [6, 0], sizes = [2, 32], strides = [1, 1]} : vector<16x32xf32> to vector<2x32xf32>
    %643 = vector.extract_strided_slice %507 {offsets = [6, 0], sizes = [2, 32], strides = [1, 1]} : vector<16x32xf32> to vector<2x32xf32>
    %cst_209 = arith.constant dense<0.000000e+00> : vector<2x32xf32>
    %644 = tpu.matmul %640, %512, %cst_209 {dimension_numbers = #tpu.dot_dimension_numbers<[1], [0], [0], [1], [0, 0, 1, 1], [], []>} : vector<2x32xf32>, vector<32x32xf32>, vector<2x32xf32> -> vector<2x32xf32>
    %645 = arith.addf %641, %644 : vector<2x32xf32>
    %646 = arith.negf %645 : vector<2x32xf32>
    %647 = math.exp %646 : vector<2x32xf32>
    %cst_210 = arith.constant 1.000000e+00 : f32
    %648 = vector.broadcast %cst_210 : f32 to vector<2x32xf32>
    %649 = arith.addf %648, %647 : vector<2x32xf32>
    %650 = arith.divf %648, %649 : vector<2x32xf32>
    %cst_211 = arith.constant dense<0.000000e+00> : vector<2x32xf32>
    %651 = tpu.matmul %640, %514, %cst_211 {dimension_numbers = #tpu.dot_dimension_numbers<[1], [0], [0], [1], [0, 0, 1, 1], [], []>} : vector<2x32xf32>, vector<32x32xf32>, vector<2x32xf32> -> vector<2x32xf32>
    %652 = arith.addf %642, %651 : vector<2x32xf32>
    %653 = arith.negf %652 : vector<2x32xf32>
    %654 = math.exp %653 : vector<2x32xf32>
    %cst_212 = arith.constant 1.000000e+00 : f32
    %655 = vector.broadcast %cst_212 : f32 to vector<2x32xf32>
    %656 = arith.addf %655, %654 : vector<2x32xf32>
    %657 = arith.divf %655, %656 : vector<2x32xf32>
    %cst_213 = arith.constant dense<0.000000e+00> : vector<2x32xf32>
    %658 = tpu.matmul %640, %516, %cst_213 {dimension_numbers = #tpu.dot_dimension_numbers<[1], [0], [0], [1], [0, 0, 1, 1], [], []>} : vector<2x32xf32>, vector<32x32xf32>, vector<2x32xf32> -> vector<2x32xf32>
    %659 = vector.broadcast %524 : vector<1x32xf32> to vector<2x32xf32>
    %660 = arith.addf %658, %659 : vector<2x32xf32>
    %661 = arith.mulf %650, %660 : vector<2x32xf32>
    %662 = arith.addf %643, %661 : vector<2x32xf32>
    %663 = math.tanh %662 : vector<2x32xf32>
    %cst_214 = arith.constant 1.000000e+00 : f32
    %664 = vector.broadcast %cst_214 : f32 to vector<2x32xf32>
    %665 = arith.subf %664, %657 : vector<2x32xf32>
    %666 = arith.mulf %665, %663 : vector<2x32xf32>
    %667 = arith.mulf %657, %640 : vector<2x32xf32>
    %668 = arith.addf %666, %667 : vector<2x32xf32>
    %669 = vector.extract_strided_slice %505 {offsets = [8, 0], sizes = [2, 32], strides = [1, 1]} : vector<16x32xf32> to vector<2x32xf32>
    %670 = vector.extract_strided_slice %506 {offsets = [8, 0], sizes = [2, 32], strides = [1, 1]} : vector<16x32xf32> to vector<2x32xf32>
    %671 = vector.extract_strided_slice %507 {offsets = [8, 0], sizes = [2, 32], strides = [1, 1]} : vector<16x32xf32> to vector<2x32xf32>
    %cst_215 = arith.constant dense<0.000000e+00> : vector<2x32xf32>
    %672 = tpu.matmul %668, %512, %cst_215 {dimension_numbers = #tpu.dot_dimension_numbers<[1], [0], [0], [1], [0, 0, 1, 1], [], []>} : vector<2x32xf32>, vector<32x32xf32>, vector<2x32xf32> -> vector<2x32xf32>
    %673 = arith.addf %669, %672 : vector<2x32xf32>
    %674 = arith.negf %673 : vector<2x32xf32>
    %675 = math.exp %674 : vector<2x32xf32>
    %cst_216 = arith.constant 1.000000e+00 : f32
    %676 = vector.broadcast %cst_216 : f32 to vector<2x32xf32>
    %677 = arith.addf %676, %675 : vector<2x32xf32>
    %678 = arith.divf %676, %677 : vector<2x32xf32>
    %cst_217 = arith.constant dense<0.000000e+00> : vector<2x32xf32>
    %679 = tpu.matmul %668, %514, %cst_217 {dimension_numbers = #tpu.dot_dimension_numbers<[1], [0], [0], [1], [0, 0, 1, 1], [], []>} : vector<2x32xf32>, vector<32x32xf32>, vector<2x32xf32> -> vector<2x32xf32>
    %680 = arith.addf %670, %679 : vector<2x32xf32>
    %681 = arith.negf %680 : vector<2x32xf32>
    %682 = math.exp %681 : vector<2x32xf32>
    %cst_218 = arith.constant 1.000000e+00 : f32
    %683 = vector.broadcast %cst_218 : f32 to vector<2x32xf32>
    %684 = arith.addf %683, %682 : vector<2x32xf32>
    %685 = arith.divf %683, %684 : vector<2x32xf32>
    %cst_219 = arith.constant dense<0.000000e+00> : vector<2x32xf32>
    %686 = tpu.matmul %668, %516, %cst_219 {dimension_numbers = #tpu.dot_dimension_numbers<[1], [0], [0], [1], [0, 0, 1, 1], [], []>} : vector<2x32xf32>, vector<32x32xf32>, vector<2x32xf32> -> vector<2x32xf32>
    %687 = vector.broadcast %524 : vector<1x32xf32> to vector<2x32xf32>
    %688 = arith.addf %686, %687 : vector<2x32xf32>
    %689 = arith.mulf %678, %688 : vector<2x32xf32>
    %690 = arith.addf %671, %689 : vector<2x32xf32>
    %691 = math.tanh %690 : vector<2x32xf32>
    %cst_220 = arith.constant 1.000000e+00 : f32
    %692 = vector.broadcast %cst_220 : f32 to vector<2x32xf32>
    %693 = arith.subf %692, %685 : vector<2x32xf32>
    %694 = arith.mulf %693, %691 : vector<2x32xf32>
    %695 = arith.mulf %685, %668 : vector<2x32xf32>
    %696 = arith.addf %694, %695 : vector<2x32xf32>
    %697 = vector.extract_strided_slice %505 {offsets = [10, 0], sizes = [2, 32], strides = [1, 1]} : vector<16x32xf32> to vector<2x32xf32>
    %698 = vector.extract_strided_slice %506 {offsets = [10, 0], sizes = [2, 32], strides = [1, 1]} : vector<16x32xf32> to vector<2x32xf32>
    %699 = vector.extract_strided_slice %507 {offsets = [10, 0], sizes = [2, 32], strides = [1, 1]} : vector<16x32xf32> to vector<2x32xf32>
    %cst_221 = arith.constant dense<0.000000e+00> : vector<2x32xf32>
    %700 = tpu.matmul %696, %512, %cst_221 {dimension_numbers = #tpu.dot_dimension_numbers<[1], [0], [0], [1], [0, 0, 1, 1], [], []>} : vector<2x32xf32>, vector<32x32xf32>, vector<2x32xf32> -> vector<2x32xf32>
    %701 = arith.addf %697, %700 : vector<2x32xf32>
    %702 = arith.negf %701 : vector<2x32xf32>
    %703 = math.exp %702 : vector<2x32xf32>
    %cst_222 = arith.constant 1.000000e+00 : f32
    %704 = vector.broadcast %cst_222 : f32 to vector<2x32xf32>
    %705 = arith.addf %704, %703 : vector<2x32xf32>
    %706 = arith.divf %704, %705 : vector<2x32xf32>
    %cst_223 = arith.constant dense<0.000000e+00> : vector<2x32xf32>
    %707 = tpu.matmul %696, %514, %cst_223 {dimension_numbers = #tpu.dot_dimension_numbers<[1], [0], [0], [1], [0, 0, 1, 1], [], []>} : vector<2x32xf32>, vector<32x32xf32>, vector<2x32xf32> -> vector<2x32xf32>
    %708 = arith.addf %698, %707 : vector<2x32xf32>
    %709 = arith.negf %708 : vector<2x32xf32>
    %710 = math.exp %709 : vector<2x32xf32>
    %cst_224 = arith.constant 1.000000e+00 : f32
    %711 = vector.broadcast %cst_224 : f32 to vector<2x32xf32>
    %712 = arith.addf %711, %710 : vector<2x32xf32>
    %713 = arith.divf %711, %712 : vector<2x32xf32>
    %cst_225 = arith.constant dense<0.000000e+00> : vector<2x32xf32>
    %714 = tpu.matmul %696, %516, %cst_225 {dimension_numbers = #tpu.dot_dimension_numbers<[1], [0], [0], [1], [0, 0, 1, 1], [], []>} : vector<2x32xf32>, vector<32x32xf32>, vector<2x32xf32> -> vector<2x32xf32>
    %715 = vector.broadcast %524 : vector<1x32xf32> to vector<2x32xf32>
    %716 = arith.addf %714, %715 : vector<2x32xf32>
    %717 = arith.mulf %706, %716 : vector<2x32xf32>
    %718 = arith.addf %699, %717 : vector<2x32xf32>
    %719 = math.tanh %718 : vector<2x32xf32>
    %cst_226 = arith.constant 1.000000e+00 : f32
    %720 = vector.broadcast %cst_226 : f32 to vector<2x32xf32>
    %721 = arith.subf %720, %713 : vector<2x32xf32>
    %722 = arith.mulf %721, %719 : vector<2x32xf32>
    %723 = arith.mulf %713, %696 : vector<2x32xf32>
    %724 = arith.addf %722, %723 : vector<2x32xf32>
    %725 = vector.extract_strided_slice %505 {offsets = [12, 0], sizes = [2, 32], strides = [1, 1]} : vector<16x32xf32> to vector<2x32xf32>
    %726 = vector.extract_strided_slice %506 {offsets = [12, 0], sizes = [2, 32], strides = [1, 1]} : vector<16x32xf32> to vector<2x32xf32>
    %727 = vector.extract_strided_slice %507 {offsets = [12, 0], sizes = [2, 32], strides = [1, 1]} : vector<16x32xf32> to vector<2x32xf32>
    %cst_227 = arith.constant dense<0.000000e+00> : vector<2x32xf32>
    %728 = tpu.matmul %724, %512, %cst_227 {dimension_numbers = #tpu.dot_dimension_numbers<[1], [0], [0], [1], [0, 0, 1, 1], [], []>} : vector<2x32xf32>, vector<32x32xf32>, vector<2x32xf32> -> vector<2x32xf32>
    %729 = arith.addf %725, %728 : vector<2x32xf32>
    %730 = arith.negf %729 : vector<2x32xf32>
    %731 = math.exp %730 : vector<2x32xf32>
    %cst_228 = arith.constant 1.000000e+00 : f32
    %732 = vector.broadcast %cst_228 : f32 to vector<2x32xf32>
    %733 = arith.addf %732, %731 : vector<2x32xf32>
    %734 = arith.divf %732, %733 : vector<2x32xf32>
    %cst_229 = arith.constant dense<0.000000e+00> : vector<2x32xf32>
    %735 = tpu.matmul %724, %514, %cst_229 {dimension_numbers = #tpu.dot_dimension_numbers<[1], [0], [0], [1], [0, 0, 1, 1], [], []>} : vector<2x32xf32>, vector<32x32xf32>, vector<2x32xf32> -> vector<2x32xf32>
    %736 = arith.addf %726, %735 : vector<2x32xf32>
    %737 = arith.negf %736 : vector<2x32xf32>
    %738 = math.exp %737 : vector<2x32xf32>
    %cst_230 = arith.constant 1.000000e+00 : f32
    %739 = vector.broadcast %cst_230 : f32 to vector<2x32xf32>
    %740 = arith.addf %739, %738 : vector<2x32xf32>
    %741 = arith.divf %739, %740 : vector<2x32xf32>
    %cst_231 = arith.constant dense<0.000000e+00> : vector<2x32xf32>
    %742 = tpu.matmul %724, %516, %cst_231 {dimension_numbers = #tpu.dot_dimension_numbers<[1], [0], [0], [1], [0, 0, 1, 1], [], []>} : vector<2x32xf32>, vector<32x32xf32>, vector<2x32xf32> -> vector<2x32xf32>
    %743 = vector.broadcast %524 : vector<1x32xf32> to vector<2x32xf32>
    %744 = arith.addf %742, %743 : vector<2x32xf32>
    %745 = arith.mulf %734, %744 : vector<2x32xf32>
    %746 = arith.addf %727, %745 : vector<2x32xf32>
    %747 = math.tanh %746 : vector<2x32xf32>
    %cst_232 = arith.constant 1.000000e+00 : f32
    %748 = vector.broadcast %cst_232 : f32 to vector<2x32xf32>
    %749 = arith.subf %748, %741 : vector<2x32xf32>
    %750 = arith.mulf %749, %747 : vector<2x32xf32>
    %751 = arith.mulf %741, %724 : vector<2x32xf32>
    %752 = arith.addf %750, %751 : vector<2x32xf32>
    %753 = vector.extract_strided_slice %505 {offsets = [14, 0], sizes = [2, 32], strides = [1, 1]} : vector<16x32xf32> to vector<2x32xf32>
    %754 = vector.extract_strided_slice %506 {offsets = [14, 0], sizes = [2, 32], strides = [1, 1]} : vector<16x32xf32> to vector<2x32xf32>
    %755 = vector.extract_strided_slice %507 {offsets = [14, 0], sizes = [2, 32], strides = [1, 1]} : vector<16x32xf32> to vector<2x32xf32>
    %cst_233 = arith.constant dense<0.000000e+00> : vector<2x32xf32>
    %756 = tpu.matmul %752, %512, %cst_233 {dimension_numbers = #tpu.dot_dimension_numbers<[1], [0], [0], [1], [0, 0, 1, 1], [], []>} : vector<2x32xf32>, vector<32x32xf32>, vector<2x32xf32> -> vector<2x32xf32>
    %757 = arith.addf %753, %756 : vector<2x32xf32>
    %758 = arith.negf %757 : vector<2x32xf32>
    %759 = math.exp %758 : vector<2x32xf32>
    %cst_234 = arith.constant 1.000000e+00 : f32
    %760 = vector.broadcast %cst_234 : f32 to vector<2x32xf32>
    %761 = arith.addf %760, %759 : vector<2x32xf32>
    %762 = arith.divf %760, %761 : vector<2x32xf32>
    %cst_235 = arith.constant dense<0.000000e+00> : vector<2x32xf32>
    %763 = tpu.matmul %752, %514, %cst_235 {dimension_numbers = #tpu.dot_dimension_numbers<[1], [0], [0], [1], [0, 0, 1, 1], [], []>} : vector<2x32xf32>, vector<32x32xf32>, vector<2x32xf32> -> vector<2x32xf32>
    %764 = arith.addf %754, %763 : vector<2x32xf32>
    %765 = arith.negf %764 : vector<2x32xf32>
    %766 = math.exp %765 : vector<2x32xf32>
    %cst_236 = arith.constant 1.000000e+00 : f32
    %767 = vector.broadcast %cst_236 : f32 to vector<2x32xf32>
    %768 = arith.addf %767, %766 : vector<2x32xf32>
    %769 = arith.divf %767, %768 : vector<2x32xf32>
    %cst_237 = arith.constant dense<0.000000e+00> : vector<2x32xf32>
    %770 = tpu.matmul %752, %516, %cst_237 {dimension_numbers = #tpu.dot_dimension_numbers<[1], [0], [0], [1], [0, 0, 1, 1], [], []>} : vector<2x32xf32>, vector<32x32xf32>, vector<2x32xf32> -> vector<2x32xf32>
    %771 = vector.broadcast %524 : vector<1x32xf32> to vector<2x32xf32>
    %772 = arith.addf %770, %771 : vector<2x32xf32>
    %773 = arith.mulf %762, %772 : vector<2x32xf32>
    %774 = arith.addf %755, %773 : vector<2x32xf32>
    %775 = math.tanh %774 : vector<2x32xf32>
    %cst_238 = arith.constant 1.000000e+00 : f32
    %776 = vector.broadcast %cst_238 : f32 to vector<2x32xf32>
    %777 = arith.subf %776, %769 : vector<2x32xf32>
    %778 = arith.mulf %777, %775 : vector<2x32xf32>
    %779 = arith.mulf %769, %752 : vector<2x32xf32>
    %780 = arith.addf %778, %779 : vector<2x32xf32>
    %c0_239 = arith.constant 0 : index
    %c0_240 = arith.constant 0 : index
    %781 = vector.load %arg9[%c0_239, %c0_240] : memref<1x64xf32, #tpu.memory_space<vmem>>, vector<1x64xf32>
    %c0_241 = arith.constant 0 : index
    %c0_242 = arith.constant 0 : index
    %782 = vector.load %arg10[%c0_241, %c0_242] : memref<1x64xf32, #tpu.memory_space<vmem>>, vector<1x64xf32>
    %c0_243 = arith.constant 0 : index
    %c0_244 = arith.constant 0 : index
    %783 = vector.load %arg11[%c0_243, %c0_244] : memref<64x6xf32, #tpu.memory_space<vmem>>, vector<64x6xf32>
    %c0_245 = arith.constant 0 : index
    %c0_246 = arith.constant 0 : index
    %784 = vector.load %arg12[%c0_245, %c0_246] : memref<1x6xf32, #tpu.memory_space<vmem>>, vector<1x6xf32>
    %785 = vector.extract_strided_slice %781 {offsets = [0, 0], sizes = [1, 32], strides = [1, 1]} : vector<1x64xf32> to vector<1x32xf32>
    %786 = vector.extract_strided_slice %782 {offsets = [0, 0], sizes = [1, 32], strides = [1, 1]} : vector<1x64xf32> to vector<1x32xf32>
    %cst_247 = arith.constant dense<0.000000e+00> : vector<32xf32>
    %787 = vector.multi_reduction <add>, %780, %cst_247 [0] : vector<2x32xf32> to vector<32xf32>
    %788 = vector.shape_cast %787 : vector<32xf32> to vector<1x32xf32>
    %cst_248 = arith.constant 2.000000e+00 : f32
    %789 = vector.broadcast %cst_248 : f32 to vector<1x32xf32>
    %790 = arith.divf %788, %789 : vector<1x32xf32>
    %791 = vector.broadcast %790 : vector<1x32xf32> to vector<2x32xf32>
    %792 = arith.subf %780, %791 : vector<2x32xf32>
    %793 = arith.mulf %792, %792 : vector<2x32xf32>
    %cst_249 = arith.constant dense<0.000000e+00> : vector<32xf32>
    %794 = vector.multi_reduction <add>, %793, %cst_249 [0] : vector<2x32xf32> to vector<32xf32>
    %795 = vector.shape_cast %794 : vector<32xf32> to vector<1x32xf32>
    %cst_250 = arith.constant 2.000000e+00 : f32
    %796 = vector.broadcast %cst_250 : f32 to vector<1x32xf32>
    %797 = arith.divf %795, %796 : vector<1x32xf32>
    %798 = vector.broadcast %790 : vector<1x32xf32> to vector<2x32xf32>
    %799 = arith.subf %780, %798 : vector<2x32xf32>
    %cst_251 = arith.constant 9.99999974E-6 : f32
    %800 = vector.broadcast %cst_251 : f32 to vector<1x32xf32>
    %801 = arith.addf %797, %800 : vector<1x32xf32>
    %802 = math.rsqrt %801 : vector<1x32xf32>
    %803 = vector.broadcast %802 : vector<1x32xf32> to vector<2x32xf32>
    %804 = arith.mulf %799, %803 : vector<2x32xf32>
    %805 = vector.broadcast %785 : vector<1x32xf32> to vector<2x32xf32>
    %806 = arith.mulf %804, %805 : vector<2x32xf32>
    %807 = vector.broadcast %786 : vector<1x32xf32> to vector<2x32xf32>
    %808 = arith.addf %806, %807 : vector<2x32xf32>
    %cst_252 = arith.constant 0.000000e+00 : f32
    %809 = vector.broadcast %cst_252 : f32 to vector<2x32xf32>
    %810 = arith.maximumf %808, %809 : vector<2x32xf32>
    %811 = vector.extract_strided_slice %781 {offsets = [0, 32], sizes = [1, 32], strides = [1, 1]} : vector<1x64xf32> to vector<1x32xf32>
    %812 = vector.extract_strided_slice %782 {offsets = [0, 32], sizes = [1, 32], strides = [1, 1]} : vector<1x64xf32> to vector<1x32xf32>
    %cst_253 = arith.constant dense<0.000000e+00> : vector<32xf32>
    %813 = vector.multi_reduction <add>, %584, %cst_253 [0] : vector<2x32xf32> to vector<32xf32>
    %814 = vector.shape_cast %813 : vector<32xf32> to vector<1x32xf32>
    %cst_254 = arith.constant 2.000000e+00 : f32
    %815 = vector.broadcast %cst_254 : f32 to vector<1x32xf32>
    %816 = arith.divf %814, %815 : vector<1x32xf32>
    %817 = vector.broadcast %816 : vector<1x32xf32> to vector<2x32xf32>
    %818 = arith.subf %584, %817 : vector<2x32xf32>
    %819 = arith.mulf %818, %818 : vector<2x32xf32>
    %cst_255 = arith.constant dense<0.000000e+00> : vector<32xf32>
    %820 = vector.multi_reduction <add>, %819, %cst_255 [0] : vector<2x32xf32> to vector<32xf32>
    %821 = vector.shape_cast %820 : vector<32xf32> to vector<1x32xf32>
    %cst_256 = arith.constant 2.000000e+00 : f32
    %822 = vector.broadcast %cst_256 : f32 to vector<1x32xf32>
    %823 = arith.divf %821, %822 : vector<1x32xf32>
    %824 = vector.broadcast %816 : vector<1x32xf32> to vector<2x32xf32>
    %825 = arith.subf %584, %824 : vector<2x32xf32>
    %cst_257 = arith.constant 9.99999974E-6 : f32
    %826 = vector.broadcast %cst_257 : f32 to vector<1x32xf32>
    %827 = arith.addf %823, %826 : vector<1x32xf32>
    %828 = math.rsqrt %827 : vector<1x32xf32>
    %829 = vector.broadcast %828 : vector<1x32xf32> to vector<2x32xf32>
    %830 = arith.mulf %825, %829 : vector<2x32xf32>
    %831 = vector.broadcast %811 : vector<1x32xf32> to vector<2x32xf32>
    %832 = arith.mulf %830, %831 : vector<2x32xf32>
    %833 = vector.broadcast %812 : vector<1x32xf32> to vector<2x32xf32>
    %834 = arith.addf %832, %833 : vector<2x32xf32>
    %cst_258 = arith.constant 0.000000e+00 : f32
    %835 = vector.broadcast %cst_258 : f32 to vector<2x32xf32>
    %836 = arith.maximumf %834, %835 : vector<2x32xf32>
    %837 = vector.extract_strided_slice %783 {offsets = [0, 0], sizes = [32, 6], strides = [1, 1]} : vector<64x6xf32> to vector<32x6xf32>
    %cst_259 = arith.constant dense<0.000000e+00> : vector<2x6xf32>
    %838 = tpu.matmul %810, %837, %cst_259 {dimension_numbers = #tpu.dot_dimension_numbers<[1], [0], [0], [1], [0, 0, 1, 1], [], []>} : vector<2x32xf32>, vector<32x6xf32>, vector<2x6xf32> -> vector<2x6xf32>
    %839 = vector.extract_strided_slice %783 {offsets = [32, 0], sizes = [32, 6], strides = [1, 1]} : vector<64x6xf32> to vector<32x6xf32>
    %cst_260 = arith.constant dense<0.000000e+00> : vector<2x6xf32>
    %840 = tpu.matmul %836, %839, %cst_260 {dimension_numbers = #tpu.dot_dimension_numbers<[1], [0], [0], [1], [0, 0, 1, 1], [], []>} : vector<2x32xf32>, vector<32x6xf32>, vector<2x6xf32> -> vector<2x6xf32>
    %841 = arith.addf %838, %840 : vector<2x6xf32>
    %842 = vector.broadcast %784 : vector<1x6xf32> to vector<2x6xf32>
    %843 = arith.addf %841, %842 : vector<2x6xf32>
    %c0_261 = arith.constant 0 : index
    %c0_262 = arith.constant 0 : index
    %844 = vector.load %arg13[%c0_261, %c0_262] : memref<2x6xf32, #tpu.memory_space<vmem>>, vector<2x6xf32>
    tpu.vector_store %arg13[%c0_261, %c0_262], %843 {strides = array<i32>} : memref<2x6xf32, #tpu.memory_space<vmem>>, vector<2x6xf32>,
    return
  }
}

</mosaic_0001>

<llo_original>
// kernel: seq_classifier_forward.1
$region0: #{seq_classifier_forward.1}
  #allocation0 [shape = 'u32[]', space=smem, size = 0x4, offset = 0x4, fixed_abs, tag = 'smem constant byte address 0x4 - core index']
  #allocation1 [shape = 'u32[144,128]{1,0:T(1,128)}', space=vmem, size = 0x12000, scoped, tag = 'internal scratch']
  #allocation2 [shape = 'f32[16,32]{1,0:T(8,128)}', space=vmem, size = 0x2000, scoped, tag = 'scratch operand']
  #allocation3 [shape = 'f32[16,32]{1,0:T(8,128)}', space=vmem, size = 0x2000, scoped, tag = 'scratch operand']
  %s0 = inlined_call_operand.vmem [shape: f32[16,32], index: 0, kind: input, shape index: {}]
  %s1 = inlined_call_operand.hbm [shape: f32[32,192], index: 1, kind: input, shape index: {}]
  %s2 = inlined_call_operand.vmem [shape: f32[1,192], index: 2, kind: input, shape index: {}]
  %s3 = inlined_call_operand.vmem [shape: f32[6,32,32], index: 3, kind: input, shape index: {}]
  %s4 = inlined_call_operand.vmem [shape: f32[2,1,32], index: 4, kind: input, shape index: {}]
  %s5 = inlined_call_operand.hbm [shape: f32[64,192], index: 5, kind: input, shape index: {}]
  %s6 = inlined_call_operand.vmem [shape: f32[1,192], index: 6, kind: input, shape index: {}]
  %s7 = inlined_call_operand.vmem [shape: f32[6,32,32], index: 7, kind: input, shape index: {}]
  %s8 = inlined_call_operand.vmem [shape: f32[2,1,32], index: 8, kind: input, shape index: {}]
  %s9 = inlined_call_operand.vmem [shape: f32[1,64], index: 9, kind: input, shape index: {}]
  %s10 = inlined_call_operand.hbm [shape: f32[1,64], index: 10, kind: input, shape index: {}]
  %s11 = inlined_call_operand.vmem [shape: f32[64,6], index: 11, kind: input, shape index: {}]
  %s12 = inlined_call_operand.hbm [shape: f32[1,6], index: 12, kind: input, shape index: {}]
  %s13 = inlined_call_operand.hbm [shape: f32[2,6], index: 13, kind: output, shape index: {}]
  %s14 = sld [smem:[#allocation0]]
  $region78: #{seq_classifier_forward.1} parent=0
    _
  %s16 = ssub.s32 1, %s14
  %s17 = scalar_select 0, %s16, %s14
  $region1: #{seq_classifier_forward.1} parent=0
    #allocation4 [shape = 'u8[32768]{0}', space=vmem, size = 0x8000, scoped, tag = 'input window, operand 1, single buffered']
    #allocation5 [shape = 's32[1]{0}', space=sflag, size = 0x4, scoped, tag = 'scoped memory for seq_classifier_forward.1']
    #allocation6 [shape = 's32[1]{0}', space=sflag, size = 0x4, scoped, tag = 'scoped memory for seq_classifier_forward.1']
    #allocation7 [shape = 'u8[65536]{0}', space=vmem, size = 0x10000, scoped, tag = 'input window, operand 5, single buffered']
    #allocation8 [shape = 's32[1]{0}', space=sflag, size = 0x4, scoped, tag = 'scoped memory for seq_classifier_forward.1']
    #allocation9 [shape = 'u8[512]{0}', space=vmem, size = 0x400, scoped, tag = 'input window, operand 10, single buffered']
    #allocation10 [shape = 'u8[512]{0}', space=vmem, size = 0x400, scoped, tag = 'input window, operand 12, single buffered']
    #allocation11 [shape = 's32[1]{0}', space=sflag, size = 0x4, scoped, tag = 'scoped memory for seq_classifier_forward.1']
    #allocation12 [shape = 'u8[1024]{0}', space=vmem, size = 0x400, scoped, tag = 'output window, operand 0, single buffered']
    %18 = vsyncpa [#allocation5], 0
    %19 = vsyncpa [#allocation8], 0
    %20 = vsyncpa [#allocation11], 0
    %21 = vsyncpa [#allocation6], 0
    // Predicated region
    $region2: #{seq_classifier_forward.1} parent=1 // pred_check
      _
    $region3: #{seq_classifier_forward.1} parent=1 // pred_check_branch
      %23 = sbr.rel (0) target = $region5
    $region4: #{seq_classifier_forward.1} parent=1 // pred_region
      _
    $region5: #{seq_classifier_forward.1} parent=1 // pred_fallthru
      _
    // Predicated region
    $region6: #{seq_classifier_forward.1} parent=1 // pred_check
      _
    $region7: #{seq_classifier_forward.1} parent=1 // pred_check_branch
      %25 = sbr.rel (0) target = $region9
    $region8: #{seq_classifier_forward.1} parent=1 // pred_region
      %s27 = ssub.s32 1024, 1024
      %28 = vsyncadd [#allocation5], %s27
      %s29 = sshll.u32 [#allocation4], 4
      %s30 = int_to_ptr.vmem [resolvable:$true] %s29
      %35 = dma.hbm_to_vmem [thread:$0]  %s1, 1024, %s30, [#allocation5], 256, 256, 16
    $region9: #{seq_classifier_forward.1} parent=1 // pred_fallthru
      _
    // Predicated region
    $region10: #{seq_classifier_forward.1} parent=1 // pred_check
      _
    $region11: #{seq_classifier_forward.1} parent=1 // pred_check_branch
      %37 = sbr.rel (0) target = $region13
    $region12: #{seq_classifier_forward.1} parent=1 // pred_region
      _
    $region13: #{seq_classifier_forward.1} parent=1 // pred_fallthru
      _
    // Predicated region
    $region14: #{seq_classifier_forward.1} parent=1 // pred_check
      _
    $region15: #{seq_classifier_forward.1} parent=1 // pred_check_branch
      %39 = sbr.rel (0) target = $region17
    $region16: #{seq_classifier_forward.1} parent=1 // pred_region
      _
    $region17: #{seq_classifier_forward.1} parent=1 // pred_fallthru
      _
    // Predicated region
    $region18: #{seq_classifier_forward.1} parent=1 // pred_check
      _
    $region19: #{seq_classifier_forward.1} parent=1 // pred_check_branch
      %41 = sbr.rel (0) target = $region21
    $region20: #{seq_classifier_forward.1} parent=1 // pred_region
      _
    $region21: #{seq_classifier_forward.1} parent=1 // pred_fallthru
      _
    // Predicated region
    $region22: #{seq_classifier_forward.1} parent=1 // pred_check
      _
    $region23: #{seq_classifier_forward.1} parent=1 // pred_check_branch
      %43 = sbr.rel (0) target = $region25
    $region24: #{seq_classifier_forward.1} parent=1 // pred_region
      %s45 = ssub.s32 2048, 2048
      %46 = vsyncadd [#allocation8], %s45
      %s47 = sshll.u32 [#allocation7], 4
      %s48 = int_to_ptr.vmem [resolvable:$true] %s47
      %53 = dma.hbm_to_vmem [thread:$0]  %s5, 2048, %s48, [#allocation8], 256, 256, 16
    $region25: #{seq_classifier_forward.1} parent=1 // pred_fallthru
      _
    // Predicated region
    $region26: #{seq_classifier_forward.1} parent=1 // pred_check
      _
    $region27: #{seq_classifier_forward.1} parent=1 // pred_check_branch
      %55 = sbr.rel (0) target = $region29
    $region28: #{seq_classifier_forward.1} parent=1 // pred_region
      _
    $region29: #{seq_classifier_forward.1} parent=1 // pred_fallthru
      _
    // Predicated region
    $region30: #{seq_classifier_forward.1} parent=1 // pred_check
      _
    $region31: #{seq_classifier_forward.1} parent=1 // pred_check_branch
      %57 = sbr.rel (0) target = $region33
    $region32: #{seq_classifier_forward.1} parent=1 // pred_region
      _
    $region33: #{seq_classifier_forward.1} parent=1 // pred_fallthru
      _
    // Predicated region
    $region34: #{seq_classifier_forward.1} parent=1 // pred_check
      _
    $region35: #{seq_classifier_forward.1} parent=1 // pred_check_branch
      %59 = sbr.rel (0) target = $region37
    $region36: #{seq_classifier_forward.1} parent=1 // pred_region
      _
    $region37: #{seq_classifier_forward.1} parent=1 // pred_fallthru
      _
    // Predicated region
    $region38: #{seq_classifier_forward.1} parent=1 // pred_check
      _
    $region39: #{seq_classifier_forward.1} parent=1 // pred_check_branch
      %61 = sbr.rel (0) target = $region41
    $region40: #{seq_classifier_forward.1} parent=1 // pred_region
      _
    $region41: #{seq_classifier_forward.1} parent=1 // pred_fallthru
      _
    // Predicated region
    $region42: #{seq_classifier_forward.1} parent=1 // pred_check
      _
    $region43: #{seq_classifier_forward.1} parent=1 // pred_check_branch
      %63 = sbr.rel (0) target = $region45
    $region44: #{seq_classifier_forward.1} parent=1 // pred_region
      %s65 = ssub.s32 16, 16
      %66 = vsyncadd [#allocation8], %s65
      %s68 = sshll.u32 [#allocation9], 4
      %s69 = int_to_ptr.vmem [resolvable:$true] %s68
      %71 = dma.hbm_to_vmem [thread:$0]  %s10, 16, %s69, [#allocation8]
    $region45: #{seq_classifier_forward.1} parent=1 // pred_fallthru
      _
    // Predicated region
    $region46: #{seq_classifier_forward.1} parent=1 // pred_check
      _
    $region47: #{seq_classifier_forward.1} parent=1 // pred_check_branch
      %73 = sbr.rel (0) target = $region49
    $region48: #{seq_classifier_forward.1} parent=1 // pred_region
      _
    $region49: #{seq_classifier_forward.1} parent=1 // pred_fallthru
      _
    // Predicated region
    $region50: #{seq_classifier_forward.1} parent=1 // pred_check
      _
    $region51: #{seq_classifier_forward.1} parent=1 // pred_check_branch
      %75 = sbr.rel (0) target = $region53
    $region52: #{seq_classifier_forward.1} parent=1 // pred_region
      %s77 = ssub.s32 16, 16
      %78 = vsyncadd [#allocation11], %s77
      %s80 = sshll.u32 [#allocation10], 4
      %s81 = int_to_ptr.vmem [resolvable:$true] %s80
      %83 = dma.hbm_to_vmem [thread:$0]  %s12, 16, %s81, [#allocation11]
    $region53: #{seq_classifier_forward.1} parent=1 // pred_fallthru
      _
    // Predicated region
    $region54: #{seq_classifier_forward.1} parent=1 // pred_check
      _
    $region55: #{seq_classifier_forward.1} parent=1 // pred_check_branch
      %85 = sbr.rel (0) target = $region57
    $region56: #{seq_classifier_forward.1} parent=1 // pred_region
      %86 = dma.done [#allocation5], 1024
    $region57: #{seq_classifier_forward.1} parent=1 // pred_fallthru
      _
    // Predicated region
    $region58: #{seq_classifier_forward.1} parent=1 // pred_check
      _
    $region59: #{seq_classifier_forward.1} parent=1 // pred_check_branch
      %88 = sbr.rel (0) target = $region61
    $region60: #{seq_classifier_forward.1} parent=1 // pred_region
      %89 = dma.done [#allocation8], 2048
    $region61: #{seq_classifier_forward.1} parent=1 // pred_fallthru
      _
    // Predicated region
    $region62: #{seq_classifier_forward.1} parent=1 // pred_check
      _
    $region63: #{seq_classifier_forward.1} parent=1 // pred_check_branch
      %91 = sbr.rel (0) target = $region65
    $region64: #{seq_classifier_forward.1} parent=1 // pred_region
      %92 = dma.done [#allocation8], 16
    $region65: #{seq_classifier_forward.1} parent=1 // pred_fallthru
      _
    // Predicated region
    $region66: #{seq_classifier_forward.1} parent=1 // pred_check
      _
    $region67: #{seq_classifier_forward.1} parent=1 // pred_check_branch
      %94 = sbr.rel (0) target = $region69
    $region68: #{seq_classifier_forward.1} parent=1 // pred_region
      %95 = dma.done [#allocation11], 16
    $region69: #{seq_classifier_forward.1} parent=1 // pred_fallthru
      _
    %v96 = vld [vmem:[%s0] sm:$0xff]
    %v97 = vld [vmem:[%s0 + $0x8] sm:$0xff]
    %v98 = vld [vmem:[#allocation4] sm:$0xff]
    %v99 = vld [vmem:[#allocation4 + $0x8] sm:$0xff]
    %v100 = vld [vmem:[#allocation4 + $0x10] sm:$0xff]
    %v101 = vld [vmem:[#allocation4 + $0x18] sm:$0xff]
    %v102 = vld [vmem:[#allocation4 + $0x20] sm:$0xff]
    %v103 = vld [vmem:[#allocation4 + $0x28] sm:$0xff]
    %v104 = vld [vmem:[#allocation4 + $0x30] sm:$0xff]
    %v105 = vld [vmem:[#allocation4 + $0x38] sm:$0xff]
    %v106 = vld [vmem:[%s2] sm:$0x3]
    %v108 = vlaneseq
    %v109 = vshrl.u32 %v108, 7
    %v110 = vsub.s32 0, %v109
    %v111 = vrot.slane %v106, %v110
    %v112 = vlaneseq
    %v113 = vshrl.u32 %v112, 7
    %v114 = vsub.s32 1, %v113
    %v115 = vrot.slane %v106, %v114
    %vm118 = vcmask 261120
    %v120 = vsel %vm118, %v96, 0
    %v123 = vsel %vm118, %v97, 0
    %125 = vmatprep.subr.mxu0 0.0
    %126 = vmatpush1.msra.mxu0 0.0
    %127 = vmatprep.subr.mxu0 0.0
    %128 = vmatpush1.msra.mxu0 0.0
    %129 = vmatprep.subr.mxu0 0.0
    %130 = vmatpush1.msra.mxu0 0.0
    %131 = vmatprep.subr.mxu0 0.0
    %132 = vmatpush1.msra.mxu0 0.0
    %133 = vmatprep.subr.mxu0 0.0
    %134 = vmatpush1.msra.mxu0 0.0
    %135 = vmatprep.subr.mxu0 0.0
    %136 = vmatpush1.msra.mxu0 0.0
    %137 = vmatprep.subr.mxu0 0.0
    %138 = vmatpush1.msra.mxu0 0.0
    %139 = vmatprep.subr.mxu0 0.0
    %140 = vmatpush1.msra.mxu0 0.0
    %141 = vmatprep.subr.mxu0 0.0
    %142 = vmatpush1.msra.mxu0 0.0
    %143 = vmatprep.subr.mxu0 0.0
    %144 = vmatpush1.msra.mxu0 0.0
    %145 = vmatprep.subr.mxu0 0.0
    %146 = vmatpush1.msra.mxu0 0.0
    %147 = vmatprep.subr.mxu0 0.0
    %148 = vmatpush1.msra.mxu0 0.0
    %149 = vmatprep.subr.mxu0 %v105
    %150 = vmatpush1.msra.mxu0 %v104
    %151 = vmatprep.subr.mxu0 %v103
    %152 = vmatpush1.msra.mxu0 %v102
    %153 = vmatprep.subr.mxu0 %v101
    %154 = vmatpush1.msra.mxu0 %v100
    %155 = vmatprep.subr.mxu0 %v99
    %156 = vmatpush1.msra.mxu0 %v98
    %157 = vmatprep.subr.mxu0 0.0
    %158 = vmatpush2.msra.mxu0 0.0
    %159 = vmatprep.subr.mxu0 0.0
    %160 = vmatpush2.msra.mxu0 0.0
    %161 = vmatprep.subr.mxu0 0.0
    %162 = vmatpush2.msra.mxu0 0.0
    %163 = vmatprep.subr.mxu0 0.0
    %164 = vmatpush2.msra.mxu0 0.0
    %165 = vmatprep.subr.mxu0 0.0
    %166 = vmatpush2.msra.mxu0 0.0
    %167 = vmatprep.subr.mxu0 0.0
    %168 = vmatpush2.msra.mxu0 0.0
    %169 = vmatprep.subr.mxu0 0.0
    %170 = vmatpush2.msra.mxu0 0.0
    %171 = vmatprep.subr.mxu0 0.0
    %172 = vmatpush2.msra.mxu0 0.0
    %173 = vmatprep.subr.mxu0 0.0
    %174 = vmatpush2.msra.mxu0 0.0
    %175 = vmatprep.subr.mxu0 0.0
    %176 = vmatpush2.msra.mxu0 0.0
    %177 = vmatprep.subr.mxu0 0.0
    %178 = vmatpush2.msra.mxu0 0.0
    %179 = vmatprep.subr.mxu0 0.0
    %180 = vmatpush2.msra.mxu0 0.0
    %181 = vmatprep.subr.mxu0 0.0
    %182 = vmatpush2.msra.mxu0 0.0
    %183 = vmatprep.subr.mxu0 0.0
    %184 = vmatpush2.msra.mxu0 0.0
    %185 = vmatprep.subr.mxu0 0.0
    %186 = vmatpush2.msra.mxu0 0.0
    %187 = vmatprep.subr.mxu0 0.0
    %188 = vmatpush2.msra.mxu0 0.0
    %189 = vmatprep.mubr.f32.mxu0 0.0
    %190 = vmatmul.mubr.f32.gmra.mxu0 %v120
    %v191 = vpop.f32.mrf.mxu0
    %v192 = vadd.f32 %v111, %v191
    %v193 = vpop.f32.mrf.mxu0
    %v194 = vadd.f32 %v115, %v193
    %195 = vmatprep.mubr.f32.mxu0 0.0
    %196 = vmatmul.mubr.f32.gmra.mxu0 %v123
    %v197 = vpop.f32.mrf.mxu0
    %v198 = vadd.f32 %v111, %v197
    %v199 = vpop.f32.mrf.mxu0
    %v200 = vadd.f32 %v115, %v199
    %201 = vdwg.mxu0
    %v202 = vld [vmem:[%s3] sm:$0xff]
    %v203 = vld [vmem:[%s3 + $0x8] sm:$0xff]
    %v204 = vld [vmem:[%s3 + $0x10] sm:$0xff]
    %v205 = vld [vmem:[%s3 + $0x18] sm:$0xff]
    %s206 = scalar_lea.vmem %s3, 32
    %v207 = vld [vmem:[%s206] sm:$0xff]
    %v208 = vld [vmem:[%s206 + $0x8] sm:$0xff]
    %v209 = vld [vmem:[%s206 + $0x10] sm:$0xff]
    %v210 = vld [vmem:[%s206 + $0x18] sm:$0xff]
    %s211 = scalar_lea.vmem %s3, 64
    %v212 = vld [vmem:[%s211] sm:$0xff]
    %v213 = vld [vmem:[%s211 + $0x8] sm:$0xff]
    %v214 = vld [vmem:[%s211 + $0x10] sm:$0xff]
    %v215 = vld [vmem:[%s211 + $0x18] sm:$0xff]
    %s216 = scalar_lea.vmem %s3, 96
    %v217 = vld [vmem:[%s216] sm:$0xff]
    %v218 = vld [vmem:[%s216 + $0x8] sm:$0xff]
    %v219 = vld [vmem:[%s216 + $0x10] sm:$0xff]
    %v220 = vld [vmem:[%s216 + $0x18] sm:$0xff]
    %s221 = scalar_lea.vmem %s3, 128
    %v222 = vld [vmem:[%s221] sm:$0xff]
    %v223 = vld [vmem:[%s221 + $0x8] sm:$0xff]
    %v224 = vld [vmem:[%s221 + $0x10] sm:$0xff]
    %v225 = vld [vmem:[%s221 + $0x18] sm:$0xff]
    %s226 = scalar_lea.vmem %s3, 160
    %v227 = vld [vmem:[%s226] sm:$0xff]
    %v228 = vld [vmem:[%s226 + $0x8] sm:$0xff]
    %v229 = vld [vmem:[%s226 + $0x10] sm:$0xff]
    %v230 = vld [vmem:[%s226 + $0x18] sm:$0xff]
    %v231 = vld [vmem:[%s4] sm:$0x1]
    %s232 = scalar_lea.vmem %s4, 1
    %v233 = vld [vmem:[%s232] sm:$0x1]
    %v235 = vsel %vm118, 0.0, 0
    %237 = vmatprep.subr.mxu0 0.0
    %238 = vmatpush1.msra.mxu0 0.0
    %239 = vmatprep.subr.mxu0 0.0
    %240 = vmatpush1.msra.mxu0 0.0
    %241 = vmatprep.subr.mxu0 0.0
    %242 = vmatpush1.msra.mxu0 0.0
    %243 = vmatprep.subr.mxu0 0.0
    %244 = vmatpush1.msra.mxu0 0.0
    %245 = vmatprep.subr.mxu0 0.0
    %246 = vmatpush1.msra.mxu0 0.0
    %247 = vmatprep.subr.mxu0 0.0
    %248 = vmatpush1.msra.mxu0 0.0
    %249 = vmatprep.subr.mxu0 0.0
    %250 = vmatpush1.msra.mxu0 0.0
    %251 = vmatprep.subr.mxu0 0.0
    %252 = vmatpush1.msra.mxu0 0.0
    %253 = vmatprep.subr.mxu0 0.0
    %254 = vmatpush1.msra.mxu0 0.0
    %255 = vmatprep.subr.mxu0 0.0
    %256 = vmatpush1.msra.mxu0 0.0
    %257 = vmatprep.subr.mxu0 0.0
    %258 = vmatpush1.msra.mxu0 0.0
    %259 = vmatprep.subr.mxu0 0.0
    %260 = vmatpush1.msra.mxu0 0.0
    %261 = vmatprep.subr.mxu0 0.0
    %262 = vmatpush1.msra.mxu0 %v205
    %263 = vmatprep.subr.mxu0 0.0
    %264 = vmatpush1.msra.mxu0 %v204
    %265 = vmatprep.subr.mxu0 0.0
    %266 = vmatpush1.msra.mxu0 %v203
    %267 = vmatprep.subr.mxu0 0.0
    %268 = vmatpush1.msra.mxu0 %v202
    %269 = vmatprep.subr.mxu0 0.0
    %270 = vmatpush2.msra.mxu0 0.0
    %271 = vmatprep.subr.mxu0 0.0
    %272 = vmatpush2.msra.mxu0 0.0
    %273 = vmatprep.subr.mxu0 0.0
    %274 = vmatpush2.msra.mxu0 0.0
    %275 = vmatprep.subr.mxu0 0.0
    %276 = vmatpush2.msra.mxu0 0.0
    %277 = vmatprep.subr.mxu0 0.0
    %278 = vmatpush2.msra.mxu0 0.0
    %279 = vmatprep.subr.mxu0 0.0
    %280 = vmatpush2.msra.mxu0 0.0
    %281 = vmatprep.subr.mxu0 0.0
    %282 = vmatpush2.msra.mxu0 0.0
    %283 = vmatprep.subr.mxu0 0.0
    %284 = vmatpush2.msra.mxu0 0.0
    %285 = vmatprep.subr.mxu0 0.0
    %286 = vmatpush2.msra.mxu0 0.0
    %287 = vmatprep.subr.mxu0 0.0
    %288 = vmatpush2.msra.mxu0 0.0
    %289 = vmatprep.subr.mxu0 0.0
    %290 = vmatpush2.msra.mxu0 0.0
    %291 = vmatprep.subr.mxu0 0.0
    %292 = vmatpush2.msra.mxu0 0.0
    %293 = vmatprep.subr.mxu0 0.0
    %294 = vmatpush2.msra.mxu0 0.0
    %295 = vmatprep.subr.mxu0 0.0
    %296 = vmatpush2.msra.mxu0 0.0
    %297 = vmatprep.subr.mxu0 0.0
    %298 = vmatpush2.msra.mxu0 0.0
    %299 = vmatprep.subr.mxu0 0.0
    %300 = vmatpush2.msra.mxu0 0.0
    %301 = vmatprep.mubr.f32.mxu0 0.0
    %302 = vmatmul.mubr.f32.gmra.mxu0 %v235
    %v303 = vpop.f32.mrf.mxu0
    %v304 = vadd.f32 0.0, %v303
    %v305 = vpop.f32.mrf.mxu0
    %306 = vdwg.mxu0
    %v307 = vadd.f32 %v192, %v304
    %v308 = vxor.u32 %v307, 2147483648
    %v309 = vmul.f32 %v308, 1.442695
    %v310 = vpow.pop %v309
    %v311 = vadd.f32 %v310, 1.0
    %v312 = vrcp.pop %v311
    %v313 = vmul.f32 1.0, %v312
    %314 = vmatprep.subr.mxu0 0.0
    %315 = vmatpush1.msra.mxu0 0.0
    %316 = vmatprep.subr.mxu0 0.0
    %317 = vmatpush1.msra.mxu0 0.0
    %318 = vmatprep.subr.mxu0 0.0
    %319 = vmatpush1.msra.mxu0 0.0
    %320 = vmatprep.subr.mxu0 0.0
    %321 = vmatpush1.msra.mxu0 0.0
    %322 = vmatprep.subr.mxu0 0.0
    %323 = vmatpush1.msra.mxu0 0.0
    %324 = vmatprep.subr.mxu0 0.0
    %325 = vmatpush1.msra.mxu0 0.0
    %326 = vmatprep.subr.mxu0 0.0
    %327 = vmatpush1.msra.mxu0 0.0
    %328 = vmatprep.subr.mxu0 0.0
    %329 = vmatpush1.msra.mxu0 0.0
    %330 = vmatprep.subr.mxu0 0.0
    %331 = vmatpush1.msra.mxu0 0.0
    %332 = vmatprep.subr.mxu0 0.0
    %333 = vmatpush1.msra.mxu0 0.0
    %334 = vmatprep.subr.mxu0 0.0
    %335 = vmatpush1.msra.mxu0 0.0
    %336 = vmatprep.subr.mxu0 0.0
    %337 = vmatpush1.msra.mxu0 0.0
    %338 = vmatprep.subr.mxu0 0.0
    %339 = vmatpush1.msra.mxu0 %v210
    %340 = vmatprep.subr.mxu0 0.0
    %341 = vmatpush1.msra.mxu0 %v209
    %342 = vmatprep.subr.mxu0 0.0
    %343 = vmatpush1.msra.mxu0 %v208
    %344 = vmatprep.subr.mxu0 0.0
    %345 = vmatpush1.msra.mxu0 %v207
    %346 = vmatprep.subr.mxu0 0.0
    %347 = vmatpush2.msra.mxu0 0.0
    %348 = vmatprep.subr.mxu0 0.0
    %349 = vmatpush2.msra.mxu0 0.0
    %350 = vmatprep.subr.mxu0 0.0
    %351 = vmatpush2.msra.mxu0 0.0
    %352 = vmatprep.subr.mxu0 0.0
    %353 = vmatpush2.msra.mxu0 0.0
    %354 = vmatprep.subr.mxu0 0.0
    %355 = vmatpush2.msra.mxu0 0.0
    %356 = vmatprep.subr.mxu0 0.0
    %357 = vmatpush2.msra.mxu0 0.0
    %358 = vmatprep.subr.mxu0 0.0
    %359 = vmatpush2.msra.mxu0 0.0
    %360 = vmatprep.subr.mxu0 0.0
    %361 = vmatpush2.msra.mxu0 0.0
    %362 = vmatprep.subr.mxu0 0.0
    %363 = vmatpush2.msra.mxu0 0.0
    %364 = vmatprep.subr.mxu0 0.0
    %365 = vmatpush2.msra.mxu0 0.0
    %366 = vmatprep.subr.mxu0 0.0
    %367 = vmatpush2.msra.mxu0 0.0
    %368 = vmatprep.subr.mxu0 0.0
    %369 = vmatpush2.msra.mxu0 0.0
    %370 = vmatprep.subr.mxu0 0.0
    %371 = vmatpush2.msra.mxu0 0.0
    %372 = vmatprep.subr.mxu0 0.0
    %373 = vmatpush2.msra.mxu0 0.0
    %374 = vmatprep.subr.mxu0 0.0
    %375 = vmatpush2.msra.mxu0 0.0
    %376 = vmatprep.subr.mxu0 0.0
    %377 = vmatpush2.msra.mxu0 0.0
    %378 = vmatprep.mubr.f32.mxu0 0.0
    %379 = vmatmul.mubr.f32.gmra.mxu0 %v235
    %v380 = vpop.f32.mrf.mxu0
    %v381 = vadd.f32 0.0, %v380
    %v382 = vpop.f32.mrf.mxu0
    %383 = vdwg.mxu0
    %385 = vrot.lane.b32.xlu0 %v381, 32
    %v386 = vpop.permute.xlu0 %385
    %v388 = vadd.f32 %v192, %v386
    %v389 = vxor.u32 %v388, 2147483648
    %v390 = vmul.f32 %v389, 1.442695
    %v391 = vpow.pop %v390
    %v392 = vadd.f32 %v391, 1.0
    %v393 = vrcp.pop %v392
    %v394 = vmul.f32 1.0, %v393
    %v396 = vlaneseq
    %v397 = vshrl.u32 %v396, 7
    %v398 = vsub.s32 0, %v397
    %v399 = vrot.slane %v231, %v398
    %401 = vmatprep.subr.mxu0 0.0
    %402 = vmatpush1.msra.mxu0 0.0
    %403 = vmatprep.subr.mxu0 0.0
    %404 = vmatpush1.msra.mxu0 0.0
    %405 = vmatprep.subr.mxu0 0.0
    %406 = vmatpush1.msra.mxu0 0.0
    %407 = vmatprep.subr.mxu0 0.0
    %408 = vmatpush1.msra.mxu0 0.0
    %409 = vmatprep.subr.mxu0 0.0
    %410 = vmatpush1.msra.mxu0 0.0
    %411 = vmatprep.subr.mxu0 0.0
    %412 = vmatpush1.msra.mxu0 0.0
    %413 = vmatprep.subr.mxu0 0.0
    %414 = vmatpush1.msra.mxu0 0.0
    %415 = vmatprep.subr.mxu0 0.0
    %416 = vmatpush1.msra.mxu0 0.0
    %417 = vmatprep.subr.mxu0 0.0
    %418 = vmatpush1.msra.mxu0 0.0
    %419 = vmatprep.subr.mxu0 0.0
    %420 = vmatpush1.msra.mxu0 0.0
    %421 = vmatprep.subr.mxu0 0.0
    %422 = vmatpush1.msra.mxu0 0.0
    %423 = vmatprep.subr.mxu0 0.0
    %424 = vmatpush1.msra.mxu0 0.0
    %425 = vmatprep.subr.mxu0 0.0
    %426 = vmatpush1.msra.mxu0 %v215
    %427 = vmatprep.subr.mxu0 0.0
    %428 = vmatpush1.msra.mxu0 %v214
    %429 = vmatprep.subr.mxu0 0.0
    %430 = vmatpush1.msra.mxu0 %v213
    %431 = vmatprep.subr.mxu0 0.0
    %432 = vmatpush1.msra.mxu0 %v212
    %433 = vmatprep.subr.mxu0 0.0
    %434 = vmatpush2.msra.mxu0 0.0
    %435 = vmatprep.subr.mxu0 0.0
    %436 = vmatpush2.msra.mxu0 0.0
    %437 = vmatprep.subr.mxu0 0.0
    %438 = vmatpush2.msra.mxu0 0.0
    %439 = vmatprep.subr.mxu0 0.0
    %440 = vmatpush2.msra.mxu0 0.0
    %441 = vmatprep.subr.mxu0 0.0
    %442 = vmatpush2.msra.mxu0 0.0
    %443 = vmatprep.subr.mxu0 0.0
    %444 = vmatpush2.msra.mxu0 0.0
    %445 = vmatprep.subr.mxu0 0.0
    %446 = vmatpush2.msra.mxu0 0.0
    %447 = vmatprep.subr.mxu0 0.0
    %448 = vmatpush2.msra.mxu0 0.0
    %449 = vmatprep.subr.mxu0 0.0
    %450 = vmatpush2.msra.mxu0 0.0
    %451 = vmatprep.subr.mxu0 0.0
    %452 = vmatpush2.msra.mxu0 0.0
    %453 = vmatprep.subr.mxu0 0.0
    %454 = vmatpush2.msra.mxu0 0.0
    %455 = vmatprep.subr.mxu0 0.0
    %456 = vmatpush2.msra.mxu0 0.0
    %457 = vmatprep.subr.mxu0 0.0
    %458 = vmatpush2.msra.mxu0 0.0
    %459 = vmatprep.subr.mxu0 0.0
    %460 = vmatpush2.msra.mxu0 0.0
    %461 = vmatprep.subr.mxu0 0.0
    %462 = vmatpush2.msra.mxu0 0.0
    %463 = vmatprep.subr.mxu0 0.0
    %464 = vmatpush2.msra.mxu0 0.0
    %465 = vmatprep.mubr.f32.mxu0 0.0
    %466 = vmatmul.mubr.f32.gmra.mxu0 %v235
    %v467 = vpop.f32.mrf.mxu0
    %v468 = vadd.f32 %v399, %v467
    %v469 = vpop.f32.mrf.mxu0
    %470 = vdwg.mxu0
    %v471 = vmul.f32 %v313, %v468
    %473 = vrot.lane.b32.xlu0 %v471, 64
    %v474 = vpop.permute.xlu0 %473
    %v476 = vadd.f32 %v192, %v474
    %v477 = vtanh.pop %v476
    %v478 = vsub.f32 1.0, %v394
    %480 = vrot.lane.b32.xlu0 %v477, 96
    %v481 = vpop.permute.xlu0 %480
    %v483 = vmul.f32 %v478, %v481
    %v484 = vmul.f32 %v394, 0.0
    %v485 = vadd.f32 %v483, %v484
    %487 = vrot.lane.b32.xlu0 %v485, 96
    %v488 = vpop.permute.xlu0 %487
    %vm490 = vcmask 254976
    %491 = vst.msk [vmem:[#allocation2] sm:$0x3] %vm490, %v488
    %492 = vmatprep.subr.mxu0 0.0
    %493 = vmatpush1.msra.mxu0 0.0
    %494 = vmatprep.subr.mxu0 0.0
    %495 = vmatpush1.msra.mxu0 0.0
    %496 = vmatprep.subr.mxu0 0.0
    %497 = vmatpush1.msra.mxu0 0.0
    %498 = vmatprep.subr.mxu0 0.0
    %499 = vmatpush1.msra.mxu0 0.0
    %500 = vmatprep.subr.mxu0 0.0
    %501 = vmatpush1.msra.mxu0 0.0
    %502 = vmatprep.subr.mxu0 0.0
    %503 = vmatpush1.msra.mxu0 0.0
    %504 = vmatprep.subr.mxu0 0.0
    %505 = vmatpush1.msra.mxu0 0.0
    %506 = vmatprep.subr.mxu0 0.0
    %507 = vmatpush1.msra.mxu0 0.0
    %508 = vmatprep.subr.mxu0 0.0
    %509 = vmatpush1.msra.mxu0 0.0
    %510 = vmatprep.subr.mxu0 0.0
    %511 = vmatpush1.msra.mxu0 0.0
    %512 = vmatprep.subr.mxu0 0.0
    %513 = vmatpush1.msra.mxu0 0.0
    %514 = vmatprep.subr.mxu0 0.0
    %515 = vmatpush1.msra.mxu0 0.0
    %516 = vmatprep.subr.mxu0 0.0
    %517 = vmatpush1.msra.mxu0 %v220
    %518 = vmatprep.subr.mxu0 0.0
    %519 = vmatpush1.msra.mxu0 %v219
    %520 = vmatprep.subr.mxu0 0.0
    %521 = vmatpush1.msra.mxu0 %v218
    %522 = vmatprep.subr.mxu0 0.0
    %523 = vmatpush1.msra.mxu0 %v217
    %524 = vmatprep.subr.mxu0 0.0
    %525 = vmatpush2.msra.mxu0 0.0
    %526 = vmatprep.subr.mxu0 0.0
    %527 = vmatpush2.msra.mxu0 0.0
    %528 = vmatprep.subr.mxu0 0.0
    %529 = vmatpush2.msra.mxu0 0.0
    %530 = vmatprep.subr.mxu0 0.0
    %531 = vmatpush2.msra.mxu0 0.0
    %532 = vmatprep.subr.mxu0 0.0
    %533 = vmatpush2.msra.mxu0 0.0
    %534 = vmatprep.subr.mxu0 0.0
    %535 = vmatpush2.msra.mxu0 0.0
    %536 = vmatprep.subr.mxu0 0.0
    %537 = vmatpush2.msra.mxu0 0.0
    %538 = vmatprep.subr.mxu0 0.0
    %539 = vmatpush2.msra.mxu0 0.0
    %540 = vmatprep.subr.mxu0 0.0
    %541 = vmatpush2.msra.mxu0 0.0
    %542 = vmatprep.subr.mxu0 0.0
    %543 = vmatpush2.msra.mxu0 0.0
    %544 = vmatprep.subr.mxu0 0.0
    %545 = vmatpush2.msra.mxu0 0.0
    %546 = vmatprep.subr.mxu0 0.0
    %547 = vmatpush2.msra.mxu0 0.0
    %548 = vmatprep.subr.mxu0 0.0
    %549 = vmatpush2.msra.mxu0 0.0
    %550 = vmatprep.subr.mxu0 0.0
    %551 = vmatpush2.msra.mxu0 0.0
    %552 = vmatprep.subr.mxu0 0.0
    %553 = vmatpush2.msra.mxu0 0.0
    %554 = vmatprep.subr.mxu0 0.0
    %555 = vmatpush2.msra.mxu0 0.0
    %556 = vmatprep.mubr.f32.mxu0 0.0
    %557 = vmatmul.mubr.f32.gmra.mxu0 %v235
    %v558 = vpop.f32.mrf.mxu0
    %v559 = vadd.f32 0.0, %v558
    %v560 = vpop.f32.mrf.mxu0
    %561 = vdwg.mxu0
    %v563 = vrot.slane %v559, 2
    %564 = vrot.lane.b32.xlu0 %v563, 96
    %v565 = vpop.permute.xlu0 %564
    %v567 = vadd.f32 %v198, %v565
    %v568 = vxor.u32 %v567, 2147483648
    %v569 = vmul.f32 %v568, 1.442695
    %v570 = vpow.pop %v569
    %v571 = vadd.f32 %v570, 1.0
    %v572 = vrcp.pop %v571
    %v573 = vmul.f32 1.0, %v572
    %574 = vmatprep.subr.mxu0 0.0
    %575 = vmatpush1.msra.mxu0 0.0
    %576 = vmatprep.subr.mxu0 0.0
    %577 = vmatpush1.msra.mxu0 0.0
    %578 = vmatprep.subr.mxu0 0.0
    %579 = vmatpush1.msra.mxu0 0.0
    %580 = vmatprep.subr.mxu0 0.0
    %581 = vmatpush1.msra.mxu0 0.0
    %582 = vmatprep.subr.mxu0 0.0
    %583 = vmatpush1.msra.mxu0 0.0
    %584 = vmatprep.subr.mxu0 0.0
    %585 = vmatpush1.msra.mxu0 0.0
    %586 = vmatprep.subr.mxu0 0.0
    %587 = vmatpush1.msra.mxu0 0.0
    %588 = vmatprep.subr.mxu0 0.0
    %589 = vmatpush1.msra.mxu0 0.0
    %590 = vmatprep.subr.mxu0 0.0
    %591 = vmatpush1.msra.mxu0 0.0
    %592 = vmatprep.subr.mxu0 0.0
    %593 = vmatpush1.msra.mxu0 0.0
    %594 = vmatprep.subr.mxu0 0.0
    %595 = vmatpush1.msra.mxu0 0.0
    %596 = vmatprep.subr.mxu0 0.0
    %597 = vmatpush1.msra.mxu0 0.0
    %598 = vmatprep.subr.mxu0 0.0
    %599 = vmatpush1.msra.mxu0 %v225
    %600 = vmatprep.subr.mxu0 0.0
    %601 = vmatpush1.msra.mxu0 %v224
    %602 = vmatprep.subr.mxu0 0.0
    %603 = vmatpush1.msra.mxu0 %v223
    %604 = vmatprep.subr.mxu0 0.0
    %605 = vmatpush1.msra.mxu0 %v222
    %606 = vmatprep.subr.mxu0 0.0
    %607 = vmatpush2.msra.mxu0 0.0
    %608 = vmatprep.subr.mxu0 0.0
    %609 = vmatpush2.msra.mxu0 0.0
    %610 = vmatprep.subr.mxu0 0.0
    %611 = vmatpush2.msra.mxu0 0.0
    %612 = vmatprep.subr.mxu0 0.0
    %613 = vmatpush2.msra.mxu0 0.0
    %614 = vmatprep.subr.mxu0 0.0
    %615 = vmatpush2.msra.mxu0 0.0
    %616 = vmatprep.subr.mxu0 0.0
    %617 = vmatpush2.msra.mxu0 0.0
    %618 = vmatprep.subr.mxu0 0.0
    %619 = vmatpush2.msra.mxu0 0.0
    %620 = vmatprep.subr.mxu0 0.0
    %621 = vmatpush2.msra.mxu0 0.0
    %622 = vmatprep.subr.mxu0 0.0
    %623 = vmatpush2.msra.mxu0 0.0
    %624 = vmatprep.subr.mxu0 0.0
    %625 = vmatpush2.msra.mxu0 0.0
    %626 = vmatprep.subr.mxu0 0.0
    %627 = vmatpush2.msra.mxu0 0.0
    %628 = vmatprep.subr.mxu0 0.0
    %629 = vmatpush2.msra.mxu0 0.0
    %630 = vmatprep.subr.mxu0 0.0
    %631 = vmatpush2.msra.mxu0 0.0
    %632 = vmatprep.subr.mxu0 0.0
    %633 = vmatpush2.msra.mxu0 0.0
    %634 = vmatprep.subr.mxu0 0.0
    %635 = vmatpush2.msra.mxu0 0.0
    %636 = vmatprep.subr.mxu0 0.0
    %637 = vmatpush2.msra.mxu0 0.0
    %638 = vmatprep.mubr.f32.mxu0 0.0
    %639 = vmatmul.mubr.f32.gmra.mxu0 %v235
    %v640 = vpop.f32.mrf.mxu0
    %v641 = vadd.f32 0.0, %v640
    %v642 = vpop.f32.mrf.mxu0
    %643 = vdwg.mxu0
    %v645 = vrot.slane %v641, 2
    %v647 = vadd.f32 %v200, %v645
    %v648 = vxor.u32 %v647, 2147483648
    %v649 = vmul.f32 %v648, 1.442695
    %v650 = vpow.pop %v649
    %v651 = vadd.f32 %v650, 1.0
    %v652 = vrcp.pop %v651
    %v653 = vmul.f32 1.0, %v652
    %v655 = vlaneseq
    %v656 = vshrl.u32 %v655, 7
    %v657 = vsub.s32 0, %v656
    %v658 = vrot.slane %v233, %v657
    %660 = vmatprep.subr.mxu0 0.0
    %661 = vmatpush1.msra.mxu0 0.0
    %662 = vmatprep.subr.mxu0 0.0
    %663 = vmatpush1.msra.mxu0 0.0
    %664 = vmatprep.subr.mxu0 0.0
    %665 = vmatpush1.msra.mxu0 0.0
    %666 = vmatprep.subr.mxu0 0.0
    %667 = vmatpush1.msra.mxu0 0.0
    %668 = vmatprep.subr.mxu0 0.0
    %669 = vmatpush1.msra.mxu0 0.0
    %670 = vmatprep.subr.mxu0 0.0
    %671 = vmatpush1.msra.mxu0 0.0
    %672 = vmatprep.subr.mxu0 0.0
    %673 = vmatpush1.msra.mxu0 0.0
    %674 = vmatprep.subr.mxu0 0.0
    %675 = vmatpush1.msra.mxu0 0.0
    %676 = vmatprep.subr.mxu0 0.0
    %677 = vmatpush1.msra.mxu0 0.0
    %678 = vmatprep.subr.mxu0 0.0
    %679 = vmatpush1.msra.mxu0 0.0
    %680 = vmatprep.subr.mxu0 0.0
    %681 = vmatpush1.msra.mxu0 0.0
    %682 = vmatprep.subr.mxu0 0.0
    %683 = vmatpush1.msra.mxu0 0.0
    %684 = vmatprep.subr.mxu0 0.0
    %685 = vmatpush1.msra.mxu0 %v230
    %686 = vmatprep.subr.mxu0 0.0
    %687 = vmatpush1.msra.mxu0 %v229
    %688 = vmatprep.subr.mxu0 0.0
    %689 = vmatpush1.msra.mxu0 %v228
    %690 = vmatprep.subr.mxu0 0.0
    %691 = vmatpush1.msra.mxu0 %v227
    %692 = vmatprep.subr.mxu0 0.0
    %693 = vmatpush2.msra.mxu0 0.0
    %694 = vmatprep.subr.mxu0 0.0
    %695 = vmatpush2.msra.mxu0 0.0
    %696 = vmatprep.subr.mxu0 0.0
    %697 = vmatpush2.msra.mxu0 0.0
    %698 = vmatprep.subr.mxu0 0.0
    %699 = vmatpush2.msra.mxu0 0.0
    %700 = vmatprep.subr.mxu0 0.0
    %701 = vmatpush2.msra.mxu0 0.0
    %702 = vmatprep.subr.mxu0 0.0
    %703 = vmatpush2.msra.mxu0 0.0
    %704 = vmatprep.subr.mxu0 0.0
    %705 = vmatpush2.msra.mxu0 0.0
    %706 = vmatprep.subr.mxu0 0.0
    %707 = vmatpush2.msra.mxu0 0.0
    %708 = vmatprep.subr.mxu0 0.0
    %709 = vmatpush2.msra.mxu0 0.0
    %710 = vmatprep.subr.mxu0 0.0
    %711 = vmatpush2.msra.mxu0 0.0
    %712 = vmatprep.subr.mxu0 0.0
    %713 = vmatpush2.msra.mxu0 0.0
    %714 = vmatprep.subr.mxu0 0.0
    %715 = vmatpush2.msra.mxu0 0.0
    %716 = vmatprep.subr.mxu0 0.0
    %717 = vmatpush2.msra.mxu0 0.0
    %718 = vmatprep.subr.mxu0 0.0
    %719 = vmatpush2.msra.mxu0 0.0
    %720 = vmatprep.subr.mxu0 0.0
    %721 = vmatpush2.msra.mxu0 0.0
    %722 = vmatprep.subr.mxu0 0.0
    %723 = vmatpush2.msra.mxu0 0.0
    %724 = vmatprep.mubr.f32.mxu0 0.0
    %725 = vmatmul.mubr.f32.gmra.mxu0 %v235
    %v726 = vpop.f32.mrf.mxu0
    %v727 = vadd.f32 %v658, %v726
    %v728 = vpop.f32.mrf.mxu0
    %729 = vdwg.mxu0
    %v731 = vrot.slane %v727, 2
    %732 = vrot.lane.b32.xlu0 %v731, 96
    %v733 = vpop.permute.xlu0 %732
    %v735 = vmul.f32 %v573, %v733
    %737 = vrot.lane.b32.xlu0 %v735, 64
    %v738 = vpop.permute.xlu0 %737
    %v740 = vadd.f32 %v200, %v738
    %v741 = vtanh.pop %v740
    %v742 = vsub.f32 1.0, %v653
    %744 = vrot.lane.b32.xlu0 %v741, 96
    %v745 = vpop.permute.xlu0 %744
    %v747 = vmul.f32 %v742, %v745
    %v748 = vmul.f32 %v653, 0.0
    %v749 = vadd.f32 %v747, %v748
    %vm750 = vcmask 261126
    %751 = vst.msk [vmem:[#allocation3 + $0x8] sm:$0xc0] %vm750, %v749
    %v752 = vsel %vm118, %v488, 0
    %754 = vmatprep.subr.mxu0 0.0
    %755 = vmatpush1.msra.mxu0 0.0
    %756 = vmatprep.subr.mxu0 0.0
    %757 = vmatpush1.msra.mxu0 0.0
    %758 = vmatprep.subr.mxu0 0.0
    %759 = vmatpush1.msra.mxu0 0.0
    %760 = vmatprep.subr.mxu0 0.0
    %761 = vmatpush1.msra.mxu0 0.0
    %762 = vmatprep.subr.mxu0 0.0
    %763 = vmatpush1.msra.mxu0 0.0
    %764 = vmatprep.subr.mxu0 0.0
    %765 = vmatpush1.msra.mxu0 0.0
    %766 = vmatprep.subr.mxu0 0.0
    %767 = vmatpush1.msra.mxu0 0.0
    %768 = vmatprep.subr.mxu0 0.0
    %769 = vmatpush1.msra.mxu0 0.0
    %770 = vmatprep.subr.mxu0 0.0
    %771 = vmatpush1.msra.mxu0 0.0
    %772 = vmatprep.subr.mxu0 0.0
    %773 = vmatpush1.msra.mxu0 0.0
    %774 = vmatprep.subr.mxu0 0.0
    %775 = vmatpush1.msra.mxu0 0.0
    %776 = vmatprep.subr.mxu0 0.0
    %777 = vmatpush1.msra.mxu0 0.0
    %778 = vmatprep.subr.mxu0 0.0
    %779 = vmatpush1.msra.mxu0 %v205
    %780 = vmatprep.subr.mxu0 0.0
    %781 = vmatpush1.msra.mxu0 %v204
    %782 = vmatprep.subr.mxu0 0.0
    %783 = vmatpush1.msra.mxu0 %v203
    %784 = vmatprep.subr.mxu0 0.0
    %785 = vmatpush1.msra.mxu0 %v202
    %786 = vmatprep.subr.mxu0 0.0
    %787 = vmatpush2.msra.mxu0 0.0
    %788 = vmatprep.subr.mxu0 0.0
    %789 = vmatpush2.msra.mxu0 0.0
    %790 = vmatprep.subr.mxu0 0.0
    %791 = vmatpush2.msra.mxu0 0.0
    %792 = vmatprep.subr.mxu0 0.0
    %793 = vmatpush2.msra.mxu0 0.0
    %794 = vmatprep.subr.mxu0 0.0
    %795 = vmatpush2.msra.mxu0 0.0
    %796 = vmatprep.subr.mxu0 0.0
    %797 = vmatpush2.msra.mxu0 0.0
    %798 = vmatprep.subr.mxu0 0.0
    %799 = vmatpush2.msra.mxu0 0.0
    %800 = vmatprep.subr.mxu0 0.0
    %801 = vmatpush2.msra.mxu0 0.0
    %802 = vmatprep.subr.mxu0 0.0
    %803 = vmatpush2.msra.mxu0 0.0
    %804 = vmatprep.subr.mxu0 0.0
    %805 = vmatpush2.msra.mxu0 0.0
    %806 = vmatprep.subr.mxu0 0.0
    %807 = vmatpush2.msra.mxu0 0.0
    %808 = vmatprep.subr.mxu0 0.0
    %809 = vmatpush2.msra.mxu0 0.0
    %810 = vmatprep.subr.mxu0 0.0
    %811 = vmatpush2.msra.mxu0 0.0
    %812 = vmatprep.subr.mxu0 0.0
    %813 = vmatpush2.msra.mxu0 0.0
    %814 = vmatprep.subr.mxu0 0.0
    %815 = vmatpush2.msra.mxu0 0.0
    %816 = vmatprep.subr.mxu0 0.0
    %817 = vmatpush2.msra.mxu0 0.0
    %818 = vmatprep.mubr.f32.mxu0 0.0
    %819 = vmatmul.mubr.f32.gmra.mxu0 %v752
    %v820 = vpop.f32.mrf.mxu0
    %v821 = vadd.f32 0.0, %v820
    %v822 = vpop.f32.mrf.mxu0
    %823 = vdwg.mxu0
    %v825 = vrot.slane %v821, 6
    %v827 = vadd.f32 %v192, %v825
    %v828 = vxor.u32 %v827, 2147483648
    %v829 = vmul.f32 %v828, 1.442695
    %v830 = vpow.pop %v829
    %v831 = vadd.f32 %v830, 1.0
    %v832 = vrcp.pop %v831
    %v833 = vmul.f32 1.0, %v832
    %834 = vmatprep.subr.mxu0 0.0
    %835 = vmatpush1.msra.mxu0 0.0
    %836 = vmatprep.subr.mxu0 0.0
    %837 = vmatpush1.msra.mxu0 0.0
    %838 = vmatprep.subr.mxu0 0.0
    %839 = vmatpush1.msra.mxu0 0.0
    %840 = vmatprep.subr.mxu0 0.0
    %841 = vmatpush1.msra.mxu0 0.0
    %842 = vmatprep.subr.mxu0 0.0
    %843 = vmatpush1.msra.mxu0 0.0
    %844 = vmatprep.subr.mxu0 0.0
    %845 = vmatpush1.msra.mxu0 0.0
    %846 = vmatprep.subr.mxu0 0.0
    %847 = vmatpush1.msra.mxu0 0.0
    %848 = vmatprep.subr.mxu0 0.0
    %849 = vmatpush1.msra.mxu0 0.0
    %850 = vmatprep.subr.mxu0 0.0
    %851 = vmatpush1.msra.mxu0 0.0
    %852 = vmatprep.subr.mxu0 0.0
    %853 = vmatpush1.msra.mxu0 0.0
    %854 = vmatprep.subr.mxu0 0.0
    %855 = vmatpush1.msra.mxu0 0.0
    %856 = vmatprep.subr.mxu0 0.0
    %857 = vmatpush1.msra.mxu0 0.0
    %858 = vmatprep.subr.mxu0 0.0
    %859 = vmatpush1.msra.mxu0 %v210
    %860 = vmatprep.subr.mxu0 0.0
    %861 = vmatpush1.msra.mxu0 %v209
    %862 = vmatprep.subr.mxu0 0.0
    %863 = vmatpush1.msra.mxu0 %v208
    %864 = vmatprep.subr.mxu0 0.0
    %865 = vmatpush1.msra.mxu0 %v207
    %866 = vmatprep.subr.mxu0 0.0
    %867 = vmatpush2.msra.mxu0 0.0
    %868 = vmatprep.subr.mxu0 0.0
    %869 = vmatpush2.msra.mxu0 0.0
    %870 = vmatprep.subr.mxu0 0.0
    %871 = vmatpush2.msra.mxu0 0.0
    %872 = vmatprep.subr.mxu0 0.0
    %873 = vmatpush2.msra.mxu0 0.0
    %874 = vmatprep.subr.mxu0 0.0
    %875 = vmatpush2.msra.mxu0 0.0
    %876 = vmatprep.subr.mxu0 0.0
    %877 = vmatpush2.msra.mxu0 0.0
    %878 = vmatprep.subr.mxu0 0.0
    %879 = vmatpush2.msra.mxu0 0.0
    %880 = vmatprep.subr.mxu0 0.0
    %881 = vmatpush2.msra.mxu0 0.0
    %882 = vmatprep.subr.mxu0 0.0
    %883 = vmatpush2.msra.mxu0 0.0
    %884 = vmatprep.subr.mxu0 0.0
    %885 = vmatpush2.msra.mxu0 0.0
    %886 = vmatprep.subr.mxu0 0.0
    %887 = vmatpush2.msra.mxu0 0.0
    %888 = vmatprep.subr.mxu0 0.0
    %889 = vmatpush2.msra.mxu0 0.0
    %890 = vmatprep.subr.mxu0 0.0
    %891 = vmatpush2.msra.mxu0 0.0
    %892 = vmatprep.subr.mxu0 0.0
    %893 = vmatpush2.msra.mxu0 0.0
    %894 = vmatprep.subr.mxu0 0.0
    %895 = vmatpush2.msra.mxu0 0.0
    %896 = vmatprep.subr.mxu0 0.0
    %897 = vmatpush2.msra.mxu0 0.0
    %898 = vmatprep.mubr.f32.mxu0 0.0
    %899 = vmatmul.mubr.f32.gmra.mxu0 %v752
    %v900 = vpop.f32.mrf.mxu0
    %v901 = vadd.f32 0.0, %v900
    %v902 = vpop.f32.mrf.mxu0
    %903 = vdwg.mxu0
    %v905 = vrot.slane %v901, 6
    %906 = vrot.lane.b32.xlu0 %v905, 32
    %v907 = vpop.permute.xlu0 %906
    %v909 = vadd.f32 %v192, %v907
    %v910 = vxor.u32 %v909, 2147483648
    %v911 = vmul.f32 %v910, 1.442695
    %v912 = vpow.pop %v911
    %v913 = vadd.f32 %v912, 1.0
    %v914 = vrcp.pop %v913
    %v915 = vmul.f32 1.0, %v914
    %916 = vmatprep.subr.mxu0 0.0
    %917 = vmatpush1.msra.mxu0 0.0
    %918 = vmatprep.subr.mxu0 0.0
    %919 = vmatpush1.msra.mxu0 0.0
    %920 = vmatprep.subr.mxu0 0.0
    %921 = vmatpush1.msra.mxu0 0.0
    %922 = vmatprep.subr.mxu0 0.0
    %923 = vmatpush1.msra.mxu0 0.0
    %924 = vmatprep.subr.mxu0 0.0
    %925 = vmatpush1.msra.mxu0 0.0
    %926 = vmatprep.subr.mxu0 0.0
    %927 = vmatpush1.msra.mxu0 0.0
    %928 = vmatprep.subr.mxu0 0.0
    %929 = vmatpush1.msra.mxu0 0.0
    %930 = vmatprep.subr.mxu0 0.0
    %931 = vmatpush1.msra.mxu0 0.0
    %932 = vmatprep.subr.mxu0 0.0
    %933 = vmatpush1.msra.mxu0 0.0
    %934 = vmatprep.subr.mxu0 0.0
    %935 = vmatpush1.msra.mxu0 0.0
    %936 = vmatprep.subr.mxu0 0.0
    %937 = vmatpush1.msra.mxu0 0.0
    %938 = vmatprep.subr.mxu0 0.0
    %939 = vmatpush1.msra.mxu0 0.0
    %940 = vmatprep.subr.mxu0 0.0
    %941 = vmatpush1.msra.mxu0 %v215
    %942 = vmatprep.subr.mxu0 0.0
    %943 = vmatpush1.msra.mxu0 %v214
    %944 = vmatprep.subr.mxu0 0.0
    %945 = vmatpush1.msra.mxu0 %v213
    %946 = vmatprep.subr.mxu0 0.0
    %947 = vmatpush1.msra.mxu0 %v212
    %948 = vmatprep.subr.mxu0 0.0
    %949 = vmatpush2.msra.mxu0 0.0
    %950 = vmatprep.subr.mxu0 0.0
    %951 = vmatpush2.msra.mxu0 0.0
    %952 = vmatprep.subr.mxu0 0.0
    %953 = vmatpush2.msra.mxu0 0.0
    %954 = vmatprep.subr.mxu0 0.0
    %955 = vmatpush2.msra.mxu0 0.0
    %956 = vmatprep.subr.mxu0 0.0
    %957 = vmatpush2.msra.mxu0 0.0
    %958 = vmatprep.subr.mxu0 0.0
    %959 = vmatpush2.msra.mxu0 0.0
    %960 = vmatprep.subr.mxu0 0.0
    %961 = vmatpush2.msra.mxu0 0.0
    %962 = vmatprep.subr.mxu0 0.0
    %963 = vmatpush2.msra.mxu0 0.0
    %964 = vmatprep.subr.mxu0 0.0
    %965 = vmatpush2.msra.mxu0 0.0
    %966 = vmatprep.subr.mxu0 0.0
    %967 = vmatpush2.msra.mxu0 0.0
    %968 = vmatprep.subr.mxu0 0.0
    %969 = vmatpush2.msra.mxu0 0.0
    %970 = vmatprep.subr.mxu0 0.0
    %971 = vmatpush2.msra.mxu0 0.0
    %972 = vmatprep.subr.mxu0 0.0
    %973 = vmatpush2.msra.mxu0 0.0
    %974 = vmatprep.subr.mxu0 0.0
    %975 = vmatpush2.msra.mxu0 0.0
    %976 = vmatprep.subr.mxu0 0.0
    %977 = vmatpush2.msra.mxu0 0.0
    %978 = vmatprep.subr.mxu0 0.0
    %979 = vmatpush2.msra.mxu0 0.0
    %980 = vmatprep.mubr.f32.mxu0 0.0
    %981 = vmatmul.mubr.f32.gmra.mxu0 %v752
    %v982 = vpop.f32.mrf.mxu0
    %v983 = vadd.f32 %v399, %v982
    %v984 = vpop.f32.mrf.mxu0
    %985 = vdwg.mxu0
    %v987 = vrot.slane %v983, 6
    %v989 = vmul.f32 %v833, %v987
    %991 = vrot.lane.b32.xlu0 %v989, 64
    %v992 = vpop.permute.xlu0 %991
    %v994 = vadd.f32 %v192, %v992
    %v995 = vtanh.pop %v994
    %v996 = vsub.f32 1.0, %v915
    %998 = vrot.lane.b32.xlu0 %v995, 96
    %v999 = vpop.permute.xlu0 %998
    %v1001 = vmul.f32 %v996, %v999
    %v1002 = vrot.slane %v485, 6
    %v1004 = vmul.f32 %v915, %v1002
    %v1005 = vadd.f32 %v1001, %v1004
    %1007 = vrot.lane.b32.xlu0 %v1005, 96
    %v1008 = vpop.permute.xlu0 %1007
    %vm1010 = vcmask 257026
    %1011 = vst.msk [vmem:[#allocation2] sm:$0xc] %vm1010, %v1008
    %v1013 = vrot.slane %v749, 6
    %v1014 = vsel %vm118, %v1013, 0
    %1016 = vmatprep.subr.mxu0 0.0
    %1017 = vmatpush1.msra.mxu0 0.0
    %1018 = vmatprep.subr.mxu0 0.0
    %1019 = vmatpush1.msra.mxu0 0.0
    %1020 = vmatprep.subr.mxu0 0.0
    %1021 = vmatpush1.msra.mxu0 0.0
    %1022 = vmatprep.subr.mxu0 0.0
    %1023 = vmatpush1.msra.mxu0 0.0
    %1024 = vmatprep.subr.mxu0 0.0
    %1025 = vmatpush1.msra.mxu0 0.0
    %1026 = vmatprep.subr.mxu0 0.0
    %1027 = vmatpush1.msra.mxu0 0.0
    %1028 = vmatprep.subr.mxu0 0.0
    %1029 = vmatpush1.msra.mxu0 0.0
    %1030 = vmatprep.subr.mxu0 0.0
    %1031 = vmatpush1.msra.mxu0 0.0
    %1032 = vmatprep.subr.mxu0 0.0
    %1033 = vmatpush1.msra.mxu0 0.0
    %1034 = vmatprep.subr.mxu0 0.0
    %1035 = vmatpush1.msra.mxu0 0.0
    %1036 = vmatprep.subr.mxu0 0.0
    %1037 = vmatpush1.msra.mxu0 0.0
    %1038 = vmatprep.subr.mxu0 0.0
    %1039 = vmatpush1.msra.mxu0 0.0
    %1040 = vmatprep.subr.mxu0 0.0
    %1041 = vmatpush1.msra.mxu0 %v220
    %1042 = vmatprep.subr.mxu0 0.0
    %1043 = vmatpush1.msra.mxu0 %v219
    %1044 = vmatprep.subr.mxu0 0.0
    %1045 = vmatpush1.msra.mxu0 %v218
    %1046 = vmatprep.subr.mxu0 0.0
    %1047 = vmatpush1.msra.mxu0 %v217
    %1048 = vmatprep.subr.mxu0 0.0
    %1049 = vmatpush2.msra.mxu0 0.0
    %1050 = vmatprep.subr.mxu0 0.0
    %1051 = vmatpush2.msra.mxu0 0.0
    %1052 = vmatprep.subr.mxu0 0.0
    %1053 = vmatpush2.msra.mxu0 0.0
    %1054 = vmatprep.subr.mxu0 0.0
    %1055 = vmatpush2.msra.mxu0 0.0
    %1056 = vmatprep.subr.mxu0 0.0
    %1057 = vmatpush2.msra.mxu0 0.0
    %1058 = vmatprep.subr.mxu0 0.0
    %1059 = vmatpush2.msra.mxu0 0.0
    %1060 = vmatprep.subr.mxu0 0.0
    %1061 = vmatpush2.msra.mxu0 0.0
    %1062 = vmatprep.subr.mxu0 0.0
    %1063 = vmatpush2.msra.mxu0 0.0
    %1064 = vmatprep.subr.mxu0 0.0
    %1065 = vmatpush2.msra.mxu0 0.0
    %1066 = vmatprep.subr.mxu0 0.0
    %1067 = vmatpush2.msra.mxu0 0.0
    %1068 = vmatprep.subr.mxu0 0.0
    %1069 = vmatpush2.msra.mxu0 0.0
    %1070 = vmatprep.subr.mxu0 0.0
    %1071 = vmatpush2.msra.mxu0 0.0
    %1072 = vmatprep.subr.mxu0 0.0
    %1073 = vmatpush2.msra.mxu0 0.0
    %1074 = vmatprep.subr.mxu0 0.0
    %1075 = vmatpush2.msra.mxu0 0.0
    %1076 = vmatprep.subr.mxu0 0.0
    %1077 = vmatpush2.msra.mxu0 0.0
    %1078 = vmatprep.subr.mxu0 0.0
    %1079 = vmatpush2.msra.mxu0 0.0
    %1080 = vmatprep.mubr.f32.mxu0 0.0
    %1081 = vmatmul.mubr.f32.gmra.mxu0 %v1014
    %v1082 = vpop.f32.mrf.mxu0
    %v1083 = vadd.f32 0.0, %v1082
    %v1084 = vpop.f32.mrf.mxu0
    %1085 = vdwg.mxu0
    %v1087 = vrot.slane %v1083, 4
    %1088 = vrot.lane.b32.xlu0 %v1087, 96
    %v1089 = vpop.permute.xlu0 %1088
    %v1091 = vadd.f32 %v198, %v1089
    %v1092 = vxor.u32 %v1091, 2147483648
    %v1093 = vmul.f32 %v1092, 1.442695
    %v1094 = vpow.pop %v1093
    %v1095 = vadd.f32 %v1094, 1.0
    %v1096 = vrcp.pop %v1095
    %v1097 = vmul.f32 1.0, %v1096
    %1098 = vmatprep.subr.mxu0 0.0
    %1099 = vmatpush1.msra.mxu0 0.0
    %1100 = vmatprep.subr.mxu0 0.0
    %1101 = vmatpush1.msra.mxu0 0.0
    %1102 = vmatprep.subr.mxu0 0.0
    %1103 = vmatpush1.msra.mxu0 0.0
    %1104 = vmatprep.subr.mxu0 0.0
    %1105 = vmatpush1.msra.mxu0 0.0
    %1106 = vmatprep.subr.mxu0 0.0
    %1107 = vmatpush1.msra.mxu0 0.0
    %1108 = vmatprep.subr.mxu0 0.0
    %1109 = vmatpush1.msra.mxu0 0.0
    %1110 = vmatprep.subr.mxu0 0.0
    %1111 = vmatpush1.msra.mxu0 0.0
    %1112 = vmatprep.subr.mxu0 0.0
    %1113 = vmatpush1.msra.mxu0 0.0
    %1114 = vmatprep.subr.mxu0 0.0
    %1115 = vmatpush1.msra.mxu0 0.0
    %1116 = vmatprep.subr.mxu0 0.0
    %1117 = vmatpush1.msra.mxu0 0.0
    %1118 = vmatprep.subr.mxu0 0.0
    %1119 = vmatpush1.msra.mxu0 0.0
    %1120 = vmatprep.subr.mxu0 0.0
    %1121 = vmatpush1.msra.mxu0 0.0
    %1122 = vmatprep.subr.mxu0 0.0
    %1123 = vmatpush1.msra.mxu0 %v225
    %1124 = vmatprep.subr.mxu0 0.0
    %1125 = vmatpush1.msra.mxu0 %v224
    %1126 = vmatprep.subr.mxu0 0.0
    %1127 = vmatpush1.msra.mxu0 %v223
    %1128 = vmatprep.subr.mxu0 0.0
    %1129 = vmatpush1.msra.mxu0 %v222
    %1130 = vmatprep.subr.mxu0 0.0
    %1131 = vmatpush2.msra.mxu0 0.0
    %1132 = vmatprep.subr.mxu0 0.0
    %1133 = vmatpush2.msra.mxu0 0.0
    %1134 = vmatprep.subr.mxu0 0.0
    %1135 = vmatpush2.msra.mxu0 0.0
    %1136 = vmatprep.subr.mxu0 0.0
    %1137 = vmatpush2.msra.mxu0 0.0
    %1138 = vmatprep.subr.mxu0 0.0
    %1139 = vmatpush2.msra.mxu0 0.0
    %1140 = vmatprep.subr.mxu0 0.0
    %1141 = vmatpush2.msra.mxu0 0.0
    %1142 = vmatprep.subr.mxu0 0.0
    %1143 = vmatpush2.msra.mxu0 0.0
    %1144 = vmatprep.subr.mxu0 0.0
    %1145 = vmatpush2.msra.mxu0 0.0
    %1146 = vmatprep.subr.mxu0 0.0
    %1147 = vmatpush2.msra.mxu0 0.0
    %1148 = vmatprep.subr.mxu0 0.0
    %1149 = vmatpush2.msra.mxu0 0.0
    %1150 = vmatprep.subr.mxu0 0.0
    %1151 = vmatpush2.msra.mxu0 0.0
    %1152 = vmatprep.subr.mxu0 0.0
    %1153 = vmatpush2.msra.mxu0 0.0
    %1154 = vmatprep.subr.mxu0 0.0
    %1155 = vmatpush2.msra.mxu0 0.0
    %1156 = vmatprep.subr.mxu0 0.0
    %1157 = vmatpush2.msra.mxu0 0.0
    %1158 = vmatprep.subr.mxu0 0.0
    %1159 = vmatpush2.msra.mxu0 0.0
    %1160 = vmatprep.subr.mxu0 0.0
    %1161 = vmatpush2.msra.mxu0 0.0
    %1162 = vmatprep.mubr.f32.mxu0 0.0
    %1163 = vmatmul.mubr.f32.gmra.mxu0 %v1014
    %v1164 = vpop.f32.mrf.mxu0
    %v1165 = vadd.f32 0.0, %v1164
    %v1166 = vpop.f32.mrf.mxu0
    %1167 = vdwg.mxu0
    %v1169 = vrot.slane %v1165, 4
    %v1171 = vadd.f32 %v200, %v1169
    %v1172 = vxor.u32 %v1171, 2147483648
    %v1173 = vmul.f32 %v1172, 1.442695
    %v1174 = vpow.pop %v1173
    %v1175 = vadd.f32 %v1174, 1.0
    %v1176 = vrcp.pop %v1175
    %v1177 = vmul.f32 1.0, %v1176
    %1178 = vmatprep.subr.mxu0 0.0
    %1179 = vmatpush1.msra.mxu0 0.0
    %1180 = vmatprep.subr.mxu0 0.0
    %1181 = vmatpush1.msra.mxu0 0.0
    %1182 = vmatprep.subr.mxu0 0.0
    %1183 = vmatpush1.msra.mxu0 0.0
    %1184 = vmatprep.subr.mxu0 0.0
    %1185 = vmatpush1.msra.mxu0 0.0
    %1186 = vmatprep.subr.mxu0 0.0
    %1187 = vmatpush1.msra.mxu0 0.0
    %1188 = vmatprep.subr.mxu0 0.0
    %1189 = vmatpush1.msra.mxu0 0.0
    %1190 = vmatprep.subr.mxu0 0.0
    %1191 = vmatpush1.msra.mxu0 0.0
    %1192 = vmatprep.subr.mxu0 0.0
    %1193 = vmatpush1.msra.mxu0 0.0
    %1194 = vmatprep.subr.mxu0 0.0
    %1195 = vmatpush1.msra.mxu0 0.0
    %1196 = vmatprep.subr.mxu0 0.0
    %1197 = vmatpush1.msra.mxu0 0.0
    %1198 = vmatprep.subr.mxu0 0.0
    %1199 = vmatpush1.msra.mxu0 0.0
    %1200 = vmatprep.subr.mxu0 0.0
    %1201 = vmatpush1.msra.mxu0 0.0
    %1202 = vmatprep.subr.mxu0 0.0
    %1203 = vmatpush1.msra.mxu0 %v230
    %1204 = vmatprep.subr.mxu0 0.0
    %1205 = vmatpush1.msra.mxu0 %v229
    %1206 = vmatprep.subr.mxu0 0.0
    %1207 = vmatpush1.msra.mxu0 %v228
    %1208 = vmatprep.subr.mxu0 0.0
    %1209 = vmatpush1.msra.mxu0 %v227
    %1210 = vmatprep.subr.mxu0 0.0
    %1211 = vmatpush2.msra.mxu0 0.0
    %1212 = vmatprep.subr.mxu0 0.0
    %1213 = vmatpush2.msra.mxu0 0.0
    %1214 = vmatprep.subr.mxu0 0.0
    %1215 = vmatpush2.msra.mxu0 0.0
    %1216 = vmatprep.subr.mxu0 0.0
    %1217 = vmatpush2.msra.mxu0 0.0
    %1218 = vmatprep.subr.mxu0 0.0
    %1219 = vmatpush2.msra.mxu0 0.0
    %1220 = vmatprep.subr.mxu0 0.0
    %1221 = vmatpush2.msra.mxu0 0.0
    %1222 = vmatprep.subr.mxu0 0.0
    %1223 = vmatpush2.msra.mxu0 0.0
    %1224 = vmatprep.subr.mxu0 0.0
    %1225 = vmatpush2.msra.mxu0 0.0
    %1226 = vmatprep.subr.mxu0 0.0
    %1227 = vmatpush2.msra.mxu0 0.0
    %1228 = vmatprep.subr.mxu0 0.0
    %1229 = vmatpush2.msra.mxu0 0.0
    %1230 = vmatprep.subr.mxu0 0.0
    %1231 = vmatpush2.msra.mxu0 0.0
    %1232 = vmatprep.subr.mxu0 0.0
    %1233 = vmatpush2.msra.mxu0 0.0
    %1234 = vmatprep.subr.mxu0 0.0
    %1235 = vmatpush2.msra.mxu0 0.0
    %1236 = vmatprep.subr.mxu0 0.0
    %1237 = vmatpush2.msra.mxu0 0.0
    %1238 = vmatprep.subr.mxu0 0.0
    %1239 = vmatpush2.msra.mxu0 0.0
    %1240 = vmatprep.subr.mxu0 0.0
    %1241 = vmatpush2.msra.mxu0 0.0
    %1242 = vmatprep.mubr.f32.mxu0 0.0
    %1243 = vmatmul.mubr.f32.gmra.mxu0 %v1014
    %v1244 = vpop.f32.mrf.mxu0
    %v1245 = vadd.f32 %v658, %v1244
    %v1246 = vpop.f32.mrf.mxu0
    %1247 = vdwg.mxu0
    %v1249 = vrot.slane %v1245, 4
    %1250 = vrot.lane.b32.xlu0 %v1249, 96
    %v1251 = vpop.permute.xlu0 %1250
    %v1253 = vmul.f32 %v1097, %v1251
    %1255 = vrot.lane.b32.xlu0 %v1253, 64
    %v1256 = vpop.permute.xlu0 %1255
    %v1258 = vadd.f32 %v200, %v1256
    %v1259 = vtanh.pop %v1258
    %v1260 = vsub.f32 1.0, %v1177
    %1262 = vrot.lane.b32.xlu0 %v1259, 96
    %v1263 = vpop.permute.xlu0 %1262
    %v1265 = vmul.f32 %v1260, %v1263
    %v1266 = vrot.slane %v749, 2
    %v1268 = vmul.f32 %v1177, %v1266
    %v1269 = vadd.f32 %v1265, %v1268
    %vm1270 = vcmask 259076
    %1271 = vst.msk [vmem:[#allocation3 + $0x8] sm:$0x30] %vm1270, %v1269
    %v1272 = vrot.slane %v1005, 2
    %1273 = vrot.lane.b32.xlu0 %v1272, 96
    %v1274 = vpop.permute.xlu0 %1273
    %v1275 = vsel %vm118, %v1274, 0
    %1277 = vmatprep.subr.mxu0 0.0
    %1278 = vmatpush1.msra.mxu0 0.0
    %1279 = vmatprep.subr.mxu0 0.0
    %1280 = vmatpush1.msra.mxu0 0.0
    %1281 = vmatprep.subr.mxu0 0.0
    %1282 = vmatpush1.msra.mxu0 0.0
    %1283 = vmatprep.subr.mxu0 0.0
    %1284 = vmatpush1.msra.mxu0 0.0
    %1285 = vmatprep.subr.mxu0 0.0
    %1286 = vmatpush1.msra.mxu0 0.0
    %1287 = vmatprep.subr.mxu0 0.0
    %1288 = vmatpush1.msra.mxu0 0.0
    %1289 = vmatprep.subr.mxu0 0.0
    %1290 = vmatpush1.msra.mxu0 0.0
    %1291 = vmatprep.subr.mxu0 0.0
    %1292 = vmatpush1.msra.mxu0 0.0
    %1293 = vmatprep.subr.mxu0 0.0
    %1294 = vmatpush1.msra.mxu0 0.0
    %1295 = vmatprep.subr.mxu0 0.0
    %1296 = vmatpush1.msra.mxu0 0.0
    %1297 = vmatprep.subr.mxu0 0.0
    %1298 = vmatpush1.msra.mxu0 0.0
    %1299 = vmatprep.subr.mxu0 0.0
    %1300 = vmatpush1.msra.mxu0 0.0
    %1301 = vmatprep.subr.mxu0 0.0
    %1302 = vmatpush1.msra.mxu0 %v205
    %1303 = vmatprep.subr.mxu0 0.0
    %1304 = vmatpush1.msra.mxu0 %v204
    %1305 = vmatprep.subr.mxu0 0.0
    %1306 = vmatpush1.msra.mxu0 %v203
    %1307 = vmatprep.subr.mxu0 0.0
    %1308 = vmatpush1.msra.mxu0 %v202
    %1309 = vmatprep.subr.mxu0 0.0
    %1310 = vmatpush2.msra.mxu0 0.0
    %1311 = vmatprep.subr.mxu0 0.0
    %1312 = vmatpush2.msra.mxu0 0.0
    %1313 = vmatprep.subr.mxu0 0.0
    %1314 = vmatpush2.msra.mxu0 0.0
    %1315 = vmatprep.subr.mxu0 0.0
    %1316 = vmatpush2.msra.mxu0 0.0
    %1317 = vmatprep.subr.mxu0 0.0
    %1318 = vmatpush2.msra.mxu0 0.0
    %1319 = vmatprep.subr.mxu0 0.0
    %1320 = vmatpush2.msra.mxu0 0.0
    %1321 = vmatprep.subr.mxu0 0.0
    %1322 = vmatpush2.msra.mxu0 0.0
    %1323 = vmatprep.subr.mxu0 0.0
    %1324 = vmatpush2.msra.mxu0 0.0
    %1325 = vmatprep.subr.mxu0 0.0
    %1326 = vmatpush2.msra.mxu0 0.0
    %1327 = vmatprep.subr.mxu0 0.0
    %1328 = vmatpush2.msra.mxu0 0.0
    %1329 = vmatprep.subr.mxu0 0.0
    %1330 = vmatpush2.msra.mxu0 0.0
    %1331 = vmatprep.subr.mxu0 0.0
    %1332 = vmatpush2.msra.mxu0 0.0
    %1333 = vmatprep.subr.mxu0 0.0
    %1334 = vmatpush2.msra.mxu0 0.0
    %1335 = vmatprep.subr.mxu0 0.0
    %1336 = vmatpush2.msra.mxu0 0.0
    %1337 = vmatprep.subr.mxu0 0.0
    %1338 = vmatpush2.msra.mxu0 0.0
    %1339 = vmatprep.subr.mxu0 0.0
    %1340 = vmatpush2.msra.mxu0 0.0
    %1341 = vmatprep.mubr.f32.mxu0 0.0
    %1342 = vmatmul.mubr.f32.gmra.mxu0 %v1275
    %v1343 = vpop.f32.mrf.mxu0
    %v1344 = vadd.f32 0.0, %v1343
    %v1345 = vpop.f32.mrf.mxu0
    %1346 = vdwg.mxu0
    %v1348 = vrot.slane %v1344, 4
    %v1350 = vadd.f32 %v192, %v1348
    %v1351 = vxor.u32 %v1350, 2147483648
    %v1352 = vmul.f32 %v1351, 1.442695
    %v1353 = vpow.pop %v1352
    %v1354 = vadd.f32 %v1353, 1.0
    %v1355 = vrcp.pop %v1354
    %v1356 = vmul.f32 1.0, %v1355
    %1357 = vmatprep.subr.mxu0 0.0
    %1358 = vmatpush1.msra.mxu0 0.0
    %1359 = vmatprep.subr.mxu0 0.0
    %1360 = vmatpush1.msra.mxu0 0.0
    %1361 = vmatprep.subr.mxu0 0.0
    %1362 = vmatpush1.msra.mxu0 0.0
    %1363 = vmatprep.subr.mxu0 0.0
    %1364 = vmatpush1.msra.mxu0 0.0
    %1365 = vmatprep.subr.mxu0 0.0
    %1366 = vmatpush1.msra.mxu0 0.0
    %1367 = vmatprep.subr.mxu0 0.0
    %1368 = vmatpush1.msra.mxu0 0.0
    %1369 = vmatprep.subr.mxu0 0.0
    %1370 = vmatpush1.msra.mxu0 0.0
    %1371 = vmatprep.subr.mxu0 0.0
    %1372 = vmatpush1.msra.mxu0 0.0
    %1373 = vmatprep.subr.mxu0 0.0
    %1374 = vmatpush1.msra.mxu0 0.0
    %1375 = vmatprep.subr.mxu0 0.0
    %1376 = vmatpush1.msra.mxu0 0.0
    %1377 = vmatprep.subr.mxu0 0.0
    %1378 = vmatpush1.msra.mxu0 0.0
    %1379 = vmatprep.subr.mxu0 0.0
    %1380 = vmatpush1.msra.mxu0 0.0
    %1381 = vmatprep.subr.mxu0 0.0
    %1382 = vmatpush1.msra.mxu0 %v210
    %1383 = vmatprep.subr.mxu0 0.0
    %1384 = vmatpush1.msra.mxu0 %v209
    %1385 = vmatprep.subr.mxu0 0.0
    %1386 = vmatpush1.msra.mxu0 %v208
    %1387 = vmatprep.subr.mxu0 0.0
    %1388 = vmatpush1.msra.mxu0 %v207
    %1389 = vmatprep.subr.mxu0 0.0
    %1390 = vmatpush2.msra.mxu0 0.0
    %1391 = vmatprep.subr.mxu0 0.0
    %1392 = vmatpush2.msra.mxu0 0.0
    %1393 = vmatprep.subr.mxu0 0.0
    %1394 = vmatpush2.msra.mxu0 0.0
    %1395 = vmatprep.subr.mxu0 0.0
    %1396 = vmatpush2.msra.mxu0 0.0
    %1397 = vmatprep.subr.mxu0 0.0
    %1398 = vmatpush2.msra.mxu0 0.0
    %1399 = vmatprep.subr.mxu0 0.0
    %1400 = vmatpush2.msra.mxu0 0.0
    %1401 = vmatprep.subr.mxu0 0.0
    %1402 = vmatpush2.msra.mxu0 0.0
    %1403 = vmatprep.subr.mxu0 0.0
    %1404 = vmatpush2.msra.mxu0 0.0
    %1405 = vmatprep.subr.mxu0 0.0
    %1406 = vmatpush2.msra.mxu0 0.0
    %1407 = vmatprep.subr.mxu0 0.0
    %1408 = vmatpush2.msra.mxu0 0.0
    %1409 = vmatprep.subr.mxu0 0.0
    %1410 = vmatpush2.msra.mxu0 0.0
    %1411 = vmatprep.subr.mxu0 0.0
    %1412 = vmatpush2.msra.mxu0 0.0
    %1413 = vmatprep.subr.mxu0 0.0
    %1414 = vmatpush2.msra.mxu0 0.0
    %1415 = vmatprep.subr.mxu0 0.0
    %1416 = vmatpush2.msra.mxu0 0.0
    %1417 = vmatprep.subr.mxu0 0.0
    %1418 = vmatpush2.msra.mxu0 0.0
    %1419 = vmatprep.subr.mxu0 0.0
    %1420 = vmatpush2.msra.mxu0 0.0
    %1421 = vmatprep.mubr.f32.mxu0 0.0
    %1422 = vmatmul.mubr.f32.gmra.mxu0 %v1275
    %v1423 = vpop.f32.mrf.mxu0
    %v1424 = vadd.f32 0.0, %v1423
    %v1425 = vpop.f32.mrf.mxu0
    %1426 = vdwg.mxu0
    %v1428 = vrot.slane %v1424, 4
    %1429 = vrot.lane.b32.xlu0 %v1428, 32
    %v1430 = vpop.permute.xlu0 %1429
    %v1432 = vadd.f32 %v192, %v1430
    %v1433 = vxor.u32 %v1432, 2147483648
    %v1434 = vmul.f32 %v1433, 1.442695
    %v1435 = vpow.pop %v1434
    %v1436 = vadd.f32 %v1435, 1.0
    %v1437 = vrcp.pop %v1436
    %v1438 = vmul.f32 1.0, %v1437
    %1439 = vmatprep.subr.mxu0 0.0
    %1440 = vmatpush1.msra.mxu0 0.0
    %1441 = vmatprep.subr.mxu0 0.0
    %1442 = vmatpush1.msra.mxu0 0.0
    %1443 = vmatprep.subr.mxu0 0.0
    %1444 = vmatpush1.msra.mxu0 0.0
    %1445 = vmatprep.subr.mxu0 0.0
    %1446 = vmatpush1.msra.mxu0 0.0
    %1447 = vmatprep.subr.mxu0 0.0
    %1448 = vmatpush1.msra.mxu0 0.0
    %1449 = vmatprep.subr.mxu0 0.0
    %1450 = vmatpush1.msra.mxu0 0.0
    %1451 = vmatprep.subr.mxu0 0.0
    %1452 = vmatpush1.msra.mxu0 0.0
    %1453 = vmatprep.subr.mxu0 0.0
    %1454 = vmatpush1.msra.mxu0 0.0
    %1455 = vmatprep.subr.mxu0 0.0
    %1456 = vmatpush1.msra.mxu0 0.0
    %1457 = vmatprep.subr.mxu0 0.0
    %1458 = vmatpush1.msra.mxu0 0.0
    %1459 = vmatprep.subr.mxu0 0.0
    %1460 = vmatpush1.msra.mxu0 0.0
    %1461 = vmatprep.subr.mxu0 0.0
    %1462 = vmatpush1.msra.mxu0 0.0
    %1463 = vmatprep.subr.mxu0 0.0
    %1464 = vmatpush1.msra.mxu0 %v215
    %1465 = vmatprep.subr.mxu0 0.0
    %1466 = vmatpush1.msra.mxu0 %v214
    %1467 = vmatprep.subr.mxu0 0.0
    %1468 = vmatpush1.msra.mxu0 %v213
    %1469 = vmatprep.subr.mxu0 0.0
    %1470 = vmatpush1.msra.mxu0 %v212
    %1471 = vmatprep.subr.mxu0 0.0
    %1472 = vmatpush2.msra.mxu0 0.0
    %1473 = vmatprep.subr.mxu0 0.0
    %1474 = vmatpush2.msra.mxu0 0.0
    %1475 = vmatprep.subr.mxu0 0.0
    %1476 = vmatpush2.msra.mxu0 0.0
    %1477 = vmatprep.subr.mxu0 0.0
    %1478 = vmatpush2.msra.mxu0 0.0
    %1479 = vmatprep.subr.mxu0 0.0
    %1480 = vmatpush2.msra.mxu0 0.0
    %1481 = vmatprep.subr.mxu0 0.0
    %1482 = vmatpush2.msra.mxu0 0.0
    %1483 = vmatprep.subr.mxu0 0.0
    %1484 = vmatpush2.msra.mxu0 0.0
    %1485 = vmatprep.subr.mxu0 0.0
    %1486 = vmatpush2.msra.mxu0 0.0
    %1487 = vmatprep.subr.mxu0 0.0
    %1488 = vmatpush2.msra.mxu0 0.0
    %1489 = vmatprep.subr.mxu0 0.0
    %1490 = vmatpush2.msra.mxu0 0.0
    %1491 = vmatprep.subr.mxu0 0.0
    %1492 = vmatpush2.msra.mxu0 0.0
    %1493 = vmatprep.subr.mxu0 0.0
    %1494 = vmatpush2.msra.mxu0 0.0
    %1495 = vmatprep.subr.mxu0 0.0
    %1496 = vmatpush2.msra.mxu0 0.0
    %1497 = vmatprep.subr.mxu0 0.0
    %1498 = vmatpush2.msra.mxu0 0.0
    %1499 = vmatprep.subr.mxu0 0.0
    %1500 = vmatpush2.msra.mxu0 0.0
    %1501 = vmatprep.subr.mxu0 0.0
    %1502 = vmatpush2.msra.mxu0 0.0
    %1503 = vmatprep.mubr.f32.mxu0 0.0
    %1504 = vmatmul.mubr.f32.gmra.mxu0 %v1275
    %v1505 = vpop.f32.mrf.mxu0
    %v1506 = vadd.f32 %v399, %v1505
    %v1507 = vpop.f32.mrf.mxu0
    %1508 = vdwg.mxu0
    %v1510 = vrot.slane %v1506, 4
    %v1512 = vmul.f32 %v1356, %v1510
    %1514 = vrot.lane.b32.xlu0 %v1512, 64
    %v1515 = vpop.permute.xlu0 %1514
    %v1517 = vadd.f32 %v192, %v1515
    %v1518 = vtanh.pop %v1517
    %v1519 = vsub.f32 1.0, %v1438
    %1521 = vrot.lane.b32.xlu0 %v1518, 96
    %v1522 = vpop.permute.xlu0 %1521
    %v1524 = vmul.f32 %v1519, %v1522
    %v1525 = vrot.slane %v1005, 6
    %v1527 = vmul.f32 %v1438, %v1525
    %v1528 = vadd.f32 %v1524, %v1527
    %1530 = vrot.lane.b32.xlu0 %v1528, 96
    %v1531 = vpop.permute.xlu0 %1530
    %1533 = vst.msk [vmem:[#allocation2] sm:$0x30] %vm1270, %v1531
    %v1535 = vrot.slane %v1269, 4
    %v1536 = vsel %vm118, %v1535, 0
    %1538 = vmatprep.subr.mxu0 0.0
    %1539 = vmatpush1.msra.mxu0 0.0
    %1540 = vmatprep.subr.mxu0 0.0
    %1541 = vmatpush1.msra.mxu0 0.0
    %1542 = vmatprep.subr.mxu0 0.0
    %1543 = vmatpush1.msra.mxu0 0.0
    %1544 = vmatprep.subr.mxu0 0.0
    %1545 = vmatpush1.msra.mxu0 0.0
    %1546 = vmatprep.subr.mxu0 0.0
    %1547 = vmatpush1.msra.mxu0 0.0
    %1548 = vmatprep.subr.mxu0 0.0
    %1549 = vmatpush1.msra.mxu0 0.0
    %1550 = vmatprep.subr.mxu0 0.0
    %1551 = vmatpush1.msra.mxu0 0.0
    %1552 = vmatprep.subr.mxu0 0.0
    %1553 = vmatpush1.msra.mxu0 0.0
    %1554 = vmatprep.subr.mxu0 0.0
    %1555 = vmatpush1.msra.mxu0 0.0
    %1556 = vmatprep.subr.mxu0 0.0
    %1557 = vmatpush1.msra.mxu0 0.0
    %1558 = vmatprep.subr.mxu0 0.0
    %1559 = vmatpush1.msra.mxu0 0.0
    %1560 = vmatprep.subr.mxu0 0.0
    %1561 = vmatpush1.msra.mxu0 0.0
    %1562 = vmatprep.subr.mxu0 0.0
    %1563 = vmatpush1.msra.mxu0 %v220
    %1564 = vmatprep.subr.mxu0 0.0
    %1565 = vmatpush1.msra.mxu0 %v219
    %1566 = vmatprep.subr.mxu0 0.0
    %1567 = vmatpush1.msra.mxu0 %v218
    %1568 = vmatprep.subr.mxu0 0.0
    %1569 = vmatpush1.msra.mxu0 %v217
    %1570 = vmatprep.subr.mxu0 0.0
    %1571 = vmatpush2.msra.mxu0 0.0
    %1572 = vmatprep.subr.mxu0 0.0
    %1573 = vmatpush2.msra.mxu0 0.0
    %1574 = vmatprep.subr.mxu0 0.0
    %1575 = vmatpush2.msra.mxu0 0.0
    %1576 = vmatprep.subr.mxu0 0.0
    %1577 = vmatpush2.msra.mxu0 0.0
    %1578 = vmatprep.subr.mxu0 0.0
    %1579 = vmatpush2.msra.mxu0 0.0
    %1580 = vmatprep.subr.mxu0 0.0
    %1581 = vmatpush2.msra.mxu0 0.0
    %1582 = vmatprep.subr.mxu0 0.0
    %1583 = vmatpush2.msra.mxu0 0.0
    %1584 = vmatprep.subr.mxu0 0.0
    %1585 = vmatpush2.msra.mxu0 0.0
    %1586 = vmatprep.subr.mxu0 0.0
    %1587 = vmatpush2.msra.mxu0 0.0
    %1588 = vmatprep.subr.mxu0 0.0
    %1589 = vmatpush2.msra.mxu0 0.0
    %1590 = vmatprep.subr.mxu0 0.0
    %1591 = vmatpush2.msra.mxu0 0.0
    %1592 = vmatprep.subr.mxu0 0.0
    %1593 = vmatpush2.msra.mxu0 0.0
    %1594 = vmatprep.subr.mxu0 0.0
    %1595 = vmatpush2.msra.mxu0 0.0
    %1596 = vmatprep.subr.mxu0 0.0
    %1597 = vmatpush2.msra.mxu0 0.0
    %1598 = vmatprep.subr.mxu0 0.0
    %1599 = vmatpush2.msra.mxu0 0.0
    %1600 = vmatprep.subr.mxu0 0.0
    %1601 = vmatpush2.msra.mxu0 0.0
    %1602 = vmatprep.mubr.f32.mxu0 0.0
    %1603 = vmatmul.mubr.f32.gmra.mxu0 %v1536
    %v1604 = vpop.f32.mrf.mxu0
    %v1605 = vadd.f32 0.0, %v1604
    %v1606 = vpop.f32.mrf.mxu0
    %1607 = vdwg.mxu0
    %v1609 = vrot.slane %v1605, 6
    %1610 = vrot.lane.b32.xlu0 %v1609, 96
    %v1611 = vpop.permute.xlu0 %1610
    %v1613 = vadd.f32 %v198, %v1611
    %v1614 = vxor.u32 %v1613, 2147483648
    %v1615 = vmul.f32 %v1614, 1.442695
    %v1616 = vpow.pop %v1615
    %v1617 = vadd.f32 %v1616, 1.0
    %v1618 = vrcp.pop %v1617
    %v1619 = vmul.f32 1.0, %v1618
    %1620 = vmatprep.subr.mxu0 0.0
    %1621 = vmatpush1.msra.mxu0 0.0
    %1622 = vmatprep.subr.mxu0 0.0
    %1623 = vmatpush1.msra.mxu0 0.0
    %1624 = vmatprep.subr.mxu0 0.0
    %1625 = vmatpush1.msra.mxu0 0.0
    %1626 = vmatprep.subr.mxu0 0.0
    %1627 = vmatpush1.msra.mxu0 0.0
    %1628 = vmatprep.subr.mxu0 0.0
    %1629 = vmatpush1.msra.mxu0 0.0
    %1630 = vmatprep.subr.mxu0 0.0
    %1631 = vmatpush1.msra.mxu0 0.0
    %1632 = vmatprep.subr.mxu0 0.0
    %1633 = vmatpush1.msra.mxu0 0.0
    %1634 = vmatprep.subr.mxu0 0.0
    %1635 = vmatpush1.msra.mxu0 0.0
    %1636 = vmatprep.subr.mxu0 0.0
    %1637 = vmatpush1.msra.mxu0 0.0
    %1638 = vmatprep.subr.mxu0 0.0
    %1639 = vmatpush1.msra.mxu0 0.0
    %1640 = vmatprep.subr.mxu0 0.0
    %1641 = vmatpush1.msra.mxu0 0.0
    %1642 = vmatprep.subr.mxu0 0.0
    %1643 = vmatpush1.msra.mxu0 0.0
    %1644 = vmatprep.subr.mxu0 0.0
    %1645 = vmatpush1.msra.mxu0 %v225
    %1646 = vmatprep.subr.mxu0 0.0
    %1647 = vmatpush1.msra.mxu0 %v224
    %1648 = vmatprep.subr.mxu0 0.0
    %1649 = vmatpush1.msra.mxu0 %v223
    %1650 = vmatprep.subr.mxu0 0.0
    %1651 = vmatpush1.msra.mxu0 %v222
    %1652 = vmatprep.subr.mxu0 0.0
    %1653 = vmatpush2.msra.mxu0 0.0
    %1654 = vmatprep.subr.mxu0 0.0
    %1655 = vmatpush2.msra.mxu0 0.0
    %1656 = vmatprep.subr.mxu0 0.0
    %1657 = vmatpush2.msra.mxu0 0.0
    %1658 = vmatprep.subr.mxu0 0.0
    %1659 = vmatpush2.msra.mxu0 0.0
    %1660 = vmatprep.subr.mxu0 0.0
    %1661 = vmatpush2.msra.mxu0 0.0
    %1662 = vmatprep.subr.mxu0 0.0
    %1663 = vmatpush2.msra.mxu0 0.0
    %1664 = vmatprep.subr.mxu0 0.0
    %1665 = vmatpush2.msra.mxu0 0.0
    %1666 = vmatprep.subr.mxu0 0.0
    %1667 = vmatpush2.msra.mxu0 0.0
    %1668 = vmatprep.subr.mxu0 0.0
    %1669 = vmatpush2.msra.mxu0 0.0
    %1670 = vmatprep.subr.mxu0 0.0
    %1671 = vmatpush2.msra.mxu0 0.0
    %1672 = vmatprep.subr.mxu0 0.0
    %1673 = vmatpush2.msra.mxu0 0.0
    %1674 = vmatprep.subr.mxu0 0.0
    %1675 = vmatpush2.msra.mxu0 0.0
    %1676 = vmatprep.subr.mxu0 0.0
    %1677 = vmatpush2.msra.mxu0 0.0
    %1678 = vmatprep.subr.mxu0 0.0
    %1679 = vmatpush2.msra.mxu0 0.0
    %1680 = vmatprep.subr.mxu0 0.0
    %1681 = vmatpush2.msra.mxu0 0.0
    %1682 = vmatprep.subr.mxu0 0.0
    %1683 = vmatpush2.msra.mxu0 0.0
    %1684 = vmatprep.mubr.f32.mxu0 0.0
    %1685 = vmatmul.mubr.f32.gmra.mxu0 %v1536
    %v1686 = vpop.f32.mrf.mxu0
    %v1687 = vadd.f32 0.0, %v1686
    %v1688 = vpop.f32.mrf.mxu0
    %1689 = vdwg.mxu0
    %v1691 = vrot.slane %v1687, 6
    %v1693 = vadd.f32 %v200, %v1691
    %v1694 = vxor.u32 %v1693, 2147483648
    %v1695 = vmul.f32 %v1694, 1.442695
    %v1696 = vpow.pop %v1695
    %v1697 = vadd.f32 %v1696, 1.0
    %v1698 = vrcp.pop %v1697
    %v1699 = vmul.f32 1.0, %v1698
    %1700 = vmatprep.subr.mxu0 0.0
    %1701 = vmatpush1.msra.mxu0 0.0
    %1702 = vmatprep.subr.mxu0 0.0
    %1703 = vmatpush1.msra.mxu0 0.0
    %1704 = vmatprep.subr.mxu0 0.0
    %1705 = vmatpush1.msra.mxu0 0.0
    %1706 = vmatprep.subr.mxu0 0.0
    %1707 = vmatpush1.msra.mxu0 0.0
    %1708 = vmatprep.subr.mxu0 0.0
    %1709 = vmatpush1.msra.mxu0 0.0
    %1710 = vmatprep.subr.mxu0 0.0
    %1711 = vmatpush1.msra.mxu0 0.0
    %1712 = vmatprep.subr.mxu0 0.0
    %1713 = vmatpush1.msra.mxu0 0.0
    %1714 = vmatprep.subr.mxu0 0.0
    %1715 = vmatpush1.msra.mxu0 0.0
    %1716 = vmatprep.subr.mxu0 0.0
    %1717 = vmatpush1.msra.mxu0 0.0
    %1718 = vmatprep.subr.mxu0 0.0
    %1719 = vmatpush1.msra.mxu0 0.0
    %1720 = vmatprep.subr.mxu0 0.0
    %1721 = vmatpush1.msra.mxu0 0.0
    %1722 = vmatprep.subr.mxu0 0.0
    %1723 = vmatpush1.msra.mxu0 0.0
    %1724 = vmatprep.subr.mxu0 0.0
    %1725 = vmatpush1.msra.mxu0 %v230
    %1726 = vmatprep.subr.mxu0 0.0
    %1727 = vmatpush1.msra.mxu0 %v229
    %1728 = vmatprep.subr.mxu0 0.0
    %1729 = vmatpush1.msra.mxu0 %v228
    %1730 = vmatprep.subr.mxu0 0.0
    %1731 = vmatpush1.msra.mxu0 %v227
    %1732 = vmatprep.subr.mxu0 0.0
    %1733 = vmatpush2.msra.mxu0 0.0
    %1734 = vmatprep.subr.mxu0 0.0
    %1735 = vmatpush2.msra.mxu0 0.0
    %1736 = vmatprep.subr.mxu0 0.0
    %1737 = vmatpush2.msra.mxu0 0.0
    %1738 = vmatprep.subr.mxu0 0.0
    %1739 = vmatpush2.msra.mxu0 0.0
    %1740 = vmatprep.subr.mxu0 0.0
    %1741 = vmatpush2.msra.mxu0 0.0
    %1742 = vmatprep.subr.mxu0 0.0
    %1743 = vmatpush2.msra.mxu0 0.0
    %1744 = vmatprep.subr.mxu0 0.0
    %1745 = vmatpush2.msra.mxu0 0.0
    %1746 = vmatprep.subr.mxu0 0.0
    %1747 = vmatpush2.msra.mxu0 0.0
    %1748 = vmatprep.subr.mxu0 0.0
    %1749 = vmatpush2.msra.mxu0 0.0
    %1750 = vmatprep.subr.mxu0 0.0
    %1751 = vmatpush2.msra.mxu0 0.0
    %1752 = vmatprep.subr.mxu0 0.0
    %1753 = vmatpush2.msra.mxu0 0.0
    %1754 = vmatprep.subr.mxu0 0.0
    %1755 = vmatpush2.msra.mxu0 0.0
    %1756 = vmatprep.subr.mxu0 0.0
    %1757 = vmatpush2.msra.mxu0 0.0
    %1758 = vmatprep.subr.mxu0 0.0
    %1759 = vmatpush2.msra.mxu0 0.0
    %1760 = vmatprep.subr.mxu0 0.0
    %1761 = vmatpush2.msra.mxu0 0.0
    %1762 = vmatprep.subr.mxu0 0.0
    %1763 = vmatpush2.msra.mxu0 0.0
    %1764 = vmatprep.mubr.f32.mxu0 0.0
    %1765 = vmatmul.mubr.f32.gmra.mxu0 %v1536
    %v1766 = vpop.f32.mrf.mxu0
    %v1767 = vadd.f32 %v658, %v1766
    %v1768 = vpop.f32.mrf.mxu0
    %1769 = vdwg.mxu0
    %v1771 = vrot.slane %v1767, 6
    %1772 = vrot.lane.b32.xlu0 %v1771, 96
    %v1773 = vpop.permute.xlu0 %1772
    %v1775 = vmul.f32 %v1619, %v1773
    %1777 = vrot.lane.b32.xlu0 %v1775, 64
    %v1778 = vpop.permute.xlu0 %1777
    %v1780 = vadd.f32 %v200, %v1778
    %v1781 = vtanh.pop %v1780
    %v1782 = vsub.f32 1.0, %v1699
    %1784 = vrot.lane.b32.xlu0 %v1781, 96
    %v1785 = vpop.permute.xlu0 %1784
    %v1787 = vmul.f32 %v1782, %v1785
    %v1788 = vrot.slane %v1269, 2
    %v1790 = vmul.f32 %v1699, %v1788
    %v1791 = vadd.f32 %v1787, %v1790
    %1792 = vst.msk [vmem:[#allocation3 + $0x8] sm:$0xc] %vm1010, %v1791
    %v1793 = vrot.slane %v1528, 4
    %1794 = vrot.lane.b32.xlu0 %v1793, 96
    %v1795 = vpop.permute.xlu0 %1794
    %v1796 = vsel %vm118, %v1795, 0
    %1798 = vmatprep.subr.mxu0 0.0
    %1799 = vmatpush1.msra.mxu0 0.0
    %1800 = vmatprep.subr.mxu0 0.0
    %1801 = vmatpush1.msra.mxu0 0.0
    %1802 = vmatprep.subr.mxu0 0.0
    %1803 = vmatpush1.msra.mxu0 0.0
    %1804 = vmatprep.subr.mxu0 0.0
    %1805 = vmatpush1.msra.mxu0 0.0
    %1806 = vmatprep.subr.mxu0 0.0
    %1807 = vmatpush1.msra.mxu0 0.0
    %1808 = vmatprep.subr.mxu0 0.0
    %1809 = vmatpush1.msra.mxu0 0.0
    %1810 = vmatprep.subr.mxu0 0.0
    %1811 = vmatpush1.msra.mxu0 0.0
    %1812 = vmatprep.subr.mxu0 0.0
    %1813 = vmatpush1.msra.mxu0 0.0
    %1814 = vmatprep.subr.mxu0 0.0
    %1815 = vmatpush1.msra.mxu0 0.0
    %1816 = vmatprep.subr.mxu0 0.0
    %1817 = vmatpush1.msra.mxu0 0.0
    %1818 = vmatprep.subr.mxu0 0.0
    %1819 = vmatpush1.msra.mxu0 0.0
    %1820 = vmatprep.subr.mxu0 0.0
    %1821 = vmatpush1.msra.mxu0 0.0
    %1822 = vmatprep.subr.mxu0 0.0
    %1823 = vmatpush1.msra.mxu0 %v205
    %1824 = vmatprep.subr.mxu0 0.0
    %1825 = vmatpush1.msra.mxu0 %v204
    %1826 = vmatprep.subr.mxu0 0.0
    %1827 = vmatpush1.msra.mxu0 %v203
    %1828 = vmatprep.subr.mxu0 0.0
    %1829 = vmatpush1.msra.mxu0 %v202
    %1830 = vmatprep.subr.mxu0 0.0
    %1831 = vmatpush2.msra.mxu0 0.0
    %1832 = vmatprep.subr.mxu0 0.0
    %1833 = vmatpush2.msra.mxu0 0.0
    %1834 = vmatprep.subr.mxu0 0.0
    %1835 = vmatpush2.msra.mxu0 0.0
    %1836 = vmatprep.subr.mxu0 0.0
    %1837 = vmatpush2.msra.mxu0 0.0
    %1838 = vmatprep.subr.mxu0 0.0
    %1839 = vmatpush2.msra.mxu0 0.0
    %1840 = vmatprep.subr.mxu0 0.0
    %1841 = vmatpush2.msra.mxu0 0.0
    %1842 = vmatprep.subr.mxu0 0.0
    %1843 = vmatpush2.msra.mxu0 0.0
    %1844 = vmatprep.subr.mxu0 0.0
    %1845 = vmatpush2.msra.mxu0 0.0
    %1846 = vmatprep.subr.mxu0 0.0
    %1847 = vmatpush2.msra.mxu0 0.0
    %1848 = vmatprep.subr.mxu0 0.0
    %1849 = vmatpush2.msra.mxu0 0.0
    %1850 = vmatprep.subr.mxu0 0.0
    %1851 = vmatpush2.msra.mxu0 0.0
    %1852 = vmatprep.subr.mxu0 0.0
    %1853 = vmatpush2.msra.mxu0 0.0
    %1854 = vmatprep.subr.mxu0 0.0
    %1855 = vmatpush2.msra.mxu0 0.0
    %1856 = vmatprep.subr.mxu0 0.0
    %1857 = vmatpush2.msra.mxu0 0.0
    %1858 = vmatprep.subr.mxu0 0.0
    %1859 = vmatpush2.msra.mxu0 0.0
    %1860 = vmatprep.subr.mxu0 0.0
    %1861 = vmatpush2.msra.mxu0 0.0
    %1862 = vmatprep.mubr.f32.mxu0 0.0
    %1863 = vmatmul.mubr.f32.gmra.mxu0 %v1796
    %v1864 = vpop.f32.mrf.mxu0
    %v1865 = vadd.f32 0.0, %v1864
    %v1866 = vpop.f32.mrf.mxu0
    %1867 = vdwg.mxu0
    %v1869 = vrot.slane %v1865, 2
    %v1871 = vadd.f32 %v192, %v1869
    %v1872 = vxor.u32 %v1871, 2147483648
    %v1873 = vmul.f32 %v1872, 1.442695
    %v1874 = vpow.pop %v1873
    %v1875 = vadd.f32 %v1874, 1.0
    %v1876 = vrcp.pop %v1875
    %v1877 = vmul.f32 1.0, %v1876
    %1878 = vmatprep.subr.mxu0 0.0
    %1879 = vmatpush1.msra.mxu0 0.0
    %1880 = vmatprep.subr.mxu0 0.0
    %1881 = vmatpush1.msra.mxu0 0.0
    %1882 = vmatprep.subr.mxu0 0.0
    %1883 = vmatpush1.msra.mxu0 0.0
    %1884 = vmatprep.subr.mxu0 0.0
    %1885 = vmatpush1.msra.mxu0 0.0
    %1886 = vmatprep.subr.mxu0 0.0
    %1887 = vmatpush1.msra.mxu0 0.0
    %1888 = vmatprep.subr.mxu0 0.0
    %1889 = vmatpush1.msra.mxu0 0.0
    %1890 = vmatprep.subr.mxu0 0.0
    %1891 = vmatpush1.msra.mxu0 0.0
    %1892 = vmatprep.subr.mxu0 0.0
    %1893 = vmatpush1.msra.mxu0 0.0
    %1894 = vmatprep.subr.mxu0 0.0
    %1895 = vmatpush1.msra.mxu0 0.0
    %1896 = vmatprep.subr.mxu0 0.0
    %1897 = vmatpush1.msra.mxu0 0.0
    %1898 = vmatprep.subr.mxu0 0.0
    %1899 = vmatpush1.msra.mxu0 0.0
    %1900 = vmatprep.subr.mxu0 0.0
    %1901 = vmatpush1.msra.mxu0 0.0
    %1902 = vmatprep.subr.mxu0 0.0
    %1903 = vmatpush1.msra.mxu0 %v210
    %1904 = vmatprep.subr.mxu0 0.0
    %1905 = vmatpush1.msra.mxu0 %v209
    %1906 = vmatprep.subr.mxu0 0.0
    %1907 = vmatpush1.msra.mxu0 %v208
    %1908 = vmatprep.subr.mxu0 0.0
    %1909 = vmatpush1.msra.mxu0 %v207
    %1910 = vmatprep.subr.mxu0 0.0
    %1911 = vmatpush2.msra.mxu0 0.0
    %1912 = vmatprep.subr.mxu0 0.0
    %1913 = vmatpush2.msra.mxu0 0.0
    %1914 = vmatprep.subr.mxu0 0.0
    %1915 = vmatpush2.msra.mxu0 0.0
    %1916 = vmatprep.subr.mxu0 0.0
    %1917 = vmatpush2.msra.mxu0 0.0
    %1918 = vmatprep.subr.mxu0 0.0
    %1919 = vmatpush2.msra.mxu0 0.0
    %1920 = vmatprep.subr.mxu0 0.0
    %1921 = vmatpush2.msra.mxu0 0.0
    %1922 = vmatprep.subr.mxu0 0.0
    %1923 = vmatpush2.msra.mxu0 0.0
    %1924 = vmatprep.subr.mxu0 0.0
    %1925 = vmatpush2.msra.mxu0 0.0
    %1926 = vmatprep.subr.mxu0 0.0
    %1927 = vmatpush2.msra.mxu0 0.0
    %1928 = vmatprep.subr.mxu0 0.0
    %1929 = vmatpush2.msra.mxu0 0.0
    %1930 = vmatprep.subr.mxu0 0.0
    %1931 = vmatpush2.msra.mxu0 0.0
    %1932 = vmatprep.subr.mxu0 0.0
    %1933 = vmatpush2.msra.mxu0 0.0
    %1934 = vmatprep.subr.mxu0 0.0
    %1935 = vmatpush2.msra.mxu0 0.0
    %1936 = vmatprep.subr.mxu0 0.0
    %1937 = vmatpush2.msra.mxu0 0.0
    %1938 = vmatprep.subr.mxu0 0.0
    %1939 = vmatpush2.msra.mxu0 0.0
    %1940 = vmatprep.subr.mxu0 0.0
    %1941 = vmatpush2.msra.mxu0 0.0
    %1942 = vmatprep.mubr.f32.mxu0 0.0
    %1943 = vmatmul.mubr.f32.gmra.mxu0 %v1796
    %v1944 = vpop.f32.mrf.mxu0
    %v1945 = vadd.f32 0.0, %v1944
    %v1946 = vpop.f32.mrf.mxu0
    %1947 = vdwg.mxu0
    %v1949 = vrot.slane %v1945, 2
    %1950 = vrot.lane.b32.xlu0 %v1949, 32
    %v1951 = vpop.permute.xlu0 %1950
    %v1953 = vadd.f32 %v192, %v1951
    %v1954 = vxor.u32 %v1953, 2147483648
    %v1955 = vmul.f32 %v1954, 1.442695
    %v1956 = vpow.pop %v1955
    %v1957 = vadd.f32 %v1956, 1.0
    %v1958 = vrcp.pop %v1957
    %v1959 = vmul.f32 1.0, %v1958
    %1960 = vmatprep.subr.mxu0 0.0
    %1961 = vmatpush1.msra.mxu0 0.0
    %1962 = vmatprep.subr.mxu0 0.0
    %1963 = vmatpush1.msra.mxu0 0.0
    %1964 = vmatprep.subr.mxu0 0.0
    %1965 = vmatpush1.msra.mxu0 0.0
    %1966 = vmatprep.subr.mxu0 0.0
    %1967 = vmatpush1.msra.mxu0 0.0
    %1968 = vmatprep.subr.mxu0 0.0
    %1969 = vmatpush1.msra.mxu0 0.0
    %1970 = vmatprep.subr.mxu0 0.0
    %1971 = vmatpush1.msra.mxu0 0.0
    %1972 = vmatprep.subr.mxu0 0.0
    %1973 = vmatpush1.msra.mxu0 0.0
    %1974 = vmatprep.subr.mxu0 0.0
    %1975 = vmatpush1.msra.mxu0 0.0
    %1976 = vmatprep.subr.mxu0 0.0
    %1977 = vmatpush1.msra.mxu0 0.0
    %1978 = vmatprep.subr.mxu0 0.0
    %1979 = vmatpush1.msra.mxu0 0.0
    %1980 = vmatprep.subr.mxu0 0.0
    %1981 = vmatpush1.msra.mxu0 0.0
    %1982 = vmatprep.subr.mxu0 0.0
    %1983 = vmatpush1.msra.mxu0 0.0
    %1984 = vmatprep.subr.mxu0 0.0
    %1985 = vmatpush1.msra.mxu0 %v215
    %1986 = vmatprep.subr.mxu0 0.0
    %1987 = vmatpush1.msra.mxu0 %v214
    %1988 = vmatprep.subr.mxu0 0.0
    %1989 = vmatpush1.msra.mxu0 %v213
    %1990 = vmatprep.subr.mxu0 0.0
    %1991 = vmatpush1.msra.mxu0 %v212
    %1992 = vmatprep.subr.mxu0 0.0
    %1993 = vmatpush2.msra.mxu0 0.0
    %1994 = vmatprep.subr.mxu0 0.0
    %1995 = vmatpush2.msra.mxu0 0.0
    %1996 = vmatprep.subr.mxu0 0.0
    %1997 = vmatpush2.msra.mxu0 0.0
    %1998 = vmatprep.subr.mxu0 0.0
    %1999 = vmatpush2.msra.mxu0 0.0
    %2000 = vmatprep.subr.mxu0 0.0
    %2001 = vmatpush2.msra.mxu0 0.0
    %2002 = vmatprep.subr.mxu0 0.0
    %2003 = vmatpush2.msra.mxu0 0.0
    %2004 = vmatprep.subr.mxu0 0.0
    %2005 = vmatpush2.msra.mxu0 0.0
    %2006 = vmatprep.subr.mxu0 0.0
    %2007 = vmatpush2.msra.mxu0 0.0
    %2008 = vmatprep.subr.mxu0 0.0
    %2009 = vmatpush2.msra.mxu0 0.0
    %2010 = vmatprep.subr.mxu0 0.0
    %2011 = vmatpush2.msra.mxu0 0.0
    %2012 = vmatprep.subr.mxu0 0.0
    %2013 = vmatpush2.msra.mxu0 0.0
    %2014 = vmatprep.subr.mxu0 0.0
    %2015 = vmatpush2.msra.mxu0 0.0
    %2016 = vmatprep.subr.mxu0 0.0
    %2017 = vmatpush2.msra.mxu0 0.0
    %2018 = vmatprep.subr.mxu0 0.0
    %2019 = vmatpush2.msra.mxu0 0.0
    %2020 = vmatprep.subr.mxu0 0.0
    %2021 = vmatpush2.msra.mxu0 0.0
    %2022 = vmatprep.subr.mxu0 0.0
    %2023 = vmatpush2.msra.mxu0 0.0
    %2024 = vmatprep.mubr.f32.mxu0 0.0
    %2025 = vmatmul.mubr.f32.gmra.mxu0 %v1796
    %v2026 = vpop.f32.mrf.mxu0
    %v2027 = vadd.f32 %v399, %v2026
    %v2028 = vpop.f32.mrf.mxu0
    %2029 = vdwg.mxu0
    %v2031 = vrot.slane %v2027, 2
    %v2033 = vmul.f32 %v1877, %v2031
    %2035 = vrot.lane.b32.xlu0 %v2033, 64
    %v2036 = vpop.permute.xlu0 %2035
    %v2038 = vadd.f32 %v192, %v2036
    %v2039 = vtanh.pop %v2038
    %v2040 = vsub.f32 1.0, %v1959
    %2042 = vrot.lane.b32.xlu0 %v2039, 96
    %v2043 = vpop.permute.xlu0 %2042
    %v2045 = vmul.f32 %v2040, %v2043
    %v2046 = vrot.slane %v1528, 6
    %v2048 = vmul.f32 %v1959, %v2046
    %v2049 = vadd.f32 %v2045, %v2048
    %2051 = vrot.lane.b32.xlu0 %v2049, 96
    %v2052 = vpop.permute.xlu0 %2051
    %2054 = vst.msk [vmem:[#allocation2] sm:$0xc0] %vm750, %v2052
    %v2056 = vrot.slane %v1791, 2
    %v2057 = vsel %vm118, %v2056, 0
    %2059 = vmatprep.subr.mxu0 0.0
    %2060 = vmatpush1.msra.mxu0 0.0
    %2061 = vmatprep.subr.mxu0 0.0
    %2062 = vmatpush1.msra.mxu0 0.0
    %2063 = vmatprep.subr.mxu0 0.0
    %2064 = vmatpush1.msra.mxu0 0.0
    %2065 = vmatprep.subr.mxu0 0.0
    %2066 = vmatpush1.msra.mxu0 0.0
    %2067 = vmatprep.subr.mxu0 0.0
    %2068 = vmatpush1.msra.mxu0 0.0
    %2069 = vmatprep.subr.mxu0 0.0
    %2070 = vmatpush1.msra.mxu0 0.0
    %2071 = vmatprep.subr.mxu0 0.0
    %2072 = vmatpush1.msra.mxu0 0.0
    %2073 = vmatprep.subr.mxu0 0.0
    %2074 = vmatpush1.msra.mxu0 0.0
    %2075 = vmatprep.subr.mxu0 0.0
    %2076 = vmatpush1.msra.mxu0 0.0
    %2077 = vmatprep.subr.mxu0 0.0
    %2078 = vmatpush1.msra.mxu0 0.0
    %2079 = vmatprep.subr.mxu0 0.0
    %2080 = vmatpush1.msra.mxu0 0.0
    %2081 = vmatprep.subr.mxu0 0.0
    %2082 = vmatpush1.msra.mxu0 0.0
    %2083 = vmatprep.subr.mxu0 0.0
    %2084 = vmatpush1.msra.mxu0 %v220
    %2085 = vmatprep.subr.mxu0 0.0
    %2086 = vmatpush1.msra.mxu0 %v219
    %2087 = vmatprep.subr.mxu0 0.0
    %2088 = vmatpush1.msra.mxu0 %v218
    %2089 = vmatprep.subr.mxu0 0.0
    %2090 = vmatpush1.msra.mxu0 %v217
    %2091 = vmatprep.subr.mxu0 0.0
    %2092 = vmatpush2.msra.mxu0 0.0
    %2093 = vmatprep.subr.mxu0 0.0
    %2094 = vmatpush2.msra.mxu0 0.0
    %2095 = vmatprep.subr.mxu0 0.0
    %2096 = vmatpush2.msra.mxu0 0.0
    %2097 = vmatprep.subr.mxu0 0.0
    %2098 = vmatpush2.msra.mxu0 0.0
    %2099 = vmatprep.subr.mxu0 0.0
    %2100 = vmatpush2.msra.mxu0 0.0
    %2101 = vmatprep.subr.mxu0 0.0
    %2102 = vmatpush2.msra.mxu0 0.0
    %2103 = vmatprep.subr.mxu0 0.0
    %2104 = vmatpush2.msra.mxu0 0.0
    %2105 = vmatprep.subr.mxu0 0.0
    %2106 = vmatpush2.msra.mxu0 0.0
    %2107 = vmatprep.subr.mxu0 0.0
    %2108 = vmatpush2.msra.mxu0 0.0
    %2109 = vmatprep.subr.mxu0 0.0
    %2110 = vmatpush2.msra.mxu0 0.0
    %2111 = vmatprep.subr.mxu0 0.0
    %2112 = vmatpush2.msra.mxu0 0.0
    %2113 = vmatprep.subr.mxu0 0.0
    %2114 = vmatpush2.msra.mxu0 0.0
    %2115 = vmatprep.subr.mxu0 0.0
    %2116 = vmatpush2.msra.mxu0 0.0
    %2117 = vmatprep.subr.mxu0 0.0
    %2118 = vmatpush2.msra.mxu0 0.0
    %2119 = vmatprep.subr.mxu0 0.0
    %2120 = vmatpush2.msra.mxu0 0.0
    %2121 = vmatprep.subr.mxu0 0.0
    %2122 = vmatpush2.msra.mxu0 0.0
    %2123 = vmatprep.mubr.f32.mxu0 0.0
    %2124 = vmatmul.mubr.f32.gmra.mxu0 %v2057
    %v2125 = vpop.f32.mrf.mxu0
    %v2126 = vadd.f32 0.0, %v2125
    %v2127 = vpop.f32.mrf.mxu0
    %2128 = vdwg.mxu0
    %2130 = vrot.lane.b32.xlu0 %v2126, 96
    %v2131 = vpop.permute.xlu0 %2130
    %v2133 = vadd.f32 %v198, %v2131
    %v2134 = vxor.u32 %v2133, 2147483648
    %v2135 = vmul.f32 %v2134, 1.442695
    %v2136 = vpow.pop %v2135
    %v2137 = vadd.f32 %v2136, 1.0
    %v2138 = vrcp.pop %v2137
    %v2139 = vmul.f32 1.0, %v2138
    %2140 = vmatprep.subr.mxu0 0.0
    %2141 = vmatpush1.msra.mxu0 0.0
    %2142 = vmatprep.subr.mxu0 0.0
    %2143 = vmatpush1.msra.mxu0 0.0
    %2144 = vmatprep.subr.mxu0 0.0
    %2145 = vmatpush1.msra.mxu0 0.0
    %2146 = vmatprep.subr.mxu0 0.0
    %2147 = vmatpush1.msra.mxu0 0.0
    %2148 = vmatprep.subr.mxu0 0.0
    %2149 = vmatpush1.msra.mxu0 0.0
    %2150 = vmatprep.subr.mxu0 0.0
    %2151 = vmatpush1.msra.mxu0 0.0
    %2152 = vmatprep.subr.mxu0 0.0
    %2153 = vmatpush1.msra.mxu0 0.0
    %2154 = vmatprep.subr.mxu0 0.0
    %2155 = vmatpush1.msra.mxu0 0.0
    %2156 = vmatprep.subr.mxu0 0.0
    %2157 = vmatpush1.msra.mxu0 0.0
    %2158 = vmatprep.subr.mxu0 0.0
    %2159 = vmatpush1.msra.mxu0 0.0
    %2160 = vmatprep.subr.mxu0 0.0
    %2161 = vmatpush1.msra.mxu0 0.0
    %2162 = vmatprep.subr.mxu0 0.0
    %2163 = vmatpush1.msra.mxu0 0.0
    %2164 = vmatprep.subr.mxu0 0.0
    %2165 = vmatpush1.msra.mxu0 %v225
    %2166 = vmatprep.subr.mxu0 0.0
    %2167 = vmatpush1.msra.mxu0 %v224
    %2168 = vmatprep.subr.mxu0 0.0
    %2169 = vmatpush1.msra.mxu0 %v223
    %2170 = vmatprep.subr.mxu0 0.0
    %2171 = vmatpush1.msra.mxu0 %v222
    %2172 = vmatprep.subr.mxu0 0.0
    %2173 = vmatpush2.msra.mxu0 0.0
    %2174 = vmatprep.subr.mxu0 0.0
    %2175 = vmatpush2.msra.mxu0 0.0
    %2176 = vmatprep.subr.mxu0 0.0
    %2177 = vmatpush2.msra.mxu0 0.0
    %2178 = vmatprep.subr.mxu0 0.0
    %2179 = vmatpush2.msra.mxu0 0.0
    %2180 = vmatprep.subr.mxu0 0.0
    %2181 = vmatpush2.msra.mxu0 0.0
    %2182 = vmatprep.subr.mxu0 0.0
    %2183 = vmatpush2.msra.mxu0 0.0
    %2184 = vmatprep.subr.mxu0 0.0
    %2185 = vmatpush2.msra.mxu0 0.0
    %2186 = vmatprep.subr.mxu0 0.0
    %2187 = vmatpush2.msra.mxu0 0.0
    %2188 = vmatprep.subr.mxu0 0.0
    %2189 = vmatpush2.msra.mxu0 0.0
    %2190 = vmatprep.subr.mxu0 0.0
    %2191 = vmatpush2.msra.mxu0 0.0
    %2192 = vmatprep.subr.mxu0 0.0
    %2193 = vmatpush2.msra.mxu0 0.0
    %2194 = vmatprep.subr.mxu0 0.0
    %2195 = vmatpush2.msra.mxu0 0.0
    %2196 = vmatprep.subr.mxu0 0.0
    %2197 = vmatpush2.msra.mxu0 0.0
    %2198 = vmatprep.subr.mxu0 0.0
    %2199 = vmatpush2.msra.mxu0 0.0
    %2200 = vmatprep.subr.mxu0 0.0
    %2201 = vmatpush2.msra.mxu0 0.0
    %2202 = vmatprep.subr.mxu0 0.0
    %2203 = vmatpush2.msra.mxu0 0.0
    %2204 = vmatprep.mubr.f32.mxu0 0.0
    %2205 = vmatmul.mubr.f32.gmra.mxu0 %v2057
    %v2206 = vpop.f32.mrf.mxu0
    %v2207 = vadd.f32 0.0, %v2206
    %v2208 = vpop.f32.mrf.mxu0
    %2209 = vdwg.mxu0
    %v2210 = vadd.f32 %v200, %v2207
    %v2211 = vxor.u32 %v2210, 2147483648
    %v2212 = vmul.f32 %v2211, 1.442695
    %v2213 = vpow.pop %v2212
    %v2214 = vadd.f32 %v2213, 1.0
    %v2215 = vrcp.pop %v2214
    %v2216 = vmul.f32 1.0, %v2215
    %2217 = vmatprep.subr.mxu0 0.0
    %2218 = vmatpush1.msra.mxu0 0.0
    %2219 = vmatprep.subr.mxu0 0.0
    %2220 = vmatpush1.msra.mxu0 0.0
    %2221 = vmatprep.subr.mxu0 0.0
    %2222 = vmatpush1.msra.mxu0 0.0
    %2223 = vmatprep.subr.mxu0 0.0
    %2224 = vmatpush1.msra.mxu0 0.0
    %2225 = vmatprep.subr.mxu0 0.0
    %2226 = vmatpush1.msra.mxu0 0.0
    %2227 = vmatprep.subr.mxu0 0.0
    %2228 = vmatpush1.msra.mxu0 0.0
    %2229 = vmatprep.subr.mxu0 0.0
    %2230 = vmatpush1.msra.mxu0 0.0
    %2231 = vmatprep.subr.mxu0 0.0
    %2232 = vmatpush1.msra.mxu0 0.0
    %2233 = vmatprep.subr.mxu0 0.0
    %2234 = vmatpush1.msra.mxu0 0.0
    %2235 = vmatprep.subr.mxu0 0.0
    %2236 = vmatpush1.msra.mxu0 0.0
    %2237 = vmatprep.subr.mxu0 0.0
    %2238 = vmatpush1.msra.mxu0 0.0
    %2239 = vmatprep.subr.mxu0 0.0
    %2240 = vmatpush1.msra.mxu0 0.0
    %2241 = vmatprep.subr.mxu0 0.0
    %2242 = vmatpush1.msra.mxu0 %v230
    %2243 = vmatprep.subr.mxu0 0.0
    %2244 = vmatpush1.msra.mxu0 %v229
    %2245 = vmatprep.subr.mxu0 0.0
    %2246 = vmatpush1.msra.mxu0 %v228
    %2247 = vmatprep.subr.mxu0 0.0
    %2248 = vmatpush1.msra.mxu0 %v227
    %2249 = vmatprep.subr.mxu0 0.0
    %2250 = vmatpush2.msra.mxu0 0.0
    %2251 = vmatprep.subr.mxu0 0.0
    %2252 = vmatpush2.msra.mxu0 0.0
    %2253 = vmatprep.subr.mxu0 0.0
    %2254 = vmatpush2.msra.mxu0 0.0
    %2255 = vmatprep.subr.mxu0 0.0
    %2256 = vmatpush2.msra.mxu0 0.0
    %2257 = vmatprep.subr.mxu0 0.0
    %2258 = vmatpush2.msra.mxu0 0.0
    %2259 = vmatprep.subr.mxu0 0.0
    %2260 = vmatpush2.msra.mxu0 0.0
    %2261 = vmatprep.subr.mxu0 0.0
    %2262 = vmatpush2.msra.mxu0 0.0
    %2263 = vmatprep.subr.mxu0 0.0
    %2264 = vmatpush2.msra.mxu0 0.0
    %2265 = vmatprep.subr.mxu0 0.0
    %2266 = vmatpush2.msra.mxu0 0.0
    %2267 = vmatprep.subr.mxu0 0.0
    %2268 = vmatpush2.msra.mxu0 0.0
    %2269 = vmatprep.subr.mxu0 0.0
    %2270 = vmatpush2.msra.mxu0 0.0
    %2271 = vmatprep.subr.mxu0 0.0
    %2272 = vmatpush2.msra.mxu0 0.0
    %2273 = vmatprep.subr.mxu0 0.0
    %2274 = vmatpush2.msra.mxu0 0.0
    %2275 = vmatprep.subr.mxu0 0.0
    %2276 = vmatpush2.msra.mxu0 0.0
    %2277 = vmatprep.subr.mxu0 0.0
    %2278 = vmatpush2.msra.mxu0 0.0
    %2279 = vmatprep.subr.mxu0 0.0
    %2280 = vmatpush2.msra.mxu0 0.0
    %2281 = vmatprep.mubr.f32.mxu0 0.0
    %2282 = vmatmul.mubr.f32.gmra.mxu0 %v2057
    %v2283 = vpop.f32.mrf.mxu0
    %v2284 = vadd.f32 %v658, %v2283
    %v2285 = vpop.f32.mrf.mxu0
    %2286 = vdwg.mxu0
    %2288 = vrot.lane.b32.xlu0 %v2284, 96
    %v2289 = vpop.permute.xlu0 %2288
    %v2291 = vmul.f32 %v2139, %v2289
    %2293 = vrot.lane.b32.xlu0 %v2291, 64
    %v2294 = vpop.permute.xlu0 %2293
    %v2296 = vadd.f32 %v200, %v2294
    %v2297 = vtanh.pop %v2296
    %v2298 = vsub.f32 1.0, %v2216
    %2300 = vrot.lane.b32.xlu0 %v2297, 96
    %v2301 = vpop.permute.xlu0 %2300
    %v2303 = vmul.f32 %v2298, %v2301
    %v2305 = vmul.f32 %v2216, %v2056
    %v2306 = vadd.f32 %v2303, %v2305
    %2307 = vst.msk [vmem:[#allocation3 + $0x8] sm:$0x3] %vm490, %v2306
    %v2308 = vrot.slane %v2049, 6
    %2309 = vrot.lane.b32.xlu0 %v2308, 96
    %v2310 = vpop.permute.xlu0 %2309
    %v2311 = vsel %vm118, %v2310, 0
    %2313 = vmatprep.subr.mxu0 0.0
    %2314 = vmatpush1.msra.mxu0 0.0
    %2315 = vmatprep.subr.mxu0 0.0
    %2316 = vmatpush1.msra.mxu0 0.0
    %2317 = vmatprep.subr.mxu0 0.0
    %2318 = vmatpush1.msra.mxu0 0.0
    %2319 = vmatprep.subr.mxu0 0.0
    %2320 = vmatpush1.msra.mxu0 0.0
    %2321 = vmatprep.subr.mxu0 0.0
    %2322 = vmatpush1.msra.mxu0 0.0
    %2323 = vmatprep.subr.mxu0 0.0
    %2324 = vmatpush1.msra.mxu0 0.0
    %2325 = vmatprep.subr.mxu0 0.0
    %2326 = vmatpush1.msra.mxu0 0.0
    %2327 = vmatprep.subr.mxu0 0.0
    %2328 = vmatpush1.msra.mxu0 0.0
    %2329 = vmatprep.subr.mxu0 0.0
    %2330 = vmatpush1.msra.mxu0 0.0
    %2331 = vmatprep.subr.mxu0 0.0
    %2332 = vmatpush1.msra.mxu0 0.0
    %2333 = vmatprep.subr.mxu0 0.0
    %2334 = vmatpush1.msra.mxu0 0.0
    %2335 = vmatprep.subr.mxu0 0.0
    %2336 = vmatpush1.msra.mxu0 0.0
    %2337 = vmatprep.subr.mxu0 0.0
    %2338 = vmatpush1.msra.mxu0 %v205
    %2339 = vmatprep.subr.mxu0 0.0
    %2340 = vmatpush1.msra.mxu0 %v204
    %2341 = vmatprep.subr.mxu0 0.0
    %2342 = vmatpush1.msra.mxu0 %v203
    %2343 = vmatprep.subr.mxu0 0.0
    %2344 = vmatpush1.msra.mxu0 %v202
    %2345 = vmatprep.subr.mxu0 0.0
    %2346 = vmatpush2.msra.mxu0 0.0
    %2347 = vmatprep.subr.mxu0 0.0
    %2348 = vmatpush2.msra.mxu0 0.0
    %2349 = vmatprep.subr.mxu0 0.0
    %2350 = vmatpush2.msra.mxu0 0.0
    %2351 = vmatprep.subr.mxu0 0.0
    %2352 = vmatpush2.msra.mxu0 0.0
    %2353 = vmatprep.subr.mxu0 0.0
    %2354 = vmatpush2.msra.mxu0 0.0
    %2355 = vmatprep.subr.mxu0 0.0
    %2356 = vmatpush2.msra.mxu0 0.0
    %2357 = vmatprep.subr.mxu0 0.0
    %2358 = vmatpush2.msra.mxu0 0.0
    %2359 = vmatprep.subr.mxu0 0.0
    %2360 = vmatpush2.msra.mxu0 0.0
    %2361 = vmatprep.subr.mxu0 0.0
    %2362 = vmatpush2.msra.mxu0 0.0
    %2363 = vmatprep.subr.mxu0 0.0
    %2364 = vmatpush2.msra.mxu0 0.0
    %2365 = vmatprep.subr.mxu0 0.0
    %2366 = vmatpush2.msra.mxu0 0.0
    %2367 = vmatprep.subr.mxu0 0.0
    %2368 = vmatpush2.msra.mxu0 0.0
    %2369 = vmatprep.subr.mxu0 0.0
    %2370 = vmatpush2.msra.mxu0 0.0
    %2371 = vmatprep.subr.mxu0 0.0
    %2372 = vmatpush2.msra.mxu0 0.0
    %2373 = vmatprep.subr.mxu0 0.0
    %2374 = vmatpush2.msra.mxu0 0.0
    %2375 = vmatprep.subr.mxu0 0.0
    %2376 = vmatpush2.msra.mxu0 0.0
    %2377 = vmatprep.mubr.f32.mxu0 0.0
    %2378 = vmatmul.mubr.f32.gmra.mxu0 %v2311
    %v2379 = vpop.f32.mrf.mxu0
    %v2380 = vadd.f32 0.0, %v2379
    %v2381 = vpop.f32.mrf.mxu0
    %2382 = vdwg.mxu0
    %v2383 = vadd.f32 %v198, %v2380
    %v2384 = vxor.u32 %v2383, 2147483648
    %v2385 = vmul.f32 %v2384, 1.442695
    %v2386 = vpow.pop %v2385
    %v2387 = vadd.f32 %v2386, 1.0
    %v2388 = vrcp.pop %v2387
    %v2389 = vmul.f32 1.0, %v2388
    %2390 = vmatprep.subr.mxu0 0.0
    %2391 = vmatpush1.msra.mxu0 0.0
    %2392 = vmatprep.subr.mxu0 0.0
    %2393 = vmatpush1.msra.mxu0 0.0
    %2394 = vmatprep.subr.mxu0 0.0
    %2395 = vmatpush1.msra.mxu0 0.0
    %2396 = vmatprep.subr.mxu0 0.0
    %2397 = vmatpush1.msra.mxu0 0.0
    %2398 = vmatprep.subr.mxu0 0.0
    %2399 = vmatpush1.msra.mxu0 0.0
    %2400 = vmatprep.subr.mxu0 0.0
    %2401 = vmatpush1.msra.mxu0 0.0
    %2402 = vmatprep.subr.mxu0 0.0
    %2403 = vmatpush1.msra.mxu0 0.0
    %2404 = vmatprep.subr.mxu0 0.0
    %2405 = vmatpush1.msra.mxu0 0.0
    %2406 = vmatprep.subr.mxu0 0.0
    %2407 = vmatpush1.msra.mxu0 0.0
    %2408 = vmatprep.subr.mxu0 0.0
    %2409 = vmatpush1.msra.mxu0 0.0
    %2410 = vmatprep.subr.mxu0 0.0
    %2411 = vmatpush1.msra.mxu0 0.0
    %2412 = vmatprep.subr.mxu0 0.0
    %2413 = vmatpush1.msra.mxu0 0.0
    %2414 = vmatprep.subr.mxu0 0.0
    %2415 = vmatpush1.msra.mxu0 %v210
    %2416 = vmatprep.subr.mxu0 0.0
    %2417 = vmatpush1.msra.mxu0 %v209
    %2418 = vmatprep.subr.mxu0 0.0
    %2419 = vmatpush1.msra.mxu0 %v208
    %2420 = vmatprep.subr.mxu0 0.0
    %2421 = vmatpush1.msra.mxu0 %v207
    %2422 = vmatprep.subr.mxu0 0.0
    %2423 = vmatpush2.msra.mxu0 0.0
    %2424 = vmatprep.subr.mxu0 0.0
    %2425 = vmatpush2.msra.mxu0 0.0
    %2426 = vmatprep.subr.mxu0 0.0
    %2427 = vmatpush2.msra.mxu0 0.0
    %2428 = vmatprep.subr.mxu0 0.0
    %2429 = vmatpush2.msra.mxu0 0.0
    %2430 = vmatprep.subr.mxu0 0.0
    %2431 = vmatpush2.msra.mxu0 0.0
    %2432 = vmatprep.subr.mxu0 0.0
    %2433 = vmatpush2.msra.mxu0 0.0
    %2434 = vmatprep.subr.mxu0 0.0
    %2435 = vmatpush2.msra.mxu0 0.0
    %2436 = vmatprep.subr.mxu0 0.0
    %2437 = vmatpush2.msra.mxu0 0.0
    %2438 = vmatprep.subr.mxu0 0.0
    %2439 = vmatpush2.msra.mxu0 0.0
    %2440 = vmatprep.subr.mxu0 0.0
    %2441 = vmatpush2.msra.mxu0 0.0
    %2442 = vmatprep.subr.mxu0 0.0
    %2443 = vmatpush2.msra.mxu0 0.0
    %2444 = vmatprep.subr.mxu0 0.0
    %2445 = vmatpush2.msra.mxu0 0.0
    %2446 = vmatprep.subr.mxu0 0.0
    %2447 = vmatpush2.msra.mxu0 0.0
    %2448 = vmatprep.subr.mxu0 0.0
    %2449 = vmatpush2.msra.mxu0 0.0
    %2450 = vmatprep.subr.mxu0 0.0
    %2451 = vmatpush2.msra.mxu0 0.0
    %2452 = vmatprep.subr.mxu0 0.0
    %2453 = vmatpush2.msra.mxu0 0.0
    %2454 = vmatprep.mubr.f32.mxu0 0.0
    %2455 = vmatmul.mubr.f32.gmra.mxu0 %v2311
    %v2456 = vpop.f32.mrf.mxu0
    %v2457 = vadd.f32 0.0, %v2456
    %v2458 = vpop.f32.mrf.mxu0
    %2459 = vdwg.mxu0
    %2461 = vrot.lane.b32.xlu0 %v2457, 32
    %v2462 = vpop.permute.xlu0 %2461
    %v2464 = vadd.f32 %v198, %v2462
    %v2465 = vxor.u32 %v2464, 2147483648
    %v2466 = vmul.f32 %v2465, 1.442695
    %v2467 = vpow.pop %v2466
    %v2468 = vadd.f32 %v2467, 1.0
    %v2469 = vrcp.pop %v2468
    %v2470 = vmul.f32 1.0, %v2469
    %2471 = vmatprep.subr.mxu0 0.0
    %2472 = vmatpush1.msra.mxu0 0.0
    %2473 = vmatprep.subr.mxu0 0.0
    %2474 = vmatpush1.msra.mxu0 0.0
    %2475 = vmatprep.subr.mxu0 0.0
    %2476 = vmatpush1.msra.mxu0 0.0
    %2477 = vmatprep.subr.mxu0 0.0
    %2478 = vmatpush1.msra.mxu0 0.0
    %2479 = vmatprep.subr.mxu0 0.0
    %2480 = vmatpush1.msra.mxu0 0.0
    %2481 = vmatprep.subr.mxu0 0.0
    %2482 = vmatpush1.msra.mxu0 0.0
    %2483 = vmatprep.subr.mxu0 0.0
    %2484 = vmatpush1.msra.mxu0 0.0
    %2485 = vmatprep.subr.mxu0 0.0
    %2486 = vmatpush1.msra.mxu0 0.0
    %2487 = vmatprep.subr.mxu0 0.0
    %2488 = vmatpush1.msra.mxu0 0.0
    %2489 = vmatprep.subr.mxu0 0.0
    %2490 = vmatpush1.msra.mxu0 0.0
    %2491 = vmatprep.subr.mxu0 0.0
    %2492 = vmatpush1.msra.mxu0 0.0
    %2493 = vmatprep.subr.mxu0 0.0
    %2494 = vmatpush1.msra.mxu0 0.0
    %2495 = vmatprep.subr.mxu0 0.0
    %2496 = vmatpush1.msra.mxu0 %v215
    %2497 = vmatprep.subr.mxu0 0.0
    %2498 = vmatpush1.msra.mxu0 %v214
    %2499 = vmatprep.subr.mxu0 0.0
    %2500 = vmatpush1.msra.mxu0 %v213
    %2501 = vmatprep.subr.mxu0 0.0
    %2502 = vmatpush1.msra.mxu0 %v212
    %2503 = vmatprep.subr.mxu0 0.0
    %2504 = vmatpush2.msra.mxu0 0.0
    %2505 = vmatprep.subr.mxu0 0.0
    %2506 = vmatpush2.msra.mxu0 0.0
    %2507 = vmatprep.subr.mxu0 0.0
    %2508 = vmatpush2.msra.mxu0 0.0
    %2509 = vmatprep.subr.mxu0 0.0
    %2510 = vmatpush2.msra.mxu0 0.0
    %2511 = vmatprep.subr.mxu0 0.0
    %2512 = vmatpush2.msra.mxu0 0.0
    %2513 = vmatprep.subr.mxu0 0.0
    %2514 = vmatpush2.msra.mxu0 0.0
    %2515 = vmatprep.subr.mxu0 0.0
    %2516 = vmatpush2.msra.mxu0 0.0
    %2517 = vmatprep.subr.mxu0 0.0
    %2518 = vmatpush2.msra.mxu0 0.0
    %2519 = vmatprep.subr.mxu0 0.0
    %2520 = vmatpush2.msra.mxu0 0.0
    %2521 = vmatprep.subr.mxu0 0.0
    %2522 = vmatpush2.msra.mxu0 0.0
    %2523 = vmatprep.subr.mxu0 0.0
    %2524 = vmatpush2.msra.mxu0 0.0
    %2525 = vmatprep.subr.mxu0 0.0
    %2526 = vmatpush2.msra.mxu0 0.0
    %2527 = vmatprep.subr.mxu0 0.0
    %2528 = vmatpush2.msra.mxu0 0.0
    %2529 = vmatprep.subr.mxu0 0.0
    %2530 = vmatpush2.msra.mxu0 0.0
    %2531 = vmatprep.subr.mxu0 0.0
    %2532 = vmatpush2.msra.mxu0 0.0
    %2533 = vmatprep.subr.mxu0 0.0
    %2534 = vmatpush2.msra.mxu0 0.0
    %2535 = vmatprep.mubr.f32.mxu0 0.0
    %2536 = vmatmul.mubr.f32.gmra.mxu0 %v2311
    %v2537 = vpop.f32.mrf.mxu0
    %v2538 = vadd.f32 %v399, %v2537
    %v2539 = vpop.f32.mrf.mxu0
    %2540 = vdwg.mxu0
    %v2541 = vmul.f32 %v2389, %v2538
    %2543 = vrot.lane.b32.xlu0 %v2541, 64
    %v2544 = vpop.permute.xlu0 %2543
    %v2546 = vadd.f32 %v198, %v2544
    %v2547 = vtanh.pop %v2546
    %v2548 = vsub.f32 1.0, %v2470
    %2550 = vrot.lane.b32.xlu0 %v2547, 96
    %v2551 = vpop.permute.xlu0 %2550
    %v2553 = vmul.f32 %v2548, %v2551
    %v2555 = vmul.f32 %v2470, %v2308
    %v2556 = vadd.f32 %v2553, %v2555
    %2558 = vrot.lane.b32.xlu0 %v2556, 96
    %v2559 = vpop.permute.xlu0 %2558
    %2561 = vst.msk [vmem:[#allocation2 + $0x8] sm:$0x3] %vm490, %v2559
    %v2563 = vsel %vm118, %v2306, 0
    %2565 = vmatprep.subr.mxu0 0.0
    %2566 = vmatpush1.msra.mxu0 0.0
    %2567 = vmatprep.subr.mxu0 0.0
    %2568 = vmatpush1.msra.mxu0 0.0
    %2569 = vmatprep.subr.mxu0 0.0
    %2570 = vmatpush1.msra.mxu0 0.0
    %2571 = vmatprep.subr.mxu0 0.0
    %2572 = vmatpush1.msra.mxu0 0.0
    %2573 = vmatprep.subr.mxu0 0.0
    %2574 = vmatpush1.msra.mxu0 0.0
    %2575 = vmatprep.subr.mxu0 0.0
    %2576 = vmatpush1.msra.mxu0 0.0
    %2577 = vmatprep.subr.mxu0 0.0
    %2578 = vmatpush1.msra.mxu0 0.0
    %2579 = vmatprep.subr.mxu0 0.0
    %2580 = vmatpush1.msra.mxu0 0.0
    %2581 = vmatprep.subr.mxu0 0.0
    %2582 = vmatpush1.msra.mxu0 0.0
    %2583 = vmatprep.subr.mxu0 0.0
    %2584 = vmatpush1.msra.mxu0 0.0
    %2585 = vmatprep.subr.mxu0 0.0
    %2586 = vmatpush1.msra.mxu0 0.0
    %2587 = vmatprep.subr.mxu0 0.0
    %2588 = vmatpush1.msra.mxu0 0.0
    %2589 = vmatprep.subr.mxu0 0.0
    %2590 = vmatpush1.msra.mxu0 %v220
    %2591 = vmatprep.subr.mxu0 0.0
    %2592 = vmatpush1.msra.mxu0 %v219
    %2593 = vmatprep.subr.mxu0 0.0
    %2594 = vmatpush1.msra.mxu0 %v218
    %2595 = vmatprep.subr.mxu0 0.0
    %2596 = vmatpush1.msra.mxu0 %v217
    %2597 = vmatprep.subr.mxu0 0.0
    %2598 = vmatpush2.msra.mxu0 0.0
    %2599 = vmatprep.subr.mxu0 0.0
    %2600 = vmatpush2.msra.mxu0 0.0
    %2601 = vmatprep.subr.mxu0 0.0
    %2602 = vmatpush2.msra.mxu0 0.0
    %2603 = vmatprep.subr.mxu0 0.0
    %2604 = vmatpush2.msra.mxu0 0.0
    %2605 = vmatprep.subr.mxu0 0.0
    %2606 = vmatpush2.msra.mxu0 0.0
    %2607 = vmatprep.subr.mxu0 0.0
    %2608 = vmatpush2.msra.mxu0 0.0
    %2609 = vmatprep.subr.mxu0 0.0
    %2610 = vmatpush2.msra.mxu0 0.0
    %2611 = vmatprep.subr.mxu0 0.0
    %2612 = vmatpush2.msra.mxu0 0.0
    %2613 = vmatprep.subr.mxu0 0.0
    %2614 = vmatpush2.msra.mxu0 0.0
    %2615 = vmatprep.subr.mxu0 0.0
    %2616 = vmatpush2.msra.mxu0 0.0
    %2617 = vmatprep.subr.mxu0 0.0
    %2618 = vmatpush2.msra.mxu0 0.0
    %2619 = vmatprep.subr.mxu0 0.0
    %2620 = vmatpush2.msra.mxu0 0.0
    %2621 = vmatprep.subr.mxu0 0.0
    %2622 = vmatpush2.msra.mxu0 0.0
    %2623 = vmatprep.subr.mxu0 0.0
    %2624 = vmatpush2.msra.mxu0 0.0
    %2625 = vmatprep.subr.mxu0 0.0
    %2626 = vmatpush2.msra.mxu0 0.0
    %2627 = vmatprep.subr.mxu0 0.0
    %2628 = vmatpush2.msra.mxu0 0.0
    %2629 = vmatprep.mubr.f32.mxu0 0.0
    %2630 = vmatmul.mubr.f32.gmra.mxu0 %v2563
    %v2631 = vpop.f32.mrf.mxu0
    %v2632 = vadd.f32 0.0, %v2631
    %v2633 = vpop.f32.mrf.mxu0
    %2634 = vdwg.mxu0
    %v2636 = vrot.slane %v2632, 2
    %2637 = vrot.lane.b32.xlu0 %v2636, 96
    %v2638 = vpop.permute.xlu0 %2637
    %v2640 = vadd.f32 %v192, %v2638
    %v2641 = vxor.u32 %v2640, 2147483648
    %v2642 = vmul.f32 %v2641, 1.442695
    %v2643 = vpow.pop %v2642
    %v2644 = vadd.f32 %v2643, 1.0
    %v2645 = vrcp.pop %v2644
    %v2646 = vmul.f32 1.0, %v2645
    %2647 = vmatprep.subr.mxu0 0.0
    %2648 = vmatpush1.msra.mxu0 0.0
    %2649 = vmatprep.subr.mxu0 0.0
    %2650 = vmatpush1.msra.mxu0 0.0
    %2651 = vmatprep.subr.mxu0 0.0
    %2652 = vmatpush1.msra.mxu0 0.0
    %2653 = vmatprep.subr.mxu0 0.0
    %2654 = vmatpush1.msra.mxu0 0.0
    %2655 = vmatprep.subr.mxu0 0.0
    %2656 = vmatpush1.msra.mxu0 0.0
    %2657 = vmatprep.subr.mxu0 0.0
    %2658 = vmatpush1.msra.mxu0 0.0
    %2659 = vmatprep.subr.mxu0 0.0
    %2660 = vmatpush1.msra.mxu0 0.0
    %2661 = vmatprep.subr.mxu0 0.0
    %2662 = vmatpush1.msra.mxu0 0.0
    %2663 = vmatprep.subr.mxu0 0.0
    %2664 = vmatpush1.msra.mxu0 0.0
    %2665 = vmatprep.subr.mxu0 0.0
    %2666 = vmatpush1.msra.mxu0 0.0
    %2667 = vmatprep.subr.mxu0 0.0
    %2668 = vmatpush1.msra.mxu0 0.0
    %2669 = vmatprep.subr.mxu0 0.0
    %2670 = vmatpush1.msra.mxu0 0.0
    %2671 = vmatprep.subr.mxu0 0.0
    %2672 = vmatpush1.msra.mxu0 %v225
    %2673 = vmatprep.subr.mxu0 0.0
    %2674 = vmatpush1.msra.mxu0 %v224
    %2675 = vmatprep.subr.mxu0 0.0
    %2676 = vmatpush1.msra.mxu0 %v223
    %2677 = vmatprep.subr.mxu0 0.0
    %2678 = vmatpush1.msra.mxu0 %v222
    %2679 = vmatprep.subr.mxu0 0.0
    %2680 = vmatpush2.msra.mxu0 0.0
    %2681 = vmatprep.subr.mxu0 0.0
    %2682 = vmatpush2.msra.mxu0 0.0
    %2683 = vmatprep.subr.mxu0 0.0
    %2684 = vmatpush2.msra.mxu0 0.0
    %2685 = vmatprep.subr.mxu0 0.0
    %2686 = vmatpush2.msra.mxu0 0.0
    %2687 = vmatprep.subr.mxu0 0.0
    %2688 = vmatpush2.msra.mxu0 0.0
    %2689 = vmatprep.subr.mxu0 0.0
    %2690 = vmatpush2.msra.mxu0 0.0
    %2691 = vmatprep.subr.mxu0 0.0
    %2692 = vmatpush2.msra.mxu0 0.0
    %2693 = vmatprep.subr.mxu0 0.0
    %2694 = vmatpush2.msra.mxu0 0.0
    %2695 = vmatprep.subr.mxu0 0.0
    %2696 = vmatpush2.msra.mxu0 0.0
    %2697 = vmatprep.subr.mxu0 0.0
    %2698 = vmatpush2.msra.mxu0 0.0
    %2699 = vmatprep.subr.mxu0 0.0
    %2700 = vmatpush2.msra.mxu0 0.0
    %2701 = vmatprep.subr.mxu0 0.0
    %2702 = vmatpush2.msra.mxu0 0.0
    %2703 = vmatprep.subr.mxu0 0.0
    %2704 = vmatpush2.msra.mxu0 0.0
    %2705 = vmatprep.subr.mxu0 0.0
    %2706 = vmatpush2.msra.mxu0 0.0
    %2707 = vmatprep.subr.mxu0 0.0
    %2708 = vmatpush2.msra.mxu0 0.0
    %2709 = vmatprep.subr.mxu0 0.0
    %2710 = vmatpush2.msra.mxu0 0.0
    %2711 = vmatprep.mubr.f32.mxu0 0.0
    %2712 = vmatmul.mubr.f32.gmra.mxu0 %v2563
    %v2713 = vpop.f32.mrf.mxu0
    %v2714 = vadd.f32 0.0, %v2713
    %v2715 = vpop.f32.mrf.mxu0
    %2716 = vdwg.mxu0
    %v2718 = vrot.slane %v2714, 2
    %v2720 = vadd.f32 %v194, %v2718
    %v2721 = vxor.u32 %v2720, 2147483648
    %v2722 = vmul.f32 %v2721, 1.442695
    %v2723 = vpow.pop %v2722
    %v2724 = vadd.f32 %v2723, 1.0
    %v2725 = vrcp.pop %v2724
    %v2726 = vmul.f32 1.0, %v2725
    %2727 = vmatprep.subr.mxu0 0.0
    %2728 = vmatpush1.msra.mxu0 0.0
    %2729 = vmatprep.subr.mxu0 0.0
    %2730 = vmatpush1.msra.mxu0 0.0
    %2731 = vmatprep.subr.mxu0 0.0
    %2732 = vmatpush1.msra.mxu0 0.0
    %2733 = vmatprep.subr.mxu0 0.0
    %2734 = vmatpush1.msra.mxu0 0.0
    %2735 = vmatprep.subr.mxu0 0.0
    %2736 = vmatpush1.msra.mxu0 0.0
    %2737 = vmatprep.subr.mxu0 0.0
    %2738 = vmatpush1.msra.mxu0 0.0
    %2739 = vmatprep.subr.mxu0 0.0
    %2740 = vmatpush1.msra.mxu0 0.0
    %2741 = vmatprep.subr.mxu0 0.0
    %2742 = vmatpush1.msra.mxu0 0.0
    %2743 = vmatprep.subr.mxu0 0.0
    %2744 = vmatpush1.msra.mxu0 0.0
    %2745 = vmatprep.subr.mxu0 0.0
    %2746 = vmatpush1.msra.mxu0 0.0
    %2747 = vmatprep.subr.mxu0 0.0
    %2748 = vmatpush1.msra.mxu0 0.0
    %2749 = vmatprep.subr.mxu0 0.0
    %2750 = vmatpush1.msra.mxu0 0.0
    %2751 = vmatprep.subr.mxu0 0.0
    %2752 = vmatpush1.msra.mxu0 %v230
    %2753 = vmatprep.subr.mxu0 0.0
    %2754 = vmatpush1.msra.mxu0 %v229
    %2755 = vmatprep.subr.mxu0 0.0
    %2756 = vmatpush1.msra.mxu0 %v228
    %2757 = vmatprep.subr.mxu0 0.0
    %2758 = vmatpush1.msra.mxu0 %v227
    %2759 = vmatprep.subr.mxu0 0.0
    %2760 = vmatpush2.msra.mxu0 0.0
    %2761 = vmatprep.subr.mxu0 0.0
    %2762 = vmatpush2.msra.mxu0 0.0
    %2763 = vmatprep.subr.mxu0 0.0
    %2764 = vmatpush2.msra.mxu0 0.0
    %2765 = vmatprep.subr.mxu0 0.0
    %2766 = vmatpush2.msra.mxu0 0.0
    %2767 = vmatprep.subr.mxu0 0.0
    %2768 = vmatpush2.msra.mxu0 0.0
    %2769 = vmatprep.subr.mxu0 0.0
    %2770 = vmatpush2.msra.mxu0 0.0
    %2771 = vmatprep.subr.mxu0 0.0
    %2772 = vmatpush2.msra.mxu0 0.0
    %2773 = vmatprep.subr.mxu0 0.0
    %2774 = vmatpush2.msra.mxu0 0.0
    %2775 = vmatprep.subr.mxu0 0.0
    %2776 = vmatpush2.msra.mxu0 0.0
    %2777 = vmatprep.subr.mxu0 0.0
    %2778 = vmatpush2.msra.mxu0 0.0
    %2779 = vmatprep.subr.mxu0 0.0
    %2780 = vmatpush2.msra.mxu0 0.0
    %2781 = vmatprep.subr.mxu0 0.0
    %2782 = vmatpush2.msra.mxu0 0.0
    %2783 = vmatprep.subr.mxu0 0.0
    %2784 = vmatpush2.msra.mxu0 0.0
    %2785 = vmatprep.subr.mxu0 0.0
    %2786 = vmatpush2.msra.mxu0 0.0
    %2787 = vmatprep.subr.mxu0 0.0
    %2788 = vmatpush2.msra.mxu0 0.0
    %2789 = vmatprep.subr.mxu0 0.0
    %2790 = vmatpush2.msra.mxu0 0.0
    %2791 = vmatprep.mubr.f32.mxu0 0.0
    %2792 = vmatmul.mubr.f32.gmra.mxu0 %v2563
    %v2793 = vpop.f32.mrf.mxu0
    %v2794 = vadd.f32 %v658, %v2793
    %v2795 = vpop.f32.mrf.mxu0
    %2796 = vdwg.mxu0
    %v2798 = vrot.slane %v2794, 2
    %2799 = vrot.lane.b32.xlu0 %v2798, 96
    %v2800 = vpop.permute.xlu0 %2799
    %v2802 = vmul.f32 %v2646, %v2800
    %2804 = vrot.lane.b32.xlu0 %v2802, 64
    %v2805 = vpop.permute.xlu0 %2804
    %v2807 = vadd.f32 %v194, %v2805
    %v2808 = vtanh.pop %v2807
    %v2809 = vsub.f32 1.0, %v2726
    %2811 = vrot.lane.b32.xlu0 %v2808, 96
    %v2812 = vpop.permute.xlu0 %2811
    %v2814 = vmul.f32 %v2809, %v2812
    %v2815 = vrot.slane %v2306, 2
    %v2817 = vmul.f32 %v2726, %v2815
    %v2818 = vadd.f32 %v2814, %v2817
    %2819 = vst.msk [vmem:[#allocation3] sm:$0xc0] %vm750, %v2818
    %v2820 = vsel %vm118, %v2559, 0
    %2822 = vmatprep.subr.mxu0 0.0
    %2823 = vmatpush1.msra.mxu0 0.0
    %2824 = vmatprep.subr.mxu0 0.0
    %2825 = vmatpush1.msra.mxu0 0.0
    %2826 = vmatprep.subr.mxu0 0.0
    %2827 = vmatpush1.msra.mxu0 0.0
    %2828 = vmatprep.subr.mxu0 0.0
    %2829 = vmatpush1.msra.mxu0 0.0
    %2830 = vmatprep.subr.mxu0 0.0
    %2831 = vmatpush1.msra.mxu0 0.0
    %2832 = vmatprep.subr.mxu0 0.0
    %2833 = vmatpush1.msra.mxu0 0.0
    %2834 = vmatprep.subr.mxu0 0.0
    %2835 = vmatpush1.msra.mxu0 0.0
    %2836 = vmatprep.subr.mxu0 0.0
    %2837 = vmatpush1.msra.mxu0 0.0
    %2838 = vmatprep.subr.mxu0 0.0
    %2839 = vmatpush1.msra.mxu0 0.0
    %2840 = vmatprep.subr.mxu0 0.0
    %2841 = vmatpush1.msra.mxu0 0.0
    %2842 = vmatprep.subr.mxu0 0.0
    %2843 = vmatpush1.msra.mxu0 0.0
    %2844 = vmatprep.subr.mxu0 0.0
    %2845 = vmatpush1.msra.mxu0 0.0
    %2846 = vmatprep.subr.mxu0 0.0
    %2847 = vmatpush1.msra.mxu0 %v205
    %2848 = vmatprep.subr.mxu0 0.0
    %2849 = vmatpush1.msra.mxu0 %v204
    %2850 = vmatprep.subr.mxu0 0.0
    %2851 = vmatpush1.msra.mxu0 %v203
    %2852 = vmatprep.subr.mxu0 0.0
    %2853 = vmatpush1.msra.mxu0 %v202
    %2854 = vmatprep.subr.mxu0 0.0
    %2855 = vmatpush2.msra.mxu0 0.0
    %2856 = vmatprep.subr.mxu0 0.0
    %2857 = vmatpush2.msra.mxu0 0.0
    %2858 = vmatprep.subr.mxu0 0.0
    %2859 = vmatpush2.msra.mxu0 0.0
    %2860 = vmatprep.subr.mxu0 0.0
    %2861 = vmatpush2.msra.mxu0 0.0
    %2862 = vmatprep.subr.mxu0 0.0
    %2863 = vmatpush2.msra.mxu0 0.0
    %2864 = vmatprep.subr.mxu0 0.0
    %2865 = vmatpush2.msra.mxu0 0.0
    %2866 = vmatprep.subr.mxu0 0.0
    %2867 = vmatpush2.msra.mxu0 0.0
    %2868 = vmatprep.subr.mxu0 0.0
    %2869 = vmatpush2.msra.mxu0 0.0
    %2870 = vmatprep.subr.mxu0 0.0
    %2871 = vmatpush2.msra.mxu0 0.0
    %2872 = vmatprep.subr.mxu0 0.0
    %2873 = vmatpush2.msra.mxu0 0.0
    %2874 = vmatprep.subr.mxu0 0.0
    %2875 = vmatpush2.msra.mxu0 0.0
    %2876 = vmatprep.subr.mxu0 0.0
    %2877 = vmatpush2.msra.mxu0 0.0
    %2878 = vmatprep.subr.mxu0 0.0
    %2879 = vmatpush2.msra.mxu0 0.0
    %2880 = vmatprep.subr.mxu0 0.0
    %2881 = vmatpush2.msra.mxu0 0.0
    %2882 = vmatprep.subr.mxu0 0.0
    %2883 = vmatpush2.msra.mxu0 0.0
    %2884 = vmatprep.subr.mxu0 0.0
    %2885 = vmatpush2.msra.mxu0 0.0
    %2886 = vmatprep.mubr.f32.mxu0 0.0
    %2887 = vmatmul.mubr.f32.gmra.mxu0 %v2820
    %v2888 = vpop.f32.mrf.mxu0
    %v2889 = vadd.f32 0.0, %v2888
    %v2890 = vpop.f32.mrf.mxu0
    %2891 = vdwg.mxu0
    %v2893 = vrot.slane %v2889, 6
    %v2895 = vadd.f32 %v198, %v2893
    %v2896 = vxor.u32 %v2895, 2147483648
    %v2897 = vmul.f32 %v2896, 1.442695
    %v2898 = vpow.pop %v2897
    %v2899 = vadd.f32 %v2898, 1.0
    %v2900 = vrcp.pop %v2899
    %v2901 = vmul.f32 1.0, %v2900
    %2902 = vmatprep.subr.mxu0 0.0
    %2903 = vmatpush1.msra.mxu0 0.0
    %2904 = vmatprep.subr.mxu0 0.0
    %2905 = vmatpush1.msra.mxu0 0.0
    %2906 = vmatprep.subr.mxu0 0.0
    %2907 = vmatpush1.msra.mxu0 0.0
    %2908 = vmatprep.subr.mxu0 0.0
    %2909 = vmatpush1.msra.mxu0 0.0
    %2910 = vmatprep.subr.mxu0 0.0
    %2911 = vmatpush1.msra.mxu0 0.0
    %2912 = vmatprep.subr.mxu0 0.0
    %2913 = vmatpush1.msra.mxu0 0.0
    %2914 = vmatprep.subr.mxu0 0.0
    %2915 = vmatpush1.msra.mxu0 0.0
    %2916 = vmatprep.subr.mxu0 0.0
    %2917 = vmatpush1.msra.mxu0 0.0
    %2918 = vmatprep.subr.mxu0 0.0
    %2919 = vmatpush1.msra.mxu0 0.0
    %2920 = vmatprep.subr.mxu0 0.0
    %2921 = vmatpush1.msra.mxu0 0.0
    %2922 = vmatprep.subr.mxu0 0.0
    %2923 = vmatpush1.msra.mxu0 0.0
    %2924 = vmatprep.subr.mxu0 0.0
    %2925 = vmatpush1.msra.mxu0 0.0
    %2926 = vmatprep.subr.mxu0 0.0
    %2927 = vmatpush1.msra.mxu0 %v210
    %2928 = vmatprep.subr.mxu0 0.0
    %2929 = vmatpush1.msra.mxu0 %v209
    %2930 = vmatprep.subr.mxu0 0.0
    %2931 = vmatpush1.msra.mxu0 %v208
    %2932 = vmatprep.subr.mxu0 0.0
    %2933 = vmatpush1.msra.mxu0 %v207
    %2934 = vmatprep.subr.mxu0 0.0
    %2935 = vmatpush2.msra.mxu0 0.0
    %2936 = vmatprep.subr.mxu0 0.0
    %2937 = vmatpush2.msra.mxu0 0.0
    %2938 = vmatprep.subr.mxu0 0.0
    %2939 = vmatpush2.msra.mxu0 0.0
    %2940 = vmatprep.subr.mxu0 0.0
    %2941 = vmatpush2.msra.mxu0 0.0
    %2942 = vmatprep.subr.mxu0 0.0
    %2943 = vmatpush2.msra.mxu0 0.0
    %2944 = vmatprep.subr.mxu0 0.0
    %2945 = vmatpush2.msra.mxu0 0.0
    %2946 = vmatprep.subr.mxu0 0.0
    %2947 = vmatpush2.msra.mxu0 0.0
    %2948 = vmatprep.subr.mxu0 0.0
    %2949 = vmatpush2.msra.mxu0 0.0
    %2950 = vmatprep.subr.mxu0 0.0
    %2951 = vmatpush2.msra.mxu0 0.0
    %2952 = vmatprep.subr.mxu0 0.0
    %2953 = vmatpush2.msra.mxu0 0.0
    %2954 = vmatprep.subr.mxu0 0.0
    %2955 = vmatpush2.msra.mxu0 0.0
    %2956 = vmatprep.subr.mxu0 0.0
    %2957 = vmatpush2.msra.mxu0 0.0
    %2958 = vmatprep.subr.mxu0 0.0
    %2959 = vmatpush2.msra.mxu0 0.0
    %2960 = vmatprep.subr.mxu0 0.0
    %2961 = vmatpush2.msra.mxu0 0.0
    %2962 = vmatprep.subr.mxu0 0.0
    %2963 = vmatpush2.msra.mxu0 0.0
    %2964 = vmatprep.subr.mxu0 0.0
    %2965 = vmatpush2.msra.mxu0 0.0
    %2966 = vmatprep.mubr.f32.mxu0 0.0
    %2967 = vmatmul.mubr.f32.gmra.mxu0 %v2820
    %v2968 = vpop.f32.mrf.mxu0
    %v2969 = vadd.f32 0.0, %v2968
    %v2970 = vpop.f32.mrf.mxu0
    %2971 = vdwg.mxu0
    %v2973 = vrot.slane %v2969, 6
    %2974 = vrot.lane.b32.xlu0 %v2973, 32
    %v2975 = vpop.permute.xlu0 %2974
    %v2977 = vadd.f32 %v198, %v2975
    %v2978 = vxor.u32 %v2977, 2147483648
    %v2979 = vmul.f32 %v2978, 1.442695
    %v2980 = vpow.pop %v2979
    %v2981 = vadd.f32 %v2980, 1.0
    %v2982 = vrcp.pop %v2981
    %v2983 = vmul.f32 1.0, %v2982
    %2984 = vmatprep.subr.mxu0 0.0
    %2985 = vmatpush1.msra.mxu0 0.0
    %2986 = vmatprep.subr.mxu0 0.0
    %2987 = vmatpush1.msra.mxu0 0.0
    %2988 = vmatprep.subr.mxu0 0.0
    %2989 = vmatpush1.msra.mxu0 0.0
    %2990 = vmatprep.subr.mxu0 0.0
    %2991 = vmatpush1.msra.mxu0 0.0
    %2992 = vmatprep.subr.mxu0 0.0
    %2993 = vmatpush1.msra.mxu0 0.0
    %2994 = vmatprep.subr.mxu0 0.0
    %2995 = vmatpush1.msra.mxu0 0.0
    %2996 = vmatprep.subr.mxu0 0.0
    %2997 = vmatpush1.msra.mxu0 0.0
    %2998 = vmatprep.subr.mxu0 0.0
    %2999 = vmatpush1.msra.mxu0 0.0
    %3000 = vmatprep.subr.mxu0 0.0
    %3001 = vmatpush1.msra.mxu0 0.0
    %3002 = vmatprep.subr.mxu0 0.0
    %3003 = vmatpush1.msra.mxu0 0.0
    %3004 = vmatprep.subr.mxu0 0.0
    %3005 = vmatpush1.msra.mxu0 0.0
    %3006 = vmatprep.subr.mxu0 0.0
    %3007 = vmatpush1.msra.mxu0 0.0
    %3008 = vmatprep.subr.mxu0 0.0
    %3009 = vmatpush1.msra.mxu0 %v215
    %3010 = vmatprep.subr.mxu0 0.0
    %3011 = vmatpush1.msra.mxu0 %v214
    %3012 = vmatprep.subr.mxu0 0.0
    %3013 = vmatpush1.msra.mxu0 %v213
    %3014 = vmatprep.subr.mxu0 0.0
    %3015 = vmatpush1.msra.mxu0 %v212
    %3016 = vmatprep.subr.mxu0 0.0
    %3017 = vmatpush2.msra.mxu0 0.0
    %3018 = vmatprep.subr.mxu0 0.0
    %3019 = vmatpush2.msra.mxu0 0.0
    %3020 = vmatprep.subr.mxu0 0.0
    %3021 = vmatpush2.msra.mxu0 0.0
    %3022 = vmatprep.subr.mxu0 0.0
    %3023 = vmatpush2.msra.mxu0 0.0
    %3024 = vmatprep.subr.mxu0 0.0
    %3025 = vmatpush2.msra.mxu0 0.0
    %3026 = vmatprep.subr.mxu0 0.0
    %3027 = vmatpush2.msra.mxu0 0.0
    %3028 = vmatprep.subr.mxu0 0.0
    %3029 = vmatpush2.msra.mxu0 0.0
    %3030 = vmatprep.subr.mxu0 0.0
    %3031 = vmatpush2.msra.mxu0 0.0
    %3032 = vmatprep.subr.mxu0 0.0
    %3033 = vmatpush2.msra.mxu0 0.0
    %3034 = vmatprep.subr.mxu0 0.0
    %3035 = vmatpush2.msra.mxu0 0.0
    %3036 = vmatprep.subr.mxu0 0.0
    %3037 = vmatpush2.msra.mxu0 0.0
    %3038 = vmatprep.subr.mxu0 0.0
    %3039 = vmatpush2.msra.mxu0 0.0
    %3040 = vmatprep.subr.mxu0 0.0
    %3041 = vmatpush2.msra.mxu0 0.0
    %3042 = vmatprep.subr.mxu0 0.0
    %3043 = vmatpush2.msra.mxu0 0.0
    %3044 = vmatprep.subr.mxu0 0.0
    %3045 = vmatpush2.msra.mxu0 0.0
    %3046 = vmatprep.subr.mxu0 0.0
    %3047 = vmatpush2.msra.mxu0 0.0
    %3048 = vmatprep.mubr.f32.mxu0 0.0
    %3049 = vmatmul.mubr.f32.gmra.mxu0 %v2820
    %v3050 = vpop.f32.mrf.mxu0
    %v3051 = vadd.f32 %v399, %v3050
    %v3052 = vpop.f32.mrf.mxu0
    %3053 = vdwg.mxu0
    %v3055 = vrot.slane %v3051, 6
    %v3057 = vmul.f32 %v2901, %v3055
    %3059 = vrot.lane.b32.xlu0 %v3057, 64
    %v3060 = vpop.permute.xlu0 %3059
    %v3062 = vadd.f32 %v198, %v3060
    %v3063 = vtanh.pop %v3062
    %v3064 = vsub.f32 1.0, %v2983
    %3066 = vrot.lane.b32.xlu0 %v3063, 96
    %v3067 = vpop.permute.xlu0 %3066
    %v3069 = vmul.f32 %v3064, %v3067
    %v3070 = vrot.slane %v2556, 6
    %v3072 = vmul.f32 %v2983, %v3070
    %v3073 = vadd.f32 %v3069, %v3072
    %3075 = vrot.lane.b32.xlu0 %v3073, 96
    %v3076 = vpop.permute.xlu0 %3075
    %3078 = vst.msk [vmem:[#allocation2 + $0x8] sm:$0xc] %vm1010, %v3076
    %v3080 = vrot.slane %v2818, 6
    %v3081 = vsel %vm118, %v3080, 0
    %3083 = vmatprep.subr.mxu0 0.0
    %3084 = vmatpush1.msra.mxu0 0.0
    %3085 = vmatprep.subr.mxu0 0.0
    %3086 = vmatpush1.msra.mxu0 0.0
    %3087 = vmatprep.subr.mxu0 0.0
    %3088 = vmatpush1.msra.mxu0 0.0
    %3089 = vmatprep.subr.mxu0 0.0
    %3090 = vmatpush1.msra.mxu0 0.0
    %3091 = vmatprep.subr.mxu0 0.0
    %3092 = vmatpush1.msra.mxu0 0.0
    %3093 = vmatprep.subr.mxu0 0.0
    %3094 = vmatpush1.msra.mxu0 0.0
    %3095 = vmatprep.subr.mxu0 0.0
    %3096 = vmatpush1.msra.mxu0 0.0
    %3097 = vmatprep.subr.mxu0 0.0
    %3098 = vmatpush1.msra.mxu0 0.0
    %3099 = vmatprep.subr.mxu0 0.0
    %3100 = vmatpush1.msra.mxu0 0.0
    %3101 = vmatprep.subr.mxu0 0.0
    %3102 = vmatpush1.msra.mxu0 0.0
    %3103 = vmatprep.subr.mxu0 0.0
    %3104 = vmatpush1.msra.mxu0 0.0
    %3105 = vmatprep.subr.mxu0 0.0
    %3106 = vmatpush1.msra.mxu0 0.0
    %3107 = vmatprep.subr.mxu0 0.0
    %3108 = vmatpush1.msra.mxu0 %v220
    %3109 = vmatprep.subr.mxu0 0.0
    %3110 = vmatpush1.msra.mxu0 %v219
    %3111 = vmatprep.subr.mxu0 0.0
    %3112 = vmatpush1.msra.mxu0 %v218
    %3113 = vmatprep.subr.mxu0 0.0
    %3114 = vmatpush1.msra.mxu0 %v217
    %3115 = vmatprep.subr.mxu0 0.0
    %3116 = vmatpush2.msra.mxu0 0.0
    %3117 = vmatprep.subr.mxu0 0.0
    %3118 = vmatpush2.msra.mxu0 0.0
    %3119 = vmatprep.subr.mxu0 0.0
    %3120 = vmatpush2.msra.mxu0 0.0
    %3121 = vmatprep.subr.mxu0 0.0
    %3122 = vmatpush2.msra.mxu0 0.0
    %3123 = vmatprep.subr.mxu0 0.0
    %3124 = vmatpush2.msra.mxu0 0.0
    %3125 = vmatprep.subr.mxu0 0.0
    %3126 = vmatpush2.msra.mxu0 0.0
    %3127 = vmatprep.subr.mxu0 0.0
    %3128 = vmatpush2.msra.mxu0 0.0
    %3129 = vmatprep.subr.mxu0 0.0
    %3130 = vmatpush2.msra.mxu0 0.0
    %3131 = vmatprep.subr.mxu0 0.0
    %3132 = vmatpush2.msra.mxu0 0.0
    %3133 = vmatprep.subr.mxu0 0.0
    %3134 = vmatpush2.msra.mxu0 0.0
    %3135 = vmatprep.subr.mxu0 0.0
    %3136 = vmatpush2.msra.mxu0 0.0
    %3137 = vmatprep.subr.mxu0 0.0
    %3138 = vmatpush2.msra.mxu0 0.0
    %3139 = vmatprep.subr.mxu0 0.0
    %3140 = vmatpush2.msra.mxu0 0.0
    %3141 = vmatprep.subr.mxu0 0.0
    %3142 = vmatpush2.msra.mxu0 0.0
    %3143 = vmatprep.subr.mxu0 0.0
    %3144 = vmatpush2.msra.mxu0 0.0
    %3145 = vmatprep.subr.mxu0 0.0
    %3146 = vmatpush2.msra.mxu0 0.0
    %3147 = vmatprep.mubr.f32.mxu0 0.0
    %3148 = vmatmul.mubr.f32.gmra.mxu0 %v3081
    %v3149 = vpop.f32.mrf.mxu0
    %v3150 = vadd.f32 0.0, %v3149
    %v3151 = vpop.f32.mrf.mxu0
    %3152 = vdwg.mxu0
    %v3154 = vrot.slane %v3150, 4
    %3155 = vrot.lane.b32.xlu0 %v3154, 96
    %v3156 = vpop.permute.xlu0 %3155
    %v3158 = vadd.f32 %v192, %v3156
    %v3159 = vxor.u32 %v3158, 2147483648
    %v3160 = vmul.f32 %v3159, 1.442695
    %v3161 = vpow.pop %v3160
    %v3162 = vadd.f32 %v3161, 1.0
    %v3163 = vrcp.pop %v3162
    %v3164 = vmul.f32 1.0, %v3163
    %3165 = vmatprep.subr.mxu0 0.0
    %3166 = vmatpush1.msra.mxu0 0.0
    %3167 = vmatprep.subr.mxu0 0.0
    %3168 = vmatpush1.msra.mxu0 0.0
    %3169 = vmatprep.subr.mxu0 0.0
    %3170 = vmatpush1.msra.mxu0 0.0
    %3171 = vmatprep.subr.mxu0 0.0
    %3172 = vmatpush1.msra.mxu0 0.0
    %3173 = vmatprep.subr.mxu0 0.0
    %3174 = vmatpush1.msra.mxu0 0.0
    %3175 = vmatprep.subr.mxu0 0.0
    %3176 = vmatpush1.msra.mxu0 0.0
    %3177 = vmatprep.subr.mxu0 0.0
    %3178 = vmatpush1.msra.mxu0 0.0
    %3179 = vmatprep.subr.mxu0 0.0
    %3180 = vmatpush1.msra.mxu0 0.0
    %3181 = vmatprep.subr.mxu0 0.0
    %3182 = vmatpush1.msra.mxu0 0.0
    %3183 = vmatprep.subr.mxu0 0.0
    %3184 = vmatpush1.msra.mxu0 0.0
    %3185 = vmatprep.subr.mxu0 0.0
    %3186 = vmatpush1.msra.mxu0 0.0
    %3187 = vmatprep.subr.mxu0 0.0
    %3188 = vmatpush1.msra.mxu0 0.0
    %3189 = vmatprep.subr.mxu0 0.0
    %3190 = vmatpush1.msra.mxu0 %v225
    %3191 = vmatprep.subr.mxu0 0.0
    %3192 = vmatpush1.msra.mxu0 %v224
    %3193 = vmatprep.subr.mxu0 0.0
    %3194 = vmatpush1.msra.mxu0 %v223
    %3195 = vmatprep.subr.mxu0 0.0
    %3196 = vmatpush1.msra.mxu0 %v222
    %3197 = vmatprep.subr.mxu0 0.0
    %3198 = vmatpush2.msra.mxu0 0.0
    %3199 = vmatprep.subr.mxu0 0.0
    %3200 = vmatpush2.msra.mxu0 0.0
    %3201 = vmatprep.subr.mxu0 0.0
    %3202 = vmatpush2.msra.mxu0 0.0
    %3203 = vmatprep.subr.mxu0 0.0
    %3204 = vmatpush2.msra.mxu0 0.0
    %3205 = vmatprep.subr.mxu0 0.0
    %3206 = vmatpush2.msra.mxu0 0.0
    %3207 = vmatprep.subr.mxu0 0.0
    %3208 = vmatpush2.msra.mxu0 0.0
    %3209 = vmatprep.subr.mxu0 0.0
    %3210 = vmatpush2.msra.mxu0 0.0
    %3211 = vmatprep.subr.mxu0 0.0
    %3212 = vmatpush2.msra.mxu0 0.0
    %3213 = vmatprep.subr.mxu0 0.0
    %3214 = vmatpush2.msra.mxu0 0.0
    %3215 = vmatprep.subr.mxu0 0.0
    %3216 = vmatpush2.msra.mxu0 0.0
    %3217 = vmatprep.subr.mxu0 0.0
    %3218 = vmatpush2.msra.mxu0 0.0
    %3219 = vmatprep.subr.mxu0 0.0
    %3220 = vmatpush2.msra.mxu0 0.0
    %3221 = vmatprep.subr.mxu0 0.0
    %3222 = vmatpush2.msra.mxu0 0.0
    %3223 = vmatprep.subr.mxu0 0.0
    %3224 = vmatpush2.msra.mxu0 0.0
    %3225 = vmatprep.subr.mxu0 0.0
    %3226 = vmatpush2.msra.mxu0 0.0
    %3227 = vmatprep.subr.mxu0 0.0
    %3228 = vmatpush2.msra.mxu0 0.0
    %3229 = vmatprep.mubr.f32.mxu0 0.0
    %3230 = vmatmul.mubr.f32.gmra.mxu0 %v3081
    %v3231 = vpop.f32.mrf.mxu0
    %v3232 = vadd.f32 0.0, %v3231
    %v3233 = vpop.f32.mrf.mxu0
    %3234 = vdwg.mxu0
    %v3236 = vrot.slane %v3232, 4
    %v3238 = vadd.f32 %v194, %v3236
    %v3239 = vxor.u32 %v3238, 2147483648
    %v3240 = vmul.f32 %v3239, 1.442695
    %v3241 = vpow.pop %v3240
    %v3242 = vadd.f32 %v3241, 1.0
    %v3243 = vrcp.pop %v3242
    %v3244 = vmul.f32 1.0, %v3243
    %3245 = vmatprep.subr.mxu0 0.0
    %3246 = vmatpush1.msra.mxu0 0.0
    %3247 = vmatprep.subr.mxu0 0.0
    %3248 = vmatpush1.msra.mxu0 0.0
    %3249 = vmatprep.subr.mxu0 0.0
    %3250 = vmatpush1.msra.mxu0 0.0
    %3251 = vmatprep.subr.mxu0 0.0
    %3252 = vmatpush1.msra.mxu0 0.0
    %3253 = vmatprep.subr.mxu0 0.0
    %3254 = vmatpush1.msra.mxu0 0.0
    %3255 = vmatprep.subr.mxu0 0.0
    %3256 = vmatpush1.msra.mxu0 0.0
    %3257 = vmatprep.subr.mxu0 0.0
    %3258 = vmatpush1.msra.mxu0 0.0
    %3259 = vmatprep.subr.mxu0 0.0
    %3260 = vmatpush1.msra.mxu0 0.0
    %3261 = vmatprep.subr.mxu0 0.0
    %3262 = vmatpush1.msra.mxu0 0.0
    %3263 = vmatprep.subr.mxu0 0.0
    %3264 = vmatpush1.msra.mxu0 0.0
    %3265 = vmatprep.subr.mxu0 0.0
    %3266 = vmatpush1.msra.mxu0 0.0
    %3267 = vmatprep.subr.mxu0 0.0
    %3268 = vmatpush1.msra.mxu0 0.0
    %3269 = vmatprep.subr.mxu0 0.0
    %3270 = vmatpush1.msra.mxu0 %v230
    %3271 = vmatprep.subr.mxu0 0.0
    %3272 = vmatpush1.msra.mxu0 %v229
    %3273 = vmatprep.subr.mxu0 0.0
    %3274 = vmatpush1.msra.mxu0 %v228
    %3275 = vmatprep.subr.mxu0 0.0
    %3276 = vmatpush1.msra.mxu0 %v227
    %3277 = vmatprep.subr.mxu0 0.0
    %3278 = vmatpush2.msra.mxu0 0.0
    %3279 = vmatprep.subr.mxu0 0.0
    %3280 = vmatpush2.msra.mxu0 0.0
    %3281 = vmatprep.subr.mxu0 0.0
    %3282 = vmatpush2.msra.mxu0 0.0
    %3283 = vmatprep.subr.mxu0 0.0
    %3284 = vmatpush2.msra.mxu0 0.0
    %3285 = vmatprep.subr.mxu0 0.0
    %3286 = vmatpush2.msra.mxu0 0.0
    %3287 = vmatprep.subr.mxu0 0.0
    %3288 = vmatpush2.msra.mxu0 0.0
    %3289 = vmatprep.subr.mxu0 0.0
    %3290 = vmatpush2.msra.mxu0 0.0
    %3291 = vmatprep.subr.mxu0 0.0
    %3292 = vmatpush2.msra.mxu0 0.0
    %3293 = vmatprep.subr.mxu0 0.0
    %3294 = vmatpush2.msra.mxu0 0.0
    %3295 = vmatprep.subr.mxu0 0.0
    %3296 = vmatpush2.msra.mxu0 0.0
    %3297 = vmatprep.subr.mxu0 0.0
    %3298 = vmatpush2.msra.mxu0 0.0
    %3299 = vmatprep.subr.mxu0 0.0
    %3300 = vmatpush2.msra.mxu0 0.0
    %3301 = vmatprep.subr.mxu0 0.0
    %3302 = vmatpush2.msra.mxu0 0.0
    %3303 = vmatprep.subr.mxu0 0.0
    %3304 = vmatpush2.msra.mxu0 0.0
    %3305 = vmatprep.subr.mxu0 0.0
    %3306 = vmatpush2.msra.mxu0 0.0
    %3307 = vmatprep.subr.mxu0 0.0
    %3308 = vmatpush2.msra.mxu0 0.0
    %3309 = vmatprep.mubr.f32.mxu0 0.0
    %3310 = vmatmul.mubr.f32.gmra.mxu0 %v3081
    %v3311 = vpop.f32.mrf.mxu0
    %v3312 = vadd.f32 %v658, %v3311
    %v3313 = vpop.f32.mrf.mxu0
    %3314 = vdwg.mxu0
    %v3316 = vrot.slane %v3312, 4
    %3317 = vrot.lane.b32.xlu0 %v3316, 96
    %v3318 = vpop.permute.xlu0 %3317
    %v3320 = vmul.f32 %v3164, %v3318
    %3322 = vrot.lane.b32.xlu0 %v3320, 64
    %v3323 = vpop.permute.xlu0 %3322
    %v3325 = vadd.f32 %v194, %v3323
    %v3326 = vtanh.pop %v3325
    %v3327 = vsub.f32 1.0, %v3244
    %3329 = vrot.lane.b32.xlu0 %v3326, 96
    %v3330 = vpop.permute.xlu0 %3329
    %v3332 = vmul.f32 %v3327, %v3330
    %v3333 = vrot.slane %v2818, 2
    %v3335 = vmul.f32 %v3244, %v3333
    %v3336 = vadd.f32 %v3332, %v3335
    %3337 = vst.msk [vmem:[#allocation3] sm:$0x30] %vm1270, %v3336
    %v3338 = vrot.slane %v3073, 2
    %3339 = vrot.lane.b32.xlu0 %v3338, 96
    %v3340 = vpop.permute.xlu0 %3339
    %v3341 = vsel %vm118, %v3340, 0
    %3343 = vmatprep.subr.mxu0 0.0
    %3344 = vmatpush1.msra.mxu0 0.0
    %3345 = vmatprep.subr.mxu0 0.0
    %3346 = vmatpush1.msra.mxu0 0.0
    %3347 = vmatprep.subr.mxu0 0.0
    %3348 = vmatpush1.msra.mxu0 0.0
    %3349 = vmatprep.subr.mxu0 0.0
    %3350 = vmatpush1.msra.mxu0 0.0
    %3351 = vmatprep.subr.mxu0 0.0
    %3352 = vmatpush1.msra.mxu0 0.0
    %3353 = vmatprep.subr.mxu0 0.0
    %3354 = vmatpush1.msra.mxu0 0.0
    %3355 = vmatprep.subr.mxu0 0.0
    %3356 = vmatpush1.msra.mxu0 0.0
    %3357 = vmatprep.subr.mxu0 0.0
    %3358 = vmatpush1.msra.mxu0 0.0
    %3359 = vmatprep.subr.mxu0 0.0
    %3360 = vmatpush1.msra.mxu0 0.0
    %3361 = vmatprep.subr.mxu0 0.0
    %3362 = vmatpush1.msra.mxu0 0.0
    %3363 = vmatprep.subr.mxu0 0.0
    %3364 = vmatpush1.msra.mxu0 0.0
    %3365 = vmatprep.subr.mxu0 0.0
    %3366 = vmatpush1.msra.mxu0 0.0
    %3367 = vmatprep.subr.mxu0 0.0
    %3368 = vmatpush1.msra.mxu0 %v205
    %3369 = vmatprep.subr.mxu0 0.0
    %3370 = vmatpush1.msra.mxu0 %v204
    %3371 = vmatprep.subr.mxu0 0.0
    %3372 = vmatpush1.msra.mxu0 %v203
    %3373 = vmatprep.subr.mxu0 0.0
    %3374 = vmatpush1.msra.mxu0 %v202
    %3375 = vmatprep.subr.mxu0 0.0
    %3376 = vmatpush2.msra.mxu0 0.0
    %3377 = vmatprep.subr.mxu0 0.0
    %3378 = vmatpush2.msra.mxu0 0.0
    %3379 = vmatprep.subr.mxu0 0.0
    %3380 = vmatpush2.msra.mxu0 0.0
    %3381 = vmatprep.subr.mxu0 0.0
    %3382 = vmatpush2.msra.mxu0 0.0
    %3383 = vmatprep.subr.mxu0 0.0
    %3384 = vmatpush2.msra.mxu0 0.0
    %3385 = vmatprep.subr.mxu0 0.0
    %3386 = vmatpush2.msra.mxu0 0.0
    %3387 = vmatprep.subr.mxu0 0.0
    %3388 = vmatpush2.msra.mxu0 0.0
    %3389 = vmatprep.subr.mxu0 0.0
    %3390 = vmatpush2.msra.mxu0 0.0
    %3391 = vmatprep.subr.mxu0 0.0
    %3392 = vmatpush2.msra.mxu0 0.0
    %3393 = vmatprep.subr.mxu0 0.0
    %3394 = vmatpush2.msra.mxu0 0.0
    %3395 = vmatprep.subr.mxu0 0.0
    %3396 = vmatpush2.msra.mxu0 0.0
    %3397 = vmatprep.subr.mxu0 0.0
    %3398 = vmatpush2.msra.mxu0 0.0
    %3399 = vmatprep.subr.mxu0 0.0
    %3400 = vmatpush2.msra.mxu0 0.0
    %3401 = vmatprep.subr.mxu0 0.0
    %3402 = vmatpush2.msra.mxu0 0.0
    %3403 = vmatprep.subr.mxu0 0.0
    %3404 = vmatpush2.msra.mxu0 0.0
    %3405 = vmatprep.subr.mxu0 0.0
    %3406 = vmatpush2.msra.mxu0 0.0
    %3407 = vmatprep.mubr.f32.mxu0 0.0
    %3408 = vmatmul.mubr.f32.gmra.mxu0 %v3341
    %v3409 = vpop.f32.mrf.mxu0
    %v3410 = vadd.f32 0.0, %v3409
    %v3411 = vpop.f32.mrf.mxu0
    %3412 = vdwg.mxu0
    %v3414 = vrot.slane %v3410, 4
    %v3416 = vadd.f32 %v198, %v3414
    %v3417 = vxor.u32 %v3416, 2147483648
    %v3418 = vmul.f32 %v3417, 1.442695
    %v3419 = vpow.pop %v3418
    %v3420 = vadd.f32 %v3419, 1.0
    %v3421 = vrcp.pop %v3420
    %v3422 = vmul.f32 1.0, %v3421
    %3423 = vmatprep.subr.mxu0 0.0
    %3424 = vmatpush1.msra.mxu0 0.0
    %3425 = vmatprep.subr.mxu0 0.0
    %3426 = vmatpush1.msra.mxu0 0.0
    %3427 = vmatprep.subr.mxu0 0.0
    %3428 = vmatpush1.msra.mxu0 0.0
    %3429 = vmatprep.subr.mxu0 0.0
    %3430 = vmatpush1.msra.mxu0 0.0
    %3431 = vmatprep.subr.mxu0 0.0
    %3432 = vmatpush1.msra.mxu0 0.0
    %3433 = vmatprep.subr.mxu0 0.0
    %3434 = vmatpush1.msra.mxu0 0.0
    %3435 = vmatprep.subr.mxu0 0.0
    %3436 = vmatpush1.msra.mxu0 0.0
    %3437 = vmatprep.subr.mxu0 0.0
    %3438 = vmatpush1.msra.mxu0 0.0
    %3439 = vmatprep.subr.mxu0 0.0
    %3440 = vmatpush1.msra.mxu0 0.0
    %3441 = vmatprep.subr.mxu0 0.0
    %3442 = vmatpush1.msra.mxu0 0.0
    %3443 = vmatprep.subr.mxu0 0.0
    %3444 = vmatpush1.msra.mxu0 0.0
    %3445 = vmatprep.subr.mxu0 0.0
    %3446 = vmatpush1.msra.mxu0 0.0
    %3447 = vmatprep.subr.mxu0 0.0
    %3448 = vmatpush1.msra.mxu0 %v210
    %3449 = vmatprep.subr.mxu0 0.0
    %3450 = vmatpush1.msra.mxu0 %v209
    %3451 = vmatprep.subr.mxu0 0.0
    %3452 = vmatpush1.msra.mxu0 %v208
    %3453 = vmatprep.subr.mxu0 0.0
    %3454 = vmatpush1.msra.mxu0 %v207
    %3455 = vmatprep.subr.mxu0 0.0
    %3456 = vmatpush2.msra.mxu0 0.0
    %3457 = vmatprep.subr.mxu0 0.0
    %3458 = vmatpush2.msra.mxu0 0.0
    %3459 = vmatprep.subr.mxu0 0.0
    %3460 = vmatpush2.msra.mxu0 0.0
    %3461 = vmatprep.subr.mxu0 0.0
    %3462 = vmatpush2.msra.mxu0 0.0
    %3463 = vmatprep.subr.mxu0 0.0
    %3464 = vmatpush2.msra.mxu0 0.0
    %3465 = vmatprep.subr.mxu0 0.0
    %3466 = vmatpush2.msra.mxu0 0.0
    %3467 = vmatprep.subr.mxu0 0.0
    %3468 = vmatpush2.msra.mxu0 0.0
    %3469 = vmatprep.subr.mxu0 0.0
    %3470 = vmatpush2.msra.mxu0 0.0
    %3471 = vmatprep.subr.mxu0 0.0
    %3472 = vmatpush2.msra.mxu0 0.0
    %3473 = vmatprep.subr.mxu0 0.0
    %3474 = vmatpush2.msra.mxu0 0.0
    %3475 = vmatprep.subr.mxu0 0.0
    %3476 = vmatpush2.msra.mxu0 0.0
    %3477 = vmatprep.subr.mxu0 0.0
    %3478 = vmatpush2.msra.mxu0 0.0
    %3479 = vmatprep.subr.mxu0 0.0
    %3480 = vmatpush2.msra.mxu0 0.0
    %3481 = vmatprep.subr.mxu0 0.0
    %3482 = vmatpush2.msra.mxu0 0.0
    %3483 = vmatprep.subr.mxu0 0.0
    %3484 = vmatpush2.msra.mxu0 0.0
    %3485 = vmatprep.subr.mxu0 0.0
    %3486 = vmatpush2.msra.mxu0 0.0
    %3487 = vmatprep.mubr.f32.mxu0 0.0
    %3488 = vmatmul.mubr.f32.gmra.mxu0 %v3341
    %v3489 = vpop.f32.mrf.mxu0
    %v3490 = vadd.f32 0.0, %v3489
    %v3491 = vpop.f32.mrf.mxu0
    %3492 = vdwg.mxu0
    %v3494 = vrot.slane %v3490, 4
    %3495 = vrot.lane.b32.xlu0 %v3494, 32
    %v3496 = vpop.permute.xlu0 %3495
    %v3498 = vadd.f32 %v198, %v3496
    %v3499 = vxor.u32 %v3498, 2147483648
    %v3500 = vmul.f32 %v3499, 1.442695
    %v3501 = vpow.pop %v3500
    %v3502 = vadd.f32 %v3501, 1.0
    %v3503 = vrcp.pop %v3502
    %v3504 = vmul.f32 1.0, %v3503
    %3505 = vmatprep.subr.mxu0 0.0
    %3506 = vmatpush1.msra.mxu0 0.0
    %3507 = vmatprep.subr.mxu0 0.0
    %3508 = vmatpush1.msra.mxu0 0.0
    %3509 = vmatprep.subr.mxu0 0.0
    %3510 = vmatpush1.msra.mxu0 0.0
    %3511 = vmatprep.subr.mxu0 0.0
    %3512 = vmatpush1.msra.mxu0 0.0
    %3513 = vmatprep.subr.mxu0 0.0
    %3514 = vmatpush1.msra.mxu0 0.0
    %3515 = vmatprep.subr.mxu0 0.0
    %3516 = vmatpush1.msra.mxu0 0.0
    %3517 = vmatprep.subr.mxu0 0.0
    %3518 = vmatpush1.msra.mxu0 0.0
    %3519 = vmatprep.subr.mxu0 0.0
    %3520 = vmatpush1.msra.mxu0 0.0
    %3521 = vmatprep.subr.mxu0 0.0
    %3522 = vmatpush1.msra.mxu0 0.0
    %3523 = vmatprep.subr.mxu0 0.0
    %3524 = vmatpush1.msra.mxu0 0.0
    %3525 = vmatprep.subr.mxu0 0.0
    %3526 = vmatpush1.msra.mxu0 0.0
    %3527 = vmatprep.subr.mxu0 0.0
    %3528 = vmatpush1.msra.mxu0 0.0
    %3529 = vmatprep.subr.mxu0 0.0
    %3530 = vmatpush1.msra.mxu0 %v215
    %3531 = vmatprep.subr.mxu0 0.0
    %3532 = vmatpush1.msra.mxu0 %v214
    %3533 = vmatprep.subr.mxu0 0.0
    %3534 = vmatpush1.msra.mxu0 %v213
    %3535 = vmatprep.subr.mxu0 0.0
    %3536 = vmatpush1.msra.mxu0 %v212
    %3537 = vmatprep.subr.mxu0 0.0
    %3538 = vmatpush2.msra.mxu0 0.0
    %3539 = vmatprep.subr.mxu0 0.0
    %3540 = vmatpush2.msra.mxu0 0.0
    %3541 = vmatprep.subr.mxu0 0.0
    %3542 = vmatpush2.msra.mxu0 0.0
    %3543 = vmatprep.subr.mxu0 0.0
    %3544 = vmatpush2.msra.mxu0 0.0
    %3545 = vmatprep.subr.mxu0 0.0
    %3546 = vmatpush2.msra.mxu0 0.0
    %3547 = vmatprep.subr.mxu0 0.0
    %3548 = vmatpush2.msra.mxu0 0.0
    %3549 = vmatprep.subr.mxu0 0.0
    %3550 = vmatpush2.msra.mxu0 0.0
    %3551 = vmatprep.subr.mxu0 0.0
    %3552 = vmatpush2.msra.mxu0 0.0
    %3553 = vmatprep.subr.mxu0 0.0
    %3554 = vmatpush2.msra.mxu0 0.0
    %3555 = vmatprep.subr.mxu0 0.0
    %3556 = vmatpush2.msra.mxu0 0.0
    %3557 = vmatprep.subr.mxu0 0.0
    %3558 = vmatpush2.msra.mxu0 0.0
    %3559 = vmatprep.subr.mxu0 0.0
    %3560 = vmatpush2.msra.mxu0 0.0
    %3561 = vmatprep.subr.mxu0 0.0
    %3562 = vmatpush2.msra.mxu0 0.0
    %3563 = vmatprep.subr.mxu0 0.0
    %3564 = vmatpush2.msra.mxu0 0.0
    %3565 = vmatprep.subr.mxu0 0.0
    %3566 = vmatpush2.msra.mxu0 0.0
    %3567 = vmatprep.subr.mxu0 0.0
    %3568 = vmatpush2.msra.mxu0 0.0
    %3569 = vmatprep.mubr.f32.mxu0 0.0
    %3570 = vmatmul.mubr.f32.gmra.mxu0 %v3341
    %v3571 = vpop.f32.mrf.mxu0
    %v3572 = vadd.f32 %v399, %v3571
    %v3573 = vpop.f32.mrf.mxu0
    %3574 = vdwg.mxu0
    %v3576 = vrot.slane %v3572, 4
    %v3578 = vmul.f32 %v3422, %v3576
    %3580 = vrot.lane.b32.xlu0 %v3578, 64
    %v3581 = vpop.permute.xlu0 %3580
    %v3583 = vadd.f32 %v198, %v3581
    %v3584 = vtanh.pop %v3583
    %v3585 = vsub.f32 1.0, %v3504
    %3587 = vrot.lane.b32.xlu0 %v3584, 96
    %v3588 = vpop.permute.xlu0 %3587
    %v3590 = vmul.f32 %v3585, %v3588
    %v3591 = vrot.slane %v3073, 6
    %v3593 = vmul.f32 %v3504, %v3591
    %v3594 = vadd.f32 %v3590, %v3593
    %3596 = vrot.lane.b32.xlu0 %v3594, 96
    %v3597 = vpop.permute.xlu0 %3596
    %3599 = vst.msk [vmem:[#allocation2 + $0x8] sm:$0x30] %vm1270, %v3597
    %v3601 = vrot.slane %v3336, 4
    %v3602 = vsel %vm118, %v3601, 0
    %3604 = vmatprep.subr.mxu0 0.0
    %3605 = vmatpush1.msra.mxu0 0.0
    %3606 = vmatprep.subr.mxu0 0.0
    %3607 = vmatpush1.msra.mxu0 0.0
    %3608 = vmatprep.subr.mxu0 0.0
    %3609 = vmatpush1.msra.mxu0 0.0
    %3610 = vmatprep.subr.mxu0 0.0
    %3611 = vmatpush1.msra.mxu0 0.0
    %3612 = vmatprep.subr.mxu0 0.0
    %3613 = vmatpush1.msra.mxu0 0.0
    %3614 = vmatprep.subr.mxu0 0.0
    %3615 = vmatpush1.msra.mxu0 0.0
    %3616 = vmatprep.subr.mxu0 0.0
    %3617 = vmatpush1.msra.mxu0 0.0
    %3618 = vmatprep.subr.mxu0 0.0
    %3619 = vmatpush1.msra.mxu0 0.0
    %3620 = vmatprep.subr.mxu0 0.0
    %3621 = vmatpush1.msra.mxu0 0.0
    %3622 = vmatprep.subr.mxu0 0.0
    %3623 = vmatpush1.msra.mxu0 0.0
    %3624 = vmatprep.subr.mxu0 0.0
    %3625 = vmatpush1.msra.mxu0 0.0
    %3626 = vmatprep.subr.mxu0 0.0
    %3627 = vmatpush1.msra.mxu0 0.0
    %3628 = vmatprep.subr.mxu0 0.0
    %3629 = vmatpush1.msra.mxu0 %v220
    %3630 = vmatprep.subr.mxu0 0.0
    %3631 = vmatpush1.msra.mxu0 %v219
    %3632 = vmatprep.subr.mxu0 0.0
    %3633 = vmatpush1.msra.mxu0 %v218
    %3634 = vmatprep.subr.mxu0 0.0
    %3635 = vmatpush1.msra.mxu0 %v217
    %3636 = vmatprep.subr.mxu0 0.0
    %3637 = vmatpush2.msra.mxu0 0.0
    %3638 = vmatprep.subr.mxu0 0.0
    %3639 = vmatpush2.msra.mxu0 0.0
    %3640 = vmatprep.subr.mxu0 0.0
    %3641 = vmatpush2.msra.mxu0 0.0
    %3642 = vmatprep.subr.mxu0 0.0
    %3643 = vmatpush2.msra.mxu0 0.0
    %3644 = vmatprep.subr.mxu0 0.0
    %3645 = vmatpush2.msra.mxu0 0.0
    %3646 = vmatprep.subr.mxu0 0.0
    %3647 = vmatpush2.msra.mxu0 0.0
    %3648 = vmatprep.subr.mxu0 0.0
    %3649 = vmatpush2.msra.mxu0 0.0
    %3650 = vmatprep.subr.mxu0 0.0
    %3651 = vmatpush2.msra.mxu0 0.0
    %3652 = vmatprep.subr.mxu0 0.0
    %3653 = vmatpush2.msra.mxu0 0.0
    %3654 = vmatprep.subr.mxu0 0.0
    %3655 = vmatpush2.msra.mxu0 0.0
    %3656 = vmatprep.subr.mxu0 0.0
    %3657 = vmatpush2.msra.mxu0 0.0
    %3658 = vmatprep.subr.mxu0 0.0
    %3659 = vmatpush2.msra.mxu0 0.0
    %3660 = vmatprep.subr.mxu0 0.0
    %3661 = vmatpush2.msra.mxu0 0.0
    %3662 = vmatprep.subr.mxu0 0.0
    %3663 = vmatpush2.msra.mxu0 0.0
    %3664 = vmatprep.subr.mxu0 0.0
    %3665 = vmatpush2.msra.mxu0 0.0
    %3666 = vmatprep.subr.mxu0 0.0
    %3667 = vmatpush2.msra.mxu0 0.0
    %3668 = vmatprep.mubr.f32.mxu0 0.0
    %3669 = vmatmul.mubr.f32.gmra.mxu0 %v3602
    %v3670 = vpop.f32.mrf.mxu0
    %v3671 = vadd.f32 0.0, %v3670
    %v3672 = vpop.f32.mrf.mxu0
    %3673 = vdwg.mxu0
    %v3675 = vrot.slane %v3671, 6
    %3676 = vrot.lane.b32.xlu0 %v3675, 96
    %v3677 = vpop.permute.xlu0 %3676
    %v3679 = vadd.f32 %v192, %v3677
    %v3680 = vxor.u32 %v3679, 2147483648
    %v3681 = vmul.f32 %v3680, 1.442695
    %v3682 = vpow.pop %v3681
    %v3683 = vadd.f32 %v3682, 1.0
    %v3684 = vrcp.pop %v3683
    %v3685 = vmul.f32 1.0, %v3684
    %3686 = vmatprep.subr.mxu0 0.0
    %3687 = vmatpush1.msra.mxu0 0.0
    %3688 = vmatprep.subr.mxu0 0.0
    %3689 = vmatpush1.msra.mxu0 0.0
    %3690 = vmatprep.subr.mxu0 0.0
    %3691 = vmatpush1.msra.mxu0 0.0
    %3692 = vmatprep.subr.mxu0 0.0
    %3693 = vmatpush1.msra.mxu0 0.0
    %3694 = vmatprep.subr.mxu0 0.0
    %3695 = vmatpush1.msra.mxu0 0.0
    %3696 = vmatprep.subr.mxu0 0.0
    %3697 = vmatpush1.msra.mxu0 0.0
    %3698 = vmatprep.subr.mxu0 0.0
    %3699 = vmatpush1.msra.mxu0 0.0
    %3700 = vmatprep.subr.mxu0 0.0
    %3701 = vmatpush1.msra.mxu0 0.0
    %3702 = vmatprep.subr.mxu0 0.0
    %3703 = vmatpush1.msra.mxu0 0.0
    %3704 = vmatprep.subr.mxu0 0.0
    %3705 = vmatpush1.msra.mxu0 0.0
    %3706 = vmatprep.subr.mxu0 0.0
    %3707 = vmatpush1.msra.mxu0 0.0
    %3708 = vmatprep.subr.mxu0 0.0
    %3709 = vmatpush1.msra.mxu0 0.0
    %3710 = vmatprep.subr.mxu0 0.0
    %3711 = vmatpush1.msra.mxu0 %v225
    %3712 = vmatprep.subr.mxu0 0.0
    %3713 = vmatpush1.msra.mxu0 %v224
    %3714 = vmatprep.subr.mxu0 0.0
    %3715 = vmatpush1.msra.mxu0 %v223
    %3716 = vmatprep.subr.mxu0 0.0
    %3717 = vmatpush1.msra.mxu0 %v222
    %3718 = vmatprep.subr.mxu0 0.0
    %3719 = vmatpush2.msra.mxu0 0.0
    %3720 = vmatprep.subr.mxu0 0.0
    %3721 = vmatpush2.msra.mxu0 0.0
    %3722 = vmatprep.subr.mxu0 0.0
    %3723 = vmatpush2.msra.mxu0 0.0
    %3724 = vmatprep.subr.mxu0 0.0
    %3725 = vmatpush2.msra.mxu0 0.0
    %3726 = vmatprep.subr.mxu0 0.0
    %3727 = vmatpush2.msra.mxu0 0.0
    %3728 = vmatprep.subr.mxu0 0.0
    %3729 = vmatpush2.msra.mxu0 0.0
    %3730 = vmatprep.subr.mxu0 0.0
    %3731 = vmatpush2.msra.mxu0 0.0
    %3732 = vmatprep.subr.mxu0 0.0
    %3733 = vmatpush2.msra.mxu0 0.0
    %3734 = vmatprep.subr.mxu0 0.0
    %3735 = vmatpush2.msra.mxu0 0.0
    %3736 = vmatprep.subr.mxu0 0.0
    %3737 = vmatpush2.msra.mxu0 0.0
    %3738 = vmatprep.subr.mxu0 0.0
    %3739 = vmatpush2.msra.mxu0 0.0
    %3740 = vmatprep.subr.mxu0 0.0
    %3741 = vmatpush2.msra.mxu0 0.0
    %3742 = vmatprep.subr.mxu0 0.0
    %3743 = vmatpush2.msra.mxu0 0.0
    %3744 = vmatprep.subr.mxu0 0.0
    %3745 = vmatpush2.msra.mxu0 0.0
    %3746 = vmatprep.subr.mxu0 0.0
    %3747 = vmatpush2.msra.mxu0 0.0
    %3748 = vmatprep.subr.mxu0 0.0
    %3749 = vmatpush2.msra.mxu0 0.0
    %3750 = vmatprep.mubr.f32.mxu0 0.0
    %3751 = vmatmul.mubr.f32.gmra.mxu0 %v3602
    %v3752 = vpop.f32.mrf.mxu0
    %v3753 = vadd.f32 0.0, %v3752
    %v3754 = vpop.f32.mrf.mxu0
    %3755 = vdwg.mxu0
    %v3757 = vrot.slane %v3753, 6
    %v3759 = vadd.f32 %v194, %v3757
    %v3760 = vxor.u32 %v3759, 2147483648
    %v3761 = vmul.f32 %v3760, 1.442695
    %v3762 = vpow.pop %v3761
    %v3763 = vadd.f32 %v3762, 1.0
    %v3764 = vrcp.pop %v3763
    %v3765 = vmul.f32 1.0, %v3764
    %3766 = vmatprep.subr.mxu0 0.0
    %3767 = vmatpush1.msra.mxu0 0.0
    %3768 = vmatprep.subr.mxu0 0.0
    %3769 = vmatpush1.msra.mxu0 0.0
    %3770 = vmatprep.subr.mxu0 0.0
    %3771 = vmatpush1.msra.mxu0 0.0
    %3772 = vmatprep.subr.mxu0 0.0
    %3773 = vmatpush1.msra.mxu0 0.0
    %3774 = vmatprep.subr.mxu0 0.0
    %3775 = vmatpush1.msra.mxu0 0.0
    %3776 = vmatprep.subr.mxu0 0.0
    %3777 = vmatpush1.msra.mxu0 0.0
    %3778 = vmatprep.subr.mxu0 0.0
    %3779 = vmatpush1.msra.mxu0 0.0
    %3780 = vmatprep.subr.mxu0 0.0
    %3781 = vmatpush1.msra.mxu0 0.0
    %3782 = vmatprep.subr.mxu0 0.0
    %3783 = vmatpush1.msra.mxu0 0.0
    %3784 = vmatprep.subr.mxu0 0.0
    %3785 = vmatpush1.msra.mxu0 0.0
    %3786 = vmatprep.subr.mxu0 0.0
    %3787 = vmatpush1.msra.mxu0 0.0
    %3788 = vmatprep.subr.mxu0 0.0
    %3789 = vmatpush1.msra.mxu0 0.0
    %3790 = vmatprep.subr.mxu0 0.0
    %3791 = vmatpush1.msra.mxu0 %v230
    %3792 = vmatprep.subr.mxu0 0.0
    %3793 = vmatpush1.msra.mxu0 %v229
    %3794 = vmatprep.subr.mxu0 0.0
    %3795 = vmatpush1.msra.mxu0 %v228
    %3796 = vmatprep.subr.mxu0 0.0
    %3797 = vmatpush1.msra.mxu0 %v227
    %3798 = vmatprep.subr.mxu0 0.0
    %3799 = vmatpush2.msra.mxu0 0.0
    %3800 = vmatprep.subr.mxu0 0.0
    %3801 = vmatpush2.msra.mxu0 0.0
    %3802 = vmatprep.subr.mxu0 0.0
    %3803 = vmatpush2.msra.mxu0 0.0
    %3804 = vmatprep.subr.mxu0 0.0
    %3805 = vmatpush2.msra.mxu0 0.0
    %3806 = vmatprep.subr.mxu0 0.0
    %3807 = vmatpush2.msra.mxu0 0.0
    %3808 = vmatprep.subr.mxu0 0.0
    %3809 = vmatpush2.msra.mxu0 0.0
    %3810 = vmatprep.subr.mxu0 0.0
    %3811 = vmatpush2.msra.mxu0 0.0
    %3812 = vmatprep.subr.mxu0 0.0
    %3813 = vmatpush2.msra.mxu0 0.0
    %3814 = vmatprep.subr.mxu0 0.0
    %3815 = vmatpush2.msra.mxu0 0.0
    %3816 = vmatprep.subr.mxu0 0.0
    %3817 = vmatpush2.msra.mxu0 0.0
    %3818 = vmatprep.subr.mxu0 0.0
    %3819 = vmatpush2.msra.mxu0 0.0
    %3820 = vmatprep.subr.mxu0 0.0
    %3821 = vmatpush2.msra.mxu0 0.0
    %3822 = vmatprep.subr.mxu0 0.0
    %3823 = vmatpush2.msra.mxu0 0.0
    %3824 = vmatprep.subr.mxu0 0.0
    %3825 = vmatpush2.msra.mxu0 0.0
    %3826 = vmatprep.subr.mxu0 0.0
    %3827 = vmatpush2.msra.mxu0 0.0
    %3828 = vmatprep.subr.mxu0 0.0
    %3829 = vmatpush2.msra.mxu0 0.0
    %3830 = vmatprep.mubr.f32.mxu0 0.0
    %3831 = vmatmul.mubr.f32.gmra.mxu0 %v3602
    %v3832 = vpop.f32.mrf.mxu0
    %v3833 = vadd.f32 %v658, %v3832
    %v3834 = vpop.f32.mrf.mxu0
    %3835 = vdwg.mxu0
    %v3837 = vrot.slane %v3833, 6
    %3838 = vrot.lane.b32.xlu0 %v3837, 96
    %v3839 = vpop.permute.xlu0 %3838
    %v3841 = vmul.f32 %v3685, %v3839
    %3843 = vrot.lane.b32.xlu0 %v3841, 64
    %v3844 = vpop.permute.xlu0 %3843
    %v3846 = vadd.f32 %v194, %v3844
    %v3847 = vtanh.pop %v3846
    %v3848 = vsub.f32 1.0, %v3765
    %3850 = vrot.lane.b32.xlu0 %v3847, 96
    %v3851 = vpop.permute.xlu0 %3850
    %v3853 = vmul.f32 %v3848, %v3851
    %v3854 = vrot.slane %v3336, 2
    %v3856 = vmul.f32 %v3765, %v3854
    %v3857 = vadd.f32 %v3853, %v3856
    %3858 = vst.msk [vmem:[#allocation3] sm:$0xc] %vm1010, %v3857
    %v3859 = vrot.slane %v3594, 4
    %3860 = vrot.lane.b32.xlu0 %v3859, 96
    %v3861 = vpop.permute.xlu0 %3860
    %v3862 = vsel %vm118, %v3861, 0
    %3864 = vmatprep.subr.mxu0 0.0
    %3865 = vmatpush1.msra.mxu0 0.0
    %3866 = vmatprep.subr.mxu0 0.0
    %3867 = vmatpush1.msra.mxu0 0.0
    %3868 = vmatprep.subr.mxu0 0.0
    %3869 = vmatpush1.msra.mxu0 0.0
    %3870 = vmatprep.subr.mxu0 0.0
    %3871 = vmatpush1.msra.mxu0 0.0
    %3872 = vmatprep.subr.mxu0 0.0
    %3873 = vmatpush1.msra.mxu0 0.0
    %3874 = vmatprep.subr.mxu0 0.0
    %3875 = vmatpush1.msra.mxu0 0.0
    %3876 = vmatprep.subr.mxu0 0.0
    %3877 = vmatpush1.msra.mxu0 0.0
    %3878 = vmatprep.subr.mxu0 0.0
    %3879 = vmatpush1.msra.mxu0 0.0
    %3880 = vmatprep.subr.mxu0 0.0
    %3881 = vmatpush1.msra.mxu0 0.0
    %3882 = vmatprep.subr.mxu0 0.0
    %3883 = vmatpush1.msra.mxu0 0.0
    %3884 = vmatprep.subr.mxu0 0.0
    %3885 = vmatpush1.msra.mxu0 0.0
    %3886 = vmatprep.subr.mxu0 0.0
    %3887 = vmatpush1.msra.mxu0 0.0
    %3888 = vmatprep.subr.mxu0 0.0
    %3889 = vmatpush1.msra.mxu0 %v205
    %3890 = vmatprep.subr.mxu0 0.0
    %3891 = vmatpush1.msra.mxu0 %v204
    %3892 = vmatprep.subr.mxu0 0.0
    %3893 = vmatpush1.msra.mxu0 %v203
    %3894 = vmatprep.subr.mxu0 0.0
    %3895 = vmatpush1.msra.mxu0 %v202
    %3896 = vmatprep.subr.mxu0 0.0
    %3897 = vmatpush2.msra.mxu0 0.0
    %3898 = vmatprep.subr.mxu0 0.0
    %3899 = vmatpush2.msra.mxu0 0.0
    %3900 = vmatprep.subr.mxu0 0.0
    %3901 = vmatpush2.msra.mxu0 0.0
    %3902 = vmatprep.subr.mxu0 0.0
    %3903 = vmatpush2.msra.mxu0 0.0
    %3904 = vmatprep.subr.mxu0 0.0
    %3905 = vmatpush2.msra.mxu0 0.0
    %3906 = vmatprep.subr.mxu0 0.0
    %3907 = vmatpush2.msra.mxu0 0.0
    %3908 = vmatprep.subr.mxu0 0.0
    %3909 = vmatpush2.msra.mxu0 0.0
    %3910 = vmatprep.subr.mxu0 0.0
    %3911 = vmatpush2.msra.mxu0 0.0
    %3912 = vmatprep.subr.mxu0 0.0
    %3913 = vmatpush2.msra.mxu0 0.0
    %3914 = vmatprep.subr.mxu0 0.0
    %3915 = vmatpush2.msra.mxu0 0.0
    %3916 = vmatprep.subr.mxu0 0.0
    %3917 = vmatpush2.msra.mxu0 0.0
    %3918 = vmatprep.subr.mxu0 0.0
    %3919 = vmatpush2.msra.mxu0 0.0
    %3920 = vmatprep.subr.mxu0 0.0
    %3921 = vmatpush2.msra.mxu0 0.0
    %3922 = vmatprep.subr.mxu0 0.0
    %3923 = vmatpush2.msra.mxu0 0.0
    %3924 = vmatprep.subr.mxu0 0.0
    %3925 = vmatpush2.msra.mxu0 0.0
    %3926 = vmatprep.subr.mxu0 0.0
    %3927 = vmatpush2.msra.mxu0 0.0
    %3928 = vmatprep.mubr.f32.mxu0 0.0
    %3929 = vmatmul.mubr.f32.gmra.mxu0 %v3862
    %v3930 = vpop.f32.mrf.mxu0
    %v3931 = vadd.f32 0.0, %v3930
    %v3932 = vpop.f32.mrf.mxu0
    %3933 = vdwg.mxu0
    %v3935 = vrot.slane %v3931, 2
    %v3937 = vadd.f32 %v198, %v3935
    %v3938 = vxor.u32 %v3937, 2147483648
    %v3939 = vmul.f32 %v3938, 1.442695
    %v3940 = vpow.pop %v3939
    %v3941 = vadd.f32 %v3940, 1.0
    %v3942 = vrcp.pop %v3941
    %v3943 = vmul.f32 1.0, %v3942
    %3944 = vmatprep.subr.mxu0 0.0
    %3945 = vmatpush1.msra.mxu0 0.0
    %3946 = vmatprep.subr.mxu0 0.0
    %3947 = vmatpush1.msra.mxu0 0.0
    %3948 = vmatprep.subr.mxu0 0.0
    %3949 = vmatpush1.msra.mxu0 0.0
    %3950 = vmatprep.subr.mxu0 0.0
    %3951 = vmatpush1.msra.mxu0 0.0
    %3952 = vmatprep.subr.mxu0 0.0
    %3953 = vmatpush1.msra.mxu0 0.0
    %3954 = vmatprep.subr.mxu0 0.0
    %3955 = vmatpush1.msra.mxu0 0.0
    %3956 = vmatprep.subr.mxu0 0.0
    %3957 = vmatpush1.msra.mxu0 0.0
    %3958 = vmatprep.subr.mxu0 0.0
    %3959 = vmatpush1.msra.mxu0 0.0
    %3960 = vmatprep.subr.mxu0 0.0
    %3961 = vmatpush1.msra.mxu0 0.0
    %3962 = vmatprep.subr.mxu0 0.0
    %3963 = vmatpush1.msra.mxu0 0.0
    %3964 = vmatprep.subr.mxu0 0.0
    %3965 = vmatpush1.msra.mxu0 0.0
    %3966 = vmatprep.subr.mxu0 0.0
    %3967 = vmatpush1.msra.mxu0 0.0
    %3968 = vmatprep.subr.mxu0 0.0
    %3969 = vmatpush1.msra.mxu0 %v210
    %3970 = vmatprep.subr.mxu0 0.0
    %3971 = vmatpush1.msra.mxu0 %v209
    %3972 = vmatprep.subr.mxu0 0.0
    %3973 = vmatpush1.msra.mxu0 %v208
    %3974 = vmatprep.subr.mxu0 0.0
    %3975 = vmatpush1.msra.mxu0 %v207
    %3976 = vmatprep.subr.mxu0 0.0
    %3977 = vmatpush2.msra.mxu0 0.0
    %3978 = vmatprep.subr.mxu0 0.0
    %3979 = vmatpush2.msra.mxu0 0.0
    %3980 = vmatprep.subr.mxu0 0.0
    %3981 = vmatpush2.msra.mxu0 0.0
    %3982 = vmatprep.subr.mxu0 0.0
    %3983 = vmatpush2.msra.mxu0 0.0
    %3984 = vmatprep.subr.mxu0 0.0
    %3985 = vmatpush2.msra.mxu0 0.0
    %3986 = vmatprep.subr.mxu0 0.0
    %3987 = vmatpush2.msra.mxu0 0.0
    %3988 = vmatprep.subr.mxu0 0.0
    %3989 = vmatpush2.msra.mxu0 0.0
    %3990 = vmatprep.subr.mxu0 0.0
    %3991 = vmatpush2.msra.mxu0 0.0
    %3992 = vmatprep.subr.mxu0 0.0
    %3993 = vmatpush2.msra.mxu0 0.0
    %3994 = vmatprep.subr.mxu0 0.0
    %3995 = vmatpush2.msra.mxu0 0.0
    %3996 = vmatprep.subr.mxu0 0.0
    %3997 = vmatpush2.msra.mxu0 0.0
    %3998 = vmatprep.subr.mxu0 0.0
    %3999 = vmatpush2.msra.mxu0 0.0
    %4000 = vmatprep.subr.mxu0 0.0
    %4001 = vmatpush2.msra.mxu0 0.0
    %4002 = vmatprep.subr.mxu0 0.0
    %4003 = vmatpush2.msra.mxu0 0.0
    %4004 = vmatprep.subr.mxu0 0.0
    %4005 = vmatpush2.msra.mxu0 0.0
    %4006 = vmatprep.subr.mxu0 0.0
    %4007 = vmatpush2.msra.mxu0 0.0
    %4008 = vmatprep.mubr.f32.mxu0 0.0
    %4009 = vmatmul.mubr.f32.gmra.mxu0 %v3862
    %v4010 = vpop.f32.mrf.mxu0
    %v4011 = vadd.f32 0.0, %v4010
    %v4012 = vpop.f32.mrf.mxu0
    %4013 = vdwg.mxu0
    %v4015 = vrot.slane %v4011, 2
    %4016 = vrot.lane.b32.xlu0 %v4015, 32
    %v4017 = vpop.permute.xlu0 %4016
    %v4019 = vadd.f32 %v198, %v4017
    %v4020 = vxor.u32 %v4019, 2147483648
    %v4021 = vmul.f32 %v4020, 1.442695
    %v4022 = vpow.pop %v4021
    %v4023 = vadd.f32 %v4022, 1.0
    %v4024 = vrcp.pop %v4023
    %v4025 = vmul.f32 1.0, %v4024
    %4026 = vmatprep.subr.mxu0 0.0
    %4027 = vmatpush1.msra.mxu0 0.0
    %4028 = vmatprep.subr.mxu0 0.0
    %4029 = vmatpush1.msra.mxu0 0.0
    %4030 = vmatprep.subr.mxu0 0.0
    %4031 = vmatpush1.msra.mxu0 0.0
    %4032 = vmatprep.subr.mxu0 0.0
    %4033 = vmatpush1.msra.mxu0 0.0
    %4034 = vmatprep.subr.mxu0 0.0
    %4035 = vmatpush1.msra.mxu0 0.0
    %4036 = vmatprep.subr.mxu0 0.0
    %4037 = vmatpush1.msra.mxu0 0.0
    %4038 = vmatprep.subr.mxu0 0.0
    %4039 = vmatpush1.msra.mxu0 0.0
    %4040 = vmatprep.subr.mxu0 0.0
    %4041 = vmatpush1.msra.mxu0 0.0
    %4042 = vmatprep.subr.mxu0 0.0
    %4043 = vmatpush1.msra.mxu0 0.0
    %4044 = vmatprep.subr.mxu0 0.0
    %4045 = vmatpush1.msra.mxu0 0.0
    %4046 = vmatprep.subr.mxu0 0.0
    %4047 = vmatpush1.msra.mxu0 0.0
    %4048 = vmatprep.subr.mxu0 0.0
    %4049 = vmatpush1.msra.mxu0 0.0
    %4050 = vmatprep.subr.mxu0 0.0
    %4051 = vmatpush1.msra.mxu0 %v215
    %4052 = vmatprep.subr.mxu0 0.0
    %4053 = vmatpush1.msra.mxu0 %v214
    %4054 = vmatprep.subr.mxu0 0.0
    %4055 = vmatpush1.msra.mxu0 %v213
    %4056 = vmatprep.subr.mxu0 0.0
    %4057 = vmatpush1.msra.mxu0 %v212
    %4058 = vmatprep.subr.mxu0 0.0
    %4059 = vmatpush2.msra.mxu0 0.0
    %4060 = vmatprep.subr.mxu0 0.0
    %4061 = vmatpush2.msra.mxu0 0.0
    %4062 = vmatprep.subr.mxu0 0.0
    %4063 = vmatpush2.msra.mxu0 0.0
    %4064 = vmatprep.subr.mxu0 0.0
    %4065 = vmatpush2.msra.mxu0 0.0
    %4066 = vmatprep.subr.mxu0 0.0
    %4067 = vmatpush2.msra.mxu0 0.0
    %4068 = vmatprep.subr.mxu0 0.0
    %4069 = vmatpush2.msra.mxu0 0.0
    %4070 = vmatprep.subr.mxu0 0.0
    %4071 = vmatpush2.msra.mxu0 0.0
    %4072 = vmatprep.subr.mxu0 0.0
    %4073 = vmatpush2.msra.mxu0 0.0
    %4074 = vmatprep.subr.mxu0 0.0
    %4075 = vmatpush2.msra.mxu0 0.0
    %4076 = vmatprep.subr.mxu0 0.0
    %4077 = vmatpush2.msra.mxu0 0.0
    %4078 = vmatprep.subr.mxu0 0.0
    %4079 = vmatpush2.msra.mxu0 0.0
    %4080 = vmatprep.subr.mxu0 0.0
    %4081 = vmatpush2.msra.mxu0 0.0
    %4082 = vmatprep.subr.mxu0 0.0
    %4083 = vmatpush2.msra.mxu0 0.0
    %4084 = vmatprep.subr.mxu0 0.0
    %4085 = vmatpush2.msra.mxu0 0.0
    %4086 = vmatprep.subr.mxu0 0.0
    %4087 = vmatpush2.msra.mxu0 0.0
    %4088 = vmatprep.subr.mxu0 0.0
    %4089 = vmatpush2.msra.mxu0 0.0
    %4090 = vmatprep.mubr.f32.mxu0 0.0
    %4091 = vmatmul.mubr.f32.gmra.mxu0 %v3862
    %v4092 = vpop.f32.mrf.mxu0
    %v4093 = vadd.f32 %v399, %v4092
    %v4094 = vpop.f32.mrf.mxu0
    %4095 = vdwg.mxu0
    %v4097 = vrot.slane %v4093, 2
    %v4099 = vmul.f32 %v3943, %v4097
    %4101 = vrot.lane.b32.xlu0 %v4099, 64
    %v4102 = vpop.permute.xlu0 %4101
    %v4104 = vadd.f32 %v198, %v4102
    %v4105 = vtanh.pop %v4104
    %v4106 = vsub.f32 1.0, %v4025
    %4108 = vrot.lane.b32.xlu0 %v4105, 96
    %v4109 = vpop.permute.xlu0 %4108
    %v4111 = vmul.f32 %v4106, %v4109
    %v4112 = vrot.slane %v3594, 6
    %v4114 = vmul.f32 %v4025, %v4112
    %v4115 = vadd.f32 %v4111, %v4114
    %4117 = vrot.lane.b32.xlu0 %v4115, 96
    %v4118 = vpop.permute.xlu0 %4117
    %4120 = vst.msk [vmem:[#allocation2 + $0x8] sm:$0xc0] %vm750, %v4118
    %v4122 = vrot.slane %v3857, 2
    %v4123 = vsel %vm118, %v4122, 0
    %4125 = vmatprep.subr.mxu0 0.0
    %4126 = vmatpush1.msra.mxu0 0.0
    %4127 = vmatprep.subr.mxu0 0.0
    %4128 = vmatpush1.msra.mxu0 0.0
    %4129 = vmatprep.subr.mxu0 0.0
    %4130 = vmatpush1.msra.mxu0 0.0
    %4131 = vmatprep.subr.mxu0 0.0
    %4132 = vmatpush1.msra.mxu0 0.0
    %4133 = vmatprep.subr.mxu0 0.0
    %4134 = vmatpush1.msra.mxu0 0.0
    %4135 = vmatprep.subr.mxu0 0.0
    %4136 = vmatpush1.msra.mxu0 0.0
    %4137 = vmatprep.subr.mxu0 0.0
    %4138 = vmatpush1.msra.mxu0 0.0
    %4139 = vmatprep.subr.mxu0 0.0
    %4140 = vmatpush1.msra.mxu0 0.0
    %4141 = vmatprep.subr.mxu0 0.0
    %4142 = vmatpush1.msra.mxu0 0.0
    %4143 = vmatprep.subr.mxu0 0.0
    %4144 = vmatpush1.msra.mxu0 0.0
    %4145 = vmatprep.subr.mxu0 0.0
    %4146 = vmatpush1.msra.mxu0 0.0
    %4147 = vmatprep.subr.mxu0 0.0
    %4148 = vmatpush1.msra.mxu0 0.0
    %4149 = vmatprep.subr.mxu0 0.0
    %4150 = vmatpush1.msra.mxu0 %v220
    %4151 = vmatprep.subr.mxu0 0.0
    %4152 = vmatpush1.msra.mxu0 %v219
    %4153 = vmatprep.subr.mxu0 0.0
    %4154 = vmatpush1.msra.mxu0 %v218
    %4155 = vmatprep.subr.mxu0 0.0
    %4156 = vmatpush1.msra.mxu0 %v217
    %4157 = vmatprep.subr.mxu0 0.0
    %4158 = vmatpush2.msra.mxu0 0.0
    %4159 = vmatprep.subr.mxu0 0.0
    %4160 = vmatpush2.msra.mxu0 0.0
    %4161 = vmatprep.subr.mxu0 0.0
    %4162 = vmatpush2.msra.mxu0 0.0
    %4163 = vmatprep.subr.mxu0 0.0
    %4164 = vmatpush2.msra.mxu0 0.0
    %4165 = vmatprep.subr.mxu0 0.0
    %4166 = vmatpush2.msra.mxu0 0.0
    %4167 = vmatprep.subr.mxu0 0.0
    %4168 = vmatpush2.msra.mxu0 0.0
    %4169 = vmatprep.subr.mxu0 0.0
    %4170 = vmatpush2.msra.mxu0 0.0
    %4171 = vmatprep.subr.mxu0 0.0
    %4172 = vmatpush2.msra.mxu0 0.0
    %4173 = vmatprep.subr.mxu0 0.0
    %4174 = vmatpush2.msra.mxu0 0.0
    %4175 = vmatprep.subr.mxu0 0.0
    %4176 = vmatpush2.msra.mxu0 0.0
    %4177 = vmatprep.subr.mxu0 0.0
    %4178 = vmatpush2.msra.mxu0 0.0
    %4179 = vmatprep.subr.mxu0 0.0
    %4180 = vmatpush2.msra.mxu0 0.0
    %4181 = vmatprep.subr.mxu0 0.0
    %4182 = vmatpush2.msra.mxu0 0.0
    %4183 = vmatprep.subr.mxu0 0.0
    %4184 = vmatpush2.msra.mxu0 0.0
    %4185 = vmatprep.subr.mxu0 0.0
    %4186 = vmatpush2.msra.mxu0 0.0
    %4187 = vmatprep.subr.mxu0 0.0
    %4188 = vmatpush2.msra.mxu0 0.0
    %4189 = vmatprep.mubr.f32.mxu0 0.0
    %4190 = vmatmul.mubr.f32.gmra.mxu0 %v4123
    %v4191 = vpop.f32.mrf.mxu0
    %v4192 = vadd.f32 0.0, %v4191
    %v4193 = vpop.f32.mrf.mxu0
    %4194 = vdwg.mxu0
    %4196 = vrot.lane.b32.xlu0 %v4192, 96
    %v4197 = vpop.permute.xlu0 %4196
    %v4199 = vadd.f32 %v192, %v4197
    %v4200 = vxor.u32 %v4199, 2147483648
    %v4201 = vmul.f32 %v4200, 1.442695
    %v4202 = vpow.pop %v4201
    %v4203 = vadd.f32 %v4202, 1.0
    %v4204 = vrcp.pop %v4203
    %v4205 = vmul.f32 1.0, %v4204
    %4206 = vmatprep.subr.mxu0 0.0
    %4207 = vmatpush1.msra.mxu0 0.0
    %4208 = vmatprep.subr.mxu0 0.0
    %4209 = vmatpush1.msra.mxu0 0.0
    %4210 = vmatprep.subr.mxu0 0.0
    %4211 = vmatpush1.msra.mxu0 0.0
    %4212 = vmatprep.subr.mxu0 0.0
    %4213 = vmatpush1.msra.mxu0 0.0
    %4214 = vmatprep.subr.mxu0 0.0
    %4215 = vmatpush1.msra.mxu0 0.0
    %4216 = vmatprep.subr.mxu0 0.0
    %4217 = vmatpush1.msra.mxu0 0.0
    %4218 = vmatprep.subr.mxu0 0.0
    %4219 = vmatpush1.msra.mxu0 0.0
    %4220 = vmatprep.subr.mxu0 0.0
    %4221 = vmatpush1.msra.mxu0 0.0
    %4222 = vmatprep.subr.mxu0 0.0
    %4223 = vmatpush1.msra.mxu0 0.0
    %4224 = vmatprep.subr.mxu0 0.0
    %4225 = vmatpush1.msra.mxu0 0.0
    %4226 = vmatprep.subr.mxu0 0.0
    %4227 = vmatpush1.msra.mxu0 0.0
    %4228 = vmatprep.subr.mxu0 0.0
    %4229 = vmatpush1.msra.mxu0 0.0
    %4230 = vmatprep.subr.mxu0 0.0
    %4231 = vmatpush1.msra.mxu0 %v225
    %4232 = vmatprep.subr.mxu0 0.0
    %4233 = vmatpush1.msra.mxu0 %v224
    %4234 = vmatprep.subr.mxu0 0.0
    %4235 = vmatpush1.msra.mxu0 %v223
    %4236 = vmatprep.subr.mxu0 0.0
    %4237 = vmatpush1.msra.mxu0 %v222
    %4238 = vmatprep.subr.mxu0 0.0
    %4239 = vmatpush2.msra.mxu0 0.0
    %4240 = vmatprep.subr.mxu0 0.0
    %4241 = vmatpush2.msra.mxu0 0.0
    %4242 = vmatprep.subr.mxu0 0.0
    %4243 = vmatpush2.msra.mxu0 0.0
    %4244 = vmatprep.subr.mxu0 0.0
    %4245 = vmatpush2.msra.mxu0 0.0
    %4246 = vmatprep.subr.mxu0 0.0
    %4247 = vmatpush2.msra.mxu0 0.0
    %4248 = vmatprep.subr.mxu0 0.0
    %4249 = vmatpush2.msra.mxu0 0.0
    %4250 = vmatprep.subr.mxu0 0.0
    %4251 = vmatpush2.msra.mxu0 0.0
    %4252 = vmatprep.subr.mxu0 0.0
    %4253 = vmatpush2.msra.mxu0 0.0
    %4254 = vmatprep.subr.mxu0 0.0
    %4255 = vmatpush2.msra.mxu0 0.0
    %4256 = vmatprep.subr.mxu0 0.0
    %4257 = vmatpush2.msra.mxu0 0.0
    %4258 = vmatprep.subr.mxu0 0.0
    %4259 = vmatpush2.msra.mxu0 0.0
    %4260 = vmatprep.subr.mxu0 0.0
    %4261 = vmatpush2.msra.mxu0 0.0
    %4262 = vmatprep.subr.mxu0 0.0
    %4263 = vmatpush2.msra.mxu0 0.0
    %4264 = vmatprep.subr.mxu0 0.0
    %4265 = vmatpush2.msra.mxu0 0.0
    %4266 = vmatprep.subr.mxu0 0.0
    %4267 = vmatpush2.msra.mxu0 0.0
    %4268 = vmatprep.subr.mxu0 0.0
    %4269 = vmatpush2.msra.mxu0 0.0
    %4270 = vmatprep.mubr.f32.mxu0 0.0
    %4271 = vmatmul.mubr.f32.gmra.mxu0 %v4123
    %v4272 = vpop.f32.mrf.mxu0
    %v4273 = vadd.f32 0.0, %v4272
    %v4274 = vpop.f32.mrf.mxu0
    %4275 = vdwg.mxu0
    %v4276 = vadd.f32 %v194, %v4273
    %v4277 = vxor.u32 %v4276, 2147483648
    %v4278 = vmul.f32 %v4277, 1.442695
    %v4279 = vpow.pop %v4278
    %v4280 = vadd.f32 %v4279, 1.0
    %v4281 = vrcp.pop %v4280
    %v4282 = vmul.f32 1.0, %v4281
    %4283 = vmatprep.subr.mxu0 0.0
    %4284 = vmatpush1.msra.mxu0 0.0
    %4285 = vmatprep.subr.mxu0 0.0
    %4286 = vmatpush1.msra.mxu0 0.0
    %4287 = vmatprep.subr.mxu0 0.0
    %4288 = vmatpush1.msra.mxu0 0.0
    %4289 = vmatprep.subr.mxu0 0.0
    %4290 = vmatpush1.msra.mxu0 0.0
    %4291 = vmatprep.subr.mxu0 0.0
    %4292 = vmatpush1.msra.mxu0 0.0
    %4293 = vmatprep.subr.mxu0 0.0
    %4294 = vmatpush1.msra.mxu0 0.0
    %4295 = vmatprep.subr.mxu0 0.0
    %4296 = vmatpush1.msra.mxu0 0.0
    %4297 = vmatprep.subr.mxu0 0.0
    %4298 = vmatpush1.msra.mxu0 0.0
    %4299 = vmatprep.subr.mxu0 0.0
    %4300 = vmatpush1.msra.mxu0 0.0
    %4301 = vmatprep.subr.mxu0 0.0
    %4302 = vmatpush1.msra.mxu0 0.0
    %4303 = vmatprep.subr.mxu0 0.0
    %4304 = vmatpush1.msra.mxu0 0.0
    %4305 = vmatprep.subr.mxu0 0.0
    %4306 = vmatpush1.msra.mxu0 0.0
    %4307 = vmatprep.subr.mxu0 0.0
    %4308 = vmatpush1.msra.mxu0 %v230
    %4309 = vmatprep.subr.mxu0 0.0
    %4310 = vmatpush1.msra.mxu0 %v229
    %4311 = vmatprep.subr.mxu0 0.0
    %4312 = vmatpush1.msra.mxu0 %v228
    %4313 = vmatprep.subr.mxu0 0.0
    %4314 = vmatpush1.msra.mxu0 %v227
    %4315 = vmatprep.subr.mxu0 0.0
    %4316 = vmatpush2.msra.mxu0 0.0
    %4317 = vmatprep.subr.mxu0 0.0
    %4318 = vmatpush2.msra.mxu0 0.0
    %4319 = vmatprep.subr.mxu0 0.0
    %4320 = vmatpush2.msra.mxu0 0.0
    %4321 = vmatprep.subr.mxu0 0.0
    %4322 = vmatpush2.msra.mxu0 0.0
    %4323 = vmatprep.subr.mxu0 0.0
    %4324 = vmatpush2.msra.mxu0 0.0
    %4325 = vmatprep.subr.mxu0 0.0
    %4326 = vmatpush2.msra.mxu0 0.0
    %4327 = vmatprep.subr.mxu0 0.0
    %4328 = vmatpush2.msra.mxu0 0.0
    %4329 = vmatprep.subr.mxu0 0.0
    %4330 = vmatpush2.msra.mxu0 0.0
    %4331 = vmatprep.subr.mxu0 0.0
    %4332 = vmatpush2.msra.mxu0 0.0
    %4333 = vmatprep.subr.mxu0 0.0
    %4334 = vmatpush2.msra.mxu0 0.0
    %4335 = vmatprep.subr.mxu0 0.0
    %4336 = vmatpush2.msra.mxu0 0.0
    %4337 = vmatprep.subr.mxu0 0.0
    %4338 = vmatpush2.msra.mxu0 0.0
    %4339 = vmatprep.subr.mxu0 0.0
    %4340 = vmatpush2.msra.mxu0 0.0
    %4341 = vmatprep.subr.mxu0 0.0
    %4342 = vmatpush2.msra.mxu0 0.0
    %4343 = vmatprep.subr.mxu0 0.0
    %4344 = vmatpush2.msra.mxu0 0.0
    %4345 = vmatprep.subr.mxu0 0.0
    %4346 = vmatpush2.msra.mxu0 0.0
    %4347 = vmatprep.mubr.f32.mxu0 0.0
    %4348 = vmatmul.mubr.f32.gmra.mxu0 %v4123
    %v4349 = vpop.f32.mrf.mxu0
    %v4350 = vadd.f32 %v658, %v4349
    %v4351 = vpop.f32.mrf.mxu0
    %4352 = vdwg.mxu0
    %4354 = vrot.lane.b32.xlu0 %v4350, 96
    %v4355 = vpop.permute.xlu0 %4354
    %v4357 = vmul.f32 %v4205, %v4355
    %4359 = vrot.lane.b32.xlu0 %v4357, 64
    %v4360 = vpop.permute.xlu0 %4359
    %v4362 = vadd.f32 %v194, %v4360
    %v4363 = vtanh.pop %v4362
    %v4364 = vsub.f32 1.0, %v4282
    %4366 = vrot.lane.b32.xlu0 %v4363, 96
    %v4367 = vpop.permute.xlu0 %4366
    %v4369 = vmul.f32 %v4364, %v4367
    %v4371 = vmul.f32 %v4282, %v4122
    %v4372 = vadd.f32 %v4369, %v4371
    %4373 = vst.msk [vmem:[#allocation3] sm:$0x3] %vm490, %v4372
    %v4374 = vld [vmem:[#allocation7] sm:$0xff]
    %v4375 = vld [vmem:[#allocation7 + $0x8] sm:$0xff]
    %v4376 = vld [vmem:[#allocation7 + $0x10] sm:$0xff]
    %v4377 = vld [vmem:[#allocation7 + $0x18] sm:$0xff]
    %v4378 = vld [vmem:[#allocation7 + $0x20] sm:$0xff]
    %v4379 = vld [vmem:[#allocation7 + $0x28] sm:$0xff]
    %v4380 = vld [vmem:[#allocation7 + $0x30] sm:$0xff]
    %v4381 = vld [vmem:[#allocation7 + $0x38] sm:$0xff]
    %v4382 = vld [vmem:[#allocation7 + $0x40] sm:$0xff]
    %v4383 = vld [vmem:[#allocation7 + $0x48] sm:$0xff]
    %v4384 = vld [vmem:[#allocation7 + $0x50] sm:$0xff]
    %v4385 = vld [vmem:[#allocation7 + $0x58] sm:$0xff]
    %v4386 = vld [vmem:[#allocation7 + $0x60] sm:$0xff]
    %v4387 = vld [vmem:[#allocation7 + $0x68] sm:$0xff]
    %v4388 = vld [vmem:[#allocation7 + $0x70] sm:$0xff]
    %v4389 = vld [vmem:[#allocation7 + $0x78] sm:$0xff]
    %v4390 = vld [vmem:[#allocation2] sm:$0xff]
    %v4391 = vld [vmem:[#allocation2 + $0x8] sm:$0xff]
    %v4392 = vld [vmem:[#allocation3] sm:$0xff]
    %v4393 = vld [vmem:[#allocation3 + $0x8] sm:$0xff]
    %v4395 = vsel %vm118, %v4392, 0
    %v4398 = vsel %vm118, %v4393, 0
    %4400 = vmatprep.subr.mxu0 0.0
    %4401 = vmatpush1.msra.mxu0 0.0
    %4402 = vmatprep.subr.mxu0 0.0
    %4403 = vmatpush1.msra.mxu0 0.0
    %4404 = vmatprep.subr.mxu0 0.0
    %4405 = vmatpush1.msra.mxu0 0.0
    %4406 = vmatprep.subr.mxu0 0.0
    %4407 = vmatpush1.msra.mxu0 0.0
    %4408 = vmatprep.subr.mxu0 0.0
    %4409 = vmatpush1.msra.mxu0 0.0
    %4410 = vmatprep.subr.mxu0 0.0
    %4411 = vmatpush1.msra.mxu0 0.0
    %4412 = vmatprep.subr.mxu0 0.0
    %4413 = vmatpush1.msra.mxu0 0.0
    %4414 = vmatprep.subr.mxu0 0.0
    %4415 = vmatpush1.msra.mxu0 0.0
    %4416 = vmatprep.subr.mxu0 0.0
    %4417 = vmatpush1.msra.mxu0 0.0
    %4418 = vmatprep.subr.mxu0 0.0
    %4419 = vmatpush1.msra.mxu0 0.0
    %4420 = vmatprep.subr.mxu0 0.0
    %4421 = vmatpush1.msra.mxu0 0.0
    %4422 = vmatprep.subr.mxu0 0.0
    %4423 = vmatpush1.msra.mxu0 0.0
    %4424 = vmatprep.subr.mxu0 %v4389
    %4425 = vmatpush1.msra.mxu0 %v4388
    %4426 = vmatprep.subr.mxu0 %v4387
    %4427 = vmatpush1.msra.mxu0 %v4386
    %4428 = vmatprep.subr.mxu0 %v4385
    %4429 = vmatpush1.msra.mxu0 %v4384
    %4430 = vmatprep.subr.mxu0 %v4383
    %4431 = vmatpush1.msra.mxu0 %v4382
    %4432 = vmatprep.subr.mxu0 0.0
    %4433 = vmatpush2.msra.mxu0 0.0
    %4434 = vmatprep.subr.mxu0 0.0
    %4435 = vmatpush2.msra.mxu0 0.0
    %4436 = vmatprep.subr.mxu0 0.0
    %4437 = vmatpush2.msra.mxu0 0.0
    %4438 = vmatprep.subr.mxu0 0.0
    %4439 = vmatpush2.msra.mxu0 0.0
    %4440 = vmatprep.subr.mxu0 0.0
    %4441 = vmatpush2.msra.mxu0 0.0
    %4442 = vmatprep.subr.mxu0 0.0
    %4443 = vmatpush2.msra.mxu0 0.0
    %4444 = vmatprep.subr.mxu0 0.0
    %4445 = vmatpush2.msra.mxu0 0.0
    %4446 = vmatprep.subr.mxu0 0.0
    %4447 = vmatpush2.msra.mxu0 0.0
    %4448 = vmatprep.subr.mxu0 0.0
    %4449 = vmatpush2.msra.mxu0 0.0
    %4450 = vmatprep.subr.mxu0 0.0
    %4451 = vmatpush2.msra.mxu0 0.0
    %4452 = vmatprep.subr.mxu0 0.0
    %4453 = vmatpush2.msra.mxu0 0.0
    %4454 = vmatprep.subr.mxu0 0.0
    %4455 = vmatpush2.msra.mxu0 0.0
    %4456 = vmatprep.subr.mxu0 0.0
    %4457 = vmatpush2.msra.mxu0 0.0
    %4458 = vmatprep.subr.mxu0 0.0
    %4459 = vmatpush2.msra.mxu0 0.0
    %4460 = vmatprep.subr.mxu0 0.0
    %4461 = vmatpush2.msra.mxu0 0.0
    %4462 = vmatprep.subr.mxu0 0.0
    %4463 = vmatpush2.msra.mxu0 0.0
    %4464 = vmatprep.mubr.f32.mxu0 0.0
    %4465 = vmatmul.mubr.f32.gmra.mxu0 %v4395
    %v4466 = vpop.f32.mrf.mxu0
    %v4467 = vadd.f32 0.0, %v4466
    %v4468 = vpop.f32.mrf.mxu0
    %4469 = vmatprep.mubr.f32.mxu0 0.0
    %4470 = vmatmul.mubr.f32.gmra.mxu0 %v4398
    %v4471 = vpop.f32.mrf.mxu0
    %v4472 = vadd.f32 0.0, %v4471
    %v4473 = vpop.f32.mrf.mxu0
    %v4474 = vadd.f32 0.0, %v4473
    %4475 = vdwg.mxu0
    %v4477 = vsel %vm118, %v4390, 0
    %v4480 = vsel %vm118, %v4391, 0
    %4482 = vmatprep.subr.mxu0 0.0
    %4483 = vmatpush1.msra.mxu0 0.0
    %4484 = vmatprep.subr.mxu0 0.0
    %4485 = vmatpush1.msra.mxu0 0.0
    %4486 = vmatprep.subr.mxu0 0.0
    %4487 = vmatpush1.msra.mxu0 0.0
    %4488 = vmatprep.subr.mxu0 0.0
    %4489 = vmatpush1.msra.mxu0 0.0
    %4490 = vmatprep.subr.mxu0 0.0
    %4491 = vmatpush1.msra.mxu0 0.0
    %4492 = vmatprep.subr.mxu0 0.0
    %4493 = vmatpush1.msra.mxu0 0.0
    %4494 = vmatprep.subr.mxu0 0.0
    %4495 = vmatpush1.msra.mxu0 0.0
    %4496 = vmatprep.subr.mxu0 0.0
    %4497 = vmatpush1.msra.mxu0 0.0
    %4498 = vmatprep.subr.mxu0 0.0
    %4499 = vmatpush1.msra.mxu0 0.0
    %4500 = vmatprep.subr.mxu0 0.0
    %4501 = vmatpush1.msra.mxu0 0.0
    %4502 = vmatprep.subr.mxu0 0.0
    %4503 = vmatpush1.msra.mxu0 0.0
    %4504 = vmatprep.subr.mxu0 0.0
    %4505 = vmatpush1.msra.mxu0 0.0
    %4506 = vmatprep.subr.mxu0 %v4381
    %4507 = vmatpush1.msra.mxu0 %v4380
    %4508 = vmatprep.subr.mxu0 %v4379
    %4509 = vmatpush1.msra.mxu0 %v4378
    %4510 = vmatprep.subr.mxu0 %v4377
    %4511 = vmatpush1.msra.mxu0 %v4376
    %4512 = vmatprep.subr.mxu0 %v4375
    %4513 = vmatpush1.msra.mxu0 %v4374
    %4514 = vmatprep.subr.mxu0 0.0
    %4515 = vmatpush2.msra.mxu0 0.0
    %4516 = vmatprep.subr.mxu0 0.0
    %4517 = vmatpush2.msra.mxu0 0.0
    %4518 = vmatprep.subr.mxu0 0.0
    %4519 = vmatpush2.msra.mxu0 0.0
    %4520 = vmatprep.subr.mxu0 0.0
    %4521 = vmatpush2.msra.mxu0 0.0
    %4522 = vmatprep.subr.mxu0 0.0
    %4523 = vmatpush2.msra.mxu0 0.0
    %4524 = vmatprep.subr.mxu0 0.0
    %4525 = vmatpush2.msra.mxu0 0.0
    %4526 = vmatprep.subr.mxu0 0.0
    %4527 = vmatpush2.msra.mxu0 0.0
    %4528 = vmatprep.subr.mxu0 0.0
    %4529 = vmatpush2.msra.mxu0 0.0
    %4530 = vmatprep.subr.mxu0 0.0
    %4531 = vmatpush2.msra.mxu0 0.0
    %4532 = vmatprep.subr.mxu0 0.0
    %4533 = vmatpush2.msra.mxu0 0.0
    %4534 = vmatprep.subr.mxu0 0.0
    %4535 = vmatpush2.msra.mxu0 0.0
    %4536 = vmatprep.subr.mxu0 0.0
    %4537 = vmatpush2.msra.mxu0 0.0
    %4538 = vmatprep.subr.mxu0 0.0
    %4539 = vmatpush2.msra.mxu0 0.0
    %4540 = vmatprep.subr.mxu0 0.0
    %4541 = vmatpush2.msra.mxu0 0.0
    %4542 = vmatprep.subr.mxu0 0.0
    %4543 = vmatpush2.msra.mxu0 0.0
    %4544 = vmatprep.subr.mxu0 0.0
    %4545 = vmatpush2.msra.mxu0 0.0
    %4546 = vmatprep.mubr.f32.mxu0 0.0
    %4547 = vmatmul.mubr.f32.gmra.mxu0 %v4477
    %v4548 = vpop.f32.mrf.mxu0
    %v4549 = vadd.f32 %v4467, %v4548
    %v4550 = vpop.f32.mrf.mxu0
    %4551 = vmatprep.mubr.f32.mxu0 0.0
    %4552 = vmatmul.mubr.f32.gmra.mxu0 %v4480
    %v4553 = vpop.f32.mrf.mxu0
    %v4554 = vadd.f32 %v4472, %v4553
    %v4555 = vpop.f32.mrf.mxu0
    %v4556 = vadd.f32 %v4474, %v4555
    %4557 = vdwg.mxu0
    %v4558 = vld [vmem:[%s6] sm:$0x3]
    %v4560 = vlaneseq
    %v4561 = vshrl.u32 %v4560, 7
    %v4562 = vsub.s32 0, %v4561
    %v4563 = vrot.slane %v4558, %v4562
    %v4564 = vlaneseq
    %v4565 = vshrl.u32 %v4564, 7
    %v4566 = vsub.s32 1, %v4565
    %v4567 = vrot.slane %v4558, %v4566
    %v4570 = vadd.f32 %v4549, %v4563
    %v4571 = vadd.f32 %v4554, %v4563
    %v4572 = vadd.f32 %v4556, %v4567
    %v4573 = vld [vmem:[%s7] sm:$0xff]
    %v4574 = vld [vmem:[%s7 + $0x8] sm:$0xff]
    %v4575 = vld [vmem:[%s7 + $0x10] sm:$0xff]
    %v4576 = vld [vmem:[%s7 + $0x18] sm:$0xff]
    %s4577 = scalar_lea.vmem %s7, 32
    %v4578 = vld [vmem:[%s4577] sm:$0xff]
    %v4579 = vld [vmem:[%s4577 + $0x8] sm:$0xff]
    %v4580 = vld [vmem:[%s4577 + $0x10] sm:$0xff]
    %v4581 = vld [vmem:[%s4577 + $0x18] sm:$0xff]
    %s4582 = scalar_lea.vmem %s7, 64
    %v4583 = vld [vmem:[%s4582] sm:$0xff]
    %v4584 = vld [vmem:[%s4582 + $0x8] sm:$0xff]
    %v4585 = vld [vmem:[%s4582 + $0x10] sm:$0xff]
    %v4586 = vld [vmem:[%s4582 + $0x18] sm:$0xff]
    %s4587 = scalar_lea.vmem %s7, 96
    %v4588 = vld [vmem:[%s4587] sm:$0xff]
    %v4589 = vld [vmem:[%s4587 + $0x8] sm:$0xff]
    %v4590 = vld [vmem:[%s4587 + $0x10] sm:$0xff]
    %v4591 = vld [vmem:[%s4587 + $0x18] sm:$0xff]
    %s4592 = scalar_lea.vmem %s7, 128
    %v4593 = vld [vmem:[%s4592] sm:$0xff]
    %v4594 = vld [vmem:[%s4592 + $0x8] sm:$0xff]
    %v4595 = vld [vmem:[%s4592 + $0x10] sm:$0xff]
    %v4596 = vld [vmem:[%s4592 + $0x18] sm:$0xff]
    %s4597 = scalar_lea.vmem %s7, 160
    %v4598 = vld [vmem:[%s4597] sm:$0xff]
    %v4599 = vld [vmem:[%s4597 + $0x8] sm:$0xff]
    %v4600 = vld [vmem:[%s4597 + $0x10] sm:$0xff]
    %v4601 = vld [vmem:[%s4597 + $0x18] sm:$0xff]
    %v4602 = vld [vmem:[%s8] sm:$0x1]
    %s4603 = scalar_lea.vmem %s8, 1
    %v4604 = vld [vmem:[%s4603] sm:$0x1]
    %4605 = vmatprep.subr.mxu0 0.0
    %4606 = vmatpush1.msra.mxu0 0.0
    %4607 = vmatprep.subr.mxu0 0.0
    %4608 = vmatpush1.msra.mxu0 0.0
    %4609 = vmatprep.subr.mxu0 0.0
    %4610 = vmatpush1.msra.mxu0 0.0
    %4611 = vmatprep.subr.mxu0 0.0
    %4612 = vmatpush1.msra.mxu0 0.0
    %4613 = vmatprep.subr.mxu0 0.0
    %4614 = vmatpush1.msra.mxu0 0.0
    %4615 = vmatprep.subr.mxu0 0.0
    %4616 = vmatpush1.msra.mxu0 0.0
    %4617 = vmatprep.subr.mxu0 0.0
    %4618 = vmatpush1.msra.mxu0 0.0
    %4619 = vmatprep.subr.mxu0 0.0
    %4620 = vmatpush1.msra.mxu0 0.0
    %4621 = vmatprep.subr.mxu0 0.0
    %4622 = vmatpush1.msra.mxu0 0.0
    %4623 = vmatprep.subr.mxu0 0.0
    %4624 = vmatpush1.msra.mxu0 0.0
    %4625 = vmatprep.subr.mxu0 0.0
    %4626 = vmatpush1.msra.mxu0 0.0
    %4627 = vmatprep.subr.mxu0 0.0
    %4628 = vmatpush1.msra.mxu0 0.0
    %4629 = vmatprep.subr.mxu0 0.0
    %4630 = vmatpush1.msra.mxu0 %v4576
    %4631 = vmatprep.subr.mxu0 0.0
    %4632 = vmatpush1.msra.mxu0 %v4575
    %4633 = vmatprep.subr.mxu0 0.0
    %4634 = vmatpush1.msra.mxu0 %v4574
    %4635 = vmatprep.subr.mxu0 0.0
    %4636 = vmatpush1.msra.mxu0 %v4573
    %4637 = vmatprep.subr.mxu0 0.0
    %4638 = vmatpush2.msra.mxu0 0.0
    %4639 = vmatprep.subr.mxu0 0.0
    %4640 = vmatpush2.msra.mxu0 0.0
    %4641 = vmatprep.subr.mxu0 0.0
    %4642 = vmatpush2.msra.mxu0 0.0
    %4643 = vmatprep.subr.mxu0 0.0
    %4644 = vmatpush2.msra.mxu0 0.0
    %4645 = vmatprep.subr.mxu0 0.0
    %4646 = vmatpush2.msra.mxu0 0.0
    %4647 = vmatprep.subr.mxu0 0.0
    %4648 = vmatpush2.msra.mxu0 0.0
    %4649 = vmatprep.subr.mxu0 0.0
    %4650 = vmatpush2.msra.mxu0 0.0
    %4651 = vmatprep.subr.mxu0 0.0
    %4652 = vmatpush2.msra.mxu0 0.0
    %4653 = vmatprep.subr.mxu0 0.0
    %4654 = vmatpush2.msra.mxu0 0.0
    %4655 = vmatprep.subr.mxu0 0.0
    %4656 = vmatpush2.msra.mxu0 0.0
    %4657 = vmatprep.subr.mxu0 0.0
    %4658 = vmatpush2.msra.mxu0 0.0
    %4659 = vmatprep.subr.mxu0 0.0
    %4660 = vmatpush2.msra.mxu0 0.0
    %4661 = vmatprep.subr.mxu0 0.0
    %4662 = vmatpush2.msra.mxu0 0.0
    %4663 = vmatprep.subr.mxu0 0.0
    %4664 = vmatpush2.msra.mxu0 0.0
    %4665 = vmatprep.subr.mxu0 0.0
    %4666 = vmatpush2.msra.mxu0 0.0
    %4667 = vmatprep.subr.mxu0 0.0
    %4668 = vmatpush2.msra.mxu0 0.0
    %4669 = vmatprep.mubr.f32.mxu0 0.0
    %4670 = vmatmul.mubr.f32.gmra.mxu0 %v235
    %v4671 = vpop.f32.mrf.mxu0
    %v4672 = vadd.f32 0.0, %v4671
    %v4673 = vpop.f32.mrf.mxu0
    %4674 = vdwg.mxu0
    %v4675 = vadd.f32 %v4570, %v4672
    %v4676 = vxor.u32 %v4675, 2147483648
    %v4677 = vmul.f32 %v4676, 1.442695
    %v4678 = vpow.pop %v4677
    %v4679 = vadd.f32 %v4678, 1.0
    %v4680 = vrcp.pop %v4679
    %v4681 = vmul.f32 1.0, %v4680
    %4682 = vmatprep.subr.mxu0 0.0
    %4683 = vmatpush1.msra.mxu0 0.0
    %4684 = vmatprep.subr.mxu0 0.0
    %4685 = vmatpush1.msra.mxu0 0.0
    %4686 = vmatprep.subr.mxu0 0.0
    %4687 = vmatpush1.msra.mxu0 0.0
    %4688 = vmatprep.subr.mxu0 0.0
    %4689 = vmatpush1.msra.mxu0 0.0
    %4690 = vmatprep.subr.mxu0 0.0
    %4691 = vmatpush1.msra.mxu0 0.0
    %4692 = vmatprep.subr.mxu0 0.0
    %4693 = vmatpush1.msra.mxu0 0.0
    %4694 = vmatprep.subr.mxu0 0.0
    %4695 = vmatpush1.msra.mxu0 0.0
    %4696 = vmatprep.subr.mxu0 0.0
    %4697 = vmatpush1.msra.mxu0 0.0
    %4698 = vmatprep.subr.mxu0 0.0
    %4699 = vmatpush1.msra.mxu0 0.0
    %4700 = vmatprep.subr.mxu0 0.0
    %4701 = vmatpush1.msra.mxu0 0.0
    %4702 = vmatprep.subr.mxu0 0.0
    %4703 = vmatpush1.msra.mxu0 0.0
    %4704 = vmatprep.subr.mxu0 0.0
    %4705 = vmatpush1.msra.mxu0 0.0
    %4706 = vmatprep.subr.mxu0 0.0
    %4707 = vmatpush1.msra.mxu0 %v4581
    %4708 = vmatprep.subr.mxu0 0.0
    %4709 = vmatpush1.msra.mxu0 %v4580
    %4710 = vmatprep.subr.mxu0 0.0
    %4711 = vmatpush1.msra.mxu0 %v4579
    %4712 = vmatprep.subr.mxu0 0.0
    %4713 = vmatpush1.msra.mxu0 %v4578
    %4714 = vmatprep.subr.mxu0 0.0
    %4715 = vmatpush2.msra.mxu0 0.0
    %4716 = vmatprep.subr.mxu0 0.0
    %4717 = vmatpush2.msra.mxu0 0.0
    %4718 = vmatprep.subr.mxu0 0.0
    %4719 = vmatpush2.msra.mxu0 0.0
    %4720 = vmatprep.subr.mxu0 0.0
    %4721 = vmatpush2.msra.mxu0 0.0
    %4722 = vmatprep.subr.mxu0 0.0
    %4723 = vmatpush2.msra.mxu0 0.0
    %4724 = vmatprep.subr.mxu0 0.0
    %4725 = vmatpush2.msra.mxu0 0.0
    %4726 = vmatprep.subr.mxu0 0.0
    %4727 = vmatpush2.msra.mxu0 0.0
    %4728 = vmatprep.subr.mxu0 0.0
    %4729 = vmatpush2.msra.mxu0 0.0
    %4730 = vmatprep.subr.mxu0 0.0
    %4731 = vmatpush2.msra.mxu0 0.0
    %4732 = vmatprep.subr.mxu0 0.0
    %4733 = vmatpush2.msra.mxu0 0.0
    %4734 = vmatprep.subr.mxu0 0.0
    %4735 = vmatpush2.msra.mxu0 0.0
    %4736 = vmatprep.subr.mxu0 0.0
    %4737 = vmatpush2.msra.mxu0 0.0
    %4738 = vmatprep.subr.mxu0 0.0
    %4739 = vmatpush2.msra.mxu0 0.0
    %4740 = vmatprep.subr.mxu0 0.0
    %4741 = vmatpush2.msra.mxu0 0.0
    %4742 = vmatprep.subr.mxu0 0.0
    %4743 = vmatpush2.msra.mxu0 0.0
    %4744 = vmatprep.subr.mxu0 0.0
    %4745 = vmatpush2.msra.mxu0 0.0
    %4746 = vmatprep.mubr.f32.mxu0 0.0
    %4747 = vmatmul.mubr.f32.gmra.mxu0 %v235
    %v4748 = vpop.f32.mrf.mxu0
    %v4749 = vadd.f32 0.0, %v4748
    %v4750 = vpop.f32.mrf.mxu0
    %4751 = vdwg.mxu0
    %4753 = vrot.lane.b32.xlu0 %v4749, 32
    %v4754 = vpop.permute.xlu0 %4753
    %v4756 = vadd.f32 %v4570, %v4754
    %v4757 = vxor.u32 %v4756, 2147483648
    %v4758 = vmul.f32 %v4757, 1.442695
    %v4759 = vpow.pop %v4758
    %v4760 = vadd.f32 %v4759, 1.0
    %v4761 = vrcp.pop %v4760
    %v4762 = vmul.f32 1.0, %v4761
    %v4764 = vlaneseq
    %v4765 = vshrl.u32 %v4764, 7
    %v4766 = vsub.s32 0, %v4765
    %v4767 = vrot.slane %v4602, %v4766
    %4769 = vmatprep.subr.mxu0 0.0
    %4770 = vmatpush1.msra.mxu0 0.0
    %4771 = vmatprep.subr.mxu0 0.0
    %4772 = vmatpush1.msra.mxu0 0.0
    %4773 = vmatprep.subr.mxu0 0.0
    %4774 = vmatpush1.msra.mxu0 0.0
    %4775 = vmatprep.subr.mxu0 0.0
    %4776 = vmatpush1.msra.mxu0 0.0
    %4777 = vmatprep.subr.mxu0 0.0
    %4778 = vmatpush1.msra.mxu0 0.0
    %4779 = vmatprep.subr.mxu0 0.0
    %4780 = vmatpush1.msra.mxu0 0.0
    %4781 = vmatprep.subr.mxu0 0.0
    %4782 = vmatpush1.msra.mxu0 0.0
    %4783 = vmatprep.subr.mxu0 0.0
    %4784 = vmatpush1.msra.mxu0 0.0
    %4785 = vmatprep.subr.mxu0 0.0
    %4786 = vmatpush1.msra.mxu0 0.0
    %4787 = vmatprep.subr.mxu0 0.0
    %4788 = vmatpush1.msra.mxu0 0.0
    %4789 = vmatprep.subr.mxu0 0.0
    %4790 = vmatpush1.msra.mxu0 0.0
    %4791 = vmatprep.subr.mxu0 0.0
    %4792 = vmatpush1.msra.mxu0 0.0
    %4793 = vmatprep.subr.mxu0 0.0
    %4794 = vmatpush1.msra.mxu0 %v4586
    %4795 = vmatprep.subr.mxu0 0.0
    %4796 = vmatpush1.msra.mxu0 %v4585
    %4797 = vmatprep.subr.mxu0 0.0
    %4798 = vmatpush1.msra.mxu0 %v4584
    %4799 = vmatprep.subr.mxu0 0.0
    %4800 = vmatpush1.msra.mxu0 %v4583
    %4801 = vmatprep.subr.mxu0 0.0
    %4802 = vmatpush2.msra.mxu0 0.0
    %4803 = vmatprep.subr.mxu0 0.0
    %4804 = vmatpush2.msra.mxu0 0.0
    %4805 = vmatprep.subr.mxu0 0.0
    %4806 = vmatpush2.msra.mxu0 0.0
    %4807 = vmatprep.subr.mxu0 0.0
    %4808 = vmatpush2.msra.mxu0 0.0
    %4809 = vmatprep.subr.mxu0 0.0
    %4810 = vmatpush2.msra.mxu0 0.0
    %4811 = vmatprep.subr.mxu0 0.0
    %4812 = vmatpush2.msra.mxu0 0.0
    %4813 = vmatprep.subr.mxu0 0.0
    %4814 = vmatpush2.msra.mxu0 0.0
    %4815 = vmatprep.subr.mxu0 0.0
    %4816 = vmatpush2.msra.mxu0 0.0
    %4817 = vmatprep.subr.mxu0 0.0
    %4818 = vmatpush2.msra.mxu0 0.0
    %4819 = vmatprep.subr.mxu0 0.0
    %4820 = vmatpush2.msra.mxu0 0.0
    %4821 = vmatprep.subr.mxu0 0.0
    %4822 = vmatpush2.msra.mxu0 0.0
    %4823 = vmatprep.subr.mxu0 0.0
    %4824 = vmatpush2.msra.mxu0 0.0
    %4825 = vmatprep.subr.mxu0 0.0
    %4826 = vmatpush2.msra.mxu0 0.0
    %4827 = vmatprep.subr.mxu0 0.0
    %4828 = vmatpush2.msra.mxu0 0.0
    %4829 = vmatprep.subr.mxu0 0.0
    %4830 = vmatpush2.msra.mxu0 0.0
    %4831 = vmatprep.subr.mxu0 0.0
    %4832 = vmatpush2.msra.mxu0 0.0
    %4833 = vmatprep.mubr.f32.mxu0 0.0
    %4834 = vmatmul.mubr.f32.gmra.mxu0 %v235
    %v4835 = vpop.f32.mrf.mxu0
    %v4836 = vadd.f32 %v4767, %v4835
    %v4837 = vpop.f32.mrf.mxu0
    %4838 = vdwg.mxu0
    %v4839 = vmul.f32 %v4681, %v4836
    %4841 = vrot.lane.b32.xlu0 %v4839, 64
    %v4842 = vpop.permute.xlu0 %4841
    %v4844 = vadd.f32 %v4570, %v4842
    %v4845 = vtanh.pop %v4844
    %v4846 = vsub.f32 1.0, %v4762
    %4848 = vrot.lane.b32.xlu0 %v4845, 96
    %v4849 = vpop.permute.xlu0 %4848
    %v4851 = vmul.f32 %v4846, %v4849
    %v4852 = vmul.f32 %v4762, 0.0
    %v4853 = vadd.f32 %v4851, %v4852
    %4854 = vmatprep.subr.mxu0 0.0
    %4855 = vmatpush1.msra.mxu0 0.0
    %4856 = vmatprep.subr.mxu0 0.0
    %4857 = vmatpush1.msra.mxu0 0.0
    %4858 = vmatprep.subr.mxu0 0.0
    %4859 = vmatpush1.msra.mxu0 0.0
    %4860 = vmatprep.subr.mxu0 0.0
    %4861 = vmatpush1.msra.mxu0 0.0
    %4862 = vmatprep.subr.mxu0 0.0
    %4863 = vmatpush1.msra.mxu0 0.0
    %4864 = vmatprep.subr.mxu0 0.0
    %4865 = vmatpush1.msra.mxu0 0.0
    %4866 = vmatprep.subr.mxu0 0.0
    %4867 = vmatpush1.msra.mxu0 0.0
    %4868 = vmatprep.subr.mxu0 0.0
    %4869 = vmatpush1.msra.mxu0 0.0
    %4870 = vmatprep.subr.mxu0 0.0
    %4871 = vmatpush1.msra.mxu0 0.0
    %4872 = vmatprep.subr.mxu0 0.0
    %4873 = vmatpush1.msra.mxu0 0.0
    %4874 = vmatprep.subr.mxu0 0.0
    %4875 = vmatpush1.msra.mxu0 0.0
    %4876 = vmatprep.subr.mxu0 0.0
    %4877 = vmatpush1.msra.mxu0 0.0
    %4878 = vmatprep.subr.mxu0 0.0
    %4879 = vmatpush1.msra.mxu0 %v4591
    %4880 = vmatprep.subr.mxu0 0.0
    %4881 = vmatpush1.msra.mxu0 %v4590
    %4882 = vmatprep.subr.mxu0 0.0
    %4883 = vmatpush1.msra.mxu0 %v4589
    %4884 = vmatprep.subr.mxu0 0.0
    %4885 = vmatpush1.msra.mxu0 %v4588
    %4886 = vmatprep.subr.mxu0 0.0
    %4887 = vmatpush2.msra.mxu0 0.0
    %4888 = vmatprep.subr.mxu0 0.0
    %4889 = vmatpush2.msra.mxu0 0.0
    %4890 = vmatprep.subr.mxu0 0.0
    %4891 = vmatpush2.msra.mxu0 0.0
    %4892 = vmatprep.subr.mxu0 0.0
    %4893 = vmatpush2.msra.mxu0 0.0
    %4894 = vmatprep.subr.mxu0 0.0
    %4895 = vmatpush2.msra.mxu0 0.0
    %4896 = vmatprep.subr.mxu0 0.0
    %4897 = vmatpush2.msra.mxu0 0.0
    %4898 = vmatprep.subr.mxu0 0.0
    %4899 = vmatpush2.msra.mxu0 0.0
    %4900 = vmatprep.subr.mxu0 0.0
    %4901 = vmatpush2.msra.mxu0 0.0
    %4902 = vmatprep.subr.mxu0 0.0
    %4903 = vmatpush2.msra.mxu0 0.0
    %4904 = vmatprep.subr.mxu0 0.0
    %4905 = vmatpush2.msra.mxu0 0.0
    %4906 = vmatprep.subr.mxu0 0.0
    %4907 = vmatpush2.msra.mxu0 0.0
    %4908 = vmatprep.subr.mxu0 0.0
    %4909 = vmatpush2.msra.mxu0 0.0
    %4910 = vmatprep.subr.mxu0 0.0
    %4911 = vmatpush2.msra.mxu0 0.0
    %4912 = vmatprep.subr.mxu0 0.0
    %4913 = vmatpush2.msra.mxu0 0.0
    %4914 = vmatprep.subr.mxu0 0.0
    %4915 = vmatpush2.msra.mxu0 0.0
    %4916 = vmatprep.subr.mxu0 0.0
    %4917 = vmatpush2.msra.mxu0 0.0
    %4918 = vmatprep.mubr.f32.mxu0 0.0
    %4919 = vmatmul.mubr.f32.gmra.mxu0 %v235
    %v4920 = vpop.f32.mrf.mxu0
    %v4921 = vadd.f32 0.0, %v4920
    %v4922 = vpop.f32.mrf.mxu0
    %4923 = vdwg.mxu0
    %v4925 = vrot.slane %v4921, 2
    %4926 = vrot.lane.b32.xlu0 %v4925, 96
    %v4927 = vpop.permute.xlu0 %4926
    %v4929 = vadd.f32 %v4571, %v4927
    %v4930 = vxor.u32 %v4929, 2147483648
    %v4931 = vmul.f32 %v4930, 1.442695
    %v4932 = vpow.pop %v4931
    %v4933 = vadd.f32 %v4932, 1.0
    %v4934 = vrcp.pop %v4933
    %v4935 = vmul.f32 1.0, %v4934
    %4936 = vmatprep.subr.mxu0 0.0
    %4937 = vmatpush1.msra.mxu0 0.0
    %4938 = vmatprep.subr.mxu0 0.0
    %4939 = vmatpush1.msra.mxu0 0.0
    %4940 = vmatprep.subr.mxu0 0.0
    %4941 = vmatpush1.msra.mxu0 0.0
    %4942 = vmatprep.subr.mxu0 0.0
    %4943 = vmatpush1.msra.mxu0 0.0
    %4944 = vmatprep.subr.mxu0 0.0
    %4945 = vmatpush1.msra.mxu0 0.0
    %4946 = vmatprep.subr.mxu0 0.0
    %4947 = vmatpush1.msra.mxu0 0.0
    %4948 = vmatprep.subr.mxu0 0.0
    %4949 = vmatpush1.msra.mxu0 0.0
    %4950 = vmatprep.subr.mxu0 0.0
    %4951 = vmatpush1.msra.mxu0 0.0
    %4952 = vmatprep.subr.mxu0 0.0
    %4953 = vmatpush1.msra.mxu0 0.0
    %4954 = vmatprep.subr.mxu0 0.0
    %4955 = vmatpush1.msra.mxu0 0.0
    %4956 = vmatprep.subr.mxu0 0.0
    %4957 = vmatpush1.msra.mxu0 0.0
    %4958 = vmatprep.subr.mxu0 0.0
    %4959 = vmatpush1.msra.mxu0 0.0
    %4960 = vmatprep.subr.mxu0 0.0
    %4961 = vmatpush1.msra.mxu0 %v4596
    %4962 = vmatprep.subr.mxu0 0.0
    %4963 = vmatpush1.msra.mxu0 %v4595
    %4964 = vmatprep.subr.mxu0 0.0
    %4965 = vmatpush1.msra.mxu0 %v4594
    %4966 = vmatprep.subr.mxu0 0.0
    %4967 = vmatpush1.msra.mxu0 %v4593
    %4968 = vmatprep.subr.mxu0 0.0
    %4969 = vmatpush2.msra.mxu0 0.0
    %4970 = vmatprep.subr.mxu0 0.0
    %4971 = vmatpush2.msra.mxu0 0.0
    %4972 = vmatprep.subr.mxu0 0.0
    %4973 = vmatpush2.msra.mxu0 0.0
    %4974 = vmatprep.subr.mxu0 0.0
    %4975 = vmatpush2.msra.mxu0 0.0
    %4976 = vmatprep.subr.mxu0 0.0
    %4977 = vmatpush2.msra.mxu0 0.0
    %4978 = vmatprep.subr.mxu0 0.0
    %4979 = vmatpush2.msra.mxu0 0.0
    %4980 = vmatprep.subr.mxu0 0.0
    %4981 = vmatpush2.msra.mxu0 0.0
    %4982 = vmatprep.subr.mxu0 0.0
    %4983 = vmatpush2.msra.mxu0 0.0
    %4984 = vmatprep.subr.mxu0 0.0
    %4985 = vmatpush2.msra.mxu0 0.0
    %4986 = vmatprep.subr.mxu0 0.0
    %4987 = vmatpush2.msra.mxu0 0.0
    %4988 = vmatprep.subr.mxu0 0.0
    %4989 = vmatpush2.msra.mxu0 0.0
    %4990 = vmatprep.subr.mxu0 0.0
    %4991 = vmatpush2.msra.mxu0 0.0
    %4992 = vmatprep.subr.mxu0 0.0
    %4993 = vmatpush2.msra.mxu0 0.0
    %4994 = vmatprep.subr.mxu0 0.0
    %4995 = vmatpush2.msra.mxu0 0.0
    %4996 = vmatprep.subr.mxu0 0.0
    %4997 = vmatpush2.msra.mxu0 0.0
    %4998 = vmatprep.subr.mxu0 0.0
    %4999 = vmatpush2.msra.mxu0 0.0
    %5000 = vmatprep.mubr.f32.mxu0 0.0
    %5001 = vmatmul.mubr.f32.gmra.mxu0 %v235
    %v5002 = vpop.f32.mrf.mxu0
    %v5003 = vadd.f32 0.0, %v5002
    %v5004 = vpop.f32.mrf.mxu0
    %5005 = vdwg.mxu0
    %v5007 = vrot.slane %v5003, 2
    %v5009 = vadd.f32 %v4572, %v5007
    %v5010 = vxor.u32 %v5009, 2147483648
    %v5011 = vmul.f32 %v5010, 1.442695
    %v5012 = vpow.pop %v5011
    %v5013 = vadd.f32 %v5012, 1.0
    %v5014 = vrcp.pop %v5013
    %v5015 = vmul.f32 1.0, %v5014
    %v5017 = vlaneseq
    %v5018 = vshrl.u32 %v5017, 7
    %v5019 = vsub.s32 0, %v5018
    %v5020 = vrot.slane %v4604, %v5019
    %5022 = vmatprep.subr.mxu0 0.0
    %5023 = vmatpush1.msra.mxu0 0.0
    %5024 = vmatprep.subr.mxu0 0.0
    %5025 = vmatpush1.msra.mxu0 0.0
    %5026 = vmatprep.subr.mxu0 0.0
    %5027 = vmatpush1.msra.mxu0 0.0
    %5028 = vmatprep.subr.mxu0 0.0
    %5029 = vmatpush1.msra.mxu0 0.0
    %5030 = vmatprep.subr.mxu0 0.0
    %5031 = vmatpush1.msra.mxu0 0.0
    %5032 = vmatprep.subr.mxu0 0.0
    %5033 = vmatpush1.msra.mxu0 0.0
    %5034 = vmatprep.subr.mxu0 0.0
    %5035 = vmatpush1.msra.mxu0 0.0
    %5036 = vmatprep.subr.mxu0 0.0
    %5037 = vmatpush1.msra.mxu0 0.0
    %5038 = vmatprep.subr.mxu0 0.0
    %5039 = vmatpush1.msra.mxu0 0.0
    %5040 = vmatprep.subr.mxu0 0.0
    %5041 = vmatpush1.msra.mxu0 0.0
    %5042 = vmatprep.subr.mxu0 0.0
    %5043 = vmatpush1.msra.mxu0 0.0
    %5044 = vmatprep.subr.mxu0 0.0
    %5045 = vmatpush1.msra.mxu0 0.0
    %5046 = vmatprep.subr.mxu0 0.0
    %5047 = vmatpush1.msra.mxu0 %v4601
    %5048 = vmatprep.subr.mxu0 0.0
    %5049 = vmatpush1.msra.mxu0 %v4600
    %5050 = vmatprep.subr.mxu0 0.0
    %5051 = vmatpush1.msra.mxu0 %v4599
    %5052 = vmatprep.subr.mxu0 0.0
    %5053 = vmatpush1.msra.mxu0 %v4598
    %5054 = vmatprep.subr.mxu0 0.0
    %5055 = vmatpush2.msra.mxu0 0.0
    %5056 = vmatprep.subr.mxu0 0.0
    %5057 = vmatpush2.msra.mxu0 0.0
    %5058 = vmatprep.subr.mxu0 0.0
    %5059 = vmatpush2.msra.mxu0 0.0
    %5060 = vmatprep.subr.mxu0 0.0
    %5061 = vmatpush2.msra.mxu0 0.0
    %5062 = vmatprep.subr.mxu0 0.0
    %5063 = vmatpush2.msra.mxu0 0.0
    %5064 = vmatprep.subr.mxu0 0.0
    %5065 = vmatpush2.msra.mxu0 0.0
    %5066 = vmatprep.subr.mxu0 0.0
    %5067 = vmatpush2.msra.mxu0 0.0
    %5068 = vmatprep.subr.mxu0 0.0
    %5069 = vmatpush2.msra.mxu0 0.0
    %5070 = vmatprep.subr.mxu0 0.0
    %5071 = vmatpush2.msra.mxu0 0.0
    %5072 = vmatprep.subr.mxu0 0.0
    %5073 = vmatpush2.msra.mxu0 0.0
    %5074 = vmatprep.subr.mxu0 0.0
    %5075 = vmatpush2.msra.mxu0 0.0
    %5076 = vmatprep.subr.mxu0 0.0
    %5077 = vmatpush2.msra.mxu0 0.0
    %5078 = vmatprep.subr.mxu0 0.0
    %5079 = vmatpush2.msra.mxu0 0.0
    %5080 = vmatprep.subr.mxu0 0.0
    %5081 = vmatpush2.msra.mxu0 0.0
    %5082 = vmatprep.subr.mxu0 0.0
    %5083 = vmatpush2.msra.mxu0 0.0
    %5084 = vmatprep.subr.mxu0 0.0
    %5085 = vmatpush2.msra.mxu0 0.0
    %5086 = vmatprep.mubr.f32.mxu0 0.0
    %5087 = vmatmul.mubr.f32.gmra.mxu0 %v235
    %v5088 = vpop.f32.mrf.mxu0
    %v5089 = vadd.f32 %v5020, %v5088
    %v5090 = vpop.f32.mrf.mxu0
    %5091 = vdwg.mxu0
    %v5093 = vrot.slane %v5089, 2
    %5094 = vrot.lane.b32.xlu0 %v5093, 96
    %v5095 = vpop.permute.xlu0 %5094
    %v5097 = vmul.f32 %v4935, %v5095
    %5099 = vrot.lane.b32.xlu0 %v5097, 64
    %v5100 = vpop.permute.xlu0 %5099
    %v5102 = vadd.f32 %v4572, %v5100
    %v5103 = vtanh.pop %v5102
    %v5104 = vsub.f32 1.0, %v5015
    %5106 = vrot.lane.b32.xlu0 %v5103, 96
    %v5107 = vpop.permute.xlu0 %5106
    %v5109 = vmul.f32 %v5104, %v5107
    %v5110 = vmul.f32 %v5015, 0.0
    %v5111 = vadd.f32 %v5109, %v5110
    %5113 = vrot.lane.b32.xlu0 %v4853, 96
    %v5114 = vpop.permute.xlu0 %5113
    %v5115 = vsel %vm118, %v5114, 0
    %5117 = vmatprep.subr.mxu0 0.0
    %5118 = vmatpush1.msra.mxu0 0.0
    %5119 = vmatprep.subr.mxu0 0.0
    %5120 = vmatpush1.msra.mxu0 0.0
    %5121 = vmatprep.subr.mxu0 0.0
    %5122 = vmatpush1.msra.mxu0 0.0
    %5123 = vmatprep.subr.mxu0 0.0
    %5124 = vmatpush1.msra.mxu0 0.0
    %5125 = vmatprep.subr.mxu0 0.0
    %5126 = vmatpush1.msra.mxu0 0.0
    %5127 = vmatprep.subr.mxu0 0.0
    %5128 = vmatpush1.msra.mxu0 0.0
    %5129 = vmatprep.subr.mxu0 0.0
    %5130 = vmatpush1.msra.mxu0 0.0
    %5131 = vmatprep.subr.mxu0 0.0
    %5132 = vmatpush1.msra.mxu0 0.0
    %5133 = vmatprep.subr.mxu0 0.0
    %5134 = vmatpush1.msra.mxu0 0.0
    %5135 = vmatprep.subr.mxu0 0.0
    %5136 = vmatpush1.msra.mxu0 0.0
    %5137 = vmatprep.subr.mxu0 0.0
    %5138 = vmatpush1.msra.mxu0 0.0
    %5139 = vmatprep.subr.mxu0 0.0
    %5140 = vmatpush1.msra.mxu0 0.0
    %5141 = vmatprep.subr.mxu0 0.0
    %5142 = vmatpush1.msra.mxu0 %v4576
    %5143 = vmatprep.subr.mxu0 0.0
    %5144 = vmatpush1.msra.mxu0 %v4575
    %5145 = vmatprep.subr.mxu0 0.0
    %5146 = vmatpush1.msra.mxu0 %v4574
    %5147 = vmatprep.subr.mxu0 0.0
    %5148 = vmatpush1.msra.mxu0 %v4573
    %5149 = vmatprep.subr.mxu0 0.0
    %5150 = vmatpush2.msra.mxu0 0.0
    %5151 = vmatprep.subr.mxu0 0.0
    %5152 = vmatpush2.msra.mxu0 0.0
    %5153 = vmatprep.subr.mxu0 0.0
    %5154 = vmatpush2.msra.mxu0 0.0
    %5155 = vmatprep.subr.mxu0 0.0
    %5156 = vmatpush2.msra.mxu0 0.0
    %5157 = vmatprep.subr.mxu0 0.0
    %5158 = vmatpush2.msra.mxu0 0.0
    %5159 = vmatprep.subr.mxu0 0.0
    %5160 = vmatpush2.msra.mxu0 0.0
    %5161 = vmatprep.subr.mxu0 0.0
    %5162 = vmatpush2.msra.mxu0 0.0
    %5163 = vmatprep.subr.mxu0 0.0
    %5164 = vmatpush2.msra.mxu0 0.0
    %5165 = vmatprep.subr.mxu0 0.0
    %5166 = vmatpush2.msra.mxu0 0.0
    %5167 = vmatprep.subr.mxu0 0.0
    %5168 = vmatpush2.msra.mxu0 0.0
    %5169 = vmatprep.subr.mxu0 0.0
    %5170 = vmatpush2.msra.mxu0 0.0
    %5171 = vmatprep.subr.mxu0 0.0
    %5172 = vmatpush2.msra.mxu0 0.0
    %5173 = vmatprep.subr.mxu0 0.0
    %5174 = vmatpush2.msra.mxu0 0.0
    %5175 = vmatprep.subr.mxu0 0.0
    %5176 = vmatpush2.msra.mxu0 0.0
    %5177 = vmatprep.subr.mxu0 0.0
    %5178 = vmatpush2.msra.mxu0 0.0
    %5179 = vmatprep.subr.mxu0 0.0
    %5180 = vmatpush2.msra.mxu0 0.0
    %5181 = vmatprep.mubr.f32.mxu0 0.0
    %5182 = vmatmul.mubr.f32.gmra.mxu0 %v5115
    %v5183 = vpop.f32.mrf.mxu0
    %v5184 = vadd.f32 0.0, %v5183
    %v5185 = vpop.f32.mrf.mxu0
    %5186 = vdwg.mxu0
    %v5188 = vrot.slane %v5184, 6
    %v5190 = vadd.f32 %v4570, %v5188
    %v5191 = vxor.u32 %v5190, 2147483648
    %v5192 = vmul.f32 %v5191, 1.442695
    %v5193 = vpow.pop %v5192
    %v5194 = vadd.f32 %v5193, 1.0
    %v5195 = vrcp.pop %v5194
    %v5196 = vmul.f32 1.0, %v5195
    %5197 = vmatprep.subr.mxu0 0.0
    %5198 = vmatpush1.msra.mxu0 0.0
    %5199 = vmatprep.subr.mxu0 0.0
    %5200 = vmatpush1.msra.mxu0 0.0
    %5201 = vmatprep.subr.mxu0 0.0
    %5202 = vmatpush1.msra.mxu0 0.0
    %5203 = vmatprep.subr.mxu0 0.0
    %5204 = vmatpush1.msra.mxu0 0.0
    %5205 = vmatprep.subr.mxu0 0.0
    %5206 = vmatpush1.msra.mxu0 0.0
    %5207 = vmatprep.subr.mxu0 0.0
    %5208 = vmatpush1.msra.mxu0 0.0
    %5209 = vmatprep.subr.mxu0 0.0
    %5210 = vmatpush1.msra.mxu0 0.0
    %5211 = vmatprep.subr.mxu0 0.0
    %5212 = vmatpush1.msra.mxu0 0.0
    %5213 = vmatprep.subr.mxu0 0.0
    %5214 = vmatpush1.msra.mxu0 0.0
    %5215 = vmatprep.subr.mxu0 0.0
    %5216 = vmatpush1.msra.mxu0 0.0
    %5217 = vmatprep.subr.mxu0 0.0
    %5218 = vmatpush1.msra.mxu0 0.0
    %5219 = vmatprep.subr.mxu0 0.0
    %5220 = vmatpush1.msra.mxu0 0.0
    %5221 = vmatprep.subr.mxu0 0.0
    %5222 = vmatpush1.msra.mxu0 %v4581
    %5223 = vmatprep.subr.mxu0 0.0
    %5224 = vmatpush1.msra.mxu0 %v4580
    %5225 = vmatprep.subr.mxu0 0.0
    %5226 = vmatpush1.msra.mxu0 %v4579
    %5227 = vmatprep.subr.mxu0 0.0
    %5228 = vmatpush1.msra.mxu0 %v4578
    %5229 = vmatprep.subr.mxu0 0.0
    %5230 = vmatpush2.msra.mxu0 0.0
    %5231 = vmatprep.subr.mxu0 0.0
    %5232 = vmatpush2.msra.mxu0 0.0
    %5233 = vmatprep.subr.mxu0 0.0
    %5234 = vmatpush2.msra.mxu0 0.0
    %5235 = vmatprep.subr.mxu0 0.0
    %5236 = vmatpush2.msra.mxu0 0.0
    %5237 = vmatprep.subr.mxu0 0.0
    %5238 = vmatpush2.msra.mxu0 0.0
    %5239 = vmatprep.subr.mxu0 0.0
    %5240 = vmatpush2.msra.mxu0 0.0
    %5241 = vmatprep.subr.mxu0 0.0
    %5242 = vmatpush2.msra.mxu0 0.0
    %5243 = vmatprep.subr.mxu0 0.0
    %5244 = vmatpush2.msra.mxu0 0.0
    %5245 = vmatprep.subr.mxu0 0.0
    %5246 = vmatpush2.msra.mxu0 0.0
    %5247 = vmatprep.subr.mxu0 0.0
    %5248 = vmatpush2.msra.mxu0 0.0
    %5249 = vmatprep.subr.mxu0 0.0
    %5250 = vmatpush2.msra.mxu0 0.0
    %5251 = vmatprep.subr.mxu0 0.0
    %5252 = vmatpush2.msra.mxu0 0.0
    %5253 = vmatprep.subr.mxu0 0.0
    %5254 = vmatpush2.msra.mxu0 0.0
    %5255 = vmatprep.subr.mxu0 0.0
    %5256 = vmatpush2.msra.mxu0 0.0
    %5257 = vmatprep.subr.mxu0 0.0
    %5258 = vmatpush2.msra.mxu0 0.0
    %5259 = vmatprep.subr.mxu0 0.0
    %5260 = vmatpush2.msra.mxu0 0.0
    %5261 = vmatprep.mubr.f32.mxu0 0.0
    %5262 = vmatmul.mubr.f32.gmra.mxu0 %v5115
    %v5263 = vpop.f32.mrf.mxu0
    %v5264 = vadd.f32 0.0, %v5263
    %v5265 = vpop.f32.mrf.mxu0
    %5266 = vdwg.mxu0
    %v5268 = vrot.slane %v5264, 6
    %5269 = vrot.lane.b32.xlu0 %v5268, 32
    %v5270 = vpop.permute.xlu0 %5269
    %v5272 = vadd.f32 %v4570, %v5270
    %v5273 = vxor.u32 %v5272, 2147483648
    %v5274 = vmul.f32 %v5273, 1.442695
    %v5275 = vpow.pop %v5274
    %v5276 = vadd.f32 %v5275, 1.0
    %v5277 = vrcp.pop %v5276
    %v5278 = vmul.f32 1.0, %v5277
    %5279 = vmatprep.subr.mxu0 0.0
    %5280 = vmatpush1.msra.mxu0 0.0
    %5281 = vmatprep.subr.mxu0 0.0
    %5282 = vmatpush1.msra.mxu0 0.0
    %5283 = vmatprep.subr.mxu0 0.0
    %5284 = vmatpush1.msra.mxu0 0.0
    %5285 = vmatprep.subr.mxu0 0.0
    %5286 = vmatpush1.msra.mxu0 0.0
    %5287 = vmatprep.subr.mxu0 0.0
    %5288 = vmatpush1.msra.mxu0 0.0
    %5289 = vmatprep.subr.mxu0 0.0
    %5290 = vmatpush1.msra.mxu0 0.0
    %5291 = vmatprep.subr.mxu0 0.0
    %5292 = vmatpush1.msra.mxu0 0.0
    %5293 = vmatprep.subr.mxu0 0.0
    %5294 = vmatpush1.msra.mxu0 0.0
    %5295 = vmatprep.subr.mxu0 0.0
    %5296 = vmatpush1.msra.mxu0 0.0
    %5297 = vmatprep.subr.mxu0 0.0
    %5298 = vmatpush1.msra.mxu0 0.0
    %5299 = vmatprep.subr.mxu0 0.0
    %5300 = vmatpush1.msra.mxu0 0.0
    %5301 = vmatprep.subr.mxu0 0.0
    %5302 = vmatpush1.msra.mxu0 0.0
    %5303 = vmatprep.subr.mxu0 0.0
    %5304 = vmatpush1.msra.mxu0 %v4586
    %5305 = vmatprep.subr.mxu0 0.0
    %5306 = vmatpush1.msra.mxu0 %v4585
    %5307 = vmatprep.subr.mxu0 0.0
    %5308 = vmatpush1.msra.mxu0 %v4584
    %5309 = vmatprep.subr.mxu0 0.0
    %5310 = vmatpush1.msra.mxu0 %v4583
    %5311 = vmatprep.subr.mxu0 0.0
    %5312 = vmatpush2.msra.mxu0 0.0
    %5313 = vmatprep.subr.mxu0 0.0
    %5314 = vmatpush2.msra.mxu0 0.0
    %5315 = vmatprep.subr.mxu0 0.0
    %5316 = vmatpush2.msra.mxu0 0.0
    %5317 = vmatprep.subr.mxu0 0.0
    %5318 = vmatpush2.msra.mxu0 0.0
    %5319 = vmatprep.subr.mxu0 0.0
    %5320 = vmatpush2.msra.mxu0 0.0
    %5321 = vmatprep.subr.mxu0 0.0
    %5322 = vmatpush2.msra.mxu0 0.0
    %5323 = vmatprep.subr.mxu0 0.0
    %5324 = vmatpush2.msra.mxu0 0.0
    %5325 = vmatprep.subr.mxu0 0.0
    %5326 = vmatpush2.msra.mxu0 0.0
    %5327 = vmatprep.subr.mxu0 0.0
    %5328 = vmatpush2.msra.mxu0 0.0
    %5329 = vmatprep.subr.mxu0 0.0
    %5330 = vmatpush2.msra.mxu0 0.0
    %5331 = vmatprep.subr.mxu0 0.0
    %5332 = vmatpush2.msra.mxu0 0.0
    %5333 = vmatprep.subr.mxu0 0.0
    %5334 = vmatpush2.msra.mxu0 0.0
    %5335 = vmatprep.subr.mxu0 0.0
    %5336 = vmatpush2.msra.mxu0 0.0
    %5337 = vmatprep.subr.mxu0 0.0
    %5338 = vmatpush2.msra.mxu0 0.0
    %5339 = vmatprep.subr.mxu0 0.0
    %5340 = vmatpush2.msra.mxu0 0.0
    %5341 = vmatprep.subr.mxu0 0.0
    %5342 = vmatpush2.msra.mxu0 0.0
    %5343 = vmatprep.mubr.f32.mxu0 0.0
    %5344 = vmatmul.mubr.f32.gmra.mxu0 %v5115
    %v5345 = vpop.f32.mrf.mxu0
    %v5346 = vadd.f32 %v4767, %v5345
    %v5347 = vpop.f32.mrf.mxu0
    %5348 = vdwg.mxu0
    %v5350 = vrot.slane %v5346, 6
    %v5352 = vmul.f32 %v5196, %v5350
    %5354 = vrot.lane.b32.xlu0 %v5352, 64
    %v5355 = vpop.permute.xlu0 %5354
    %v5357 = vadd.f32 %v4570, %v5355
    %v5358 = vtanh.pop %v5357
    %v5359 = vsub.f32 1.0, %v5278
    %5361 = vrot.lane.b32.xlu0 %v5358, 96
    %v5362 = vpop.permute.xlu0 %5361
    %v5364 = vmul.f32 %v5359, %v5362
    %v5365 = vrot.slane %v4853, 6
    %v5367 = vmul.f32 %v5278, %v5365
    %v5368 = vadd.f32 %v5364, %v5367
    %v5370 = vrot.slane %v5368, 2
    %5371 = vrot.lane.b32.xlu0 %v5370, 96
    %v5372 = vpop.permute.xlu0 %5371
    %v5373 = vsel %vm118, %v5372, 0
    %5375 = vmatprep.subr.mxu0 0.0
    %5376 = vmatpush1.msra.mxu0 0.0
    %5377 = vmatprep.subr.mxu0 0.0
    %5378 = vmatpush1.msra.mxu0 0.0
    %5379 = vmatprep.subr.mxu0 0.0
    %5380 = vmatpush1.msra.mxu0 0.0
    %5381 = vmatprep.subr.mxu0 0.0
    %5382 = vmatpush1.msra.mxu0 0.0
    %5383 = vmatprep.subr.mxu0 0.0
    %5384 = vmatpush1.msra.mxu0 0.0
    %5385 = vmatprep.subr.mxu0 0.0
    %5386 = vmatpush1.msra.mxu0 0.0
    %5387 = vmatprep.subr.mxu0 0.0
    %5388 = vmatpush1.msra.mxu0 0.0
    %5389 = vmatprep.subr.mxu0 0.0
    %5390 = vmatpush1.msra.mxu0 0.0
    %5391 = vmatprep.subr.mxu0 0.0
    %5392 = vmatpush1.msra.mxu0 0.0
    %5393 = vmatprep.subr.mxu0 0.0
    %5394 = vmatpush1.msra.mxu0 0.0
    %5395 = vmatprep.subr.mxu0 0.0
    %5396 = vmatpush1.msra.mxu0 0.0
    %5397 = vmatprep.subr.mxu0 0.0
    %5398 = vmatpush1.msra.mxu0 0.0
    %5399 = vmatprep.subr.mxu0 0.0
    %5400 = vmatpush1.msra.mxu0 %v4576
    %5401 = vmatprep.subr.mxu0 0.0
    %5402 = vmatpush1.msra.mxu0 %v4575
    %5403 = vmatprep.subr.mxu0 0.0
    %5404 = vmatpush1.msra.mxu0 %v4574
    %5405 = vmatprep.subr.mxu0 0.0
    %5406 = vmatpush1.msra.mxu0 %v4573
    %5407 = vmatprep.subr.mxu0 0.0
    %5408 = vmatpush2.msra.mxu0 0.0
    %5409 = vmatprep.subr.mxu0 0.0
    %5410 = vmatpush2.msra.mxu0 0.0
    %5411 = vmatprep.subr.mxu0 0.0
    %5412 = vmatpush2.msra.mxu0 0.0
    %5413 = vmatprep.subr.mxu0 0.0
    %5414 = vmatpush2.msra.mxu0 0.0
    %5415 = vmatprep.subr.mxu0 0.0
    %5416 = vmatpush2.msra.mxu0 0.0
    %5417 = vmatprep.subr.mxu0 0.0
    %5418 = vmatpush2.msra.mxu0 0.0
    %5419 = vmatprep.subr.mxu0 0.0
    %5420 = vmatpush2.msra.mxu0 0.0
    %5421 = vmatprep.subr.mxu0 0.0
    %5422 = vmatpush2.msra.mxu0 0.0
    %5423 = vmatprep.subr.mxu0 0.0
    %5424 = vmatpush2.msra.mxu0 0.0
    %5425 = vmatprep.subr.mxu0 0.0
    %5426 = vmatpush2.msra.mxu0 0.0
    %5427 = vmatprep.subr.mxu0 0.0
    %5428 = vmatpush2.msra.mxu0 0.0
    %5429 = vmatprep.subr.mxu0 0.0
    %5430 = vmatpush2.msra.mxu0 0.0
    %5431 = vmatprep.subr.mxu0 0.0
    %5432 = vmatpush2.msra.mxu0 0.0
    %5433 = vmatprep.subr.mxu0 0.0
    %5434 = vmatpush2.msra.mxu0 0.0
    %5435 = vmatprep.subr.mxu0 0.0
    %5436 = vmatpush2.msra.mxu0 0.0
    %5437 = vmatprep.subr.mxu0 0.0
    %5438 = vmatpush2.msra.mxu0 0.0
    %5439 = vmatprep.mubr.f32.mxu0 0.0
    %5440 = vmatmul.mubr.f32.gmra.mxu0 %v5373
    %v5441 = vpop.f32.mrf.mxu0
    %v5442 = vadd.f32 0.0, %v5441
    %v5443 = vpop.f32.mrf.mxu0
    %5444 = vdwg.mxu0
    %v5446 = vrot.slane %v5442, 4
    %v5448 = vadd.f32 %v4570, %v5446
    %v5449 = vxor.u32 %v5448, 2147483648
    %v5450 = vmul.f32 %v5449, 1.442695
    %v5451 = vpow.pop %v5450
    %v5452 = vadd.f32 %v5451, 1.0
    %v5453 = vrcp.pop %v5452
    %v5454 = vmul.f32 1.0, %v5453
    %5455 = vmatprep.subr.mxu0 0.0
    %5456 = vmatpush1.msra.mxu0 0.0
    %5457 = vmatprep.subr.mxu0 0.0
    %5458 = vmatpush1.msra.mxu0 0.0
    %5459 = vmatprep.subr.mxu0 0.0
    %5460 = vmatpush1.msra.mxu0 0.0
    %5461 = vmatprep.subr.mxu0 0.0
    %5462 = vmatpush1.msra.mxu0 0.0
    %5463 = vmatprep.subr.mxu0 0.0
    %5464 = vmatpush1.msra.mxu0 0.0
    %5465 = vmatprep.subr.mxu0 0.0
    %5466 = vmatpush1.msra.mxu0 0.0
    %5467 = vmatprep.subr.mxu0 0.0
    %5468 = vmatpush1.msra.mxu0 0.0
    %5469 = vmatprep.subr.mxu0 0.0
    %5470 = vmatpush1.msra.mxu0 0.0
    %5471 = vmatprep.subr.mxu0 0.0
    %5472 = vmatpush1.msra.mxu0 0.0
    %5473 = vmatprep.subr.mxu0 0.0
    %5474 = vmatpush1.msra.mxu0 0.0
    %5475 = vmatprep.subr.mxu0 0.0
    %5476 = vmatpush1.msra.mxu0 0.0
    %5477 = vmatprep.subr.mxu0 0.0
    %5478 = vmatpush1.msra.mxu0 0.0
    %5479 = vmatprep.subr.mxu0 0.0
    %5480 = vmatpush1.msra.mxu0 %v4581
    %5481 = vmatprep.subr.mxu0 0.0
    %5482 = vmatpush1.msra.mxu0 %v4580
    %5483 = vmatprep.subr.mxu0 0.0
    %5484 = vmatpush1.msra.mxu0 %v4579
    %5485 = vmatprep.subr.mxu0 0.0
    %5486 = vmatpush1.msra.mxu0 %v4578
    %5487 = vmatprep.subr.mxu0 0.0
    %5488 = vmatpush2.msra.mxu0 0.0
    %5489 = vmatprep.subr.mxu0 0.0
    %5490 = vmatpush2.msra.mxu0 0.0
    %5491 = vmatprep.subr.mxu0 0.0
    %5492 = vmatpush2.msra.mxu0 0.0
    %5493 = vmatprep.subr.mxu0 0.0
    %5494 = vmatpush2.msra.mxu0 0.0
    %5495 = vmatprep.subr.mxu0 0.0
    %5496 = vmatpush2.msra.mxu0 0.0
    %5497 = vmatprep.subr.mxu0 0.0
    %5498 = vmatpush2.msra.mxu0 0.0
    %5499 = vmatprep.subr.mxu0 0.0
    %5500 = vmatpush2.msra.mxu0 0.0
    %5501 = vmatprep.subr.mxu0 0.0
    %5502 = vmatpush2.msra.mxu0 0.0
    %5503 = vmatprep.subr.mxu0 0.0
    %5504 = vmatpush2.msra.mxu0 0.0
    %5505 = vmatprep.subr.mxu0 0.0
    %5506 = vmatpush2.msra.mxu0 0.0
    %5507 = vmatprep.subr.mxu0 0.0
    %5508 = vmatpush2.msra.mxu0 0.0
    %5509 = vmatprep.subr.mxu0 0.0
    %5510 = vmatpush2.msra.mxu0 0.0
    %5511 = vmatprep.subr.mxu0 0.0
    %5512 = vmatpush2.msra.mxu0 0.0
    %5513 = vmatprep.subr.mxu0 0.0
    %5514 = vmatpush2.msra.mxu0 0.0
    %5515 = vmatprep.subr.mxu0 0.0
    %5516 = vmatpush2.msra.mxu0 0.0
    %5517 = vmatprep.subr.mxu0 0.0
    %5518 = vmatpush2.msra.mxu0 0.0
    %5519 = vmatprep.mubr.f32.mxu0 0.0
    %5520 = vmatmul.mubr.f32.gmra.mxu0 %v5373
    %v5521 = vpop.f32.mrf.mxu0
    %v5522 = vadd.f32 0.0, %v5521
    %v5523 = vpop.f32.mrf.mxu0
    %5524 = vdwg.mxu0
    %v5526 = vrot.slane %v5522, 4
    %5527 = vrot.lane.b32.xlu0 %v5526, 32
    %v5528 = vpop.permute.xlu0 %5527
    %v5530 = vadd.f32 %v4570, %v5528
    %v5531 = vxor.u32 %v5530, 2147483648
    %v5532 = vmul.f32 %v5531, 1.442695
    %v5533 = vpow.pop %v5532
    %v5534 = vadd.f32 %v5533, 1.0
    %v5535 = vrcp.pop %v5534
    %v5536 = vmul.f32 1.0, %v5535
    %5537 = vmatprep.subr.mxu0 0.0
    %5538 = vmatpush1.msra.mxu0 0.0
    %5539 = vmatprep.subr.mxu0 0.0
    %5540 = vmatpush1.msra.mxu0 0.0
    %5541 = vmatprep.subr.mxu0 0.0
    %5542 = vmatpush1.msra.mxu0 0.0
    %5543 = vmatprep.subr.mxu0 0.0
    %5544 = vmatpush1.msra.mxu0 0.0
    %5545 = vmatprep.subr.mxu0 0.0
    %5546 = vmatpush1.msra.mxu0 0.0
    %5547 = vmatprep.subr.mxu0 0.0
    %5548 = vmatpush1.msra.mxu0 0.0
    %5549 = vmatprep.subr.mxu0 0.0
    %5550 = vmatpush1.msra.mxu0 0.0
    %5551 = vmatprep.subr.mxu0 0.0
    %5552 = vmatpush1.msra.mxu0 0.0
    %5553 = vmatprep.subr.mxu0 0.0
    %5554 = vmatpush1.msra.mxu0 0.0
    %5555 = vmatprep.subr.mxu0 0.0
    %5556 = vmatpush1.msra.mxu0 0.0
    %5557 = vmatprep.subr.mxu0 0.0
    %5558 = vmatpush1.msra.mxu0 0.0
    %5559 = vmatprep.subr.mxu0 0.0
    %5560 = vmatpush1.msra.mxu0 0.0
    %5561 = vmatprep.subr.mxu0 0.0
    %5562 = vmatpush1.msra.mxu0 %v4586
    %5563 = vmatprep.subr.mxu0 0.0
    %5564 = vmatpush1.msra.mxu0 %v4585
    %5565 = vmatprep.subr.mxu0 0.0
    %5566 = vmatpush1.msra.mxu0 %v4584
    %5567 = vmatprep.subr.mxu0 0.0
    %5568 = vmatpush1.msra.mxu0 %v4583
    %5569 = vmatprep.subr.mxu0 0.0
    %5570 = vmatpush2.msra.mxu0 0.0
    %5571 = vmatprep.subr.mxu0 0.0
    %5572 = vmatpush2.msra.mxu0 0.0
    %5573 = vmatprep.subr.mxu0 0.0
    %5574 = vmatpush2.msra.mxu0 0.0
    %5575 = vmatprep.subr.mxu0 0.0
    %5576 = vmatpush2.msra.mxu0 0.0
    %5577 = vmatprep.subr.mxu0 0.0
    %5578 = vmatpush2.msra.mxu0 0.0
    %5579 = vmatprep.subr.mxu0 0.0
    %5580 = vmatpush2.msra.mxu0 0.0
    %5581 = vmatprep.subr.mxu0 0.0
    %5582 = vmatpush2.msra.mxu0 0.0
    %5583 = vmatprep.subr.mxu0 0.0
    %5584 = vmatpush2.msra.mxu0 0.0
    %5585 = vmatprep.subr.mxu0 0.0
    %5586 = vmatpush2.msra.mxu0 0.0
    %5587 = vmatprep.subr.mxu0 0.0
    %5588 = vmatpush2.msra.mxu0 0.0
    %5589 = vmatprep.subr.mxu0 0.0
    %5590 = vmatpush2.msra.mxu0 0.0
    %5591 = vmatprep.subr.mxu0 0.0
    %5592 = vmatpush2.msra.mxu0 0.0
    %5593 = vmatprep.subr.mxu0 0.0
    %5594 = vmatpush2.msra.mxu0 0.0
    %5595 = vmatprep.subr.mxu0 0.0
    %5596 = vmatpush2.msra.mxu0 0.0
    %5597 = vmatprep.subr.mxu0 0.0
    %5598 = vmatpush2.msra.mxu0 0.0
    %5599 = vmatprep.subr.mxu0 0.0
    %5600 = vmatpush2.msra.mxu0 0.0
    %5601 = vmatprep.mubr.f32.mxu0 0.0
    %5602 = vmatmul.mubr.f32.gmra.mxu0 %v5373
    %v5603 = vpop.f32.mrf.mxu0
    %v5604 = vadd.f32 %v4767, %v5603
    %v5605 = vpop.f32.mrf.mxu0
    %5606 = vdwg.mxu0
    %v5608 = vrot.slane %v5604, 4
    %v5610 = vmul.f32 %v5454, %v5608
    %5612 = vrot.lane.b32.xlu0 %v5610, 64
    %v5613 = vpop.permute.xlu0 %5612
    %v5615 = vadd.f32 %v4570, %v5613
    %v5616 = vtanh.pop %v5615
    %v5617 = vsub.f32 1.0, %v5536
    %5619 = vrot.lane.b32.xlu0 %v5616, 96
    %v5620 = vpop.permute.xlu0 %5619
    %v5622 = vmul.f32 %v5617, %v5620
    %v5623 = vrot.slane %v5368, 6
    %v5625 = vmul.f32 %v5536, %v5623
    %v5626 = vadd.f32 %v5622, %v5625
    %v5628 = vrot.slane %v5626, 4
    %5629 = vrot.lane.b32.xlu0 %v5628, 96
    %v5630 = vpop.permute.xlu0 %5629
    %v5631 = vsel %vm118, %v5630, 0
    %5633 = vmatprep.subr.mxu0 0.0
    %5634 = vmatpush1.msra.mxu0 0.0
    %5635 = vmatprep.subr.mxu0 0.0
    %5636 = vmatpush1.msra.mxu0 0.0
    %5637 = vmatprep.subr.mxu0 0.0
    %5638 = vmatpush1.msra.mxu0 0.0
    %5639 = vmatprep.subr.mxu0 0.0
    %5640 = vmatpush1.msra.mxu0 0.0
    %5641 = vmatprep.subr.mxu0 0.0
    %5642 = vmatpush1.msra.mxu0 0.0
    %5643 = vmatprep.subr.mxu0 0.0
    %5644 = vmatpush1.msra.mxu0 0.0
    %5645 = vmatprep.subr.mxu0 0.0
    %5646 = vmatpush1.msra.mxu0 0.0
    %5647 = vmatprep.subr.mxu0 0.0
    %5648 = vmatpush1.msra.mxu0 0.0
    %5649 = vmatprep.subr.mxu0 0.0
    %5650 = vmatpush1.msra.mxu0 0.0
    %5651 = vmatprep.subr.mxu0 0.0
    %5652 = vmatpush1.msra.mxu0 0.0
    %5653 = vmatprep.subr.mxu0 0.0
    %5654 = vmatpush1.msra.mxu0 0.0
    %5655 = vmatprep.subr.mxu0 0.0
    %5656 = vmatpush1.msra.mxu0 0.0
    %5657 = vmatprep.subr.mxu0 0.0
    %5658 = vmatpush1.msra.mxu0 %v4576
    %5659 = vmatprep.subr.mxu0 0.0
    %5660 = vmatpush1.msra.mxu0 %v4575
    %5661 = vmatprep.subr.mxu0 0.0
    %5662 = vmatpush1.msra.mxu0 %v4574
    %5663 = vmatprep.subr.mxu0 0.0
    %5664 = vmatpush1.msra.mxu0 %v4573
    %5665 = vmatprep.subr.mxu0 0.0
    %5666 = vmatpush2.msra.mxu0 0.0
    %5667 = vmatprep.subr.mxu0 0.0
    %5668 = vmatpush2.msra.mxu0 0.0
    %5669 = vmatprep.subr.mxu0 0.0
    %5670 = vmatpush2.msra.mxu0 0.0
    %5671 = vmatprep.subr.mxu0 0.0
    %5672 = vmatpush2.msra.mxu0 0.0
    %5673 = vmatprep.subr.mxu0 0.0
    %5674 = vmatpush2.msra.mxu0 0.0
    %5675 = vmatprep.subr.mxu0 0.0
    %5676 = vmatpush2.msra.mxu0 0.0
    %5677 = vmatprep.subr.mxu0 0.0
    %5678 = vmatpush2.msra.mxu0 0.0
    %5679 = vmatprep.subr.mxu0 0.0
    %5680 = vmatpush2.msra.mxu0 0.0
    %5681 = vmatprep.subr.mxu0 0.0
    %5682 = vmatpush2.msra.mxu0 0.0
    %5683 = vmatprep.subr.mxu0 0.0
    %5684 = vmatpush2.msra.mxu0 0.0
    %5685 = vmatprep.subr.mxu0 0.0
    %5686 = vmatpush2.msra.mxu0 0.0
    %5687 = vmatprep.subr.mxu0 0.0
    %5688 = vmatpush2.msra.mxu0 0.0
    %5689 = vmatprep.subr.mxu0 0.0
    %5690 = vmatpush2.msra.mxu0 0.0
    %5691 = vmatprep.subr.mxu0 0.0
    %5692 = vmatpush2.msra.mxu0 0.0
    %5693 = vmatprep.subr.mxu0 0.0
    %5694 = vmatpush2.msra.mxu0 0.0
    %5695 = vmatprep.subr.mxu0 0.0
    %5696 = vmatpush2.msra.mxu0 0.0
    %5697 = vmatprep.mubr.f32.mxu0 0.0
    %5698 = vmatmul.mubr.f32.gmra.mxu0 %v5631
    %v5699 = vpop.f32.mrf.mxu0
    %v5700 = vadd.f32 0.0, %v5699
    %v5701 = vpop.f32.mrf.mxu0
    %5702 = vdwg.mxu0
    %v5704 = vrot.slane %v5700, 2
    %v5706 = vadd.f32 %v4570, %v5704
    %v5707 = vxor.u32 %v5706, 2147483648
    %v5708 = vmul.f32 %v5707, 1.442695
    %v5709 = vpow.pop %v5708
    %v5710 = vadd.f32 %v5709, 1.0
    %v5711 = vrcp.pop %v5710
    %v5712 = vmul.f32 1.0, %v5711
    %5713 = vmatprep.subr.mxu0 0.0
    %5714 = vmatpush1.msra.mxu0 0.0
    %5715 = vmatprep.subr.mxu0 0.0
    %5716 = vmatpush1.msra.mxu0 0.0
    %5717 = vmatprep.subr.mxu0 0.0
    %5718 = vmatpush1.msra.mxu0 0.0
    %5719 = vmatprep.subr.mxu0 0.0
    %5720 = vmatpush1.msra.mxu0 0.0
    %5721 = vmatprep.subr.mxu0 0.0
    %5722 = vmatpush1.msra.mxu0 0.0
    %5723 = vmatprep.subr.mxu0 0.0
    %5724 = vmatpush1.msra.mxu0 0.0
    %5725 = vmatprep.subr.mxu0 0.0
    %5726 = vmatpush1.msra.mxu0 0.0
    %5727 = vmatprep.subr.mxu0 0.0
    %5728 = vmatpush1.msra.mxu0 0.0
    %5729 = vmatprep.subr.mxu0 0.0
    %5730 = vmatpush1.msra.mxu0 0.0
    %5731 = vmatprep.subr.mxu0 0.0
    %5732 = vmatpush1.msra.mxu0 0.0
    %5733 = vmatprep.subr.mxu0 0.0
    %5734 = vmatpush1.msra.mxu0 0.0
    %5735 = vmatprep.subr.mxu0 0.0
    %5736 = vmatpush1.msra.mxu0 0.0
    %5737 = vmatprep.subr.mxu0 0.0
    %5738 = vmatpush1.msra.mxu0 %v4581
    %5739 = vmatprep.subr.mxu0 0.0
    %5740 = vmatpush1.msra.mxu0 %v4580
    %5741 = vmatprep.subr.mxu0 0.0
    %5742 = vmatpush1.msra.mxu0 %v4579
    %5743 = vmatprep.subr.mxu0 0.0
    %5744 = vmatpush1.msra.mxu0 %v4578
    %5745 = vmatprep.subr.mxu0 0.0
    %5746 = vmatpush2.msra.mxu0 0.0
    %5747 = vmatprep.subr.mxu0 0.0
    %5748 = vmatpush2.msra.mxu0 0.0
    %5749 = vmatprep.subr.mxu0 0.0
    %5750 = vmatpush2.msra.mxu0 0.0
    %5751 = vmatprep.subr.mxu0 0.0
    %5752 = vmatpush2.msra.mxu0 0.0
    %5753 = vmatprep.subr.mxu0 0.0
    %5754 = vmatpush2.msra.mxu0 0.0
    %5755 = vmatprep.subr.mxu0 0.0
    %5756 = vmatpush2.msra.mxu0 0.0
    %5757 = vmatprep.subr.mxu0 0.0
    %5758 = vmatpush2.msra.mxu0 0.0
    %5759 = vmatprep.subr.mxu0 0.0
    %5760 = vmatpush2.msra.mxu0 0.0
    %5761 = vmatprep.subr.mxu0 0.0
    %5762 = vmatpush2.msra.mxu0 0.0
    %5763 = vmatprep.subr.mxu0 0.0
    %5764 = vmatpush2.msra.mxu0 0.0
    %5765 = vmatprep.subr.mxu0 0.0
    %5766 = vmatpush2.msra.mxu0 0.0
    %5767 = vmatprep.subr.mxu0 0.0
    %5768 = vmatpush2.msra.mxu0 0.0
    %5769 = vmatprep.subr.mxu0 0.0
    %5770 = vmatpush2.msra.mxu0 0.0
    %5771 = vmatprep.subr.mxu0 0.0
    %5772 = vmatpush2.msra.mxu0 0.0
    %5773 = vmatprep.subr.mxu0 0.0
    %5774 = vmatpush2.msra.mxu0 0.0
    %5775 = vmatprep.subr.mxu0 0.0
    %5776 = vmatpush2.msra.mxu0 0.0
    %5777 = vmatprep.mubr.f32.mxu0 0.0
    %5778 = vmatmul.mubr.f32.gmra.mxu0 %v5631
    %v5779 = vpop.f32.mrf.mxu0
    %v5780 = vadd.f32 0.0, %v5779
    %v5781 = vpop.f32.mrf.mxu0
    %5782 = vdwg.mxu0
    %v5784 = vrot.slane %v5780, 2
    %5785 = vrot.lane.b32.xlu0 %v5784, 32
    %v5786 = vpop.permute.xlu0 %5785
    %v5788 = vadd.f32 %v4570, %v5786
    %v5789 = vxor.u32 %v5788, 2147483648
    %v5790 = vmul.f32 %v5789, 1.442695
    %v5791 = vpow.pop %v5790
    %v5792 = vadd.f32 %v5791, 1.0
    %v5793 = vrcp.pop %v5792
    %v5794 = vmul.f32 1.0, %v5793
    %5795 = vmatprep.subr.mxu0 0.0
    %5796 = vmatpush1.msra.mxu0 0.0
    %5797 = vmatprep.subr.mxu0 0.0
    %5798 = vmatpush1.msra.mxu0 0.0
    %5799 = vmatprep.subr.mxu0 0.0
    %5800 = vmatpush1.msra.mxu0 0.0
    %5801 = vmatprep.subr.mxu0 0.0
    %5802 = vmatpush1.msra.mxu0 0.0
    %5803 = vmatprep.subr.mxu0 0.0
    %5804 = vmatpush1.msra.mxu0 0.0
    %5805 = vmatprep.subr.mxu0 0.0
    %5806 = vmatpush1.msra.mxu0 0.0
    %5807 = vmatprep.subr.mxu0 0.0
    %5808 = vmatpush1.msra.mxu0 0.0
    %5809 = vmatprep.subr.mxu0 0.0
    %5810 = vmatpush1.msra.mxu0 0.0
    %5811 = vmatprep.subr.mxu0 0.0
    %5812 = vmatpush1.msra.mxu0 0.0
    %5813 = vmatprep.subr.mxu0 0.0
    %5814 = vmatpush1.msra.mxu0 0.0
    %5815 = vmatprep.subr.mxu0 0.0
    %5816 = vmatpush1.msra.mxu0 0.0
    %5817 = vmatprep.subr.mxu0 0.0
    %5818 = vmatpush1.msra.mxu0 0.0
    %5819 = vmatprep.subr.mxu0 0.0
    %5820 = vmatpush1.msra.mxu0 %v4586
    %5821 = vmatprep.subr.mxu0 0.0
    %5822 = vmatpush1.msra.mxu0 %v4585
    %5823 = vmatprep.subr.mxu0 0.0
    %5824 = vmatpush1.msra.mxu0 %v4584
    %5825 = vmatprep.subr.mxu0 0.0
    %5826 = vmatpush1.msra.mxu0 %v4583
    %5827 = vmatprep.subr.mxu0 0.0
    %5828 = vmatpush2.msra.mxu0 0.0
    %5829 = vmatprep.subr.mxu0 0.0
    %5830 = vmatpush2.msra.mxu0 0.0
    %5831 = vmatprep.subr.mxu0 0.0
    %5832 = vmatpush2.msra.mxu0 0.0
    %5833 = vmatprep.subr.mxu0 0.0
    %5834 = vmatpush2.msra.mxu0 0.0
    %5835 = vmatprep.subr.mxu0 0.0
    %5836 = vmatpush2.msra.mxu0 0.0
    %5837 = vmatprep.subr.mxu0 0.0
    %5838 = vmatpush2.msra.mxu0 0.0
    %5839 = vmatprep.subr.mxu0 0.0
    %5840 = vmatpush2.msra.mxu0 0.0
    %5841 = vmatprep.subr.mxu0 0.0
    %5842 = vmatpush2.msra.mxu0 0.0
    %5843 = vmatprep.subr.mxu0 0.0
    %5844 = vmatpush2.msra.mxu0 0.0
    %5845 = vmatprep.subr.mxu0 0.0
    %5846 = vmatpush2.msra.mxu0 0.0
    %5847 = vmatprep.subr.mxu0 0.0
    %5848 = vmatpush2.msra.mxu0 0.0
    %5849 = vmatprep.subr.mxu0 0.0
    %5850 = vmatpush2.msra.mxu0 0.0
    %5851 = vmatprep.subr.mxu0 0.0
    %5852 = vmatpush2.msra.mxu0 0.0
    %5853 = vmatprep.subr.mxu0 0.0
    %5854 = vmatpush2.msra.mxu0 0.0
    %5855 = vmatprep.subr.mxu0 0.0
    %5856 = vmatpush2.msra.mxu0 0.0
    %5857 = vmatprep.subr.mxu0 0.0
    %5858 = vmatpush2.msra.mxu0 0.0
    %5859 = vmatprep.mubr.f32.mxu0 0.0
    %5860 = vmatmul.mubr.f32.gmra.mxu0 %v5631
    %v5861 = vpop.f32.mrf.mxu0
    %v5862 = vadd.f32 %v4767, %v5861
    %v5863 = vpop.f32.mrf.mxu0
    %5864 = vdwg.mxu0
    %v5866 = vrot.slane %v5862, 2
    %v5868 = vmul.f32 %v5712, %v5866
    %5870 = vrot.lane.b32.xlu0 %v5868, 64
    %v5871 = vpop.permute.xlu0 %5870
    %v5873 = vadd.f32 %v4570, %v5871
    %v5874 = vtanh.pop %v5873
    %v5875 = vsub.f32 1.0, %v5794
    %5877 = vrot.lane.b32.xlu0 %v5874, 96
    %v5878 = vpop.permute.xlu0 %5877
    %v5880 = vmul.f32 %v5875, %v5878
    %v5881 = vrot.slane %v5626, 6
    %v5883 = vmul.f32 %v5794, %v5881
    %v5884 = vadd.f32 %v5880, %v5883
    %v5886 = vrot.slane %v5884, 6
    %5887 = vrot.lane.b32.xlu0 %v5886, 96
    %v5888 = vpop.permute.xlu0 %5887
    %v5889 = vsel %vm118, %v5888, 0
    %5891 = vmatprep.subr.mxu0 0.0
    %5892 = vmatpush1.msra.mxu0 0.0
    %5893 = vmatprep.subr.mxu0 0.0
    %5894 = vmatpush1.msra.mxu0 0.0
    %5895 = vmatprep.subr.mxu0 0.0
    %5896 = vmatpush1.msra.mxu0 0.0
    %5897 = vmatprep.subr.mxu0 0.0
    %5898 = vmatpush1.msra.mxu0 0.0
    %5899 = vmatprep.subr.mxu0 0.0
    %5900 = vmatpush1.msra.mxu0 0.0
    %5901 = vmatprep.subr.mxu0 0.0
    %5902 = vmatpush1.msra.mxu0 0.0
    %5903 = vmatprep.subr.mxu0 0.0
    %5904 = vmatpush1.msra.mxu0 0.0
    %5905 = vmatprep.subr.mxu0 0.0
    %5906 = vmatpush1.msra.mxu0 0.0
    %5907 = vmatprep.subr.mxu0 0.0
    %5908 = vmatpush1.msra.mxu0 0.0
    %5909 = vmatprep.subr.mxu0 0.0
    %5910 = vmatpush1.msra.mxu0 0.0
    %5911 = vmatprep.subr.mxu0 0.0
    %5912 = vmatpush1.msra.mxu0 0.0
    %5913 = vmatprep.subr.mxu0 0.0
    %5914 = vmatpush1.msra.mxu0 0.0
    %5915 = vmatprep.subr.mxu0 0.0
    %5916 = vmatpush1.msra.mxu0 %v4576
    %5917 = vmatprep.subr.mxu0 0.0
    %5918 = vmatpush1.msra.mxu0 %v4575
    %5919 = vmatprep.subr.mxu0 0.0
    %5920 = vmatpush1.msra.mxu0 %v4574
    %5921 = vmatprep.subr.mxu0 0.0
    %5922 = vmatpush1.msra.mxu0 %v4573
    %5923 = vmatprep.subr.mxu0 0.0
    %5924 = vmatpush2.msra.mxu0 0.0
    %5925 = vmatprep.subr.mxu0 0.0
    %5926 = vmatpush2.msra.mxu0 0.0
    %5927 = vmatprep.subr.mxu0 0.0
    %5928 = vmatpush2.msra.mxu0 0.0
    %5929 = vmatprep.subr.mxu0 0.0
    %5930 = vmatpush2.msra.mxu0 0.0
    %5931 = vmatprep.subr.mxu0 0.0
    %5932 = vmatpush2.msra.mxu0 0.0
    %5933 = vmatprep.subr.mxu0 0.0
    %5934 = vmatpush2.msra.mxu0 0.0
    %5935 = vmatprep.subr.mxu0 0.0
    %5936 = vmatpush2.msra.mxu0 0.0
    %5937 = vmatprep.subr.mxu0 0.0
    %5938 = vmatpush2.msra.mxu0 0.0
    %5939 = vmatprep.subr.mxu0 0.0
    %5940 = vmatpush2.msra.mxu0 0.0
    %5941 = vmatprep.subr.mxu0 0.0
    %5942 = vmatpush2.msra.mxu0 0.0
    %5943 = vmatprep.subr.mxu0 0.0
    %5944 = vmatpush2.msra.mxu0 0.0
    %5945 = vmatprep.subr.mxu0 0.0
    %5946 = vmatpush2.msra.mxu0 0.0
    %5947 = vmatprep.subr.mxu0 0.0
    %5948 = vmatpush2.msra.mxu0 0.0
    %5949 = vmatprep.subr.mxu0 0.0
    %5950 = vmatpush2.msra.mxu0 0.0
    %5951 = vmatprep.subr.mxu0 0.0
    %5952 = vmatpush2.msra.mxu0 0.0
    %5953 = vmatprep.subr.mxu0 0.0
    %5954 = vmatpush2.msra.mxu0 0.0
    %5955 = vmatprep.mubr.f32.mxu0 0.0
    %5956 = vmatmul.mubr.f32.gmra.mxu0 %v5889
    %v5957 = vpop.f32.mrf.mxu0
    %v5958 = vadd.f32 0.0, %v5957
    %v5959 = vpop.f32.mrf.mxu0
    %5960 = vdwg.mxu0
    %v5961 = vadd.f32 %v4571, %v5958
    %v5962 = vxor.u32 %v5961, 2147483648
    %v5963 = vmul.f32 %v5962, 1.442695
    %v5964 = vpow.pop %v5963
    %v5965 = vadd.f32 %v5964, 1.0
    %v5966 = vrcp.pop %v5965
    %v5967 = vmul.f32 1.0, %v5966
    %5968 = vmatprep.subr.mxu0 0.0
    %5969 = vmatpush1.msra.mxu0 0.0
    %5970 = vmatprep.subr.mxu0 0.0
    %5971 = vmatpush1.msra.mxu0 0.0
    %5972 = vmatprep.subr.mxu0 0.0
    %5973 = vmatpush1.msra.mxu0 0.0
    %5974 = vmatprep.subr.mxu0 0.0
    %5975 = vmatpush1.msra.mxu0 0.0
    %5976 = vmatprep.subr.mxu0 0.0
    %5977 = vmatpush1.msra.mxu0 0.0
    %5978 = vmatprep.subr.mxu0 0.0
    %5979 = vmatpush1.msra.mxu0 0.0
    %5980 = vmatprep.subr.mxu0 0.0
    %5981 = vmatpush1.msra.mxu0 0.0
    %5982 = vmatprep.subr.mxu0 0.0
    %5983 = vmatpush1.msra.mxu0 0.0
    %5984 = vmatprep.subr.mxu0 0.0
    %5985 = vmatpush1.msra.mxu0 0.0
    %5986 = vmatprep.subr.mxu0 0.0
    %5987 = vmatpush1.msra.mxu0 0.0
    %5988 = vmatprep.subr.mxu0 0.0
    %5989 = vmatpush1.msra.mxu0 0.0
    %5990 = vmatprep.subr.mxu0 0.0
    %5991 = vmatpush1.msra.mxu0 0.0
    %5992 = vmatprep.subr.mxu0 0.0
    %5993 = vmatpush1.msra.mxu0 %v4581
    %5994 = vmatprep.subr.mxu0 0.0
    %5995 = vmatpush1.msra.mxu0 %v4580
    %5996 = vmatprep.subr.mxu0 0.0
    %5997 = vmatpush1.msra.mxu0 %v4579
    %5998 = vmatprep.subr.mxu0 0.0
    %5999 = vmatpush1.msra.mxu0 %v4578
    %6000 = vmatprep.subr.mxu0 0.0
    %6001 = vmatpush2.msra.mxu0 0.0
    %6002 = vmatprep.subr.mxu0 0.0
    %6003 = vmatpush2.msra.mxu0 0.0
    %6004 = vmatprep.subr.mxu0 0.0
    %6005 = vmatpush2.msra.mxu0 0.0
    %6006 = vmatprep.subr.mxu0 0.0
    %6007 = vmatpush2.msra.mxu0 0.0
    %6008 = vmatprep.subr.mxu0 0.0
    %6009 = vmatpush2.msra.mxu0 0.0
    %6010 = vmatprep.subr.mxu0 0.0
    %6011 = vmatpush2.msra.mxu0 0.0
    %6012 = vmatprep.subr.mxu0 0.0
    %6013 = vmatpush2.msra.mxu0 0.0
    %6014 = vmatprep.subr.mxu0 0.0
    %6015 = vmatpush2.msra.mxu0 0.0
    %6016 = vmatprep.subr.mxu0 0.0
    %6017 = vmatpush2.msra.mxu0 0.0
    %6018 = vmatprep.subr.mxu0 0.0
    %6019 = vmatpush2.msra.mxu0 0.0
    %6020 = vmatprep.subr.mxu0 0.0
    %6021 = vmatpush2.msra.mxu0 0.0
    %6022 = vmatprep.subr.mxu0 0.0
    %6023 = vmatpush2.msra.mxu0 0.0
    %6024 = vmatprep.subr.mxu0 0.0
    %6025 = vmatpush2.msra.mxu0 0.0
    %6026 = vmatprep.subr.mxu0 0.0
    %6027 = vmatpush2.msra.mxu0 0.0
    %6028 = vmatprep.subr.mxu0 0.0
    %6029 = vmatpush2.msra.mxu0 0.0
    %6030 = vmatprep.subr.mxu0 0.0
    %6031 = vmatpush2.msra.mxu0 0.0
    %6032 = vmatprep.mubr.f32.mxu0 0.0
    %6033 = vmatmul.mubr.f32.gmra.mxu0 %v5889
    %v6034 = vpop.f32.mrf.mxu0
    %v6035 = vadd.f32 0.0, %v6034
    %v6036 = vpop.f32.mrf.mxu0
    %6037 = vdwg.mxu0
    %6039 = vrot.lane.b32.xlu0 %v6035, 32
    %v6040 = vpop.permute.xlu0 %6039
    %v6042 = vadd.f32 %v4571, %v6040
    %v6043 = vxor.u32 %v6042, 2147483648
    %v6044 = vmul.f32 %v6043, 1.442695
    %v6045 = vpow.pop %v6044
    %v6046 = vadd.f32 %v6045, 1.0
    %v6047 = vrcp.pop %v6046
    %v6048 = vmul.f32 1.0, %v6047
    %6049 = vmatprep.subr.mxu0 0.0
    %6050 = vmatpush1.msra.mxu0 0.0
    %6051 = vmatprep.subr.mxu0 0.0
    %6052 = vmatpush1.msra.mxu0 0.0
    %6053 = vmatprep.subr.mxu0 0.0
    %6054 = vmatpush1.msra.mxu0 0.0
    %6055 = vmatprep.subr.mxu0 0.0
    %6056 = vmatpush1.msra.mxu0 0.0
    %6057 = vmatprep.subr.mxu0 0.0
    %6058 = vmatpush1.msra.mxu0 0.0
    %6059 = vmatprep.subr.mxu0 0.0
    %6060 = vmatpush1.msra.mxu0 0.0
    %6061 = vmatprep.subr.mxu0 0.0
    %6062 = vmatpush1.msra.mxu0 0.0
    %6063 = vmatprep.subr.mxu0 0.0
    %6064 = vmatpush1.msra.mxu0 0.0
    %6065 = vmatprep.subr.mxu0 0.0
    %6066 = vmatpush1.msra.mxu0 0.0
    %6067 = vmatprep.subr.mxu0 0.0
    %6068 = vmatpush1.msra.mxu0 0.0
    %6069 = vmatprep.subr.mxu0 0.0
    %6070 = vmatpush1.msra.mxu0 0.0
    %6071 = vmatprep.subr.mxu0 0.0
    %6072 = vmatpush1.msra.mxu0 0.0
    %6073 = vmatprep.subr.mxu0 0.0
    %6074 = vmatpush1.msra.mxu0 %v4586
    %6075 = vmatprep.subr.mxu0 0.0
    %6076 = vmatpush1.msra.mxu0 %v4585
    %6077 = vmatprep.subr.mxu0 0.0
    %6078 = vmatpush1.msra.mxu0 %v4584
    %6079 = vmatprep.subr.mxu0 0.0
    %6080 = vmatpush1.msra.mxu0 %v4583
    %6081 = vmatprep.subr.mxu0 0.0
    %6082 = vmatpush2.msra.mxu0 0.0
    %6083 = vmatprep.subr.mxu0 0.0
    %6084 = vmatpush2.msra.mxu0 0.0
    %6085 = vmatprep.subr.mxu0 0.0
    %6086 = vmatpush2.msra.mxu0 0.0
    %6087 = vmatprep.subr.mxu0 0.0
    %6088 = vmatpush2.msra.mxu0 0.0
    %6089 = vmatprep.subr.mxu0 0.0
    %6090 = vmatpush2.msra.mxu0 0.0
    %6091 = vmatprep.subr.mxu0 0.0
    %6092 = vmatpush2.msra.mxu0 0.0
    %6093 = vmatprep.subr.mxu0 0.0
    %6094 = vmatpush2.msra.mxu0 0.0
    %6095 = vmatprep.subr.mxu0 0.0
    %6096 = vmatpush2.msra.mxu0 0.0
    %6097 = vmatprep.subr.mxu0 0.0
    %6098 = vmatpush2.msra.mxu0 0.0
    %6099 = vmatprep.subr.mxu0 0.0
    %6100 = vmatpush2.msra.mxu0 0.0
    %6101 = vmatprep.subr.mxu0 0.0
    %6102 = vmatpush2.msra.mxu0 0.0
    %6103 = vmatprep.subr.mxu0 0.0
    %6104 = vmatpush2.msra.mxu0 0.0
    %6105 = vmatprep.subr.mxu0 0.0
    %6106 = vmatpush2.msra.mxu0 0.0
    %6107 = vmatprep.subr.mxu0 0.0
    %6108 = vmatpush2.msra.mxu0 0.0
    %6109 = vmatprep.subr.mxu0 0.0
    %6110 = vmatpush2.msra.mxu0 0.0
    %6111 = vmatprep.subr.mxu0 0.0
    %6112 = vmatpush2.msra.mxu0 0.0
    %6113 = vmatprep.mubr.f32.mxu0 0.0
    %6114 = vmatmul.mubr.f32.gmra.mxu0 %v5889
    %v6115 = vpop.f32.mrf.mxu0
    %v6116 = vadd.f32 %v4767, %v6115
    %v6117 = vpop.f32.mrf.mxu0
    %6118 = vdwg.mxu0
    %v6119 = vmul.f32 %v5967, %v6116
    %6121 = vrot.lane.b32.xlu0 %v6119, 64
    %v6122 = vpop.permute.xlu0 %6121
    %v6124 = vadd.f32 %v4571, %v6122
    %v6125 = vtanh.pop %v6124
    %v6126 = vsub.f32 1.0, %v6048
    %6128 = vrot.lane.b32.xlu0 %v6125, 96
    %v6129 = vpop.permute.xlu0 %6128
    %v6131 = vmul.f32 %v6126, %v6129
    %v6133 = vmul.f32 %v6048, %v5886
    %v6134 = vadd.f32 %v6131, %v6133
    %6136 = vrot.lane.b32.xlu0 %v6134, 96
    %v6137 = vpop.permute.xlu0 %6136
    %v6138 = vsel %vm118, %v6137, 0
    %6140 = vmatprep.subr.mxu0 0.0
    %6141 = vmatpush1.msra.mxu0 0.0
    %6142 = vmatprep.subr.mxu0 0.0
    %6143 = vmatpush1.msra.mxu0 0.0
    %6144 = vmatprep.subr.mxu0 0.0
    %6145 = vmatpush1.msra.mxu0 0.0
    %6146 = vmatprep.subr.mxu0 0.0
    %6147 = vmatpush1.msra.mxu0 0.0
    %6148 = vmatprep.subr.mxu0 0.0
    %6149 = vmatpush1.msra.mxu0 0.0
    %6150 = vmatprep.subr.mxu0 0.0
    %6151 = vmatpush1.msra.mxu0 0.0
    %6152 = vmatprep.subr.mxu0 0.0
    %6153 = vmatpush1.msra.mxu0 0.0
    %6154 = vmatprep.subr.mxu0 0.0
    %6155 = vmatpush1.msra.mxu0 0.0
    %6156 = vmatprep.subr.mxu0 0.0
    %6157 = vmatpush1.msra.mxu0 0.0
    %6158 = vmatprep.subr.mxu0 0.0
    %6159 = vmatpush1.msra.mxu0 0.0
    %6160 = vmatprep.subr.mxu0 0.0
    %6161 = vmatpush1.msra.mxu0 0.0
    %6162 = vmatprep.subr.mxu0 0.0
    %6163 = vmatpush1.msra.mxu0 0.0
    %6164 = vmatprep.subr.mxu0 0.0
    %6165 = vmatpush1.msra.mxu0 %v4576
    %6166 = vmatprep.subr.mxu0 0.0
    %6167 = vmatpush1.msra.mxu0 %v4575
    %6168 = vmatprep.subr.mxu0 0.0
    %6169 = vmatpush1.msra.mxu0 %v4574
    %6170 = vmatprep.subr.mxu0 0.0
    %6171 = vmatpush1.msra.mxu0 %v4573
    %6172 = vmatprep.subr.mxu0 0.0
    %6173 = vmatpush2.msra.mxu0 0.0
    %6174 = vmatprep.subr.mxu0 0.0
    %6175 = vmatpush2.msra.mxu0 0.0
    %6176 = vmatprep.subr.mxu0 0.0
    %6177 = vmatpush2.msra.mxu0 0.0
    %6178 = vmatprep.subr.mxu0 0.0
    %6179 = vmatpush2.msra.mxu0 0.0
    %6180 = vmatprep.subr.mxu0 0.0
    %6181 = vmatpush2.msra.mxu0 0.0
    %6182 = vmatprep.subr.mxu0 0.0
    %6183 = vmatpush2.msra.mxu0 0.0
    %6184 = vmatprep.subr.mxu0 0.0
    %6185 = vmatpush2.msra.mxu0 0.0
    %6186 = vmatprep.subr.mxu0 0.0
    %6187 = vmatpush2.msra.mxu0 0.0
    %6188 = vmatprep.subr.mxu0 0.0
    %6189 = vmatpush2.msra.mxu0 0.0
    %6190 = vmatprep.subr.mxu0 0.0
    %6191 = vmatpush2.msra.mxu0 0.0
    %6192 = vmatprep.subr.mxu0 0.0
    %6193 = vmatpush2.msra.mxu0 0.0
    %6194 = vmatprep.subr.mxu0 0.0
    %6195 = vmatpush2.msra.mxu0 0.0
    %6196 = vmatprep.subr.mxu0 0.0
    %6197 = vmatpush2.msra.mxu0 0.0
    %6198 = vmatprep.subr.mxu0 0.0
    %6199 = vmatpush2.msra.mxu0 0.0
    %6200 = vmatprep.subr.mxu0 0.0
    %6201 = vmatpush2.msra.mxu0 0.0
    %6202 = vmatprep.subr.mxu0 0.0
    %6203 = vmatpush2.msra.mxu0 0.0
    %6204 = vmatprep.mubr.f32.mxu0 0.0
    %6205 = vmatmul.mubr.f32.gmra.mxu0 %v6138
    %v6206 = vpop.f32.mrf.mxu0
    %v6207 = vadd.f32 0.0, %v6206
    %v6208 = vpop.f32.mrf.mxu0
    %6209 = vdwg.mxu0
    %v6211 = vrot.slane %v6207, 6
    %v6213 = vadd.f32 %v4571, %v6211
    %v6214 = vxor.u32 %v6213, 2147483648
    %v6215 = vmul.f32 %v6214, 1.442695
    %v6216 = vpow.pop %v6215
    %v6217 = vadd.f32 %v6216, 1.0
    %v6218 = vrcp.pop %v6217
    %v6219 = vmul.f32 1.0, %v6218
    %6220 = vmatprep.subr.mxu0 0.0
    %6221 = vmatpush1.msra.mxu0 0.0
    %6222 = vmatprep.subr.mxu0 0.0
    %6223 = vmatpush1.msra.mxu0 0.0
    %6224 = vmatprep.subr.mxu0 0.0
    %6225 = vmatpush1.msra.mxu0 0.0
    %6226 = vmatprep.subr.mxu0 0.0
    %6227 = vmatpush1.msra.mxu0 0.0
    %6228 = vmatprep.subr.mxu0 0.0
    %6229 = vmatpush1.msra.mxu0 0.0
    %6230 = vmatprep.subr.mxu0 0.0
    %6231 = vmatpush1.msra.mxu0 0.0
    %6232 = vmatprep.subr.mxu0 0.0
    %6233 = vmatpush1.msra.mxu0 0.0
    %6234 = vmatprep.subr.mxu0 0.0
    %6235 = vmatpush1.msra.mxu0 0.0
    %6236 = vmatprep.subr.mxu0 0.0
    %6237 = vmatpush1.msra.mxu0 0.0
    %6238 = vmatprep.subr.mxu0 0.0
    %6239 = vmatpush1.msra.mxu0 0.0
    %6240 = vmatprep.subr.mxu0 0.0
    %6241 = vmatpush1.msra.mxu0 0.0
    %6242 = vmatprep.subr.mxu0 0.0
    %6243 = vmatpush1.msra.mxu0 0.0
    %6244 = vmatprep.subr.mxu0 0.0
    %6245 = vmatpush1.msra.mxu0 %v4581
    %6246 = vmatprep.subr.mxu0 0.0
    %6247 = vmatpush1.msra.mxu0 %v4580
    %6248 = vmatprep.subr.mxu0 0.0
    %6249 = vmatpush1.msra.mxu0 %v4579
    %6250 = vmatprep.subr.mxu0 0.0
    %6251 = vmatpush1.msra.mxu0 %v4578
    %6252 = vmatprep.subr.mxu0 0.0
    %6253 = vmatpush2.msra.mxu0 0.0
    %6254 = vmatprep.subr.mxu0 0.0
    %6255 = vmatpush2.msra.mxu0 0.0
    %6256 = vmatprep.subr.mxu0 0.0
    %6257 = vmatpush2.msra.mxu0 0.0
    %6258 = vmatprep.subr.mxu0 0.0
    %6259 = vmatpush2.msra.mxu0 0.0
    %6260 = vmatprep.subr.mxu0 0.0
    %6261 = vmatpush2.msra.mxu0 0.0
    %6262 = vmatprep.subr.mxu0 0.0
    %6263 = vmatpush2.msra.mxu0 0.0
    %6264 = vmatprep.subr.mxu0 0.0
    %6265 = vmatpush2.msra.mxu0 0.0
    %6266 = vmatprep.subr.mxu0 0.0
    %6267 = vmatpush2.msra.mxu0 0.0
    %6268 = vmatprep.subr.mxu0 0.0
    %6269 = vmatpush2.msra.mxu0 0.0
    %6270 = vmatprep.subr.mxu0 0.0
    %6271 = vmatpush2.msra.mxu0 0.0
    %6272 = vmatprep.subr.mxu0 0.0
    %6273 = vmatpush2.msra.mxu0 0.0
    %6274 = vmatprep.subr.mxu0 0.0
    %6275 = vmatpush2.msra.mxu0 0.0
    %6276 = vmatprep.subr.mxu0 0.0
    %6277 = vmatpush2.msra.mxu0 0.0
    %6278 = vmatprep.subr.mxu0 0.0
    %6279 = vmatpush2.msra.mxu0 0.0
    %6280 = vmatprep.subr.mxu0 0.0
    %6281 = vmatpush2.msra.mxu0 0.0
    %6282 = vmatprep.subr.mxu0 0.0
    %6283 = vmatpush2.msra.mxu0 0.0
    %6284 = vmatprep.mubr.f32.mxu0 0.0
    %6285 = vmatmul.mubr.f32.gmra.mxu0 %v6138
    %v6286 = vpop.f32.mrf.mxu0
    %v6287 = vadd.f32 0.0, %v6286
    %v6288 = vpop.f32.mrf.mxu0
    %6289 = vdwg.mxu0
    %v6291 = vrot.slane %v6287, 6
    %6292 = vrot.lane.b32.xlu0 %v6291, 32
    %v6293 = vpop.permute.xlu0 %6292
    %v6295 = vadd.f32 %v4571, %v6293
    %v6296 = vxor.u32 %v6295, 2147483648
    %v6297 = vmul.f32 %v6296, 1.442695
    %v6298 = vpow.pop %v6297
    %v6299 = vadd.f32 %v6298, 1.0
    %v6300 = vrcp.pop %v6299
    %v6301 = vmul.f32 1.0, %v6300
    %6302 = vmatprep.subr.mxu0 0.0
    %6303 = vmatpush1.msra.mxu0 0.0
    %6304 = vmatprep.subr.mxu0 0.0
    %6305 = vmatpush1.msra.mxu0 0.0
    %6306 = vmatprep.subr.mxu0 0.0
    %6307 = vmatpush1.msra.mxu0 0.0
    %6308 = vmatprep.subr.mxu0 0.0
    %6309 = vmatpush1.msra.mxu0 0.0
    %6310 = vmatprep.subr.mxu0 0.0
    %6311 = vmatpush1.msra.mxu0 0.0
    %6312 = vmatprep.subr.mxu0 0.0
    %6313 = vmatpush1.msra.mxu0 0.0
    %6314 = vmatprep.subr.mxu0 0.0
    %6315 = vmatpush1.msra.mxu0 0.0
    %6316 = vmatprep.subr.mxu0 0.0
    %6317 = vmatpush1.msra.mxu0 0.0
    %6318 = vmatprep.subr.mxu0 0.0
    %6319 = vmatpush1.msra.mxu0 0.0
    %6320 = vmatprep.subr.mxu0 0.0
    %6321 = vmatpush1.msra.mxu0 0.0
    %6322 = vmatprep.subr.mxu0 0.0
    %6323 = vmatpush1.msra.mxu0 0.0
    %6324 = vmatprep.subr.mxu0 0.0
    %6325 = vmatpush1.msra.mxu0 0.0
    %6326 = vmatprep.subr.mxu0 0.0
    %6327 = vmatpush1.msra.mxu0 %v4586
    %6328 = vmatprep.subr.mxu0 0.0
    %6329 = vmatpush1.msra.mxu0 %v4585
    %6330 = vmatprep.subr.mxu0 0.0
    %6331 = vmatpush1.msra.mxu0 %v4584
    %6332 = vmatprep.subr.mxu0 0.0
    %6333 = vmatpush1.msra.mxu0 %v4583
    %6334 = vmatprep.subr.mxu0 0.0
    %6335 = vmatpush2.msra.mxu0 0.0
    %6336 = vmatprep.subr.mxu0 0.0
    %6337 = vmatpush2.msra.mxu0 0.0
    %6338 = vmatprep.subr.mxu0 0.0
    %6339 = vmatpush2.msra.mxu0 0.0
    %6340 = vmatprep.subr.mxu0 0.0
    %6341 = vmatpush2.msra.mxu0 0.0
    %6342 = vmatprep.subr.mxu0 0.0
    %6343 = vmatpush2.msra.mxu0 0.0
    %6344 = vmatprep.subr.mxu0 0.0
    %6345 = vmatpush2.msra.mxu0 0.0
    %6346 = vmatprep.subr.mxu0 0.0
    %6347 = vmatpush2.msra.mxu0 0.0
    %6348 = vmatprep.subr.mxu0 0.0
    %6349 = vmatpush2.msra.mxu0 0.0
    %6350 = vmatprep.subr.mxu0 0.0
    %6351 = vmatpush2.msra.mxu0 0.0
    %6352 = vmatprep.subr.mxu0 0.0
    %6353 = vmatpush2.msra.mxu0 0.0
    %6354 = vmatprep.subr.mxu0 0.0
    %6355 = vmatpush2.msra.mxu0 0.0
    %6356 = vmatprep.subr.mxu0 0.0
    %6357 = vmatpush2.msra.mxu0 0.0
    %6358 = vmatprep.subr.mxu0 0.0
    %6359 = vmatpush2.msra.mxu0 0.0
    %6360 = vmatprep.subr.mxu0 0.0
    %6361 = vmatpush2.msra.mxu0 0.0
    %6362 = vmatprep.subr.mxu0 0.0
    %6363 = vmatpush2.msra.mxu0 0.0
    %6364 = vmatprep.subr.mxu0 0.0
    %6365 = vmatpush2.msra.mxu0 0.0
    %6366 = vmatprep.mubr.f32.mxu0 0.0
    %6367 = vmatmul.mubr.f32.gmra.mxu0 %v6138
    %v6368 = vpop.f32.mrf.mxu0
    %v6369 = vadd.f32 %v4767, %v6368
    %v6370 = vpop.f32.mrf.mxu0
    %6371 = vdwg.mxu0
    %v6373 = vrot.slane %v6369, 6
    %v6375 = vmul.f32 %v6219, %v6373
    %6377 = vrot.lane.b32.xlu0 %v6375, 64
    %v6378 = vpop.permute.xlu0 %6377
    %v6380 = vadd.f32 %v4571, %v6378
    %v6381 = vtanh.pop %v6380
    %v6382 = vsub.f32 1.0, %v6301
    %6384 = vrot.lane.b32.xlu0 %v6381, 96
    %v6385 = vpop.permute.xlu0 %6384
    %v6387 = vmul.f32 %v6382, %v6385
    %v6388 = vrot.slane %v6134, 6
    %v6390 = vmul.f32 %v6301, %v6388
    %v6391 = vadd.f32 %v6387, %v6390
    %v6393 = vrot.slane %v6391, 2
    %6394 = vrot.lane.b32.xlu0 %v6393, 96
    %v6395 = vpop.permute.xlu0 %6394
    %v6396 = vsel %vm118, %v6395, 0
    %6398 = vmatprep.subr.mxu0 0.0
    %6399 = vmatpush1.msra.mxu0 0.0
    %6400 = vmatprep.subr.mxu0 0.0
    %6401 = vmatpush1.msra.mxu0 0.0
    %6402 = vmatprep.subr.mxu0 0.0
    %6403 = vmatpush1.msra.mxu0 0.0
    %6404 = vmatprep.subr.mxu0 0.0
    %6405 = vmatpush1.msra.mxu0 0.0
    %6406 = vmatprep.subr.mxu0 0.0
    %6407 = vmatpush1.msra.mxu0 0.0
    %6408 = vmatprep.subr.mxu0 0.0
    %6409 = vmatpush1.msra.mxu0 0.0
    %6410 = vmatprep.subr.mxu0 0.0
    %6411 = vmatpush1.msra.mxu0 0.0
    %6412 = vmatprep.subr.mxu0 0.0
    %6413 = vmatpush1.msra.mxu0 0.0
    %6414 = vmatprep.subr.mxu0 0.0
    %6415 = vmatpush1.msra.mxu0 0.0
    %6416 = vmatprep.subr.mxu0 0.0
    %6417 = vmatpush1.msra.mxu0 0.0
    %6418 = vmatprep.subr.mxu0 0.0
    %6419 = vmatpush1.msra.mxu0 0.0
    %6420 = vmatprep.subr.mxu0 0.0
    %6421 = vmatpush1.msra.mxu0 0.0
    %6422 = vmatprep.subr.mxu0 0.0
    %6423 = vmatpush1.msra.mxu0 %v4576
    %6424 = vmatprep.subr.mxu0 0.0
    %6425 = vmatpush1.msra.mxu0 %v4575
    %6426 = vmatprep.subr.mxu0 0.0
    %6427 = vmatpush1.msra.mxu0 %v4574
    %6428 = vmatprep.subr.mxu0 0.0
    %6429 = vmatpush1.msra.mxu0 %v4573
    %6430 = vmatprep.subr.mxu0 0.0
    %6431 = vmatpush2.msra.mxu0 0.0
    %6432 = vmatprep.subr.mxu0 0.0
    %6433 = vmatpush2.msra.mxu0 0.0
    %6434 = vmatprep.subr.mxu0 0.0
    %6435 = vmatpush2.msra.mxu0 0.0
    %6436 = vmatprep.subr.mxu0 0.0
    %6437 = vmatpush2.msra.mxu0 0.0
    %6438 = vmatprep.subr.mxu0 0.0
    %6439 = vmatpush2.msra.mxu0 0.0
    %6440 = vmatprep.subr.mxu0 0.0
    %6441 = vmatpush2.msra.mxu0 0.0
    %6442 = vmatprep.subr.mxu0 0.0
    %6443 = vmatpush2.msra.mxu0 0.0
    %6444 = vmatprep.subr.mxu0 0.0
    %6445 = vmatpush2.msra.mxu0 0.0
    %6446 = vmatprep.subr.mxu0 0.0
    %6447 = vmatpush2.msra.mxu0 0.0
    %6448 = vmatprep.subr.mxu0 0.0
    %6449 = vmatpush2.msra.mxu0 0.0
    %6450 = vmatprep.subr.mxu0 0.0
    %6451 = vmatpush2.msra.mxu0 0.0
    %6452 = vmatprep.subr.mxu0 0.0
    %6453 = vmatpush2.msra.mxu0 0.0
    %6454 = vmatprep.subr.mxu0 0.0
    %6455 = vmatpush2.msra.mxu0 0.0
    %6456 = vmatprep.subr.mxu0 0.0
    %6457 = vmatpush2.msra.mxu0 0.0
    %6458 = vmatprep.subr.mxu0 0.0
    %6459 = vmatpush2.msra.mxu0 0.0
    %6460 = vmatprep.subr.mxu0 0.0
    %6461 = vmatpush2.msra.mxu0 0.0
    %6462 = vmatprep.mubr.f32.mxu0 0.0
    %6463 = vmatmul.mubr.f32.gmra.mxu0 %v6396
    %v6464 = vpop.f32.mrf.mxu0
    %v6465 = vadd.f32 0.0, %v6464
    %v6466 = vpop.f32.mrf.mxu0
    %6467 = vdwg.mxu0
    %v6469 = vrot.slane %v6465, 4
    %v6471 = vadd.f32 %v4571, %v6469
    %v6472 = vxor.u32 %v6471, 2147483648
    %v6473 = vmul.f32 %v6472, 1.442695
    %v6474 = vpow.pop %v6473
    %v6475 = vadd.f32 %v6474, 1.0
    %v6476 = vrcp.pop %v6475
    %v6477 = vmul.f32 1.0, %v6476
    %6478 = vmatprep.subr.mxu0 0.0
    %6479 = vmatpush1.msra.mxu0 0.0
    %6480 = vmatprep.subr.mxu0 0.0
    %6481 = vmatpush1.msra.mxu0 0.0
    %6482 = vmatprep.subr.mxu0 0.0
    %6483 = vmatpush1.msra.mxu0 0.0
    %6484 = vmatprep.subr.mxu0 0.0
    %6485 = vmatpush1.msra.mxu0 0.0
    %6486 = vmatprep.subr.mxu0 0.0
    %6487 = vmatpush1.msra.mxu0 0.0
    %6488 = vmatprep.subr.mxu0 0.0
    %6489 = vmatpush1.msra.mxu0 0.0
    %6490 = vmatprep.subr.mxu0 0.0
    %6491 = vmatpush1.msra.mxu0 0.0
    %6492 = vmatprep.subr.mxu0 0.0
    %6493 = vmatpush1.msra.mxu0 0.0
    %6494 = vmatprep.subr.mxu0 0.0
    %6495 = vmatpush1.msra.mxu0 0.0
    %6496 = vmatprep.subr.mxu0 0.0
    %6497 = vmatpush1.msra.mxu0 0.0
    %6498 = vmatprep.subr.mxu0 0.0
    %6499 = vmatpush1.msra.mxu0 0.0
    %6500 = vmatprep.subr.mxu0 0.0
    %6501 = vmatpush1.msra.mxu0 0.0
    %6502 = vmatprep.subr.mxu0 0.0
    %6503 = vmatpush1.msra.mxu0 %v4581
    %6504 = vmatprep.subr.mxu0 0.0
    %6505 = vmatpush1.msra.mxu0 %v4580
    %6506 = vmatprep.subr.mxu0 0.0
    %6507 = vmatpush1.msra.mxu0 %v4579
    %6508 = vmatprep.subr.mxu0 0.0
    %6509 = vmatpush1.msra.mxu0 %v4578
    %6510 = vmatprep.subr.mxu0 0.0
    %6511 = vmatpush2.msra.mxu0 0.0
    %6512 = vmatprep.subr.mxu0 0.0
    %6513 = vmatpush2.msra.mxu0 0.0
    %6514 = vmatprep.subr.mxu0 0.0
    %6515 = vmatpush2.msra.mxu0 0.0
    %6516 = vmatprep.subr.mxu0 0.0
    %6517 = vmatpush2.msra.mxu0 0.0
    %6518 = vmatprep.subr.mxu0 0.0
    %6519 = vmatpush2.msra.mxu0 0.0
    %6520 = vmatprep.subr.mxu0 0.0
    %6521 = vmatpush2.msra.mxu0 0.0
    %6522 = vmatprep.subr.mxu0 0.0
    %6523 = vmatpush2.msra.mxu0 0.0
    %6524 = vmatprep.subr.mxu0 0.0
    %6525 = vmatpush2.msra.mxu0 0.0
    %6526 = vmatprep.subr.mxu0 0.0
    %6527 = vmatpush2.msra.mxu0 0.0
    %6528 = vmatprep.subr.mxu0 0.0
    %6529 = vmatpush2.msra.mxu0 0.0
    %6530 = vmatprep.subr.mxu0 0.0
    %6531 = vmatpush2.msra.mxu0 0.0
    %6532 = vmatprep.subr.mxu0 0.0
    %6533 = vmatpush2.msra.mxu0 0.0
    %6534 = vmatprep.subr.mxu0 0.0
    %6535 = vmatpush2.msra.mxu0 0.0
    %6536 = vmatprep.subr.mxu0 0.0
    %6537 = vmatpush2.msra.mxu0 0.0
    %6538 = vmatprep.subr.mxu0 0.0
    %6539 = vmatpush2.msra.mxu0 0.0
    %6540 = vmatprep.subr.mxu0 0.0
    %6541 = vmatpush2.msra.mxu0 0.0
    %6542 = vmatprep.mubr.f32.mxu0 0.0
    %6543 = vmatmul.mubr.f32.gmra.mxu0 %v6396
    %v6544 = vpop.f32.mrf.mxu0
    %v6545 = vadd.f32 0.0, %v6544
    %v6546 = vpop.f32.mrf.mxu0
    %6547 = vdwg.mxu0
    %v6549 = vrot.slane %v6545, 4
    %6550 = vrot.lane.b32.xlu0 %v6549, 32
    %v6551 = vpop.permute.xlu0 %6550
    %v6553 = vadd.f32 %v4571, %v6551
    %v6554 = vxor.u32 %v6553, 2147483648
    %v6555 = vmul.f32 %v6554, 1.442695
    %v6556 = vpow.pop %v6555
    %v6557 = vadd.f32 %v6556, 1.0
    %v6558 = vrcp.pop %v6557
    %v6559 = vmul.f32 1.0, %v6558
    %6560 = vmatprep.subr.mxu0 0.0
    %6561 = vmatpush1.msra.mxu0 0.0
    %6562 = vmatprep.subr.mxu0 0.0
    %6563 = vmatpush1.msra.mxu0 0.0
    %6564 = vmatprep.subr.mxu0 0.0
    %6565 = vmatpush1.msra.mxu0 0.0
    %6566 = vmatprep.subr.mxu0 0.0
    %6567 = vmatpush1.msra.mxu0 0.0
    %6568 = vmatprep.subr.mxu0 0.0
    %6569 = vmatpush1.msra.mxu0 0.0
    %6570 = vmatprep.subr.mxu0 0.0
    %6571 = vmatpush1.msra.mxu0 0.0
    %6572 = vmatprep.subr.mxu0 0.0
    %6573 = vmatpush1.msra.mxu0 0.0
    %6574 = vmatprep.subr.mxu0 0.0
    %6575 = vmatpush1.msra.mxu0 0.0
    %6576 = vmatprep.subr.mxu0 0.0
    %6577 = vmatpush1.msra.mxu0 0.0
    %6578 = vmatprep.subr.mxu0 0.0
    %6579 = vmatpush1.msra.mxu0 0.0
    %6580 = vmatprep.subr.mxu0 0.0
    %6581 = vmatpush1.msra.mxu0 0.0
    %6582 = vmatprep.subr.mxu0 0.0
    %6583 = vmatpush1.msra.mxu0 0.0
    %6584 = vmatprep.subr.mxu0 0.0
    %6585 = vmatpush1.msra.mxu0 %v4586
    %6586 = vmatprep.subr.mxu0 0.0
    %6587 = vmatpush1.msra.mxu0 %v4585
    %6588 = vmatprep.subr.mxu0 0.0
    %6589 = vmatpush1.msra.mxu0 %v4584
    %6590 = vmatprep.subr.mxu0 0.0
    %6591 = vmatpush1.msra.mxu0 %v4583
    %6592 = vmatprep.subr.mxu0 0.0
    %6593 = vmatpush2.msra.mxu0 0.0
    %6594 = vmatprep.subr.mxu0 0.0
    %6595 = vmatpush2.msra.mxu0 0.0
    %6596 = vmatprep.subr.mxu0 0.0
    %6597 = vmatpush2.msra.mxu0 0.0
    %6598 = vmatprep.subr.mxu0 0.0
    %6599 = vmatpush2.msra.mxu0 0.0
    %6600 = vmatprep.subr.mxu0 0.0
    %6601 = vmatpush2.msra.mxu0 0.0
    %6602 = vmatprep.subr.mxu0 0.0
    %6603 = vmatpush2.msra.mxu0 0.0
    %6604 = vmatprep.subr.mxu0 0.0
    %6605 = vmatpush2.msra.mxu0 0.0
    %6606 = vmatprep.subr.mxu0 0.0
    %6607 = vmatpush2.msra.mxu0 0.0
    %6608 = vmatprep.subr.mxu0 0.0
    %6609 = vmatpush2.msra.mxu0 0.0
    %6610 = vmatprep.subr.mxu0 0.0
    %6611 = vmatpush2.msra.mxu0 0.0
    %6612 = vmatprep.subr.mxu0 0.0
    %6613 = vmatpush2.msra.mxu0 0.0
    %6614 = vmatprep.subr.mxu0 0.0
    %6615 = vmatpush2.msra.mxu0 0.0
    %6616 = vmatprep.subr.mxu0 0.0
    %6617 = vmatpush2.msra.mxu0 0.0
    %6618 = vmatprep.subr.mxu0 0.0
    %6619 = vmatpush2.msra.mxu0 0.0
    %6620 = vmatprep.subr.mxu0 0.0
    %6621 = vmatpush2.msra.mxu0 0.0
    %6622 = vmatprep.subr.mxu0 0.0
    %6623 = vmatpush2.msra.mxu0 0.0
    %6624 = vmatprep.mubr.f32.mxu0 0.0
    %6625 = vmatmul.mubr.f32.gmra.mxu0 %v6396
    %v6626 = vpop.f32.mrf.mxu0
    %v6627 = vadd.f32 %v4767, %v6626
    %v6628 = vpop.f32.mrf.mxu0
    %6629 = vdwg.mxu0
    %v6631 = vrot.slane %v6627, 4
    %v6633 = vmul.f32 %v6477, %v6631
    %6635 = vrot.lane.b32.xlu0 %v6633, 64
    %v6636 = vpop.permute.xlu0 %6635
    %v6638 = vadd.f32 %v4571, %v6636
    %v6639 = vtanh.pop %v6638
    %v6640 = vsub.f32 1.0, %v6559
    %6642 = vrot.lane.b32.xlu0 %v6639, 96
    %v6643 = vpop.permute.xlu0 %6642
    %v6645 = vmul.f32 %v6640, %v6643
    %v6646 = vrot.slane %v6391, 6
    %v6648 = vmul.f32 %v6559, %v6646
    %v6649 = vadd.f32 %v6645, %v6648
    %v6651 = vrot.slane %v6649, 4
    %6652 = vrot.lane.b32.xlu0 %v6651, 96
    %v6653 = vpop.permute.xlu0 %6652
    %v6654 = vsel %vm118, %v6653, 0
    %6656 = vmatprep.subr.mxu0 0.0
    %6657 = vmatpush1.msra.mxu0 0.0
    %6658 = vmatprep.subr.mxu0 0.0
    %6659 = vmatpush1.msra.mxu0 0.0
    %6660 = vmatprep.subr.mxu0 0.0
    %6661 = vmatpush1.msra.mxu0 0.0
    %6662 = vmatprep.subr.mxu0 0.0
    %6663 = vmatpush1.msra.mxu0 0.0
    %6664 = vmatprep.subr.mxu0 0.0
    %6665 = vmatpush1.msra.mxu0 0.0
    %6666 = vmatprep.subr.mxu0 0.0
    %6667 = vmatpush1.msra.mxu0 0.0
    %6668 = vmatprep.subr.mxu0 0.0
    %6669 = vmatpush1.msra.mxu0 0.0
    %6670 = vmatprep.subr.mxu0 0.0
    %6671 = vmatpush1.msra.mxu0 0.0
    %6672 = vmatprep.subr.mxu0 0.0
    %6673 = vmatpush1.msra.mxu0 0.0
    %6674 = vmatprep.subr.mxu0 0.0
    %6675 = vmatpush1.msra.mxu0 0.0
    %6676 = vmatprep.subr.mxu0 0.0
    %6677 = vmatpush1.msra.mxu0 0.0
    %6678 = vmatprep.subr.mxu0 0.0
    %6679 = vmatpush1.msra.mxu0 0.0
    %6680 = vmatprep.subr.mxu0 0.0
    %6681 = vmatpush1.msra.mxu0 %v4576
    %6682 = vmatprep.subr.mxu0 0.0
    %6683 = vmatpush1.msra.mxu0 %v4575
    %6684 = vmatprep.subr.mxu0 0.0
    %6685 = vmatpush1.msra.mxu0 %v4574
    %6686 = vmatprep.subr.mxu0 0.0
    %6687 = vmatpush1.msra.mxu0 %v4573
    %6688 = vmatprep.subr.mxu0 0.0
    %6689 = vmatpush2.msra.mxu0 0.0
    %6690 = vmatprep.subr.mxu0 0.0
    %6691 = vmatpush2.msra.mxu0 0.0
    %6692 = vmatprep.subr.mxu0 0.0
    %6693 = vmatpush2.msra.mxu0 0.0
    %6694 = vmatprep.subr.mxu0 0.0
    %6695 = vmatpush2.msra.mxu0 0.0
    %6696 = vmatprep.subr.mxu0 0.0
    %6697 = vmatpush2.msra.mxu0 0.0
    %6698 = vmatprep.subr.mxu0 0.0
    %6699 = vmatpush2.msra.mxu0 0.0
    %6700 = vmatprep.subr.mxu0 0.0
    %6701 = vmatpush2.msra.mxu0 0.0
    %6702 = vmatprep.subr.mxu0 0.0
    %6703 = vmatpush2.msra.mxu0 0.0
    %6704 = vmatprep.subr.mxu0 0.0
    %6705 = vmatpush2.msra.mxu0 0.0
    %6706 = vmatprep.subr.mxu0 0.0
    %6707 = vmatpush2.msra.mxu0 0.0
    %6708 = vmatprep.subr.mxu0 0.0
    %6709 = vmatpush2.msra.mxu0 0.0
    %6710 = vmatprep.subr.mxu0 0.0
    %6711 = vmatpush2.msra.mxu0 0.0
    %6712 = vmatprep.subr.mxu0 0.0
    %6713 = vmatpush2.msra.mxu0 0.0
    %6714 = vmatprep.subr.mxu0 0.0
    %6715 = vmatpush2.msra.mxu0 0.0
    %6716 = vmatprep.subr.mxu0 0.0
    %6717 = vmatpush2.msra.mxu0 0.0
    %6718 = vmatprep.subr.mxu0 0.0
    %6719 = vmatpush2.msra.mxu0 0.0
    %6720 = vmatprep.mubr.f32.mxu0 0.0
    %6721 = vmatmul.mubr.f32.gmra.mxu0 %v6654
    %v6722 = vpop.f32.mrf.mxu0
    %v6723 = vadd.f32 0.0, %v6722
    %v6724 = vpop.f32.mrf.mxu0
    %6725 = vdwg.mxu0
    %v6727 = vrot.slane %v6723, 2
    %v6729 = vadd.f32 %v4571, %v6727
    %v6730 = vxor.u32 %v6729, 2147483648
    %v6731 = vmul.f32 %v6730, 1.442695
    %v6732 = vpow.pop %v6731
    %v6733 = vadd.f32 %v6732, 1.0
    %v6734 = vrcp.pop %v6733
    %v6735 = vmul.f32 1.0, %v6734
    %6736 = vmatprep.subr.mxu0 0.0
    %6737 = vmatpush1.msra.mxu0 0.0
    %6738 = vmatprep.subr.mxu0 0.0
    %6739 = vmatpush1.msra.mxu0 0.0
    %6740 = vmatprep.subr.mxu0 0.0
    %6741 = vmatpush1.msra.mxu0 0.0
    %6742 = vmatprep.subr.mxu0 0.0
    %6743 = vmatpush1.msra.mxu0 0.0
    %6744 = vmatprep.subr.mxu0 0.0
    %6745 = vmatpush1.msra.mxu0 0.0
    %6746 = vmatprep.subr.mxu0 0.0
    %6747 = vmatpush1.msra.mxu0 0.0
    %6748 = vmatprep.subr.mxu0 0.0
    %6749 = vmatpush1.msra.mxu0 0.0
    %6750 = vmatprep.subr.mxu0 0.0
    %6751 = vmatpush1.msra.mxu0 0.0
    %6752 = vmatprep.subr.mxu0 0.0
    %6753 = vmatpush1.msra.mxu0 0.0
    %6754 = vmatprep.subr.mxu0 0.0
    %6755 = vmatpush1.msra.mxu0 0.0
    %6756 = vmatprep.subr.mxu0 0.0
    %6757 = vmatpush1.msra.mxu0 0.0
    %6758 = vmatprep.subr.mxu0 0.0
    %6759 = vmatpush1.msra.mxu0 0.0
    %6760 = vmatprep.subr.mxu0 0.0
    %6761 = vmatpush1.msra.mxu0 %v4581
    %6762 = vmatprep.subr.mxu0 0.0
    %6763 = vmatpush1.msra.mxu0 %v4580
    %6764 = vmatprep.subr.mxu0 0.0
    %6765 = vmatpush1.msra.mxu0 %v4579
    %6766 = vmatprep.subr.mxu0 0.0
    %6767 = vmatpush1.msra.mxu0 %v4578
    %6768 = vmatprep.subr.mxu0 0.0
    %6769 = vmatpush2.msra.mxu0 0.0
    %6770 = vmatprep.subr.mxu0 0.0
    %6771 = vmatpush2.msra.mxu0 0.0
    %6772 = vmatprep.subr.mxu0 0.0
    %6773 = vmatpush2.msra.mxu0 0.0
    %6774 = vmatprep.subr.mxu0 0.0
    %6775 = vmatpush2.msra.mxu0 0.0
    %6776 = vmatprep.subr.mxu0 0.0
    %6777 = vmatpush2.msra.mxu0 0.0
    %6778 = vmatprep.subr.mxu0 0.0
    %6779 = vmatpush2.msra.mxu0 0.0
    %6780 = vmatprep.subr.mxu0 0.0
    %6781 = vmatpush2.msra.mxu0 0.0
    %6782 = vmatprep.subr.mxu0 0.0
    %6783 = vmatpush2.msra.mxu0 0.0
    %6784 = vmatprep.subr.mxu0 0.0
    %6785 = vmatpush2.msra.mxu0 0.0
    %6786 = vmatprep.subr.mxu0 0.0
    %6787 = vmatpush2.msra.mxu0 0.0
    %6788 = vmatprep.subr.mxu0 0.0
    %6789 = vmatpush2.msra.mxu0 0.0
    %6790 = vmatprep.subr.mxu0 0.0
    %6791 = vmatpush2.msra.mxu0 0.0
    %6792 = vmatprep.subr.mxu0 0.0
    %6793 = vmatpush2.msra.mxu0 0.0
    %6794 = vmatprep.subr.mxu0 0.0
    %6795 = vmatpush2.msra.mxu0 0.0
    %6796 = vmatprep.subr.mxu0 0.0
    %6797 = vmatpush2.msra.mxu0 0.0
    %6798 = vmatprep.subr.mxu0 0.0
    %6799 = vmatpush2.msra.mxu0 0.0
    %6800 = vmatprep.mubr.f32.mxu0 0.0
    %6801 = vmatmul.mubr.f32.gmra.mxu0 %v6654
    %v6802 = vpop.f32.mrf.mxu0
    %v6803 = vadd.f32 0.0, %v6802
    %v6804 = vpop.f32.mrf.mxu0
    %6805 = vdwg.mxu0
    %v6807 = vrot.slane %v6803, 2
    %6808 = vrot.lane.b32.xlu0 %v6807, 32
    %v6809 = vpop.permute.xlu0 %6808
    %v6811 = vadd.f32 %v4571, %v6809
    %v6812 = vxor.u32 %v6811, 2147483648
    %v6813 = vmul.f32 %v6812, 1.442695
    %v6814 = vpow.pop %v6813
    %v6815 = vadd.f32 %v6814, 1.0
    %v6816 = vrcp.pop %v6815
    %v6817 = vmul.f32 1.0, %v6816
    %6818 = vmatprep.subr.mxu0 0.0
    %6819 = vmatpush1.msra.mxu0 0.0
    %6820 = vmatprep.subr.mxu0 0.0
    %6821 = vmatpush1.msra.mxu0 0.0
    %6822 = vmatprep.subr.mxu0 0.0
    %6823 = vmatpush1.msra.mxu0 0.0
    %6824 = vmatprep.subr.mxu0 0.0
    %6825 = vmatpush1.msra.mxu0 0.0
    %6826 = vmatprep.subr.mxu0 0.0
    %6827 = vmatpush1.msra.mxu0 0.0
    %6828 = vmatprep.subr.mxu0 0.0
    %6829 = vmatpush1.msra.mxu0 0.0
    %6830 = vmatprep.subr.mxu0 0.0
    %6831 = vmatpush1.msra.mxu0 0.0
    %6832 = vmatprep.subr.mxu0 0.0
    %6833 = vmatpush1.msra.mxu0 0.0
    %6834 = vmatprep.subr.mxu0 0.0
    %6835 = vmatpush1.msra.mxu0 0.0
    %6836 = vmatprep.subr.mxu0 0.0
    %6837 = vmatpush1.msra.mxu0 0.0
    %6838 = vmatprep.subr.mxu0 0.0
    %6839 = vmatpush1.msra.mxu0 0.0
    %6840 = vmatprep.subr.mxu0 0.0
    %6841 = vmatpush1.msra.mxu0 0.0
    %6842 = vmatprep.subr.mxu0 0.0
    %6843 = vmatpush1.msra.mxu0 %v4586
    %6844 = vmatprep.subr.mxu0 0.0
    %6845 = vmatpush1.msra.mxu0 %v4585
    %6846 = vmatprep.subr.mxu0 0.0
    %6847 = vmatpush1.msra.mxu0 %v4584
    %6848 = vmatprep.subr.mxu0 0.0
    %6849 = vmatpush1.msra.mxu0 %v4583
    %6850 = vmatprep.subr.mxu0 0.0
    %6851 = vmatpush2.msra.mxu0 0.0
    %6852 = vmatprep.subr.mxu0 0.0
    %6853 = vmatpush2.msra.mxu0 0.0
    %6854 = vmatprep.subr.mxu0 0.0
    %6855 = vmatpush2.msra.mxu0 0.0
    %6856 = vmatprep.subr.mxu0 0.0
    %6857 = vmatpush2.msra.mxu0 0.0
    %6858 = vmatprep.subr.mxu0 0.0
    %6859 = vmatpush2.msra.mxu0 0.0
    %6860 = vmatprep.subr.mxu0 0.0
    %6861 = vmatpush2.msra.mxu0 0.0
    %6862 = vmatprep.subr.mxu0 0.0
    %6863 = vmatpush2.msra.mxu0 0.0
    %6864 = vmatprep.subr.mxu0 0.0
    %6865 = vmatpush2.msra.mxu0 0.0
    %6866 = vmatprep.subr.mxu0 0.0
    %6867 = vmatpush2.msra.mxu0 0.0
    %6868 = vmatprep.subr.mxu0 0.0
    %6869 = vmatpush2.msra.mxu0 0.0
    %6870 = vmatprep.subr.mxu0 0.0
    %6871 = vmatpush2.msra.mxu0 0.0
    %6872 = vmatprep.subr.mxu0 0.0
    %6873 = vmatpush2.msra.mxu0 0.0
    %6874 = vmatprep.subr.mxu0 0.0
    %6875 = vmatpush2.msra.mxu0 0.0
    %6876 = vmatprep.subr.mxu0 0.0
    %6877 = vmatpush2.msra.mxu0 0.0
    %6878 = vmatprep.subr.mxu0 0.0
    %6879 = vmatpush2.msra.mxu0 0.0
    %6880 = vmatprep.subr.mxu0 0.0
    %6881 = vmatpush2.msra.mxu0 0.0
    %6882 = vmatprep.mubr.f32.mxu0 0.0
    %6883 = vmatmul.mubr.f32.gmra.mxu0 %v6654
    %v6884 = vpop.f32.mrf.mxu0
    %v6885 = vadd.f32 %v4767, %v6884
    %v6886 = vpop.f32.mrf.mxu0
    %6887 = vdwg.mxu0
    %v6889 = vrot.slane %v6885, 2
    %v6891 = vmul.f32 %v6735, %v6889
    %6893 = vrot.lane.b32.xlu0 %v6891, 64
    %v6894 = vpop.permute.xlu0 %6893
    %v6896 = vadd.f32 %v4571, %v6894
    %v6897 = vtanh.pop %v6896
    %v6898 = vsub.f32 1.0, %v6817
    %6900 = vrot.lane.b32.xlu0 %v6897, 96
    %v6901 = vpop.permute.xlu0 %6900
    %v6903 = vmul.f32 %v6898, %v6901
    %v6904 = vrot.slane %v6649, 6
    %v6906 = vmul.f32 %v6817, %v6904
    %v6907 = vadd.f32 %v6903, %v6906
    %v6908 = vld [vmem:[%s9] sm:$0x1]
    %v6909 = vld [vmem:[#allocation9] sm:$0x1]
    %v6910 = vld [vmem:[%s11] sm:$0xff]
    %v6911 = vld [vmem:[%s11 + $0x8] sm:$0xff]
    %v6912 = vld [vmem:[%s11 + $0x10] sm:$0xff]
    %v6913 = vld [vmem:[%s11 + $0x18] sm:$0xff]
    %v6914 = vld [vmem:[%s11 + $0x20] sm:$0xff]
    %v6915 = vld [vmem:[%s11 + $0x28] sm:$0xff]
    %v6916 = vld [vmem:[%s11 + $0x30] sm:$0xff]
    %v6917 = vld [vmem:[%s11 + $0x38] sm:$0xff]
    %v6918 = vld [vmem:[#allocation10] sm:$0x1]
    %v6920 = vrot.slane %v6907, 6
    %vm6922 = vcmask 517376
    %v6923 = vsel %vm6922, %v6920, 0.0
    %v6924 = vrot.slane %v6923, 4
    %v6925 = vadd.f32 %v6923, %v6924
    %v6926 = vrot.slane %v6925, 2
    %v6927 = vadd.f32 %v6925, %v6926
    %v6928 = vrot.slane %v6927, 1
    %v6929 = vadd.f32 %v6927, %v6928
    %v6930 = vrcp.pop 2.0
    %v6931 = vmul.f32 %v6929, %v6930
    %v6932 = vsub.f32 %v6907, %v6931
    %v6933 = vmul.f32 %v6932, %v6932
    %v6935 = vrot.slane %v6933, 6
    %v6937 = vsel %vm6922, %v6935, 0.0
    %v6938 = vrot.slane %v6937, 4
    %v6939 = vadd.f32 %v6937, %v6938
    %v6940 = vrot.slane %v6939, 2
    %v6941 = vadd.f32 %v6939, %v6940
    %v6942 = vrot.slane %v6941, 1
    %v6943 = vadd.f32 %v6941, %v6942
    %v6944 = vmul.f32 %v6943, %v6930
    %v6945 = vadd.f32 %v6944, 1e-05
    %v6946 = vrsqrt.pop %v6945
    %v6947 = vmul.f32 %v6932, %v6946
    %v6949 = vlaneseq
    %v6950 = vshrl.u32 %v6949, 7
    %v6951 = vsub.s32 0, %v6950
    %v6952 = vrot.slane %v6908, %v6951
    %6953 = vrot.lane.b32.xlu0 %v6952, 32
    %v6954 = vpop.permute.xlu0 %6953
    %v6956 = vmul.f32 %v6947, %v6954
    %v6958 = vlaneseq
    %v6959 = vshrl.u32 %v6958, 7
    %v6960 = vsub.s32 0, %v6959
    %v6961 = vrot.slane %v6909, %v6960
    %6962 = vrot.lane.b32.xlu0 %v6961, 32
    %v6963 = vpop.permute.xlu0 %6962
    %v6965 = vadd.f32 %v6956, %v6963
    %v6966 = vmax.f32 %v6965, 0.0
    %v6968 = vrot.slane %v5111, 6
    %v6970 = vsel %vm490, %v6968, 0.0
    %v6971 = vrot.slane %v6970, 4
    %v6972 = vadd.f32 %v6970, %v6971
    %v6973 = vrot.slane %v6972, 2
    %v6974 = vadd.f32 %v6972, %v6973
    %v6975 = vrot.slane %v6974, 1
    %v6976 = vadd.f32 %v6974, %v6975
    %v6977 = vmul.f32 %v6976, %v6930
    %v6978 = vsub.f32 %v5111, %v6977
    %v6979 = vmul.f32 %v6978, %v6978
    %v6981 = vrot.slane %v6979, 6
    %v6983 = vsel %vm490, %v6981, 0.0
    %v6984 = vrot.slane %v6983, 4
    %v6985 = vadd.f32 %v6983, %v6984
    %v6986 = vrot.slane %v6985, 2
    %v6987 = vadd.f32 %v6985, %v6986
    %v6988 = vrot.slane %v6987, 1
    %v6989 = vadd.f32 %v6987, %v6988
    %v6990 = vmul.f32 %v6989, %v6930
    %v6991 = vadd.f32 %v6990, 1e-05
    %v6992 = vrsqrt.pop %v6991
    %v6993 = vmul.f32 %v6978, %v6992
    %6994 = vrot.lane.b32.xlu0 %v6952, 96
    %v6995 = vpop.permute.xlu0 %6994
    %v6997 = vmul.f32 %v6993, %v6995
    %6998 = vrot.lane.b32.xlu0 %v6961, 96
    %v6999 = vpop.permute.xlu0 %6998
    %v7001 = vadd.f32 %v6997, %v6999
    %v7002 = vmax.f32 %v7001, 0.0
    %v7004 = vrot.slane %v7002, 6
    %v7005 = vsel %vm118, %v7004, 0
    %7007 = vmatprep.subr.mxu0 0.0
    %7008 = vmatpush1.msra.mxu0 0.0
    %7009 = vmatprep.subr.mxu0 0.0
    %7010 = vmatpush1.msra.mxu0 0.0
    %7011 = vmatprep.subr.mxu0 0.0
    %7012 = vmatpush1.msra.mxu0 0.0
    %7013 = vmatprep.subr.mxu0 0.0
    %7014 = vmatpush1.msra.mxu0 0.0
    %7015 = vmatprep.subr.mxu0 0.0
    %7016 = vmatpush1.msra.mxu0 0.0
    %7017 = vmatprep.subr.mxu0 0.0
    %7018 = vmatpush1.msra.mxu0 0.0
    %7019 = vmatprep.subr.mxu0 0.0
    %7020 = vmatpush1.msra.mxu0 0.0
    %7021 = vmatprep.subr.mxu0 0.0
    %7022 = vmatpush1.msra.mxu0 0.0
    %7023 = vmatprep.subr.mxu0 0.0
    %7024 = vmatpush1.msra.mxu0 0.0
    %7025 = vmatprep.subr.mxu0 0.0
    %7026 = vmatpush1.msra.mxu0 0.0
    %7027 = vmatprep.subr.mxu0 0.0
    %7028 = vmatpush1.msra.mxu0 0.0
    %7029 = vmatprep.subr.mxu0 0.0
    %7030 = vmatpush1.msra.mxu0 0.0
    %7031 = vmatprep.subr.mxu0 0.0
    %7032 = vmatpush1.msra.mxu0 %v6917
    %7033 = vmatprep.subr.mxu0 0.0
    %7034 = vmatpush1.msra.mxu0 %v6916
    %7035 = vmatprep.subr.mxu0 0.0
    %7036 = vmatpush1.msra.mxu0 %v6915
    %7037 = vmatprep.subr.mxu0 0.0
    %7038 = vmatpush1.msra.mxu0 %v6914
    %7039 = vmatprep.subr.mxu0 0.0
    %7040 = vmatpush2.msra.mxu0 0.0
    %7041 = vmatprep.subr.mxu0 0.0
    %7042 = vmatpush2.msra.mxu0 0.0
    %7043 = vmatprep.subr.mxu0 0.0
    %7044 = vmatpush2.msra.mxu0 0.0
    %7045 = vmatprep.subr.mxu0 0.0
    %7046 = vmatpush2.msra.mxu0 0.0
    %7047 = vmatprep.subr.mxu0 0.0
    %7048 = vmatpush2.msra.mxu0 0.0
    %7049 = vmatprep.subr.mxu0 0.0
    %7050 = vmatpush2.msra.mxu0 0.0
    %7051 = vmatprep.subr.mxu0 0.0
    %7052 = vmatpush2.msra.mxu0 0.0
    %7053 = vmatprep.subr.mxu0 0.0
    %7054 = vmatpush2.msra.mxu0 0.0
    %7055 = vmatprep.subr.mxu0 0.0
    %7056 = vmatpush2.msra.mxu0 0.0
    %7057 = vmatprep.subr.mxu0 0.0
    %7058 = vmatpush2.msra.mxu0 0.0
    %7059 = vmatprep.subr.mxu0 0.0
    %7060 = vmatpush2.msra.mxu0 0.0
    %7061 = vmatprep.subr.mxu0 0.0
    %7062 = vmatpush2.msra.mxu0 0.0
    %7063 = vmatprep.subr.mxu0 0.0
    %7064 = vmatpush2.msra.mxu0 0.0
    %7065 = vmatprep.subr.mxu0 0.0
    %7066 = vmatpush2.msra.mxu0 0.0
    %7067 = vmatprep.subr.mxu0 0.0
    %7068 = vmatpush2.msra.mxu0 0.0
    %7069 = vmatprep.subr.mxu0 0.0
    %7070 = vmatpush2.msra.mxu0 0.0
    %7071 = vmatprep.mubr.f32.mxu0 0.0
    %7072 = vmatmul.mubr.f32.gmra.mxu0 %v7005
    %v7073 = vpop.f32.mrf.mxu0
    %v7074 = vadd.f32 0.0, %v7073
    %v7075 = vpop.f32.mrf.mxu0
    %7076 = vdwg.mxu0
    %v7078 = vrot.slane %v6966, 6
    %7079 = vrot.lane.b32.xlu0 %v7078, 96
    %v7080 = vpop.permute.xlu0 %7079
    %v7081 = vsel %vm118, %v7080, 0
    %7083 = vmatprep.subr.mxu0 0.0
    %7084 = vmatpush1.msra.mxu0 0.0
    %7085 = vmatprep.subr.mxu0 0.0
    %7086 = vmatpush1.msra.mxu0 0.0
    %7087 = vmatprep.subr.mxu0 0.0
    %7088 = vmatpush1.msra.mxu0 0.0
    %7089 = vmatprep.subr.mxu0 0.0
    %7090 = vmatpush1.msra.mxu0 0.0
    %7091 = vmatprep.subr.mxu0 0.0
    %7092 = vmatpush1.msra.mxu0 0.0
    %7093 = vmatprep.subr.mxu0 0.0
    %7094 = vmatpush1.msra.mxu0 0.0
    %7095 = vmatprep.subr.mxu0 0.0
    %7096 = vmatpush1.msra.mxu0 0.0
    %7097 = vmatprep.subr.mxu0 0.0
    %7098 = vmatpush1.msra.mxu0 0.0
    %7099 = vmatprep.subr.mxu0 0.0
    %7100 = vmatpush1.msra.mxu0 0.0
    %7101 = vmatprep.subr.mxu0 0.0
    %7102 = vmatpush1.msra.mxu0 0.0
    %7103 = vmatprep.subr.mxu0 0.0
    %7104 = vmatpush1.msra.mxu0 0.0
    %7105 = vmatprep.subr.mxu0 0.0
    %7106 = vmatpush1.msra.mxu0 0.0
    %7107 = vmatprep.subr.mxu0 0.0
    %7108 = vmatpush1.msra.mxu0 %v6913
    %7109 = vmatprep.subr.mxu0 0.0
    %7110 = vmatpush1.msra.mxu0 %v6912
    %7111 = vmatprep.subr.mxu0 0.0
    %7112 = vmatpush1.msra.mxu0 %v6911
    %7113 = vmatprep.subr.mxu0 0.0
    %7114 = vmatpush1.msra.mxu0 %v6910
    %7115 = vmatprep.subr.mxu0 0.0
    %7116 = vmatpush2.msra.mxu0 0.0
    %7117 = vmatprep.subr.mxu0 0.0
    %7118 = vmatpush2.msra.mxu0 0.0
    %7119 = vmatprep.subr.mxu0 0.0
    %7120 = vmatpush2.msra.mxu0 0.0
    %7121 = vmatprep.subr.mxu0 0.0
    %7122 = vmatpush2.msra.mxu0 0.0
    %7123 = vmatprep.subr.mxu0 0.0
    %7124 = vmatpush2.msra.mxu0 0.0
    %7125 = vmatprep.subr.mxu0 0.0
    %7126 = vmatpush2.msra.mxu0 0.0
    %7127 = vmatprep.subr.mxu0 0.0
    %7128 = vmatpush2.msra.mxu0 0.0
    %7129 = vmatprep.subr.mxu0 0.0
    %7130 = vmatpush2.msra.mxu0 0.0
    %7131 = vmatprep.subr.mxu0 0.0
    %7132 = vmatpush2.msra.mxu0 0.0
    %7133 = vmatprep.subr.mxu0 0.0
    %7134 = vmatpush2.msra.mxu0 0.0
    %7135 = vmatprep.subr.mxu0 0.0
    %7136 = vmatpush2.msra.mxu0 0.0
    %7137 = vmatprep.subr.mxu0 0.0
    %7138 = vmatpush2.msra.mxu0 0.0
    %7139 = vmatprep.subr.mxu0 0.0
    %7140 = vmatpush2.msra.mxu0 0.0
    %7141 = vmatprep.subr.mxu0 0.0
    %7142 = vmatpush2.msra.mxu0 0.0
    %7143 = vmatprep.subr.mxu0 0.0
    %7144 = vmatpush2.msra.mxu0 0.0
    %7145 = vmatprep.subr.mxu0 0.0
    %7146 = vmatpush2.msra.mxu0 0.0
    %7147 = vmatprep.mubr.f32.mxu0 0.0
    %7148 = vmatmul.mubr.f32.gmra.mxu0 %v7081
    %v7149 = vpop.f32.mrf.mxu0
    %v7150 = vadd.f32 %v7074, %v7149
    %v7151 = vpop.f32.mrf.mxu0
    %7152 = vdwg.mxu0
    %v7154 = vlaneseq
    %v7155 = vshrl.u32 %v7154, 7
    %v7156 = vsub.s32 0, %v7155
    %v7157 = vrot.slane %v6918, %v7156
    %v7159 = vadd.f32 %v7150, %v7157
    %vm7160 = vcmask 41984
    %7161 = vst.msk [vmem:[#allocation12] sm:$0x3] %vm7160, %v7159
    // Predicated region
    $region70: #{seq_classifier_forward.1} parent=1 // pred_check
      _
    $region71: #{seq_classifier_forward.1} parent=1 // pred_check_branch
      %7163 = sbr.rel (0) target = $region73
    $region72: #{seq_classifier_forward.1} parent=1 // pred_region
      %s7165 = ssub.s32 32, 32
      %7166 = vsyncadd [#allocation6], %s7165
      %s7168 = sshll.u32 [#allocation12], 4
      %s7169 = int_to_ptr.vmem [resolvable:$true] %s7168
      %7171 = dma.vmem_to_hbm [thread:$0]  %s7169, 32, %s13, [#allocation6]
    $region73: #{seq_classifier_forward.1} parent=1 // pred_fallthru
      _
    // Predicated region
    $region74: #{seq_classifier_forward.1} parent=1 // pred_check
      _
    $region75: #{seq_classifier_forward.1} parent=1 // pred_check_branch
      %7173 = sbr.rel (0) target = $region77
    $region76: #{seq_classifier_forward.1} parent=1 // pred_region
      %7174 = dma.done [#allocation6], 32
    $region77: #{seq_classifier_forward.1} parent=1 // pred_fallthru
      _
    %7175 = vsyncpa [#allocation5], 1
    %7176 = vsyncpa [#allocation8], 1
    %7177 = vsyncpa [#allocation11], 1
    %7178 = vsyncpa [#allocation6], 1

</llo_original>
